<compile_context>
chip_gen: v6e
topology: v6e:2x2x1
jax: 0.10.0
libtpu: 0.0.40
codegen_flags: <defaults>
</compile_context>

<pallas_src>
import functools
import math

import jax
import jax.numpy as jnp
from jax.experimental import pallas as pl
from jax.experimental.pallas import tpu as pltpu


# --------------------------------------------------------------------------------------
# hardware-aware knobs
# --------------------------------------------------------------------------------------
@functools.lru_cache(maxsize=None)
def _vmem_limit_bytes():
    """~75% of physical VMEM (96 MiB on v5e/v6e, 48 MiB on v7x); safe fallback if unqueryable."""
    cap = None
    try:
        info = pltpu.get_tpu_info()
        for name in ("vmem_capacity_bytes", "vmem_bytes", "vmem_size_bytes"):
            val = getattr(info, name, None)
            if isinstance(val, int) and val > 0:
                cap = val
                break
    except Exception:
        cap = None
    if cap is None:
        cap = 64 * 1024 * 1024                    # conservative: v7x physical VMEM per core
    return int(min(cap * 3 // 4, 100 * 1024 * 1024))


@functools.lru_cache(maxsize=None)
def _weight_pipeline_mode():
    """pl.Buffered(1) for grid-invariant weight blocks (their index map never changes, so
    double-buffering them is pure VMEM waste).  Probed once on a tiny kernel so runtimes
    without pipeline_mode support silently fall back to the default."""
    if not hasattr(pl, "Buffered"):
        return None
    try:
        def probe(x_ref, o_ref):
            o_ref[...] = x_ref[...] + 1.0

        out = pl.pallas_call(
            probe,
            out_shape=jax.ShapeDtypeStruct((8, 128), jnp.float32),
            grid=(2,),
            in_specs=[pl.BlockSpec((8, 128), lambda i: (0, 0),
                                   pipeline_mode=pl.Buffered(1))],
            out_specs=pl.BlockSpec((8, 128), lambda i: (0, 0)),
        )(jnp.zeros((8, 128), jnp.float32))
        out = jax.block_until_ready(out)
        if not bool(jnp.all(out == 1.0)):
            return None
        return pl.Buffered(1)
    except Exception:
        return None


def _const_spec(shape):
    """Whole-array weight block: same block every grid step (single-buffered when supported)."""
    index_map = lambda *_: (0,) * len(shape)
    mode = _weight_pipeline_mode()
    if mode is None:
        return pl.BlockSpec(shape, index_map)
    return pl.BlockSpec(shape, index_map, pipeline_mode=mode)


# --------------------------------------------------------------------------------------
# tile-size helpers
# --------------------------------------------------------------------------------------
def _pick_row_tile(count, unit_rows, target_rows=512, max_rows=4096):
    """Units per grid step (each unit = `unit_rows` matmul rows) and the padded unit count.

    Targets ~512 MXU rows per step, caps the block at max_rows (no unbounded single block),
    keeps the (8, *) sublane constraint on the output block, and prefers >= 2 grid steps so
    v7x's second TensorCore gets work whenever that costs no padding waste.
    """
    unit_rows = max(1, unit_rows)
    tile = max(8, ((max(1, target_rows // unit_rows) + 7) // 8) * 8)
    cap = max(8, (max(1, max_rows // unit_rows) // 8) * 8)
    tile = min(tile, cap)
    if count > tile:
        steps = (count + tile - 1) // tile
        per_step = (count + steps - 1) // steps
        tile = ((per_step + 7) // 8) * 8           # balance the steps -> minimal padding
        return tile, steps * tile
    if count >= 16 and count % 16 == 0:
        return count // 2, count                   # free 2-way split for v7x megacore
    return count, count                            # one full-extent step


def _pick_batch_tile(batch, seq_len, target_rows=512, max_rows=2048):
    """Batch rows per transformer-block grid step: a divisor of `batch`, ~target_rows tokens,
    preferring >= 2 grid steps (v7x megacore) over an exact row-target match."""
    divisors = [t for t in range(1, batch + 1) if batch % t == 0]

    def score(t):
        rows = t * seq_len
        return (rows <= max_rows, (batch // t) >= 2, -abs(rows - target_rows))

    return max(divisors, key=score)


# --------------------------------------------------------------------------------------
# small math helpers (run inside kernels, f32)
# --------------------------------------------------------------------------------------
def _gelu(x):
    # tanh-approximate GELU: the tanh runs on the EUP slot instead of burning VALU ops.
    c = 0.7978845608028654  # sqrt(2/pi)
    return 0.5 * x * (1.0 + jnp.tanh(c * (x + 0.044715 * x * x * x)))


def _layernorm(x, g, b, eps=1e-5):
    mu = jnp.mean(x, axis=-1, keepdims=True)
    var = jnp.mean(jnp.square(x - mu), axis=-1, keepdims=True)
    return (x - mu) * jax.lax.rsqrt(var + eps) * g + b


# --------------------------------------------------------------------------------------
# Kernel 1: mini-PointNet group encoder (many point groups per grid step)
# --------------------------------------------------------------------------------------
def encoder_kernel(pts_ref, w1_ref, b1_ref, s1_ref, t1_ref, w2_ref, b2_ref,
                   w3g_ref, w3l_ref, b3_ref, s2_ref, t2_ref, w4_ref, b4_ref,
                   out_ref, *, tile_g, group_size):
    n = group_size                                                             # multiple of 8 keeps
    pts = pts_ref[...]                                                         # (R, 3) f32   reshapes free

    # conv1 (3 -> 128): K=3 contraction done as three VPU broadcast-FMAs (not the MXU)
    w1 = w1_ref[...]                                                           # (3, 128) f32
    f = (pts[:, 0:1] * w1[0:1, :] + pts[:, 1:2] * w1[1:2, :]
         + pts[:, 2:3] * w1[2:3, :] + b1_ref[...])
    f = jnp.maximum(f * s1_ref[...] + t1_ref[...], 0.0)                        # BN(eval) + ReLU

    # conv2 (128 -> 256), bf16 MXU, f32 accumulate
    f = jnp.dot(f.astype(jnp.bfloat16), w2_ref[...],
                preferred_element_type=jnp.float32) + b2_ref[...]              # (R, 256)

    # per-group global feature
    g = jnp.max(f.reshape(tile_g, n, 256), axis=1)                             # (G, 256)

    # concat([global, local]) @ W3  ==  global @ W3[:256] + local @ W3[256:]   (split matmul)
    hg = jnp.dot(g.astype(jnp.bfloat16), w3g_ref[...],
                 preferred_element_type=jnp.float32)                           # (G, 512)
    hl = jnp.dot(f.astype(jnp.bfloat16), w3l_ref[...],
                 preferred_element_type=jnp.float32)                           # (R, 512)
    h = hl.reshape(tile_g, n, 512) + hg[:, None, :] + b3_ref[...]
    h = jnp.maximum(h * s2_ref[...] + t2_ref[...], 0.0)                        # BN(eval) + ReLU

    # conv4 (512 -> D) + per-group max
    h = jnp.dot(h.reshape(tile_g * n, 512).astype(jnp.bfloat16), w4_ref[...],
                preferred_element_type=jnp.float32) + b4_ref[...]              # (R, D)
    out_ref[...] = jnp.max(h.reshape(tile_g, n, -1), axis=1).astype(out_ref.dtype)


def encoder_forward(pts, ep):
    # pts: (BG, n, 3) float32  ->  (BG, D) bfloat16 (tokens stay bf16 between kernels)
    BG, n, _ = pts.shape
    D = ep['w4'].shape[1]
    tile_g, padded = _pick_row_tile(BG, n)
    if padded != BG:
        pts = jnp.pad(pts, ((0, padded - BG), (0, 0), (0, 0)))
    pts_flat = pts.reshape(padded * n, 3)                                      # flat rows: no in-kernel
    w = [ep['w1'], ep['b1'], ep['s1'], ep['t1'], ep['w2'], ep['b2'],           # input reshape needed
         ep['w3g'], ep['w3l'], ep['b3'], ep['s2'], ep['t2'], ep['w4'], ep['b4']]
    kern = functools.partial(encoder_kernel, tile_g=tile_g, group_size=n)
    out = pl.pallas_call(
        kern,
        out_shape=jax.ShapeDtypeStruct((padded, D), jnp.bfloat16),
        grid=(padded // tile_g,),
        in_specs=[pl.BlockSpec((tile_g * n, 3), lambda i: (i, 0))]
                 + [_const_spec(a.shape) for a in w],
        out_specs=pl.BlockSpec((tile_g, D), lambda i: (i, 0)),
        compiler_params=pltpu.CompilerParams(
            dimension_semantics=("parallel",),
            vmem_limit_bytes=_vmem_limit_bytes()),
    )(pts_flat, *w)
    return out[:BG]


# --------------------------------------------------------------------------------------
# Kernel 2: positional embedding MLP  (Linear(3,128) -> GELU -> Linear(128,D)), row-tiled grid
# --------------------------------------------------------------------------------------
def posembed_kernel(c_ref, w1_ref, b1_ref, w2_ref, b2_ref, o_ref):
    c = c_ref[...]                                                             # (M, 3)
    w1 = w1_ref[...]                                                           # (3, 128)
    h = (c[:, 0:1] * w1[0:1, :] + c[:, 1:2] * w1[1:2, :]
         + c[:, 2:3] * w1[2:3, :] + b1_ref[...])                               # K=3 via VPU FMAs
    h = _gelu(h)
    o_ref[...] = (jnp.dot(h.astype(jnp.bfloat16), w2_ref[...],
                          preferred_element_type=jnp.float32)
                  + b2_ref[...]).astype(o_ref.dtype)


def posembed_forward(centers, pp):
    M = centers.shape[0]
    D = pp['w2'].shape[1]
    tile_m, padded = _pick_row_tile(M, 1)
    if padded != M:
        centers = jnp.pad(centers, ((0, padded - M), (0, 0)))
    w = [pp['w1'], pp['b1'], pp['w2'], pp['b2']]
    out = pl.pallas_call(
        posembed_kernel,
        out_shape=jax.ShapeDtypeStruct((padded, D), jnp.bfloat16),
        grid=(padded // tile_m,),
        in_specs=[pl.BlockSpec((tile_m, 3), lambda i: (i, 0))]
                 + [_const_spec(a.shape) for a in w],
        out_specs=pl.BlockSpec((tile_m, D), lambda i: (i, 0)),
        compiler_params=pltpu.CompilerParams(
            dimension_semantics=("parallel",),
            vmem_limit_bytes=_vmem_limit_bytes()),
    )(centers, *w)
    return out[:M]


# --------------------------------------------------------------------------------------
# Kernel 3: fused transformer encoder block (pre-LN ViT block, pos added at block input).
#           The final model LayerNorm is fused into the last block's epilogue.
# --------------------------------------------------------------------------------------
def block_kernel(x_ref, pos_ref, g1_ref, b1_ref, wqkv_ref, wp_ref, bp_ref,
                 g2_ref, b2_ref, wf1_ref, bf1_ref, wf2_ref, bf2_ref,
                 gf_ref, bf_ref, o_ref, *, num_heads, tile_b, seq_len, final_ln):
    TB, N = tile_b, seq_len
    D = x_ref.shape[-1]
    dh = D // num_heads
    scale = 1.0 / math.sqrt(dh)

    x = (x_ref[...].astype(jnp.float32)
         + pos_ref[...].astype(jnp.float32)).reshape(TB * N, D)                # token rows, f32
    y = _layernorm(x, g1_ref[...], b1_ref[...]).astype(jnp.bfloat16)

    # single fused qkv matmul (qkv_bias=False), bf16 MXU, f32 accumulate
    qkv = jnp.dot(y, wqkv_ref[...], preferred_element_type=jnp.float32)        # (TB*N, 3D)
    # 1/sqrt(dh) folded into the q operand (one (R,D) VPU mul; no per-head (TB,N,N) scaling)
    q = (qkv[:, 0 * D:1 * D] * scale).reshape(TB, N, D).astype(jnp.bfloat16)
    k = qkv[:, 1 * D:2 * D].reshape(TB, N, D).astype(jnp.bfloat16)
    v = qkv[:, 2 * D:3 * D].reshape(TB, N, D).astype(jnp.bfloat16)

    # Per-head score/softmax/context (static unrolled loop of 3-D single-batch einsums), then
    # ONE full-K output projection of the concatenated head contexts.
    head_ctx = []
    for hh in range(num_heads):
        sl = slice(hh * dh, (hh + 1) * dh)
        s = jnp.einsum('bqd,bkd->bqk', q[:, :, sl], k[:, :, sl],
                       preferred_element_type=jnp.float32)                     # (TB, N, N)
        m = jnp.max(s, axis=-1, keepdims=True)
        e = jnp.exp(s - m)
        p = e * pl.reciprocal(jnp.sum(e, axis=-1, keepdims=True), approx=True)  # softmax (EUP div)
        head_ctx.append(jnp.einsum('bqk,bkd->bqd', p.astype(jnp.bfloat16), v[:, :, sl],
                                   preferred_element_type=jnp.float32))        # (TB, N, dh)
    ctx = jnp.concatenate(head_ctx, axis=-1).reshape(TB * N, D)                # (R, D) f32
    attn = jnp.dot(ctx.astype(jnp.bfloat16), wp_ref[...],
                   preferred_element_type=jnp.float32) + bp_ref[...]           # K=D proj matmul
    x = x + attn                                                               # residual 1

    y2 = _layernorm(x, g2_ref[...], b2_ref[...]).astype(jnp.bfloat16)
    hdn = jnp.dot(y2, wf1_ref[...], preferred_element_type=jnp.float32) + bf1_ref[...]
    hdn = _gelu(hdn).astype(jnp.bfloat16)
    mlp = jnp.dot(hdn, wf2_ref[...], preferred_element_type=jnp.float32) + bf2_ref[...]
    x = x + mlp                                                                # residual 2
    if final_ln:
        x = _layernorm(x, gf_ref[...], bf_ref[...])                            # fused model norm
    o_ref[...] = x.reshape(TB, N, D).astype(o_ref.dtype)


def block_forward(x, pos, bprm, norm_g, norm_b, num_heads, *, final_ln, out_dtype):
    B, N, D = x.shape
    assert D % num_heads == 0
    tile_b = _pick_batch_tile(B, N)
    w = [bprm['ln1_g'], bprm['ln1_b'], bprm['w_qkv'], bprm['w_proj'], bprm['b_proj'],
         bprm['ln2_g'], bprm['ln2_b'], bprm['w_fc1'], bprm['b_fc1'],
         bprm['w_fc2'], bprm['b_fc2'], norm_g, norm_b]
    kern = functools.partial(block_kernel, num_heads=num_heads, tile_b=tile_b,
                             seq_len=N, final_ln=final_ln)
    return pl.pallas_call(
        kern,
        out_shape=jax.ShapeDtypeStruct((B, N, D), out_dtype),
        grid=(B // tile_b,),
        in_specs=[pl.BlockSpec((tile_b, N, D), lambda b: (b, 0, 0)),
                  pl.BlockSpec((tile_b, N, D), lambda b: (b, 0, 0))]
                 + [_const_spec(a.shape) for a in w],
        out_specs=pl.BlockSpec((tile_b, N, D), lambda b: (b, 0, 0)),
        compiler_params=pltpu.CompilerParams(
            dimension_semantics=("parallel",),
            vmem_limit_bytes=_vmem_limit_bytes()),
    )(x, pos, *w)


# --------------------------------------------------------------------------------------
# Kernel 4: standalone LayerNorm (only used when encoder_depth == 0; otherwise fused above)
# --------------------------------------------------------------------------------------
def ln_kernel(x_ref, g_ref, b_ref, o_ref):
    o_ref[...] = _layernorm(x_ref[...].astype(jnp.float32),
                            g_ref[...], b_ref[...]).astype(o_ref.dtype)


def layernorm_forward(x2d, g, b):
    M, D = x2d.shape
    tile_m, padded = _pick_row_tile(M, 1)
    if padded != M:
        x2d = jnp.pad(x2d, ((0, padded - M), (0, 0)))
    out = pl.pallas_call(
        ln_kernel,
        out_shape=jax.ShapeDtypeStruct((padded, D), jnp.float32),
        grid=(padded // tile_m,),
        in_specs=[pl.BlockSpec((tile_m, D), lambda i: (i, 0)),
                  _const_spec(g.shape), _const_spec(b.shape)],
        out_specs=pl.BlockSpec((tile_m, D), lambda i: (i, 0)),
        compiler_params=pltpu.CompilerParams(
            dimension_semantics=("parallel",),
            vmem_limit_bytes=_vmem_limit_bytes()),
    )(x2d, g, b)
    return out[:M]


# --------------------------------------------------------------------------------------
# PointTransformer forward (glue in plain JAX; fully jit-safe)
# --------------------------------------------------------------------------------------
def point_transformer_forward(params, neighborhood, center, mask, cfg):
    B, _ = mask.shape
    C = neighborhood.shape[-1]
    vis = neighborhood.reshape(B, -1, cfg.group_size, C)                 # (B, G_vis, gs, 3)
    Gvis = vis.shape[1]
    pts = vis.reshape(B * Gvis, cfg.group_size, C)

    tokens = encoder_forward(pts, params['encoder'])                     # (B*G_vis, D) bf16
    D = tokens.shape[-1]
    x = tokens.reshape(B, Gvis, D)

    # jit-safe equivalent of center[~mask].reshape(B, -1, C): gather the Gvis unmasked centers
    # per row; JAX argsort is stable, so the original ordering is preserved.
    order = jnp.argsort(mask.astype(jnp.int32), axis=1)[:, :Gvis]        # (B, Gvis)
    idx = jnp.broadcast_to(order[:, :, None], (B, Gvis, C))
    vis_center = jnp.take_along_axis(center, idx, axis=1)                # (B, Gvis, 3)

    pos = posembed_forward(vis_center.reshape(-1, C),
                           params['pos_embed']).reshape(B, Gvis, D)      # (B, Gvis, D) bf16

    n_blocks = len(params['blocks'])
    for li, bprm in enumerate(params['blocks']):
        last = (li == n_blocks - 1)
        x = block_forward(x, pos, bprm, params['norm_g'], params['norm_b'],
                          cfg.encoder_num_heads, final_ln=last,
                          out_dtype=jnp.float32 if last else jnp.bfloat16)  # x = block(x + pos)
    if n_blocks == 0:
        x = layernorm_forward(x.astype(jnp.float32).reshape(-1, D),
                              params['norm_g'], params['norm_b']).reshape(B, Gvis, D)
    return x                                                             # (B, Gvis, D) f32


# --------------------------------------------------------------------------------------
# deterministic parameter init (mirrors module __init__ shapes; trunc_normal std=0.02)
# big matmul weights are stored in bf16; biases / BN / LN params stay f32.
# NOTE(porting): torch qkv.weight is (3D, D); transpose to (D, 3D) -> columns are [q | k | v]
#                with timm's per-head ordering (heads contiguous in dh-sized column blocks).
#                The 1/sqrt(dh) scale is applied to the q activation inside the kernel, so the
#                ported weights need no rescaling.  w3g/w3l are rows [0:256] (global feature)
#                and [256:512] (local feature) of the Encoder's Conv1d(512, 512).
# --------------------------------------------------------------------------------------
def init_params(key, cfg):
    D = cfg.trans_dim
    H = 4 * D
    bf = jnp.bfloat16
    keys = iter(jax.random.split(key, 8 + 4 * cfg.encoder_depth))

    def tn(shape, dtype=jnp.float32):
        w = 0.02 * jax.random.truncated_normal(next(keys), -2.0, 2.0, shape, jnp.float32)
        return w.astype(dtype)

    eps = 1e-5
    bn_scale = float(1.0 / math.sqrt(1.0 + eps))      # eval BN: gamma=1, mean=0, var=1
    w3 = tn((512, 512))
    enc = dict(
        w1=tn((3, 128)), b1=jnp.zeros((1, 128), jnp.float32),
        s1=jnp.full((1, 128), bn_scale, jnp.float32), t1=jnp.zeros((1, 128), jnp.float32),
        w2=tn((128, 256), bf), b2=jnp.zeros((1, 256), jnp.float32),
        w3g=w3[:256].astype(bf), w3l=w3[256:].astype(bf),
        b3=jnp.zeros((1, 512), jnp.float32),
        s2=jnp.full((1, 512), bn_scale, jnp.float32), t2=jnp.zeros((1, 512), jnp.float32),
        w4=tn((512, D), bf), b4=jnp.zeros((1, D), jnp.float32),
    )
    pos = dict(w1=tn((3, 128)), b1=jnp.zeros((1, 128), jnp.float32),
               w2=tn((128, D), bf), b2=jnp.zeros((1, D), jnp.float32))
    blocks = []
    for _ in range(cfg.encoder_depth):
        blocks.append(dict(
            ln1_g=jnp.ones((1, D), jnp.float32), ln1_b=jnp.zeros((1, D), jnp.float32),
            w_qkv=tn((D, 3 * D), bf),                                  # qkv Linear (bias=False)
            w_proj=tn((D, D), bf), b_proj=jnp.zeros((1, D), jnp.float32),
            ln2_g=jnp.ones((1, D), jnp.float32), ln2_b=jnp.zeros((1, D), jnp.float32),
            w_fc1=tn((D, H), bf), b_fc1=jnp.zeros((1, H), jnp.float32),
            w_fc2=tn((H, D), bf), b_fc2=jnp.zeros((1, D), jnp.float32),
        ))
    return dict(encoder=enc, pos_embed=pos, blocks=blocks,
                norm_g=jnp.ones((1, D), jnp.float32), norm_b=jnp.zeros((1, D), jnp.float32))


class Config:
    def __init__(self, **kw):
        self.__dict__.update(kw)


if __name__ == "__main__":
    # trans_dim=128 keeps every kernel output lane-dense (last dim multiple of 128);
    # group_size=16 keeps the per-group reshapes sublane-aligned (multiple of 8).
    cfg = Config(trans_dim=128, encoder_depth=2, drop_path_rate=0.1, encoder_num_heads=4,
                 mask_type='rand', mask_ratio=0.5, group_size=16)

    key = jax.random.PRNGKey(0)
    kp, kn, kc = jax.random.split(key, 3)
    params = init_params(kp, cfg)

    B, G = 2, 8
    G_vis = G - int(G * cfg.mask_ratio)                                  # 4 visible groups/sample
    neighborhood = jax.random.normal(kn, (B * G_vis, cfg.group_size, 3), jnp.float32)
    center = jax.random.normal(kc, (B, G, 3), jnp.float32)
    # deterministic mask: last half of the groups are masked (True) in every sample
    mask = jnp.concatenate(
        [jnp.zeros((B, G_vis), dtype=bool), jnp.ones((B, G - G_vis), dtype=bool)], axis=1)

    fwd = jax.jit(functools.partial(point_transformer_forward, cfg=cfg))
    z = fwd(params, neighborhood, center, mask)
    z = jax.block_until_ready(z)
    assert z.shape == (B, G_vis, cfg.trans_dim) and z.dtype == jnp.float32
    assert bool(jnp.all(jnp.isfinite(z)))
    print("KERNEL_OK")
</pallas_src>

<mosaic_0001>
module attributes {stable_mosaic.version = 11 : i64} {
  func.func @encoder_kernel(%arg0: i32, %arg1: memref<128x3xf32, #tpu.memory_space<vmem>>, %arg2: memref<3x128xf32, #tpu.memory_space<vmem>>, %arg3: memref<1x128xf32, #tpu.memory_space<vmem>>, %arg4: memref<1x128xf32, #tpu.memory_space<vmem>>, %arg5: memref<1x128xf32, #tpu.memory_space<vmem>>, %arg6: memref<128x256xbf16, #tpu.memory_space<vmem>>, %arg7: memref<1x256xf32, #tpu.memory_space<vmem>>, %arg8: memref<256x512xbf16, #tpu.memory_space<vmem>>, %arg9: memref<256x512xbf16, #tpu.memory_space<vmem>>, %arg10: memref<1x512xf32, #tpu.memory_space<vmem>>, %arg11: memref<1x512xf32, #tpu.memory_space<vmem>>, %arg12: memref<1x512xf32, #tpu.memory_space<vmem>>, %arg13: memref<512x128xbf16, #tpu.memory_space<vmem>>, %arg14: memref<1x128xf32, #tpu.memory_space<vmem>>, %arg15: memref<8x128xbf16, #tpu.memory_space<vmem>>) attributes {dimension_semantics = [#tpu.dimension_semantics<parallel>], iteration_bounds = array<i64: 1>, scalar_prefetch = 0 : i64, scratch_operands = 0 : i64, tpu.core_type = #tpu.core_type<tc>, window_params = [{transform_indices = @transform_0, window_bounds = array<i64: 128, 3>}, {pipeline_mode = #tpu.pipeline_mode<synchronous>, transform_indices = @transform_1, window_bounds = array<i64: 3, 128>}, {pipeline_mode = #tpu.pipeline_mode<synchronous>, transform_indices = @transform_2, window_bounds = array<i64: 1, 128>}, {pipeline_mode = #tpu.pipeline_mode<synchronous>, transform_indices = @transform_3, window_bounds = array<i64: 1, 128>}, {pipeline_mode = #tpu.pipeline_mode<synchronous>, transform_indices = @transform_4, window_bounds = array<i64: 1, 128>}, {pipeline_mode = #tpu.pipeline_mode<synchronous>, transform_indices = @transform_5, window_bounds = array<i64: 128, 256>}, {pipeline_mode = #tpu.pipeline_mode<synchronous>, transform_indices = @transform_6, window_bounds = array<i64: 1, 256>}, {pipeline_mode = #tpu.pipeline_mode<synchronous>, transform_indices = @transform_7, window_bounds = array<i64: 256, 512>}, {pipeline_mode = #tpu.pipeline_mode<synchronous>, transform_indices = @transform_8, window_bounds = array<i64: 256, 512>}, {pipeline_mode = #tpu.pipeline_mode<synchronous>, transform_indices = @transform_9, window_bounds = array<i64: 1, 512>}, {pipeline_mode = #tpu.pipeline_mode<synchronous>, transform_indices = @transform_10, window_bounds = array<i64: 1, 512>}, {pipeline_mode = #tpu.pipeline_mode<synchronous>, transform_indices = @transform_11, window_bounds = array<i64: 1, 512>}, {pipeline_mode = #tpu.pipeline_mode<synchronous>, transform_indices = @transform_12, window_bounds = array<i64: 512, 128>}, {pipeline_mode = #tpu.pipeline_mode<synchronous>, transform_indices = @transform_13, window_bounds = array<i64: 1, 128>}, {transform_indices = @transform_14, window_bounds = array<i64: 8, 128>}]} {
    %c0 = arith.constant 0 : index
    %c0_0 = arith.constant 0 : index
    %0 = vector.load %arg1[%c0, %c0_0] : memref<128x3xf32, #tpu.memory_space<vmem>>, vector<128x3xf32>
    %c0_1 = arith.constant 0 : index
    %c0_2 = arith.constant 0 : index
    %1 = vector.load %arg2[%c0_1, %c0_2] : memref<3x128xf32, #tpu.memory_space<vmem>>, vector<3x128xf32>
    %2 = vector.extract_strided_slice %0 {offsets = [0, 0], sizes = [128, 1], strides = [1, 1]} : vector<128x3xf32> to vector<128x1xf32>
    %3 = vector.extract_strided_slice %1 {offsets = [0, 0], sizes = [1, 128], strides = [1, 1]} : vector<3x128xf32> to vector<1x128xf32>
    %4 = vector.broadcast %2 : vector<128x1xf32> to vector<128x128xf32>
    %5 = vector.broadcast %3 : vector<1x128xf32> to vector<128x128xf32>
    %6 = arith.mulf %4, %5 : vector<128x128xf32>
    %7 = vector.extract_strided_slice %0 {offsets = [0, 1], sizes = [128, 1], strides = [1, 1]} : vector<128x3xf32> to vector<128x1xf32>
    %8 = vector.extract_strided_slice %1 {offsets = [1, 0], sizes = [1, 128], strides = [1, 1]} : vector<3x128xf32> to vector<1x128xf32>
    %9 = vector.broadcast %7 : vector<128x1xf32> to vector<128x128xf32>
    %10 = vector.broadcast %8 : vector<1x128xf32> to vector<128x128xf32>
    %11 = arith.mulf %9, %10 : vector<128x128xf32>
    %12 = arith.addf %6, %11 : vector<128x128xf32>
    %13 = vector.extract_strided_slice %0 {offsets = [0, 2], sizes = [128, 1], strides = [1, 1]} : vector<128x3xf32> to vector<128x1xf32>
    %14 = vector.extract_strided_slice %1 {offsets = [2, 0], sizes = [1, 128], strides = [1, 1]} : vector<3x128xf32> to vector<1x128xf32>
    %15 = vector.broadcast %13 : vector<128x1xf32> to vector<128x128xf32>
    %16 = vector.broadcast %14 : vector<1x128xf32> to vector<128x128xf32>
    %17 = arith.mulf %15, %16 : vector<128x128xf32>
    %18 = arith.addf %12, %17 : vector<128x128xf32>
    %c0_3 = arith.constant 0 : index
    %c0_4 = arith.constant 0 : index
    %19 = vector.load %arg3[%c0_3, %c0_4] : memref<1x128xf32, #tpu.memory_space<vmem>>, vector<1x128xf32>
    %20 = vector.broadcast %19 : vector<1x128xf32> to vector<128x128xf32>
    %21 = arith.addf %18, %20 : vector<128x128xf32>
    %c0_5 = arith.constant 0 : index
    %c0_6 = arith.constant 0 : index
    %22 = vector.load %arg4[%c0_5, %c0_6] : memref<1x128xf32, #tpu.memory_space<vmem>>, vector<1x128xf32>
    %23 = vector.broadcast %22 : vector<1x128xf32> to vector<128x128xf32>
    %24 = arith.mulf %21, %23 : vector<128x128xf32>
    %c0_7 = arith.constant 0 : index
    %c0_8 = arith.constant 0 : index
    %25 = vector.load %arg5[%c0_7, %c0_8] : memref<1x128xf32, #tpu.memory_space<vmem>>, vector<1x128xf32>
    %26 = vector.broadcast %25 : vector<1x128xf32> to vector<128x128xf32>
    %27 = arith.addf %24, %26 : vector<128x128xf32>
    %cst = arith.constant 0.000000e+00 : f32
    %28 = vector.broadcast %cst : f32 to vector<128x128xf32>
    %29 = arith.maximumf %27, %28 : vector<128x128xf32>
    %30 = arith.truncf %29 : vector<128x128xf32> to vector<128x128xbf16>
    %c0_9 = arith.constant 0 : index
    %c0_10 = arith.constant 0 : index
    %31 = vector.load %arg6[%c0_9, %c0_10] : memref<128x256xbf16, #tpu.memory_space<vmem>>, vector<128x256xbf16>
    %cst_11 = arith.constant dense<0.000000e+00> : vector<128x256xf32>
    %32 = tpu.matmul %30, %31, %cst_11 {dimension_numbers = #tpu.dot_dimension_numbers<[1], [0], [0], [1], [0, 0, 1, 1], [], []>} : vector<128x128xbf16>, vector<128x256xbf16>, vector<128x256xf32> -> vector<128x256xf32>
    %c0_12 = arith.constant 0 : index
    %c0_13 = arith.constant 0 : index
    %33 = vector.load %arg7[%c0_12, %c0_13] : memref<1x256xf32, #tpu.memory_space<vmem>>, vector<1x256xf32>
    %34 = vector.broadcast %33 : vector<1x256xf32> to vector<128x256xf32>
    %35 = arith.addf %32, %34 : vector<128x256xf32>
    %36 = vector.shape_cast %35 : vector<128x256xf32> to vector<8x16x256xf32>
    %cst_14 = arith.constant dense<0xFF800000> : vector<8x256xf32>
    %37 = vector.multi_reduction <maximumf>, %36, %cst_14 [1] : vector<8x16x256xf32> to vector<8x256xf32>
    %38 = arith.truncf %37 : vector<8x256xf32> to vector<8x256xbf16>
    %c0_15 = arith.constant 0 : index
    %c0_16 = arith.constant 0 : index
    %39 = vector.load %arg8[%c0_15, %c0_16] : memref<256x512xbf16, #tpu.memory_space<vmem>>, vector<256x512xbf16>
    %cst_17 = arith.constant dense<0.000000e+00> : vector<8x512xf32>
    %40 = tpu.matmul %38, %39, %cst_17 {dimension_numbers = #tpu.dot_dimension_numbers<[1], [0], [0], [1], [0, 0, 1, 1], [], []>} : vector<8x256xbf16>, vector<256x512xbf16>, vector<8x512xf32> -> vector<8x512xf32>
    %41 = arith.truncf %35 : vector<128x256xf32> to vector<128x256xbf16>
    %c0_18 = arith.constant 0 : index
    %c0_19 = arith.constant 0 : index
    %42 = vector.load %arg9[%c0_18, %c0_19] : memref<256x512xbf16, #tpu.memory_space<vmem>>, vector<256x512xbf16>
    %cst_20 = arith.constant dense<0.000000e+00> : vector<128x512xf32>
    %43 = tpu.matmul %41, %42, %cst_20 {dimension_numbers = #tpu.dot_dimension_numbers<[1], [0], [0], [1], [0, 0, 1, 1], [], []>} : vector<128x256xbf16>, vector<256x512xbf16>, vector<128x512xf32> -> vector<128x512xf32>
    %44 = vector.shape_cast %43 : vector<128x512xf32> to vector<8x16x512xf32>
    %45 = vector.shape_cast %40 : vector<8x512xf32> to vector<8x1x512xf32>
    %46 = vector.broadcast %45 : vector<8x1x512xf32> to vector<8x16x512xf32>
    %47 = arith.addf %44, %46 : vector<8x16x512xf32>
    %c0_21 = arith.constant 0 : index
    %c0_22 = arith.constant 0 : index
    %48 = vector.load %arg10[%c0_21, %c0_22] : memref<1x512xf32, #tpu.memory_space<vmem>>, vector<1x512xf32>
    %49 = vector.shape_cast %48 : vector<1x512xf32> to vector<1x1x512xf32>
    %50 = vector.broadcast %49 : vector<1x1x512xf32> to vector<8x16x512xf32>
    %51 = arith.addf %47, %50 : vector<8x16x512xf32>
    %c0_23 = arith.constant 0 : index
    %c0_24 = arith.constant 0 : index
    %52 = vector.load %arg11[%c0_23, %c0_24] : memref<1x512xf32, #tpu.memory_space<vmem>>, vector<1x512xf32>
    %53 = vector.shape_cast %52 : vector<1x512xf32> to vector<1x1x512xf32>
    %54 = vector.broadcast %53 : vector<1x1x512xf32> to vector<8x16x512xf32>
    %55 = arith.mulf %51, %54 : vector<8x16x512xf32>
    %c0_25 = arith.constant 0 : index
    %c0_26 = arith.constant 0 : index
    %56 = vector.load %arg12[%c0_25, %c0_26] : memref<1x512xf32, #tpu.memory_space<vmem>>, vector<1x512xf32>
    %57 = vector.shape_cast %56 : vector<1x512xf32> to vector<1x1x512xf32>
    %58 = vector.broadcast %57 : vector<1x1x512xf32> to vector<8x16x512xf32>
    %59 = arith.addf %55, %58 : vector<8x16x512xf32>
    %cst_27 = arith.constant 0.000000e+00 : f32
    %60 = vector.broadcast %cst_27 : f32 to vector<8x16x512xf32>
    %61 = arith.maximumf %59, %60 : vector<8x16x512xf32>
    %62 = vector.shape_cast %61 : vector<8x16x512xf32> to vector<128x512xf32>
    %63 = arith.truncf %62 : vector<128x512xf32> to vector<128x512xbf16>
    %c0_28 = arith.constant 0 : index
    %c0_29 = arith.constant 0 : index
    %64 = vector.load %arg13[%c0_28, %c0_29] : memref<512x128xbf16, #tpu.memory_space<vmem>>, vector<512x128xbf16>
    %cst_30 = arith.constant dense<0.000000e+00> : vector<128x128xf32>
    %65 = tpu.matmul %63, %64, %cst_30 {dimension_numbers = #tpu.dot_dimension_numbers<[1], [0], [0], [1], [0, 0, 1, 1], [], []>} : vector<128x512xbf16>, vector<512x128xbf16>, vector<128x128xf32> -> vector<128x128xf32>
    %c0_31 = arith.constant 0 : index
    %c0_32 = arith.constant 0 : index
    %66 = vector.load %arg14[%c0_31, %c0_32] : memref<1x128xf32, #tpu.memory_space<vmem>>, vector<1x128xf32>
    %67 = vector.broadcast %66 : vector<1x128xf32> to vector<128x128xf32>
    %68 = arith.addf %65, %67 : vector<128x128xf32>
    %69 = vector.shape_cast %68 : vector<128x128xf32> to vector<8x16x128xf32>
    %cst_33 = arith.constant dense<0xFF800000> : vector<8x128xf32>
    %70 = vector.multi_reduction <maximumf>, %69, %cst_33 [1] : vector<8x16x128xf32> to vector<8x128xf32>
    %71 = arith.truncf %70 : vector<8x128xf32> to vector<8x128xbf16>
    %c0_34 = arith.constant 0 : index
    %c0_35 = arith.constant 0 : index
    %72 = vector.load %arg15[%c0_34, %c0_35] : memref<8x128xbf16, #tpu.memory_space<vmem>>, vector<8x128xbf16>
    tpu.vector_store %arg15[%c0_34, %c0_35], %71 {strides = array<i32>} : memref<8x128xbf16, #tpu.memory_space<vmem>>, vector<8x128xbf16>,
    return
  }
  func.func @transform_0(%arg0: i32) -> (i32, i32) {
    %c0_i32 = arith.constant 0 : i32
    %c0_i32_0 = arith.constant 0 : i32
    return %arg0, %c0_i32 : i32, i32
  }
  func.func @transform_1(%arg0: i32) -> (i32, i32) {
    %c0_i32 = arith.constant 0 : i32
    %c0_i32_0 = arith.constant 0 : i32
    %c0_i32_1 = arith.constant 0 : i32
    return %c0_i32, %c0_i32_0 : i32, i32
  }
  func.func @transform_2(%arg0: i32) -> (i32, i32) {
    %c0_i32 = arith.constant 0 : i32
    %c0_i32_0 = arith.constant 0 : i32
    %c0_i32_1 = arith.constant 0 : i32
    return %c0_i32, %c0_i32_0 : i32, i32
  }
  func.func @transform_3(%arg0: i32) -> (i32, i32) {
    %c0_i32 = arith.constant 0 : i32
    %c0_i32_0 = arith.constant 0 : i32
    %c0_i32_1 = arith.constant 0 : i32
    return %c0_i32, %c0_i32_0 : i32, i32
  }
  func.func @transform_4(%arg0: i32) -> (i32, i32) {
    %c0_i32 = arith.constant 0 : i32
    %c0_i32_0 = arith.constant 0 : i32
    %c0_i32_1 = arith.constant 0 : i32
    return %c0_i32, %c0_i32_0 : i32, i32
  }
  func.func @transform_5(%arg0: i32) -> (i32, i32) {
    %c0_i32 = arith.constant 0 : i32
    %c0_i32_0 = arith.constant 0 : i32
    %c0_i32_1 = arith.constant 0 : i32
    return %c0_i32, %c0_i32_0 : i32, i32
  }
  func.func @transform_6(%arg0: i32) -> (i32, i32) {
    %c0_i32 = arith.constant 0 : i32
    %c0_i32_0 = arith.constant 0 : i32
    %c0_i32_1 = arith.constant 0 : i32
    return %c0_i32, %c0_i32_0 : i32, i32
  }
  func.func @transform_7(%arg0: i32) -> (i32, i32) {
    %c0_i32 = arith.constant 0 : i32
    %c0_i32_0 = arith.constant 0 : i32
    %c0_i32_1 = arith.constant 0 : i32
    return %c0_i32, %c0_i32_0 : i32, i32
  }
  func.func @transform_8(%arg0: i32) -> (i32, i32) {
    %c0_i32 = arith.constant 0 : i32
    %c0_i32_0 = arith.constant 0 : i32
    %c0_i32_1 = arith.constant 0 : i32
    return %c0_i32, %c0_i32_0 : i32, i32
  }
  func.func @transform_9(%arg0: i32) -> (i32, i32) {
    %c0_i32 = arith.constant 0 : i32
    %c0_i32_0 = arith.constant 0 : i32
    %c0_i32_1 = arith.constant 0 : i32
    return %c0_i32, %c0_i32_0 : i32, i32
  }
  func.func @transform_10(%arg0: i32) -> (i32, i32) {
    %c0_i32 = arith.constant 0 : i32
    %c0_i32_0 = arith.constant 0 : i32
    %c0_i32_1 = arith.constant 0 : i32
    return %c0_i32, %c0_i32_0 : i32, i32
  }
  func.func @transform_11(%arg0: i32) -> (i32, i32) {
    %c0_i32 = arith.constant 0 : i32
    %c0_i32_0 = arith.constant 0 : i32
    %c0_i32_1 = arith.constant 0 : i32
    return %c0_i32, %c0_i32_0 : i32, i32
  }
  func.func @transform_12(%arg0: i32) -> (i32, i32) {
    %c0_i32 = arith.constant 0 : i32
    %c0_i32_0 = arith.constant 0 : i32
    %c0_i32_1 = arith.constant 0 : i32
    return %c0_i32, %c0_i32_0 : i32, i32
  }
  func.func @transform_13(%arg0: i32) -> (i32, i32) {
    %c0_i32 = arith.constant 0 : i32
    %c0_i32_0 = arith.constant 0 : i32
    %c0_i32_1 = arith.constant 0 : i32
    return %c0_i32, %c0_i32_0 : i32, i32
  }
  func.func @transform_14(%arg0: i32) -> (i32, i32) {
    %c0_i32 = arith.constant 0 : i32
    %c0_i32_0 = arith.constant 0 : i32
    return %arg0, %c0_i32 : i32, i32
  }
}

module attributes {stable_mosaic.version = 11 : i64} {
  func.func @posembed_kernel(%arg0: i32, %arg1: memref<8x3xf32, #tpu.memory_space<vmem>>, %arg2: memref<3x128xf32, #tpu.memory_space<vmem>>, %arg3: memref<1x128xf32, #tpu.memory_space<vmem>>, %arg4: memref<128x128xbf16, #tpu.memory_space<vmem>>, %arg5: memref<1x128xf32, #tpu.memory_space<vmem>>, %arg6: memref<8x128xbf16, #tpu.memory_space<vmem>>) attributes {dimension_semantics = [#tpu.dimension_semantics<parallel>], iteration_bounds = array<i64: 1>, scalar_prefetch = 0 : i64, scratch_operands = 0 : i64, tpu.core_type = #tpu.core_type<tc>, window_params = [{transform_indices = @transform_0, window_bounds = array<i64: 8, 3>}, {pipeline_mode = #tpu.pipeline_mode<synchronous>, transform_indices = @transform_1, window_bounds = array<i64: 3, 128>}, {pipeline_mode = #tpu.pipeline_mode<synchronous>, transform_indices = @transform_2, window_bounds = array<i64: 1, 128>}, {pipeline_mode = #tpu.pipeline_mode<synchronous>, transform_indices = @transform_3, window_bounds = array<i64: 128, 128>}, {pipeline_mode = #tpu.pipeline_mode<synchronous>, transform_indices = @transform_4, window_bounds = array<i64: 1, 128>}, {transform_indices = @transform_5, window_bounds = array<i64: 8, 128>}]} {
    %c0 = arith.constant 0 : index
    %c0_0 = arith.constant 0 : index
    %0 = vector.load %arg1[%c0, %c0_0] : memref<8x3xf32, #tpu.memory_space<vmem>>, vector<8x3xf32>
    %c0_1 = arith.constant 0 : index
    %c0_2 = arith.constant 0 : index
    %1 = vector.load %arg2[%c0_1, %c0_2] : memref<3x128xf32, #tpu.memory_space<vmem>>, vector<3x128xf32>
    %2 = vector.extract_strided_slice %0 {offsets = [0, 0], sizes = [8, 1], strides = [1, 1]} : vector<8x3xf32> to vector<8x1xf32>
    %3 = vector.extract_strided_slice %1 {offsets = [0, 0], sizes = [1, 128], strides = [1, 1]} : vector<3x128xf32> to vector<1x128xf32>
    %4 = vector.broadcast %2 : vector<8x1xf32> to vector<8x128xf32>
    %5 = vector.broadcast %3 : vector<1x128xf32> to vector<8x128xf32>
    %6 = arith.mulf %4, %5 : vector<8x128xf32>
    %7 = vector.extract_strided_slice %0 {offsets = [0, 1], sizes = [8, 1], strides = [1, 1]} : vector<8x3xf32> to vector<8x1xf32>
    %8 = vector.extract_strided_slice %1 {offsets = [1, 0], sizes = [1, 128], strides = [1, 1]} : vector<3x128xf32> to vector<1x128xf32>
    %9 = vector.broadcast %7 : vector<8x1xf32> to vector<8x128xf32>
    %10 = vector.broadcast %8 : vector<1x128xf32> to vector<8x128xf32>
    %11 = arith.mulf %9, %10 : vector<8x128xf32>
    %12 = arith.addf %6, %11 : vector<8x128xf32>
    %13 = vector.extract_strided_slice %0 {offsets = [0, 2], sizes = [8, 1], strides = [1, 1]} : vector<8x3xf32> to vector<8x1xf32>
    %14 = vector.extract_strided_slice %1 {offsets = [2, 0], sizes = [1, 128], strides = [1, 1]} : vector<3x128xf32> to vector<1x128xf32>
    %15 = vector.broadcast %13 : vector<8x1xf32> to vector<8x128xf32>
    %16 = vector.broadcast %14 : vector<1x128xf32> to vector<8x128xf32>
    %17 = arith.mulf %15, %16 : vector<8x128xf32>
    %18 = arith.addf %12, %17 : vector<8x128xf32>
    %c0_3 = arith.constant 0 : index
    %c0_4 = arith.constant 0 : index
    %19 = vector.load %arg3[%c0_3, %c0_4] : memref<1x128xf32, #tpu.memory_space<vmem>>, vector<1x128xf32>
    %20 = vector.broadcast %19 : vector<1x128xf32> to vector<8x128xf32>
    %21 = arith.addf %18, %20 : vector<8x128xf32>
    %cst = arith.constant 5.000000e-01 : f32
    %22 = vector.broadcast %cst : f32 to vector<8x128xf32>
    %23 = arith.mulf %22, %21 : vector<8x128xf32>
    %cst_5 = arith.constant 4.471500e-02 : f32
    %24 = vector.broadcast %cst_5 : f32 to vector<8x128xf32>
    %25 = arith.mulf %24, %21 : vector<8x128xf32>
    %26 = arith.mulf %25, %21 : vector<8x128xf32>
    %27 = arith.mulf %26, %21 : vector<8x128xf32>
    %28 = arith.addf %21, %27 : vector<8x128xf32>
    %cst_6 = arith.constant 0.797884583 : f32
    %29 = vector.broadcast %cst_6 : f32 to vector<8x128xf32>
    %30 = arith.mulf %29, %28 : vector<8x128xf32>
    %31 = math.tanh %30 : vector<8x128xf32>
    %cst_7 = arith.constant 1.000000e+00 : f32
    %32 = vector.broadcast %cst_7 : f32 to vector<8x128xf32>
    %33 = arith.addf %32, %31 : vector<8x128xf32>
    %34 = arith.mulf %23, %33 : vector<8x128xf32>
    %35 = arith.truncf %34 : vector<8x128xf32> to vector<8x128xbf16>
    %c0_8 = arith.constant 0 : index
    %c0_9 = arith.constant 0 : index
    %36 = vector.load %arg4[%c0_8, %c0_9] : memref<128x128xbf16, #tpu.memory_space<vmem>>, vector<128x128xbf16>
    %cst_10 = arith.constant dense<0.000000e+00> : vector<8x128xf32>
    %37 = tpu.matmul %35, %36, %cst_10 {dimension_numbers = #tpu.dot_dimension_numbers<[1], [0], [0], [1], [0, 0, 1, 1], [], []>} : vector<8x128xbf16>, vector<128x128xbf16>, vector<8x128xf32> -> vector<8x128xf32>
    %c0_11 = arith.constant 0 : index
    %c0_12 = arith.constant 0 : index
    %38 = vector.load %arg5[%c0_11, %c0_12] : memref<1x128xf32, #tpu.memory_space<vmem>>, vector<1x128xf32>
    %39 = vector.broadcast %38 : vector<1x128xf32> to vector<8x128xf32>
    %40 = arith.addf %37, %39 : vector<8x128xf32>
    %41 = arith.truncf %40 : vector<8x128xf32> to vector<8x128xbf16>
    %c0_13 = arith.constant 0 : index
    %c0_14 = arith.constant 0 : index
    %42 = vector.load %arg6[%c0_13, %c0_14] : memref<8x128xbf16, #tpu.memory_space<vmem>>, vector<8x128xbf16>
    tpu.vector_store %arg6[%c0_13, %c0_14], %41 {strides = array<i32>} : memref<8x128xbf16, #tpu.memory_space<vmem>>, vector<8x128xbf16>,
    return
  }
  func.func @transform_0(%arg0: i32) -> (i32, i32) {
    %c0_i32 = arith.constant 0 : i32
    %c0_i32_0 = arith.constant 0 : i32
    return %arg0, %c0_i32 : i32, i32
  }
  func.func @transform_1(%arg0: i32) -> (i32, i32) {
    %c0_i32 = arith.constant 0 : i32
    %c0_i32_0 = arith.constant 0 : i32
    %c0_i32_1 = arith.constant 0 : i32
    return %c0_i32, %c0_i32_0 : i32, i32
  }
  func.func @transform_2(%arg0: i32) -> (i32, i32) {
    %c0_i32 = arith.constant 0 : i32
    %c0_i32_0 = arith.constant 0 : i32
    %c0_i32_1 = arith.constant 0 : i32
    return %c0_i32, %c0_i32_0 : i32, i32
  }
  func.func @transform_3(%arg0: i32) -> (i32, i32) {
    %c0_i32 = arith.constant 0 : i32
    %c0_i32_0 = arith.constant 0 : i32
    %c0_i32_1 = arith.constant 0 : i32
    return %c0_i32, %c0_i32_0 : i32, i32
  }
  func.func @transform_4(%arg0: i32) -> (i32, i32) {
    %c0_i32 = arith.constant 0 : i32
    %c0_i32_0 = arith.constant 0 : i32
    %c0_i32_1 = arith.constant 0 : i32
    return %c0_i32, %c0_i32_0 : i32, i32
  }
  func.func @transform_5(%arg0: i32) -> (i32, i32) {
    %c0_i32 = arith.constant 0 : i32
    %c0_i32_0 = arith.constant 0 : i32
    return %arg0, %c0_i32 : i32, i32
  }
}

module attributes {stable_mosaic.version = 11 : i64} {
  func.func @block_kernel(%arg0: i32, %arg1: memref<1x4x128xbf16, #tpu.memory_space<vmem>>, %arg2: memref<1x4x128xbf16, #tpu.memory_space<vmem>>, %arg3: memref<1x128xf32, #tpu.memory_space<vmem>>, %arg4: memref<1x128xf32, #tpu.memory_space<vmem>>, %arg5: memref<128x384xbf16, #tpu.memory_space<vmem>>, %arg6: memref<128x128xbf16, #tpu.memory_space<vmem>>, %arg7: memref<1x128xf32, #tpu.memory_space<vmem>>, %arg8: memref<1x128xf32, #tpu.memory_space<vmem>>, %arg9: memref<1x128xf32, #tpu.memory_space<vmem>>, %arg10: memref<128x512xbf16, #tpu.memory_space<vmem>>, %arg11: memref<1x512xf32, #tpu.memory_space<vmem>>, %arg12: memref<512x128xbf16, #tpu.memory_space<vmem>>, %arg13: memref<1x128xf32, #tpu.memory_space<vmem>>, %arg14: memref<1x128xf32, #tpu.memory_space<vmem>>, %arg15: memref<1x128xf32, #tpu.memory_space<vmem>>, %arg16: memref<1x4x128xbf16, #tpu.memory_space<vmem>>) attributes {dimension_semantics = [#tpu.dimension_semantics<parallel>], iteration_bounds = array<i64: 2>, scalar_prefetch = 0 : i64, scratch_operands = 0 : i64, tpu.core_type = #tpu.core_type<tc>, window_params = [{transform_indices = @transform_0, window_bounds = array<i64: 1, 4, 128>}, {transform_indices = @transform_1, window_bounds = array<i64: 1, 4, 128>}, {pipeline_mode = #tpu.pipeline_mode<synchronous>, transform_indices = @transform_2, window_bounds = array<i64: 1, 128>}, {pipeline_mode = #tpu.pipeline_mode<synchronous>, transform_indices = @transform_3, window_bounds = array<i64: 1, 128>}, {pipeline_mode = #tpu.pipeline_mode<synchronous>, transform_indices = @transform_4, window_bounds = array<i64: 128, 384>}, {pipeline_mode = #tpu.pipeline_mode<synchronous>, transform_indices = @transform_5, window_bounds = array<i64: 128, 128>}, {pipeline_mode = #tpu.pipeline_mode<synchronous>, transform_indices = @transform_6, window_bounds = array<i64: 1, 128>}, {pipeline_mode = #tpu.pipeline_mode<synchronous>, transform_indices = @transform_7, window_bounds = array<i64: 1, 128>}, {pipeline_mode = #tpu.pipeline_mode<synchronous>, transform_indices = @transform_8, window_bounds = array<i64: 1, 128>}, {pipeline_mode = #tpu.pipeline_mode<synchronous>, transform_indices = @transform_9, window_bounds = array<i64: 128, 512>}, {pipeline_mode = #tpu.pipeline_mode<synchronous>, transform_indices = @transform_10, window_bounds = array<i64: 1, 512>}, {pipeline_mode = #tpu.pipeline_mode<synchronous>, transform_indices = @transform_11, window_bounds = array<i64: 512, 128>}, {pipeline_mode = #tpu.pipeline_mode<synchronous>, transform_indices = @transform_12, window_bounds = array<i64: 1, 128>}, {pipeline_mode = #tpu.pipeline_mode<synchronous>, transform_indices = @transform_13, window_bounds = array<i64: 1, 128>}, {pipeline_mode = #tpu.pipeline_mode<synchronous>, transform_indices = @transform_14, window_bounds = array<i64: 1, 128>}, {transform_indices = @transform_15, window_bounds = array<i64: 1, 4, 128>}]} {
    %c0 = arith.constant 0 : index
    %c0_0 = arith.constant 0 : index
    %c0_1 = arith.constant 0 : index
    %0 = vector.load %arg1[%c0, %c0_0, %c0_1] : memref<1x4x128xbf16, #tpu.memory_space<vmem>>, vector<1x4x128xbf16>
    %1 = arith.extf %0 : vector<1x4x128xbf16> to vector<1x4x128xf32>
    %c0_2 = arith.constant 0 : index
    %c0_3 = arith.constant 0 : index
    %c0_4 = arith.constant 0 : index
    %2 = vector.load %arg2[%c0_2, %c0_3, %c0_4] : memref<1x4x128xbf16, #tpu.memory_space<vmem>>, vector<1x4x128xbf16>
    %3 = arith.extf %2 : vector<1x4x128xbf16> to vector<1x4x128xf32>
    %4 = arith.addf %1, %3 : vector<1x4x128xf32>
    %5 = vector.shape_cast %4 : vector<1x4x128xf32> to vector<4x128xf32>
    %c0_5 = arith.constant 0 : index
    %c0_6 = arith.constant 0 : index
    %6 = vector.load %arg3[%c0_5, %c0_6] : memref<1x128xf32, #tpu.memory_space<vmem>>, vector<1x128xf32>
    %c0_7 = arith.constant 0 : index
    %c0_8 = arith.constant 0 : index
    %7 = vector.load %arg4[%c0_7, %c0_8] : memref<1x128xf32, #tpu.memory_space<vmem>>, vector<1x128xf32>
    %cst = arith.constant dense<0.000000e+00> : vector<4xf32>
    %8 = vector.multi_reduction <add>, %5, %cst [1] : vector<4x128xf32> to vector<4xf32>
    %9 = vector.shape_cast %8 : vector<4xf32> to vector<4x1xf32>
    %cst_9 = arith.constant 1.280000e+02 : f32
    %10 = vector.broadcast %cst_9 : f32 to vector<4x1xf32>
    %11 = arith.divf %9, %10 : vector<4x1xf32>
    %12 = vector.broadcast %11 : vector<4x1xf32> to vector<4x128xf32>
    %13 = arith.subf %5, %12 : vector<4x128xf32>
    %14 = arith.mulf %13, %13 : vector<4x128xf32>
    %cst_10 = arith.constant dense<0.000000e+00> : vector<4xf32>
    %15 = vector.multi_reduction <add>, %14, %cst_10 [1] : vector<4x128xf32> to vector<4xf32>
    %16 = vector.shape_cast %15 : vector<4xf32> to vector<4x1xf32>
    %cst_11 = arith.constant 1.280000e+02 : f32
    %17 = vector.broadcast %cst_11 : f32 to vector<4x1xf32>
    %18 = arith.divf %16, %17 : vector<4x1xf32>
    %19 = vector.broadcast %11 : vector<4x1xf32> to vector<4x128xf32>
    %20 = arith.subf %5, %19 : vector<4x128xf32>
    %cst_12 = arith.constant 9.99999974E-6 : f32
    %21 = vector.broadcast %cst_12 : f32 to vector<4x1xf32>
    %22 = arith.addf %18, %21 : vector<4x1xf32>
    %23 = math.rsqrt %22 : vector<4x1xf32>
    %24 = vector.broadcast %23 : vector<4x1xf32> to vector<4x128xf32>
    %25 = arith.mulf %20, %24 : vector<4x128xf32>
    %26 = vector.broadcast %6 : vector<1x128xf32> to vector<4x128xf32>
    %27 = arith.mulf %25, %26 : vector<4x128xf32>
    %28 = vector.broadcast %7 : vector<1x128xf32> to vector<4x128xf32>
    %29 = arith.addf %27, %28 : vector<4x128xf32>
    %30 = arith.truncf %29 : vector<4x128xf32> to vector<4x128xbf16>
    %c0_13 = arith.constant 0 : index
    %c0_14 = arith.constant 0 : index
    %31 = vector.load %arg5[%c0_13, %c0_14] : memref<128x384xbf16, #tpu.memory_space<vmem>>, vector<128x384xbf16>
    %cst_15 = arith.constant dense<0.000000e+00> : vector<4x384xf32>
    %32 = tpu.matmul %30, %31, %cst_15 {dimension_numbers = #tpu.dot_dimension_numbers<[1], [0], [0], [1], [0, 0, 1, 1], [], []>} : vector<4x128xbf16>, vector<128x384xbf16>, vector<4x384xf32> -> vector<4x384xf32>
    %33 = vector.extract_strided_slice %32 {offsets = [0, 0], sizes = [4, 128], strides = [1, 1]} : vector<4x384xf32> to vector<4x128xf32>
    %cst_16 = arith.constant 0.176776692 : f32
    %34 = vector.broadcast %cst_16 : f32 to vector<4x128xf32>
    %35 = arith.mulf %33, %34 : vector<4x128xf32>
    %36 = vector.shape_cast %35 : vector<4x128xf32> to vector<1x4x128xf32>
    %37 = arith.truncf %36 : vector<1x4x128xf32> to vector<1x4x128xbf16>
    %38 = vector.extract_strided_slice %32 {offsets = [0, 128], sizes = [4, 128], strides = [1, 1]} : vector<4x384xf32> to vector<4x128xf32>
    %39 = vector.shape_cast %38 : vector<4x128xf32> to vector<1x4x128xf32>
    %40 = arith.truncf %39 : vector<1x4x128xf32> to vector<1x4x128xbf16>
    %41 = vector.extract_strided_slice %32 {offsets = [0, 256], sizes = [4, 128], strides = [1, 1]} : vector<4x384xf32> to vector<4x128xf32>
    %42 = vector.shape_cast %41 : vector<4x128xf32> to vector<1x4x128xf32>
    %43 = arith.truncf %42 : vector<1x4x128xf32> to vector<1x4x128xbf16>
    %44 = vector.extract_strided_slice %37 {offsets = [0, 0, 0], sizes = [1, 4, 32], strides = [1, 1, 1]} : vector<1x4x128xbf16> to vector<1x4x32xbf16>
    %45 = vector.extract_strided_slice %40 {offsets = [0, 0, 0], sizes = [1, 4, 32], strides = [1, 1, 1]} : vector<1x4x128xbf16> to vector<1x4x32xbf16>
    "tpu.trace_start"() <{level = 10 : i32, message = "bqd,bkd->bqk"}> : () -> ()
    %cst_17 = arith.constant dense<0.000000e+00> : vector<1x4x4xf32>
    %46 = tpu.matmul %44, %45, %cst_17 {dimension_numbers = #tpu.dot_dimension_numbers<[2], [2], [1], [1], [0, 0, 0, 1, 1, 1], [0], [0]>} : vector<1x4x32xbf16>, vector<1x4x32xbf16>, vector<1x4x4xf32> -> vector<1x4x4xf32>
    "tpu.trace_stop"() : () -> ()
    %cst_18 = arith.constant dense<0xFF800000> : vector<1x4xf32>
    %47 = vector.multi_reduction <maximumf>, %46, %cst_18 [2] : vector<1x4x4xf32> to vector<1x4xf32>
    %48 = vector.shape_cast %47 : vector<1x4xf32> to vector<1x4x1xf32>
    %49 = vector.broadcast %48 : vector<1x4x1xf32> to vector<1x4x4xf32>
    %50 = arith.subf %46, %49 : vector<1x4x4xf32>
    %51 = math.exp %50 : vector<1x4x4xf32>
    %cst_19 = arith.constant dense<0.000000e+00> : vector<1x4xf32>
    %52 = vector.multi_reduction <add>, %51, %cst_19 [2] : vector<1x4x4xf32> to vector<1x4xf32>
    %53 = vector.shape_cast %52 : vector<1x4xf32> to vector<1x4x1xf32>
    %54 = tpu.reciprocal %53 {approx = true} : vector<1x4x1xf32> -> vector<1x4x1xf32>
    %55 = vector.broadcast %54 : vector<1x4x1xf32> to vector<1x4x4xf32>
    %56 = arith.mulf %51, %55 : vector<1x4x4xf32>
    %57 = arith.truncf %56 : vector<1x4x4xf32> to vector<1x4x4xbf16>
    %58 = vector.extract_strided_slice %43 {offsets = [0, 0, 0], sizes = [1, 4, 32], strides = [1, 1, 1]} : vector<1x4x128xbf16> to vector<1x4x32xbf16>
    "tpu.trace_start"() <{level = 10 : i32, message = "bqk,bkd->bqd"}> : () -> ()
    %cst_20 = arith.constant dense<0.000000e+00> : vector<1x4x32xf32>
    %59 = tpu.matmul %57, %58, %cst_20 {dimension_numbers = #tpu.dot_dimension_numbers<[2], [1], [1], [2], [0, 0, 0, 1, 1, 2], [0], [0]>} : vector<1x4x4xbf16>, vector<1x4x32xbf16>, vector<1x4x32xf32> -> vector<1x4x32xf32>
    "tpu.trace_stop"() : () -> ()
    %60 = vector.extract_strided_slice %37 {offsets = [0, 0, 32], sizes = [1, 4, 32], strides = [1, 1, 1]} : vector<1x4x128xbf16> to vector<1x4x32xbf16>
    %61 = vector.extract_strided_slice %40 {offsets = [0, 0, 32], sizes = [1, 4, 32], strides = [1, 1, 1]} : vector<1x4x128xbf16> to vector<1x4x32xbf16>
    "tpu.trace_start"() <{level = 10 : i32, message = "bqd,bkd->bqk"}> : () -> ()
    %cst_21 = arith.constant dense<0.000000e+00> : vector<1x4x4xf32>
    %62 = tpu.matmul %60, %61, %cst_21 {dimension_numbers = #tpu.dot_dimension_numbers<[2], [2], [1], [1], [0, 0, 0, 1, 1, 1], [0], [0]>} : vector<1x4x32xbf16>, vector<1x4x32xbf16>, vector<1x4x4xf32> -> vector<1x4x4xf32>
    "tpu.trace_stop"() : () -> ()
    %cst_22 = arith.constant dense<0xFF800000> : vector<1x4xf32>
    %63 = vector.multi_reduction <maximumf>, %62, %cst_22 [2] : vector<1x4x4xf32> to vector<1x4xf32>
    %64 = vector.shape_cast %63 : vector<1x4xf32> to vector<1x4x1xf32>
    %65 = vector.broadcast %64 : vector<1x4x1xf32> to vector<1x4x4xf32>
    %66 = arith.subf %62, %65 : vector<1x4x4xf32>
    %67 = math.exp %66 : vector<1x4x4xf32>
    %cst_23 = arith.constant dense<0.000000e+00> : vector<1x4xf32>
    %68 = vector.multi_reduction <add>, %67, %cst_23 [2] : vector<1x4x4xf32> to vector<1x4xf32>
    %69 = vector.shape_cast %68 : vector<1x4xf32> to vector<1x4x1xf32>
    %70 = tpu.reciprocal %69 {approx = true} : vector<1x4x1xf32> -> vector<1x4x1xf32>
    %71 = vector.broadcast %70 : vector<1x4x1xf32> to vector<1x4x4xf32>
    %72 = arith.mulf %67, %71 : vector<1x4x4xf32>
    %73 = arith.truncf %72 : vector<1x4x4xf32> to vector<1x4x4xbf16>
    %74 = vector.extract_strided_slice %43 {offsets = [0, 0, 32], sizes = [1, 4, 32], strides = [1, 1, 1]} : vector<1x4x128xbf16> to vector<1x4x32xbf16>
    "tpu.trace_start"() <{level = 10 : i32, message = "bqk,bkd->bqd"}> : () -> ()
    %cst_24 = arith.constant dense<0.000000e+00> : vector<1x4x32xf32>
    %75 = tpu.matmul %73, %74, %cst_24 {dimension_numbers = #tpu.dot_dimension_numbers<[2], [1], [1], [2], [0, 0, 0, 1, 1, 2], [0], [0]>} : vector<1x4x4xbf16>, vector<1x4x32xbf16>, vector<1x4x32xf32> -> vector<1x4x32xf32>
    "tpu.trace_stop"() : () -> ()
    %76 = vector.extract_strided_slice %37 {offsets = [0, 0, 64], sizes = [1, 4, 32], strides = [1, 1, 1]} : vector<1x4x128xbf16> to vector<1x4x32xbf16>
    %77 = vector.extract_strided_slice %40 {offsets = [0, 0, 64], sizes = [1, 4, 32], strides = [1, 1, 1]} : vector<1x4x128xbf16> to vector<1x4x32xbf16>
    "tpu.trace_start"() <{level = 10 : i32, message = "bqd,bkd->bqk"}> : () -> ()
    %cst_25 = arith.constant dense<0.000000e+00> : vector<1x4x4xf32>
    %78 = tpu.matmul %76, %77, %cst_25 {dimension_numbers = #tpu.dot_dimension_numbers<[2], [2], [1], [1], [0, 0, 0, 1, 1, 1], [0], [0]>} : vector<1x4x32xbf16>, vector<1x4x32xbf16>, vector<1x4x4xf32> -> vector<1x4x4xf32>
    "tpu.trace_stop"() : () -> ()
    %cst_26 = arith.constant dense<0xFF800000> : vector<1x4xf32>
    %79 = vector.multi_reduction <maximumf>, %78, %cst_26 [2] : vector<1x4x4xf32> to vector<1x4xf32>
    %80 = vector.shape_cast %79 : vector<1x4xf32> to vector<1x4x1xf32>
    %81 = vector.broadcast %80 : vector<1x4x1xf32> to vector<1x4x4xf32>
    %82 = arith.subf %78, %81 : vector<1x4x4xf32>
    %83 = math.exp %82 : vector<1x4x4xf32>
    %cst_27 = arith.constant dense<0.000000e+00> : vector<1x4xf32>
    %84 = vector.multi_reduction <add>, %83, %cst_27 [2] : vector<1x4x4xf32> to vector<1x4xf32>
    %85 = vector.shape_cast %84 : vector<1x4xf32> to vector<1x4x1xf32>
    %86 = tpu.reciprocal %85 {approx = true} : vector<1x4x1xf32> -> vector<1x4x1xf32>
    %87 = vector.broadcast %86 : vector<1x4x1xf32> to vector<1x4x4xf32>
    %88 = arith.mulf %83, %87 : vector<1x4x4xf32>
    %89 = arith.truncf %88 : vector<1x4x4xf32> to vector<1x4x4xbf16>
    %90 = vector.extract_strided_slice %43 {offsets = [0, 0, 64], sizes = [1, 4, 32], strides = [1, 1, 1]} : vector<1x4x128xbf16> to vector<1x4x32xbf16>
    "tpu.trace_start"() <{level = 10 : i32, message = "bqk,bkd->bqd"}> : () -> ()
    %cst_28 = arith.constant dense<0.000000e+00> : vector<1x4x32xf32>
    %91 = tpu.matmul %89, %90, %cst_28 {dimension_numbers = #tpu.dot_dimension_numbers<[2], [1], [1], [2], [0, 0, 0, 1, 1, 2], [0], [0]>} : vector<1x4x4xbf16>, vector<1x4x32xbf16>, vector<1x4x32xf32> -> vector<1x4x32xf32>
    "tpu.trace_stop"() : () -> ()
    %92 = vector.extract_strided_slice %37 {offsets = [0, 0, 96], sizes = [1, 4, 32], strides = [1, 1, 1]} : vector<1x4x128xbf16> to vector<1x4x32xbf16>
    %93 = vector.extract_strided_slice %40 {offsets = [0, 0, 96], sizes = [1, 4, 32], strides = [1, 1, 1]} : vector<1x4x128xbf16> to vector<1x4x32xbf16>
    "tpu.trace_start"() <{level = 10 : i32, message = "bqd,bkd->bqk"}> : () -> ()
    %cst_29 = arith.constant dense<0.000000e+00> : vector<1x4x4xf32>
    %94 = tpu.matmul %92, %93, %cst_29 {dimension_numbers = #tpu.dot_dimension_numbers<[2], [2], [1], [1], [0, 0, 0, 1, 1, 1], [0], [0]>} : vector<1x4x32xbf16>, vector<1x4x32xbf16>, vector<1x4x4xf32> -> vector<1x4x4xf32>
    "tpu.trace_stop"() : () -> ()
    %cst_30 = arith.constant dense<0xFF800000> : vector<1x4xf32>
    %95 = vector.multi_reduction <maximumf>, %94, %cst_30 [2] : vector<1x4x4xf32> to vector<1x4xf32>
    %96 = vector.shape_cast %95 : vector<1x4xf32> to vector<1x4x1xf32>
    %97 = vector.broadcast %96 : vector<1x4x1xf32> to vector<1x4x4xf32>
    %98 = arith.subf %94, %97 : vector<1x4x4xf32>
    %99 = math.exp %98 : vector<1x4x4xf32>
    %cst_31 = arith.constant dense<0.000000e+00> : vector<1x4xf32>
    %100 = vector.multi_reduction <add>, %99, %cst_31 [2] : vector<1x4x4xf32> to vector<1x4xf32>
    %101 = vector.shape_cast %100 : vector<1x4xf32> to vector<1x4x1xf32>
    %102 = tpu.reciprocal %101 {approx = true} : vector<1x4x1xf32> -> vector<1x4x1xf32>
    %103 = vector.broadcast %102 : vector<1x4x1xf32> to vector<1x4x4xf32>
    %104 = arith.mulf %99, %103 : vector<1x4x4xf32>
    %105 = arith.truncf %104 : vector<1x4x4xf32> to vector<1x4x4xbf16>
    %106 = vector.extract_strided_slice %43 {offsets = [0, 0, 96], sizes = [1, 4, 32], strides = [1, 1, 1]} : vector<1x4x128xbf16> to vector<1x4x32xbf16>
    "tpu.trace_start"() <{level = 10 : i32, message = "bqk,bkd->bqd"}> : () -> ()
    %cst_32 = arith.constant dense<0.000000e+00> : vector<1x4x32xf32>
    %107 = tpu.matmul %105, %106, %cst_32 {dimension_numbers = #tpu.dot_dimension_numbers<[2], [1], [1], [2], [0, 0, 0, 1, 1, 2], [0], [0]>} : vector<1x4x4xbf16>, vector<1x4x32xbf16>, vector<1x4x32xf32> -> vector<1x4x32xf32>
    "tpu.trace_stop"() : () -> ()
    %108 = tpu.concatenate %59, %75, %91, %107 in 2 : vector<1x4x32xf32>, vector<1x4x32xf32>, vector<1x4x32xf32>, vector<1x4x32xf32> -> vector<1x4x128xf32>
    %109 = vector.shape_cast %108 : vector<1x4x128xf32> to vector<4x128xf32>
    %110 = arith.truncf %109 : vector<4x128xf32> to vector<4x128xbf16>
    %c0_33 = arith.constant 0 : index
    %c0_34 = arith.constant 0 : index
    %111 = vector.load %arg6[%c0_33, %c0_34] : memref<128x128xbf16, #tpu.memory_space<vmem>>, vector<128x128xbf16>
    %cst_35 = arith.constant dense<0.000000e+00> : vector<4x128xf32>
    %112 = tpu.matmul %110, %111, %cst_35 {dimension_numbers = #tpu.dot_dimension_numbers<[1], [0], [0], [1], [0, 0, 1, 1], [], []>} : vector<4x128xbf16>, vector<128x128xbf16>, vector<4x128xf32> -> vector<4x128xf32>
    %c0_36 = arith.constant 0 : index
    %c0_37 = arith.constant 0 : index
    %113 = vector.load %arg7[%c0_36, %c0_37] : memref<1x128xf32, #tpu.memory_space<vmem>>, vector<1x128xf32>
    %114 = vector.broadcast %113 : vector<1x128xf32> to vector<4x128xf32>
    %115 = arith.addf %112, %114 : vector<4x128xf32>
    %116 = arith.addf %5, %115 : vector<4x128xf32>
    %c0_38 = arith.constant 0 : index
    %c0_39 = arith.constant 0 : index
    %117 = vector.load %arg8[%c0_38, %c0_39] : memref<1x128xf32, #tpu.memory_space<vmem>>, vector<1x128xf32>
    %c0_40 = arith.constant 0 : index
    %c0_41 = arith.constant 0 : index
    %118 = vector.load %arg9[%c0_40, %c0_41] : memref<1x128xf32, #tpu.memory_space<vmem>>, vector<1x128xf32>
    %cst_42 = arith.constant dense<0.000000e+00> : vector<4xf32>
    %119 = vector.multi_reduction <add>, %116, %cst_42 [1] : vector<4x128xf32> to vector<4xf32>
    %120 = vector.shape_cast %119 : vector<4xf32> to vector<4x1xf32>
    %cst_43 = arith.constant 1.280000e+02 : f32
    %121 = vector.broadcast %cst_43 : f32 to vector<4x1xf32>
    %122 = arith.divf %120, %121 : vector<4x1xf32>
    %123 = vector.broadcast %122 : vector<4x1xf32> to vector<4x128xf32>
    %124 = arith.subf %116, %123 : vector<4x128xf32>
    %125 = arith.mulf %124, %124 : vector<4x128xf32>
    %cst_44 = arith.constant dense<0.000000e+00> : vector<4xf32>
    %126 = vector.multi_reduction <add>, %125, %cst_44 [1] : vector<4x128xf32> to vector<4xf32>
    %127 = vector.shape_cast %126 : vector<4xf32> to vector<4x1xf32>
    %cst_45 = arith.constant 1.280000e+02 : f32
    %128 = vector.broadcast %cst_45 : f32 to vector<4x1xf32>
    %129 = arith.divf %127, %128 : vector<4x1xf32>
    %130 = vector.broadcast %122 : vector<4x1xf32> to vector<4x128xf32>
    %131 = arith.subf %116, %130 : vector<4x128xf32>
    %cst_46 = arith.constant 9.99999974E-6 : f32
    %132 = vector.broadcast %cst_46 : f32 to vector<4x1xf32>
    %133 = arith.addf %129, %132 : vector<4x1xf32>
    %134 = math.rsqrt %133 : vector<4x1xf32>
    %135 = vector.broadcast %134 : vector<4x1xf32> to vector<4x128xf32>
    %136 = arith.mulf %131, %135 : vector<4x128xf32>
    %137 = vector.broadcast %117 : vector<1x128xf32> to vector<4x128xf32>
    %138 = arith.mulf %136, %137 : vector<4x128xf32>
    %139 = vector.broadcast %118 : vector<1x128xf32> to vector<4x128xf32>
    %140 = arith.addf %138, %139 : vector<4x128xf32>
    %141 = arith.truncf %140 : vector<4x128xf32> to vector<4x128xbf16>
    %c0_47 = arith.constant 0 : index
    %c0_48 = arith.constant 0 : index
    %142 = vector.load %arg10[%c0_47, %c0_48] : memref<128x512xbf16, #tpu.memory_space<vmem>>, vector<128x512xbf16>
    %cst_49 = arith.constant dense<0.000000e+00> : vector<4x512xf32>
    %143 = tpu.matmul %141, %142, %cst_49 {dimension_numbers = #tpu.dot_dimension_numbers<[1], [0], [0], [1], [0, 0, 1, 1], [], []>} : vector<4x128xbf16>, vector<128x512xbf16>, vector<4x512xf32> -> vector<4x512xf32>
    %c0_50 = arith.constant 0 : index
    %c0_51 = arith.constant 0 : index
    %144 = vector.load %arg11[%c0_50, %c0_51] : memref<1x512xf32, #tpu.memory_space<vmem>>, vector<1x512xf32>
    %145 = vector.broadcast %144 : vector<1x512xf32> to vector<4x512xf32>
    %146 = arith.addf %143, %145 : vector<4x512xf32>
    %cst_52 = arith.constant 5.000000e-01 : f32
    %147 = vector.broadcast %cst_52 : f32 to vector<4x512xf32>
    %148 = arith.mulf %147, %146 : vector<4x512xf32>
    %cst_53 = arith.constant 4.471500e-02 : f32
    %149 = vector.broadcast %cst_53 : f32 to vector<4x512xf32>
    %150 = arith.mulf %149, %146 : vector<4x512xf32>
    %151 = arith.mulf %150, %146 : vector<4x512xf32>
    %152 = arith.mulf %151, %146 : vector<4x512xf32>
    %153 = arith.addf %146, %152 : vector<4x512xf32>
    %cst_54 = arith.constant 0.797884583 : f32
    %154 = vector.broadcast %cst_54 : f32 to vector<4x512xf32>
    %155 = arith.mulf %154, %153 : vector<4x512xf32>
    %156 = math.tanh %155 : vector<4x512xf32>
    %cst_55 = arith.constant 1.000000e+00 : f32
    %157 = vector.broadcast %cst_55 : f32 to vector<4x512xf32>
    %158 = arith.addf %157, %156 : vector<4x512xf32>
    %159 = arith.mulf %148, %158 : vector<4x512xf32>
    %160 = arith.truncf %159 : vector<4x512xf32> to vector<4x512xbf16>
    %c0_56 = arith.constant 0 : index
    %c0_57 = arith.constant 0 : index
    %161 = vector.load %arg12[%c0_56, %c0_57] : memref<512x128xbf16, #tpu.memory_space<vmem>>, vector<512x128xbf16>
    %cst_58 = arith.constant dense<0.000000e+00> : vector<4x128xf32>
    %162 = tpu.matmul %160, %161, %cst_58 {dimension_numbers = #tpu.dot_dimension_numbers<[1], [0], [0], [1], [0, 0, 1, 1], [], []>} : vector<4x512xbf16>, vector<512x128xbf16>, vector<4x128xf32> -> vector<4x128xf32>
    %c0_59 = arith.constant 0 : index
    %c0_60 = arith.constant 0 : index
    %163 = vector.load %arg13[%c0_59, %c0_60] : memref<1x128xf32, #tpu.memory_space<vmem>>, vector<1x128xf32>
    %164 = vector.broadcast %163 : vector<1x128xf32> to vector<4x128xf32>
    %165 = arith.addf %162, %164 : vector<4x128xf32>
    %166 = arith.addf %116, %165 : vector<4x128xf32>
    %167 = vector.shape_cast %166 : vector<4x128xf32> to vector<1x4x128xf32>
    %168 = arith.truncf %167 : vector<1x4x128xf32> to vector<1x4x128xbf16>
    %c0_61 = arith.constant 0 : index
    %c0_62 = arith.constant 0 : index
    %c0_63 = arith.constant 0 : index
    %169 = vector.load %arg16[%c0_61, %c0_62, %c0_63] : memref<1x4x128xbf16, #tpu.memory_space<vmem>>, vector<1x4x128xbf16>
    tpu.vector_store %arg16[%c0_61, %c0_62, %c0_63], %168 {strides = array<i32>} : memref<1x4x128xbf16, #tpu.memory_space<vmem>>, vector<1x4x128xbf16>,
    return
  }
  func.func @transform_0(%arg0: i32) -> (i32, i32, i32) {
    %c0_i32 = arith.constant 0 : i32
    %c0_i32_0 = arith.constant 0 : i32
    %c0_i32_1 = arith.constant 0 : i32
    return %arg0, %c0_i32, %c0_i32_0 : i32, i32, i32
  }
  func.func @transform_1(%arg0: i32) -> (i32, i32, i32) {
    %c0_i32 = arith.constant 0 : i32
    %c0_i32_0 = arith.constant 0 : i32
    %c0_i32_1 = arith.constant 0 : i32
    return %arg0, %c0_i32, %c0_i32_0 : i32, i32, i32
  }
  func.func @transform_2(%arg0: i32) -> (i32, i32) {
    %c0_i32 = arith.constant 0 : i32
    %c0_i32_0 = arith.constant 0 : i32
    %c0_i32_1 = arith.constant 0 : i32
    return %c0_i32, %c0_i32_0 : i32, i32
  }
  func.func @transform_3(%arg0: i32) -> (i32, i32) {
    %c0_i32 = arith.constant 0 : i32
    %c0_i32_0 = arith.constant 0 : i32
    %c0_i32_1 = arith.constant 0 : i32
    return %c0_i32, %c0_i32_0 : i32, i32
  }
  func.func @transform_4(%arg0: i32) -> (i32, i32) {
    %c0_i32 = arith.constant 0 : i32
    %c0_i32_0 = arith.constant 0 : i32
    %c0_i32_1 = arith.constant 0 : i32
    return %c0_i32, %c0_i32_0 : i32, i32
  }
  func.func @transform_5(%arg0: i32) -> (i32, i32) {
    %c0_i32 = arith.constant 0 : i32
    %c0_i32_0 = arith.constant 0 : i32
    %c0_i32_1 = arith.constant 0 : i32
    return %c0_i32, %c0_i32_0 : i32, i32
  }
  func.func @transform_6(%arg0: i32) -> (i32, i32) {
    %c0_i32 = arith.constant 0 : i32
    %c0_i32_0 = arith.constant 0 : i32
    %c0_i32_1 = arith.constant 0 : i32
    return %c0_i32, %c0_i32_0 : i32, i32
  }
  func.func @transform_7(%arg0: i32) -> (i32, i32) {
    %c0_i32 = arith.constant 0 : i32
    %c0_i32_0 = arith.constant 0 : i32
    %c0_i32_1 = arith.constant 0 : i32
    return %c0_i32, %c0_i32_0 : i32, i32
  }
  func.func @transform_8(%arg0: i32) -> (i32, i32) {
    %c0_i32 = arith.constant 0 : i32
    %c0_i32_0 = arith.constant 0 : i32
    %c0_i32_1 = arith.constant 0 : i32
    return %c0_i32, %c0_i32_0 : i32, i32
  }
  func.func @transform_9(%arg0: i32) -> (i32, i32) {
    %c0_i32 = arith.constant 0 : i32
    %c0_i32_0 = arith.constant 0 : i32
    %c0_i32_1 = arith.constant 0 : i32
    return %c0_i32, %c0_i32_0 : i32, i32
  }
  func.func @transform_10(%arg0: i32) -> (i32, i32) {
    %c0_i32 = arith.constant 0 : i32
    %c0_i32_0 = arith.constant 0 : i32
    %c0_i32_1 = arith.constant 0 : i32
    return %c0_i32, %c0_i32_0 : i32, i32
  }
  func.func @transform_11(%arg0: i32) -> (i32, i32) {
    %c0_i32 = arith.constant 0 : i32
    %c0_i32_0 = arith.constant 0 : i32
    %c0_i32_1 = arith.constant 0 : i32
    return %c0_i32, %c0_i32_0 : i32, i32
  }
  func.func @transform_12(%arg0: i32) -> (i32, i32) {
    %c0_i32 = arith.constant 0 : i32
    %c0_i32_0 = arith.constant 0 : i32
    %c0_i32_1 = arith.constant 0 : i32
    return %c0_i32, %c0_i32_0 : i32, i32
  }
  func.func @transform_13(%arg0: i32) -> (i32, i32) {
    %c0_i32 = arith.constant 0 : i32
    %c0_i32_0 = arith.constant 0 : i32
    %c0_i32_1 = arith.constant 0 : i32
    return %c0_i32, %c0_i32_0 : i32, i32
  }
  func.func @transform_14(%arg0: i32) -> (i32, i32) {
    %c0_i32 = arith.constant 0 : i32
    %c0_i32_0 = arith.constant 0 : i32
    %c0_i32_1 = arith.constant 0 : i32
    return %c0_i32, %c0_i32_0 : i32, i32
  }
  func.func @transform_15(%arg0: i32) -> (i32, i32, i32) {
    %c0_i32 = arith.constant 0 : i32
    %c0_i32_0 = arith.constant 0 : i32
    %c0_i32_1 = arith.constant 0 : i32
    return %arg0, %c0_i32, %c0_i32_0 : i32, i32, i32
  }
}

module attributes {stable_mosaic.version = 11 : i64} {
  func.func @block_kernel(%arg0: i32, %arg1: memref<1x4x128xbf16, #tpu.memory_space<vmem>>, %arg2: memref<1x4x128xbf16, #tpu.memory_space<vmem>>, %arg3: memref<1x128xf32, #tpu.memory_space<vmem>>, %arg4: memref<1x128xf32, #tpu.memory_space<vmem>>, %arg5: memref<128x384xbf16, #tpu.memory_space<vmem>>, %arg6: memref<128x128xbf16, #tpu.memory_space<vmem>>, %arg7: memref<1x128xf32, #tpu.memory_space<vmem>>, %arg8: memref<1x128xf32, #tpu.memory_space<vmem>>, %arg9: memref<1x128xf32, #tpu.memory_space<vmem>>, %arg10: memref<128x512xbf16, #tpu.memory_space<vmem>>, %arg11: memref<1x512xf32, #tpu.memory_space<vmem>>, %arg12: memref<512x128xbf16, #tpu.memory_space<vmem>>, %arg13: memref<1x128xf32, #tpu.memory_space<vmem>>, %arg14: memref<1x128xf32, #tpu.memory_space<vmem>>, %arg15: memref<1x128xf32, #tpu.memory_space<vmem>>, %arg16: memref<1x4x128xf32, #tpu.memory_space<vmem>>) attributes {dimension_semantics = [#tpu.dimension_semantics<parallel>], iteration_bounds = array<i64: 2>, scalar_prefetch = 0 : i64, scratch_operands = 0 : i64, tpu.core_type = #tpu.core_type<tc>, window_params = [{transform_indices = @transform_0, window_bounds = array<i64: 1, 4, 128>}, {transform_indices = @transform_1, window_bounds = array<i64: 1, 4, 128>}, {pipeline_mode = #tpu.pipeline_mode<synchronous>, transform_indices = @transform_2, window_bounds = array<i64: 1, 128>}, {pipeline_mode = #tpu.pipeline_mode<synchronous>, transform_indices = @transform_3, window_bounds = array<i64: 1, 128>}, {pipeline_mode = #tpu.pipeline_mode<synchronous>, transform_indices = @transform_4, window_bounds = array<i64: 128, 384>}, {pipeline_mode = #tpu.pipeline_mode<synchronous>, transform_indices = @transform_5, window_bounds = array<i64: 128, 128>}, {pipeline_mode = #tpu.pipeline_mode<synchronous>, transform_indices = @transform_6, window_bounds = array<i64: 1, 128>}, {pipeline_mode = #tpu.pipeline_mode<synchronous>, transform_indices = @transform_7, window_bounds = array<i64: 1, 128>}, {pipeline_mode = #tpu.pipeline_mode<synchronous>, transform_indices = @transform_8, window_bounds = array<i64: 1, 128>}, {pipeline_mode = #tpu.pipeline_mode<synchronous>, transform_indices = @transform_9, window_bounds = array<i64: 128, 512>}, {pipeline_mode = #tpu.pipeline_mode<synchronous>, transform_indices = @transform_10, window_bounds = array<i64: 1, 512>}, {pipeline_mode = #tpu.pipeline_mode<synchronous>, transform_indices = @transform_11, window_bounds = array<i64: 512, 128>}, {pipeline_mode = #tpu.pipeline_mode<synchronous>, transform_indices = @transform_12, window_bounds = array<i64: 1, 128>}, {pipeline_mode = #tpu.pipeline_mode<synchronous>, transform_indices = @transform_13, window_bounds = array<i64: 1, 128>}, {pipeline_mode = #tpu.pipeline_mode<synchronous>, transform_indices = @transform_14, window_bounds = array<i64: 1, 128>}, {transform_indices = @transform_15, window_bounds = array<i64: 1, 4, 128>}]} {
    %c0 = arith.constant 0 : index
    %c0_0 = arith.constant 0 : index
    %c0_1 = arith.constant 0 : index
    %0 = vector.load %arg1[%c0, %c0_0, %c0_1] : memref<1x4x128xbf16, #tpu.memory_space<vmem>>, vector<1x4x128xbf16>
    %1 = arith.extf %0 : vector<1x4x128xbf16> to vector<1x4x128xf32>
    %c0_2 = arith.constant 0 : index
    %c0_3 = arith.constant 0 : index
    %c0_4 = arith.constant 0 : index
    %2 = vector.load %arg2[%c0_2, %c0_3, %c0_4] : memref<1x4x128xbf16, #tpu.memory_space<vmem>>, vector<1x4x128xbf16>
    %3 = arith.extf %2 : vector<1x4x128xbf16> to vector<1x4x128xf32>
    %4 = arith.addf %1, %3 : vector<1x4x128xf32>
    %5 = vector.shape_cast %4 : vector<1x4x128xf32> to vector<4x128xf32>
    %c0_5 = arith.constant 0 : index
    %c0_6 = arith.constant 0 : index
    %6 = vector.load %arg3[%c0_5, %c0_6] : memref<1x128xf32, #tpu.memory_space<vmem>>, vector<1x128xf32>
    %c0_7 = arith.constant 0 : index
    %c0_8 = arith.constant 0 : index
    %7 = vector.load %arg4[%c0_7, %c0_8] : memref<1x128xf32, #tpu.memory_space<vmem>>, vector<1x128xf32>
    %cst = arith.constant dense<0.000000e+00> : vector<4xf32>
    %8 = vector.multi_reduction <add>, %5, %cst [1] : vector<4x128xf32> to vector<4xf32>
    %9 = vector.shape_cast %8 : vector<4xf32> to vector<4x1xf32>
    %cst_9 = arith.constant 1.280000e+02 : f32
    %10 = vector.broadcast %cst_9 : f32 to vector<4x1xf32>
    %11 = arith.divf %9, %10 : vector<4x1xf32>
    %12 = vector.broadcast %11 : vector<4x1xf32> to vector<4x128xf32>
    %13 = arith.subf %5, %12 : vector<4x128xf32>
    %14 = arith.mulf %13, %13 : vector<4x128xf32>
    %cst_10 = arith.constant dense<0.000000e+00> : vector<4xf32>
    %15 = vector.multi_reduction <add>, %14, %cst_10 [1] : vector<4x128xf32> to vector<4xf32>
    %16 = vector.shape_cast %15 : vector<4xf32> to vector<4x1xf32>
    %cst_11 = arith.constant 1.280000e+02 : f32
    %17 = vector.broadcast %cst_11 : f32 to vector<4x1xf32>
    %18 = arith.divf %16, %17 : vector<4x1xf32>
    %19 = vector.broadcast %11 : vector<4x1xf32> to vector<4x128xf32>
    %20 = arith.subf %5, %19 : vector<4x128xf32>
    %cst_12 = arith.constant 9.99999974E-6 : f32
    %21 = vector.broadcast %cst_12 : f32 to vector<4x1xf32>
    %22 = arith.addf %18, %21 : vector<4x1xf32>
    %23 = math.rsqrt %22 : vector<4x1xf32>
    %24 = vector.broadcast %23 : vector<4x1xf32> to vector<4x128xf32>
    %25 = arith.mulf %20, %24 : vector<4x128xf32>
    %26 = vector.broadcast %6 : vector<1x128xf32> to vector<4x128xf32>
    %27 = arith.mulf %25, %26 : vector<4x128xf32>
    %28 = vector.broadcast %7 : vector<1x128xf32> to vector<4x128xf32>
    %29 = arith.addf %27, %28 : vector<4x128xf32>
    %30 = arith.truncf %29 : vector<4x128xf32> to vector<4x128xbf16>
    %c0_13 = arith.constant 0 : index
    %c0_14 = arith.constant 0 : index
    %31 = vector.load %arg5[%c0_13, %c0_14] : memref<128x384xbf16, #tpu.memory_space<vmem>>, vector<128x384xbf16>
    %cst_15 = arith.constant dense<0.000000e+00> : vector<4x384xf32>
    %32 = tpu.matmul %30, %31, %cst_15 {dimension_numbers = #tpu.dot_dimension_numbers<[1], [0], [0], [1], [0, 0, 1, 1], [], []>} : vector<4x128xbf16>, vector<128x384xbf16>, vector<4x384xf32> -> vector<4x384xf32>
    %33 = vector.extract_strided_slice %32 {offsets = [0, 0], sizes = [4, 128], strides = [1, 1]} : vector<4x384xf32> to vector<4x128xf32>
    %cst_16 = arith.constant 0.176776692 : f32
    %34 = vector.broadcast %cst_16 : f32 to vector<4x128xf32>
    %35 = arith.mulf %33, %34 : vector<4x128xf32>
    %36 = vector.shape_cast %35 : vector<4x128xf32> to vector<1x4x128xf32>
    %37 = arith.truncf %36 : vector<1x4x128xf32> to vector<1x4x128xbf16>
    %38 = vector.extract_strided_slice %32 {offsets = [0, 128], sizes = [4, 128], strides = [1, 1]} : vector<4x384xf32> to vector<4x128xf32>
    %39 = vector.shape_cast %38 : vector<4x128xf32> to vector<1x4x128xf32>
    %40 = arith.truncf %39 : vector<1x4x128xf32> to vector<1x4x128xbf16>
    %41 = vector.extract_strided_slice %32 {offsets = [0, 256], sizes = [4, 128], strides = [1, 1]} : vector<4x384xf32> to vector<4x128xf32>
    %42 = vector.shape_cast %41 : vector<4x128xf32> to vector<1x4x128xf32>
    %43 = arith.truncf %42 : vector<1x4x128xf32> to vector<1x4x128xbf16>
    %44 = vector.extract_strided_slice %37 {offsets = [0, 0, 0], sizes = [1, 4, 32], strides = [1, 1, 1]} : vector<1x4x128xbf16> to vector<1x4x32xbf16>
    %45 = vector.extract_strided_slice %40 {offsets = [0, 0, 0], sizes = [1, 4, 32], strides = [1, 1, 1]} : vector<1x4x128xbf16> to vector<1x4x32xbf16>
    "tpu.trace_start"() <{level = 10 : i32, message = "bqd,bkd->bqk"}> : () -> ()
    %cst_17 = arith.constant dense<0.000000e+00> : vector<1x4x4xf32>
    %46 = tpu.matmul %44, %45, %cst_17 {dimension_numbers = #tpu.dot_dimension_numbers<[2], [2], [1], [1], [0, 0, 0, 1, 1, 1], [0], [0]>} : vector<1x4x32xbf16>, vector<1x4x32xbf16>, vector<1x4x4xf32> -> vector<1x4x4xf32>
    "tpu.trace_stop"() : () -> ()
    %cst_18 = arith.constant dense<0xFF800000> : vector<1x4xf32>
    %47 = vector.multi_reduction <maximumf>, %46, %cst_18 [2] : vector<1x4x4xf32> to vector<1x4xf32>
    %48 = vector.shape_cast %47 : vector<1x4xf32> to vector<1x4x1xf32>
    %49 = vector.broadcast %48 : vector<1x4x1xf32> to vector<1x4x4xf32>
    %50 = arith.subf %46, %49 : vector<1x4x4xf32>
    %51 = math.exp %50 : vector<1x4x4xf32>
    %cst_19 = arith.constant dense<0.000000e+00> : vector<1x4xf32>
    %52 = vector.multi_reduction <add>, %51, %cst_19 [2] : vector<1x4x4xf32> to vector<1x4xf32>
    %53 = vector.shape_cast %52 : vector<1x4xf32> to vector<1x4x1xf32>
    %54 = tpu.reciprocal %53 {approx = true} : vector<1x4x1xf32> -> vector<1x4x1xf32>
    %55 = vector.broadcast %54 : vector<1x4x1xf32> to vector<1x4x4xf32>
    %56 = arith.mulf %51, %55 : vector<1x4x4xf32>
    %57 = arith.truncf %56 : vector<1x4x4xf32> to vector<1x4x4xbf16>
    %58 = vector.extract_strided_slice %43 {offsets = [0, 0, 0], sizes = [1, 4, 32], strides = [1, 1, 1]} : vector<1x4x128xbf16> to vector<1x4x32xbf16>
    "tpu.trace_start"() <{level = 10 : i32, message = "bqk,bkd->bqd"}> : () -> ()
    %cst_20 = arith.constant dense<0.000000e+00> : vector<1x4x32xf32>
    %59 = tpu.matmul %57, %58, %cst_20 {dimension_numbers = #tpu.dot_dimension_numbers<[2], [1], [1], [2], [0, 0, 0, 1, 1, 2], [0], [0]>} : vector<1x4x4xbf16>, vector<1x4x32xbf16>, vector<1x4x32xf32> -> vector<1x4x32xf32>
    "tpu.trace_stop"() : () -> ()
    %60 = vector.extract_strided_slice %37 {offsets = [0, 0, 32], sizes = [1, 4, 32], strides = [1, 1, 1]} : vector<1x4x128xbf16> to vector<1x4x32xbf16>
    %61 = vector.extract_strided_slice %40 {offsets = [0, 0, 32], sizes = [1, 4, 32], strides = [1, 1, 1]} : vector<1x4x128xbf16> to vector<1x4x32xbf16>
    "tpu.trace_start"() <{level = 10 : i32, message = "bqd,bkd->bqk"}> : () -> ()
    %cst_21 = arith.constant dense<0.000000e+00> : vector<1x4x4xf32>
    %62 = tpu.matmul %60, %61, %cst_21 {dimension_numbers = #tpu.dot_dimension_numbers<[2], [2], [1], [1], [0, 0, 0, 1, 1, 1], [0], [0]>} : vector<1x4x32xbf16>, vector<1x4x32xbf16>, vector<1x4x4xf32> -> vector<1x4x4xf32>
    "tpu.trace_stop"() : () -> ()
    %cst_22 = arith.constant dense<0xFF800000> : vector<1x4xf32>
    %63 = vector.multi_reduction <maximumf>, %62, %cst_22 [2] : vector<1x4x4xf32> to vector<1x4xf32>
    %64 = vector.shape_cast %63 : vector<1x4xf32> to vector<1x4x1xf32>
    %65 = vector.broadcast %64 : vector<1x4x1xf32> to vector<1x4x4xf32>
    %66 = arith.subf %62, %65 : vector<1x4x4xf32>
    %67 = math.exp %66 : vector<1x4x4xf32>
    %cst_23 = arith.constant dense<0.000000e+00> : vector<1x4xf32>
    %68 = vector.multi_reduction <add>, %67, %cst_23 [2] : vector<1x4x4xf32> to vector<1x4xf32>
    %69 = vector.shape_cast %68 : vector<1x4xf32> to vector<1x4x1xf32>
    %70 = tpu.reciprocal %69 {approx = true} : vector<1x4x1xf32> -> vector<1x4x1xf32>
    %71 = vector.broadcast %70 : vector<1x4x1xf32> to vector<1x4x4xf32>
    %72 = arith.mulf %67, %71 : vector<1x4x4xf32>
    %73 = arith.truncf %72 : vector<1x4x4xf32> to vector<1x4x4xbf16>
    %74 = vector.extract_strided_slice %43 {offsets = [0, 0, 32], sizes = [1, 4, 32], strides = [1, 1, 1]} : vector<1x4x128xbf16> to vector<1x4x32xbf16>
    "tpu.trace_start"() <{level = 10 : i32, message = "bqk,bkd->bqd"}> : () -> ()
    %cst_24 = arith.constant dense<0.000000e+00> : vector<1x4x32xf32>
    %75 = tpu.matmul %73, %74, %cst_24 {dimension_numbers = #tpu.dot_dimension_numbers<[2], [1], [1], [2], [0, 0, 0, 1, 1, 2], [0], [0]>} : vector<1x4x4xbf16>, vector<1x4x32xbf16>, vector<1x4x32xf32> -> vector<1x4x32xf32>
    "tpu.trace_stop"() : () -> ()
    %76 = vector.extract_strided_slice %37 {offsets = [0, 0, 64], sizes = [1, 4, 32], strides = [1, 1, 1]} : vector<1x4x128xbf16> to vector<1x4x32xbf16>
    %77 = vector.extract_strided_slice %40 {offsets = [0, 0, 64], sizes = [1, 4, 32], strides = [1, 1, 1]} : vector<1x4x128xbf16> to vector<1x4x32xbf16>
    "tpu.trace_start"() <{level = 10 : i32, message = "bqd,bkd->bqk"}> : () -> ()
    %cst_25 = arith.constant dense<0.000000e+00> : vector<1x4x4xf32>
    %78 = tpu.matmul %76, %77, %cst_25 {dimension_numbers = #tpu.dot_dimension_numbers<[2], [2], [1], [1], [0, 0, 0, 1, 1, 1], [0], [0]>} : vector<1x4x32xbf16>, vector<1x4x32xbf16>, vector<1x4x4xf32> -> vector<1x4x4xf32>
    "tpu.trace_stop"() : () -> ()
    %cst_26 = arith.constant dense<0xFF800000> : vector<1x4xf32>
    %79 = vector.multi_reduction <maximumf>, %78, %cst_26 [2] : vector<1x4x4xf32> to vector<1x4xf32>
    %80 = vector.shape_cast %79 : vector<1x4xf32> to vector<1x4x1xf32>
    %81 = vector.broadcast %80 : vector<1x4x1xf32> to vector<1x4x4xf32>
    %82 = arith.subf %78, %81 : vector<1x4x4xf32>
    %83 = math.exp %82 : vector<1x4x4xf32>
    %cst_27 = arith.constant dense<0.000000e+00> : vector<1x4xf32>
    %84 = vector.multi_reduction <add>, %83, %cst_27 [2] : vector<1x4x4xf32> to vector<1x4xf32>
    %85 = vector.shape_cast %84 : vector<1x4xf32> to vector<1x4x1xf32>
    %86 = tpu.reciprocal %85 {approx = true} : vector<1x4x1xf32> -> vector<1x4x1xf32>
    %87 = vector.broadcast %86 : vector<1x4x1xf32> to vector<1x4x4xf32>
    %88 = arith.mulf %83, %87 : vector<1x4x4xf32>
    %89 = arith.truncf %88 : vector<1x4x4xf32> to vector<1x4x4xbf16>
    %90 = vector.extract_strided_slice %43 {offsets = [0, 0, 64], sizes = [1, 4, 32], strides = [1, 1, 1]} : vector<1x4x128xbf16> to vector<1x4x32xbf16>
    "tpu.trace_start"() <{level = 10 : i32, message = "bqk,bkd->bqd"}> : () -> ()
    %cst_28 = arith.constant dense<0.000000e+00> : vector<1x4x32xf32>
    %91 = tpu.matmul %89, %90, %cst_28 {dimension_numbers = #tpu.dot_dimension_numbers<[2], [1], [1], [2], [0, 0, 0, 1, 1, 2], [0], [0]>} : vector<1x4x4xbf16>, vector<1x4x32xbf16>, vector<1x4x32xf32> -> vector<1x4x32xf32>
    "tpu.trace_stop"() : () -> ()
    %92 = vector.extract_strided_slice %37 {offsets = [0, 0, 96], sizes = [1, 4, 32], strides = [1, 1, 1]} : vector<1x4x128xbf16> to vector<1x4x32xbf16>
    %93 = vector.extract_strided_slice %40 {offsets = [0, 0, 96], sizes = [1, 4, 32], strides = [1, 1, 1]} : vector<1x4x128xbf16> to vector<1x4x32xbf16>
    "tpu.trace_start"() <{level = 10 : i32, message = "bqd,bkd->bqk"}> : () -> ()
    %cst_29 = arith.constant dense<0.000000e+00> : vector<1x4x4xf32>
    %94 = tpu.matmul %92, %93, %cst_29 {dimension_numbers = #tpu.dot_dimension_numbers<[2], [2], [1], [1], [0, 0, 0, 1, 1, 1], [0], [0]>} : vector<1x4x32xbf16>, vector<1x4x32xbf16>, vector<1x4x4xf32> -> vector<1x4x4xf32>
    "tpu.trace_stop"() : () -> ()
    %cst_30 = arith.constant dense<0xFF800000> : vector<1x4xf32>
    %95 = vector.multi_reduction <maximumf>, %94, %cst_30 [2] : vector<1x4x4xf32> to vector<1x4xf32>
    %96 = vector.shape_cast %95 : vector<1x4xf32> to vector<1x4x1xf32>
    %97 = vector.broadcast %96 : vector<1x4x1xf32> to vector<1x4x4xf32>
    %98 = arith.subf %94, %97 : vector<1x4x4xf32>
    %99 = math.exp %98 : vector<1x4x4xf32>
    %cst_31 = arith.constant dense<0.000000e+00> : vector<1x4xf32>
    %100 = vector.multi_reduction <add>, %99, %cst_31 [2] : vector<1x4x4xf32> to vector<1x4xf32>
    %101 = vector.shape_cast %100 : vector<1x4xf32> to vector<1x4x1xf32>
    %102 = tpu.reciprocal %101 {approx = true} : vector<1x4x1xf32> -> vector<1x4x1xf32>
    %103 = vector.broadcast %102 : vector<1x4x1xf32> to vector<1x4x4xf32>
    %104 = arith.mulf %99, %103 : vector<1x4x4xf32>
    %105 = arith.truncf %104 : vector<1x4x4xf32> to vector<1x4x4xbf16>
    %106 = vector.extract_strided_slice %43 {offsets = [0, 0, 96], sizes = [1, 4, 32], strides = [1, 1, 1]} : vector<1x4x128xbf16> to vector<1x4x32xbf16>
    "tpu.trace_start"() <{level = 10 : i32, message = "bqk,bkd->bqd"}> : () -> ()
    %cst_32 = arith.constant dense<0.000000e+00> : vector<1x4x32xf32>
    %107 = tpu.matmul %105, %106, %cst_32 {dimension_numbers = #tpu.dot_dimension_numbers<[2], [1], [1], [2], [0, 0, 0, 1, 1, 2], [0], [0]>} : vector<1x4x4xbf16>, vector<1x4x32xbf16>, vector<1x4x32xf32> -> vector<1x4x32xf32>
    "tpu.trace_stop"() : () -> ()
    %108 = tpu.concatenate %59, %75, %91, %107 in 2 : vector<1x4x32xf32>, vector<1x4x32xf32>, vector<1x4x32xf32>, vector<1x4x32xf32> -> vector<1x4x128xf32>
    %109 = vector.shape_cast %108 : vector<1x4x128xf32> to vector<4x128xf32>
    %110 = arith.truncf %109 : vector<4x128xf32> to vector<4x128xbf16>
    %c0_33 = arith.constant 0 : index
    %c0_34 = arith.constant 0 : index
    %111 = vector.load %arg6[%c0_33, %c0_34] : memref<128x128xbf16, #tpu.memory_space<vmem>>, vector<128x128xbf16>
    %cst_35 = arith.constant dense<0.000000e+00> : vector<4x128xf32>
    %112 = tpu.matmul %110, %111, %cst_35 {dimension_numbers = #tpu.dot_dimension_numbers<[1], [0], [0], [1], [0, 0, 1, 1], [], []>} : vector<4x128xbf16>, vector<128x128xbf16>, vector<4x128xf32> -> vector<4x128xf32>
    %c0_36 = arith.constant 0 : index
    %c0_37 = arith.constant 0 : index
    %113 = vector.load %arg7[%c0_36, %c0_37] : memref<1x128xf32, #tpu.memory_space<vmem>>, vector<1x128xf32>
    %114 = vector.broadcast %113 : vector<1x128xf32> to vector<4x128xf32>
    %115 = arith.addf %112, %114 : vector<4x128xf32>
    %116 = arith.addf %5, %115 : vector<4x128xf32>
    %c0_38 = arith.constant 0 : index
    %c0_39 = arith.constant 0 : index
    %117 = vector.load %arg8[%c0_38, %c0_39] : memref<1x128xf32, #tpu.memory_space<vmem>>, vector<1x128xf32>
    %c0_40 = arith.constant 0 : index
    %c0_41 = arith.constant 0 : index
    %118 = vector.load %arg9[%c0_40, %c0_41] : memref<1x128xf32, #tpu.memory_space<vmem>>, vector<1x128xf32>
    %cst_42 = arith.constant dense<0.000000e+00> : vector<4xf32>
    %119 = vector.multi_reduction <add>, %116, %cst_42 [1] : vector<4x128xf32> to vector<4xf32>
    %120 = vector.shape_cast %119 : vector<4xf32> to vector<4x1xf32>
    %cst_43 = arith.constant 1.280000e+02 : f32
    %121 = vector.broadcast %cst_43 : f32 to vector<4x1xf32>
    %122 = arith.divf %120, %121 : vector<4x1xf32>
    %123 = vector.broadcast %122 : vector<4x1xf32> to vector<4x128xf32>
    %124 = arith.subf %116, %123 : vector<4x128xf32>
    %125 = arith.mulf %124, %124 : vector<4x128xf32>
    %cst_44 = arith.constant dense<0.000000e+00> : vector<4xf32>
    %126 = vector.multi_reduction <add>, %125, %cst_44 [1] : vector<4x128xf32> to vector<4xf32>
    %127 = vector.shape_cast %126 : vector<4xf32> to vector<4x1xf32>
    %cst_45 = arith.constant 1.280000e+02 : f32
    %128 = vector.broadcast %cst_45 : f32 to vector<4x1xf32>
    %129 = arith.divf %127, %128 : vector<4x1xf32>
    %130 = vector.broadcast %122 : vector<4x1xf32> to vector<4x128xf32>
    %131 = arith.subf %116, %130 : vector<4x128xf32>
    %cst_46 = arith.constant 9.99999974E-6 : f32
    %132 = vector.broadcast %cst_46 : f32 to vector<4x1xf32>
    %133 = arith.addf %129, %132 : vector<4x1xf32>
    %134 = math.rsqrt %133 : vector<4x1xf32>
    %135 = vector.broadcast %134 : vector<4x1xf32> to vector<4x128xf32>
    %136 = arith.mulf %131, %135 : vector<4x128xf32>
    %137 = vector.broadcast %117 : vector<1x128xf32> to vector<4x128xf32>
    %138 = arith.mulf %136, %137 : vector<4x128xf32>
    %139 = vector.broadcast %118 : vector<1x128xf32> to vector<4x128xf32>
    %140 = arith.addf %138, %139 : vector<4x128xf32>
    %141 = arith.truncf %140 : vector<4x128xf32> to vector<4x128xbf16>
    %c0_47 = arith.constant 0 : index
    %c0_48 = arith.constant 0 : index
    %142 = vector.load %arg10[%c0_47, %c0_48] : memref<128x512xbf16, #tpu.memory_space<vmem>>, vector<128x512xbf16>
    %cst_49 = arith.constant dense<0.000000e+00> : vector<4x512xf32>
    %143 = tpu.matmul %141, %142, %cst_49 {dimension_numbers = #tpu.dot_dimension_numbers<[1], [0], [0], [1], [0, 0, 1, 1], [], []>} : vector<4x128xbf16>, vector<128x512xbf16>, vector<4x512xf32> -> vector<4x512xf32>
    %c0_50 = arith.constant 0 : index
    %c0_51 = arith.constant 0 : index
    %144 = vector.load %arg11[%c0_50, %c0_51] : memref<1x512xf32, #tpu.memory_space<vmem>>, vector<1x512xf32>
    %145 = vector.broadcast %144 : vector<1x512xf32> to vector<4x512xf32>
    %146 = arith.addf %143, %145 : vector<4x512xf32>
    %cst_52 = arith.constant 5.000000e-01 : f32
    %147 = vector.broadcast %cst_52 : f32 to vector<4x512xf32>
    %148 = arith.mulf %147, %146 : vector<4x512xf32>
    %cst_53 = arith.constant 4.471500e-02 : f32
    %149 = vector.broadcast %cst_53 : f32 to vector<4x512xf32>
    %150 = arith.mulf %149, %146 : vector<4x512xf32>
    %151 = arith.mulf %150, %146 : vector<4x512xf32>
    %152 = arith.mulf %151, %146 : vector<4x512xf32>
    %153 = arith.addf %146, %152 : vector<4x512xf32>
    %cst_54 = arith.constant 0.797884583 : f32
    %154 = vector.broadcast %cst_54 : f32 to vector<4x512xf32>
    %155 = arith.mulf %154, %153 : vector<4x512xf32>
    %156 = math.tanh %155 : vector<4x512xf32>
    %cst_55 = arith.constant 1.000000e+00 : f32
    %157 = vector.broadcast %cst_55 : f32 to vector<4x512xf32>
    %158 = arith.addf %157, %156 : vector<4x512xf32>
    %159 = arith.mulf %148, %158 : vector<4x512xf32>
    %160 = arith.truncf %159 : vector<4x512xf32> to vector<4x512xbf16>
    %c0_56 = arith.constant 0 : index
    %c0_57 = arith.constant 0 : index
    %161 = vector.load %arg12[%c0_56, %c0_57] : memref<512x128xbf16, #tpu.memory_space<vmem>>, vector<512x128xbf16>
    %cst_58 = arith.constant dense<0.000000e+00> : vector<4x128xf32>
    %162 = tpu.matmul %160, %161, %cst_58 {dimension_numbers = #tpu.dot_dimension_numbers<[1], [0], [0], [1], [0, 0, 1, 1], [], []>} : vector<4x512xbf16>, vector<512x128xbf16>, vector<4x128xf32> -> vector<4x128xf32>
    %c0_59 = arith.constant 0 : index
    %c0_60 = arith.constant 0 : index
    %163 = vector.load %arg13[%c0_59, %c0_60] : memref<1x128xf32, #tpu.memory_space<vmem>>, vector<1x128xf32>
    %164 = vector.broadcast %163 : vector<1x128xf32> to vector<4x128xf32>
    %165 = arith.addf %162, %164 : vector<4x128xf32>
    %166 = arith.addf %116, %165 : vector<4x128xf32>
    %c0_61 = arith.constant 0 : index
    %c0_62 = arith.constant 0 : index
    %167 = vector.load %arg14[%c0_61, %c0_62] : memref<1x128xf32, #tpu.memory_space<vmem>>, vector<1x128xf32>
    %c0_63 = arith.constant 0 : index
    %c0_64 = arith.constant 0 : index
    %168 = vector.load %arg15[%c0_63, %c0_64] : memref<1x128xf32, #tpu.memory_space<vmem>>, vector<1x128xf32>
    %cst_65 = arith.constant dense<0.000000e+00> : vector<4xf32>
    %169 = vector.multi_reduction <add>, %166, %cst_65 [1] : vector<4x128xf32> to vector<4xf32>
    %170 = vector.shape_cast %169 : vector<4xf32> to vector<4x1xf32>
    %cst_66 = arith.constant 1.280000e+02 : f32
    %171 = vector.broadcast %cst_66 : f32 to vector<4x1xf32>
    %172 = arith.divf %170, %171 : vector<4x1xf32>
    %173 = vector.broadcast %172 : vector<4x1xf32> to vector<4x128xf32>
    %174 = arith.subf %166, %173 : vector<4x128xf32>
    %175 = arith.mulf %174, %174 : vector<4x128xf32>
    %cst_67 = arith.constant dense<0.000000e+00> : vector<4xf32>
    %176 = vector.multi_reduction <add>, %175, %cst_67 [1] : vector<4x128xf32> to vector<4xf32>
    %177 = vector.shape_cast %176 : vector<4xf32> to vector<4x1xf32>
    %cst_68 = arith.constant 1.280000e+02 : f32
    %178 = vector.broadcast %cst_68 : f32 to vector<4x1xf32>
    %179 = arith.divf %177, %178 : vector<4x1xf32>
    %180 = vector.broadcast %172 : vector<4x1xf32> to vector<4x128xf32>
    %181 = arith.subf %166, %180 : vector<4x128xf32>
    %cst_69 = arith.constant 9.99999974E-6 : f32
    %182 = vector.broadcast %cst_69 : f32 to vector<4x1xf32>
    %183 = arith.addf %179, %182 : vector<4x1xf32>
    %184 = math.rsqrt %183 : vector<4x1xf32>
    %185 = vector.broadcast %184 : vector<4x1xf32> to vector<4x128xf32>
    %186 = arith.mulf %181, %185 : vector<4x128xf32>
    %187 = vector.broadcast %167 : vector<1x128xf32> to vector<4x128xf32>
    %188 = arith.mulf %186, %187 : vector<4x128xf32>
    %189 = vector.broadcast %168 : vector<1x128xf32> to vector<4x128xf32>
    %190 = arith.addf %188, %189 : vector<4x128xf32>
    %191 = vector.shape_cast %190 : vector<4x128xf32> to vector<1x4x128xf32>
    %c0_70 = arith.constant 0 : index
    %c0_71 = arith.constant 0 : index
    %c0_72 = arith.constant 0 : index
    %192 = vector.load %arg16[%c0_70, %c0_71, %c0_72] : memref<1x4x128xf32, #tpu.memory_space<vmem>>, vector<1x4x128xf32>
    tpu.vector_store %arg16[%c0_70, %c0_71, %c0_72], %191 {strides = array<i32>} : memref<1x4x128xf32, #tpu.memory_space<vmem>>, vector<1x4x128xf32>,
    return
  }
  func.func @transform_0(%arg0: i32) -> (i32, i32, i32) {
    %c0_i32 = arith.constant 0 : i32
    %c0_i32_0 = arith.constant 0 : i32
    %c0_i32_1 = arith.constant 0 : i32
    return %arg0, %c0_i32, %c0_i32_0 : i32, i32, i32
  }
  func.func @transform_1(%arg0: i32) -> (i32, i32, i32) {
    %c0_i32 = arith.constant 0 : i32
    %c0_i32_0 = arith.constant 0 : i32
    %c0_i32_1 = arith.constant 0 : i32
    return %arg0, %c0_i32, %c0_i32_0 : i32, i32, i32
  }
  func.func @transform_2(%arg0: i32) -> (i32, i32) {
    %c0_i32 = arith.constant 0 : i32
    %c0_i32_0 = arith.constant 0 : i32
    %c0_i32_1 = arith.constant 0 : i32
    return %c0_i32, %c0_i32_0 : i32, i32
  }
  func.func @transform_3(%arg0: i32) -> (i32, i32) {
    %c0_i32 = arith.constant 0 : i32
    %c0_i32_0 = arith.constant 0 : i32
    %c0_i32_1 = arith.constant 0 : i32
    return %c0_i32, %c0_i32_0 : i32, i32
  }
  func.func @transform_4(%arg0: i32) -> (i32, i32) {
    %c0_i32 = arith.constant 0 : i32
    %c0_i32_0 = arith.constant 0 : i32
    %c0_i32_1 = arith.constant 0 : i32
    return %c0_i32, %c0_i32_0 : i32, i32
  }
  func.func @transform_5(%arg0: i32) -> (i32, i32) {
    %c0_i32 = arith.constant 0 : i32
    %c0_i32_0 = arith.constant 0 : i32
    %c0_i32_1 = arith.constant 0 : i32
    return %c0_i32, %c0_i32_0 : i32, i32
  }
  func.func @transform_6(%arg0: i32) -> (i32, i32) {
    %c0_i32 = arith.constant 0 : i32
    %c0_i32_0 = arith.constant 0 : i32
    %c0_i32_1 = arith.constant 0 : i32
    return %c0_i32, %c0_i32_0 : i32, i32
  }
  func.func @transform_7(%arg0: i32) -> (i32, i32) {
    %c0_i32 = arith.constant 0 : i32
    %c0_i32_0 = arith.constant 0 : i32
    %c0_i32_1 = arith.constant 0 : i32
    return %c0_i32, %c0_i32_0 : i32, i32
  }
  func.func @transform_8(%arg0: i32) -> (i32, i32) {
    %c0_i32 = arith.constant 0 : i32
    %c0_i32_0 = arith.constant 0 : i32
    %c0_i32_1 = arith.constant 0 : i32
    return %c0_i32, %c0_i32_0 : i32, i32
  }
  func.func @transform_9(%arg0: i32) -> (i32, i32) {
    %c0_i32 = arith.constant 0 : i32
    %c0_i32_0 = arith.constant 0 : i32
    %c0_i32_1 = arith.constant 0 : i32
    return %c0_i32, %c0_i32_0 : i32, i32
  }
  func.func @transform_10(%arg0: i32) -> (i32, i32) {
    %c0_i32 = arith.constant 0 : i32
    %c0_i32_0 = arith.constant 0 : i32
    %c0_i32_1 = arith.constant 0 : i32
    return %c0_i32, %c0_i32_0 : i32, i32
  }
  func.func @transform_11(%arg0: i32) -> (i32, i32) {
    %c0_i32 = arith.constant 0 : i32
    %c0_i32_0 = arith.constant 0 : i32
    %c0_i32_1 = arith.constant 0 : i32
    return %c0_i32, %c0_i32_0 : i32, i32
  }
  func.func @transform_12(%arg0: i32) -> (i32, i32) {
    %c0_i32 = arith.constant 0 : i32
    %c0_i32_0 = arith.constant 0 : i32
    %c0_i32_1 = arith.constant 0 : i32
    return %c0_i32, %c0_i32_0 : i32, i32
  }
  func.func @transform_13(%arg0: i32) -> (i32, i32) {
    %c0_i32 = arith.constant 0 : i32
    %c0_i32_0 = arith.constant 0 : i32
    %c0_i32_1 = arith.constant 0 : i32
    return %c0_i32, %c0_i32_0 : i32, i32
  }
  func.func @transform_14(%arg0: i32) -> (i32, i32) {
    %c0_i32 = arith.constant 0 : i32
    %c0_i32_0 = arith.constant 0 : i32
    %c0_i32_1 = arith.constant 0 : i32
    return %c0_i32, %c0_i32_0 : i32, i32
  }
  func.func @transform_15(%arg0: i32) -> (i32, i32, i32) {
    %c0_i32 = arith.constant 0 : i32
    %c0_i32_0 = arith.constant 0 : i32
    %c0_i32_1 = arith.constant 0 : i32
    return %arg0, %c0_i32, %c0_i32_0 : i32, i32, i32
  }
}

</mosaic_0001>

<llo_original>
// kernel: point_transformer_forward.5
$region0: #{point_transformer_forward.5}
  #allocation0 [shape = 'u32[]', space=smem, size = 0x4, offset = 0x4, fixed_abs, tag = 'smem constant byte address 0x4 - core index']
  #allocation1 [shape = 'u32[144,128]{1,0:T(1,128)}', space=vmem, size = 0x12000, scoped, tag = 'internal scratch']
  %s0 = inlined_call_operand.vmem [shape: f32[8,3], index: 0, kind: input, shape index: {}]
  %s1 = inlined_call_operand.vmem [shape: f32[3,128], index: 1, kind: input, shape index: {}]
  %s2 = inlined_call_operand.vmem [shape: f32[1,128], index: 2, kind: input, shape index: {}]
  %s3 = inlined_call_operand.vmem [shape: bf16[128,128], index: 3, kind: input, shape index: {}]
  %s4 = inlined_call_operand.vmem [shape: f32[1,128], index: 4, kind: input, shape index: {}]
  %s5 = inlined_call_operand.vmem [shape: bf16[8,128], index: 5, kind: output, shape index: {}]
  %s6 = sld [smem:[#allocation0]]
  $region30: #{point_transformer_forward.5} parent=0
    _
  %s8 = ssub.s32 1, %s6
  %s9 = scalar_select 0, %s8, %s6
  // Predicated region
  $region2: #{point_transformer_forward.5} parent=0 // pred_check
    _
  $region3: #{point_transformer_forward.5} parent=0 // pred_check_branch
    %11 = sbr.rel (0) target = $region5
  $region4: #{point_transformer_forward.5} parent=0 // pred_region
    _
  $region5: #{point_transformer_forward.5} parent=0 // pred_fallthru
    _
  // Predicated region
  $region6: #{point_transformer_forward.5} parent=0 // pred_check
    _
  $region7: #{point_transformer_forward.5} parent=0 // pred_check_branch
    %13 = sbr.rel (0) target = $region9
  $region8: #{point_transformer_forward.5} parent=0 // pred_region
    _
  $region9: #{point_transformer_forward.5} parent=0 // pred_fallthru
    _
  // Predicated region
  $region10: #{point_transformer_forward.5} parent=0 // pred_check
    _
  $region11: #{point_transformer_forward.5} parent=0 // pred_check_branch
    %15 = sbr.rel (0) target = $region13
  $region12: #{point_transformer_forward.5} parent=0 // pred_region
    _
  $region13: #{point_transformer_forward.5} parent=0 // pred_fallthru
    _
  // Predicated region
  $region14: #{point_transformer_forward.5} parent=0 // pred_check
    _
  $region15: #{point_transformer_forward.5} parent=0 // pred_check_branch
    %17 = sbr.rel (0) target = $region17
  $region16: #{point_transformer_forward.5} parent=0 // pred_region
    _
  $region17: #{point_transformer_forward.5} parent=0 // pred_fallthru
    _
  // Predicated region
  $region18: #{point_transformer_forward.5} parent=0 // pred_check
    _
  $region19: #{point_transformer_forward.5} parent=0 // pred_check_branch
    %19 = sbr.rel (0) target = $region21
  $region20: #{point_transformer_forward.5} parent=0 // pred_region
    _
  $region21: #{point_transformer_forward.5} parent=0 // pred_fallthru
    _
  %v21 = vld [vmem:[%s0] sm:$0xff]
  %v22 = vld [vmem:[%s1] sm:$0x7]
  %24 = vset.pattern.permute.xlu0 0
  %25 = vperm.xlu0 %24, %v21
  %v26 = vpop.permute.xlu0 %25
  %v28 = vlaneseq
  %v29 = vshrl.u32 %v28, 7
  %v30 = vsub.s32 0, %v29
  %v31 = vrot.slane %v22, %v30
  %v32 = vmul.f32 %v26, %v31
  %33 = vset.pattern.permute.xlu0 1
  %34 = vperm.xlu0 %33, %v21
  %v35 = vpop.permute.xlu0 %34
  %v37 = vlaneseq
  %v38 = vshrl.u32 %v37, 7
  %v39 = vsub.s32 1, %v38
  %v40 = vrot.slane %v22, %v39
  %v41 = vmul.f32 %v35, %v40
  %v42 = vadd.f32 %v32, %v41
  %43 = vset.pattern.permute.xlu0 2
  %44 = vperm.xlu0 %43, %v21
  %v45 = vpop.permute.xlu0 %44
  %v47 = vlaneseq
  %v48 = vshrl.u32 %v47, 7
  %v49 = vsub.s32 2, %v48
  %v50 = vrot.slane %v22, %v49
  %v51 = vmul.f32 %v45, %v50
  %v52 = vadd.f32 %v42, %v51
  %v53 = vld [vmem:[%s2] sm:$0x1]
  %v55 = vlaneseq
  %v56 = vshrl.u32 %v55, 7
  %v57 = vsub.s32 0, %v56
  %v58 = vrot.slane %v53, %v57
  %v60 = vadd.f32 %v52, %v58
  %v61 = vmul.f32 %v60, 0.5
  %v62 = vmul.f32 %v60, 0.044715
  %v63 = vmul.f32 %v62, %v60
  %v64 = vmul.f32 %v63, %v60
  %v65 = vadd.f32 %v60, %v64
  %v66 = vmul.f32 %v65, 0.7978846
  %v67 = vtanh.pop %v66
  %v68 = vadd.f32 %v67, 1.0
  %v69 = vmul.f32 %v61, %v68
  %v70 = vpack.c.bf16 %v69, %v69
  %v71 = vld [vmem:[%s3] sm:$0xf]
  %v72 = vld [vmem:[%s3 + $0x4] sm:$0xf]
  %v73 = vld [vmem:[%s3 + $0x8] sm:$0xf]
  %v74 = vld [vmem:[%s3 + $0xc] sm:$0xf]
  %v75 = vld [vmem:[%s3 + $0x10] sm:$0xf]
  %v76 = vld [vmem:[%s3 + $0x14] sm:$0xf]
  %v77 = vld [vmem:[%s3 + $0x18] sm:$0xf]
  %v78 = vld [vmem:[%s3 + $0x1c] sm:$0xf]
  %v79 = vld [vmem:[%s3 + $0x20] sm:$0xf]
  %v80 = vld [vmem:[%s3 + $0x24] sm:$0xf]
  %v81 = vld [vmem:[%s3 + $0x28] sm:$0xf]
  %v82 = vld [vmem:[%s3 + $0x2c] sm:$0xf]
  %v83 = vld [vmem:[%s3 + $0x30] sm:$0xf]
  %v84 = vld [vmem:[%s3 + $0x34] sm:$0xf]
  %v85 = vld [vmem:[%s3 + $0x38] sm:$0xf]
  %v86 = vld [vmem:[%s3 + $0x3c] sm:$0xf]
  %v87 = vld [vmem:[%s4] sm:$0x1]
  %v89 = vlaneseq
  %v90 = vshrl.u32 %v89, 7
  %v91 = vsub.s32 0, %v90
  %v92 = vrot.slane %v87, %v91
  %v110 = vunpack.c.l.b16 %v71
  %v111 = vunpack.c.l.b16 %v72
  %v112 = vunpack.c.l.b16 %v73
  %v113 = vunpack.c.l.b16 %v74
  %v114 = vunpack.c.l.b16 %v75
  %v115 = vunpack.c.l.b16 %v76
  %v116 = vunpack.c.l.b16 %v77
  %v117 = vunpack.c.l.b16 %v78
  %v118 = vunpack.c.l.b16 %v79
  %v119 = vunpack.c.l.b16 %v80
  %v120 = vunpack.c.l.b16 %v81
  %v121 = vunpack.c.l.b16 %v82
  %v122 = vunpack.c.l.b16 %v83
  %v123 = vunpack.c.l.b16 %v84
  %v124 = vunpack.c.l.b16 %v85
  %v125 = vunpack.c.l.b16 %v86
  %v126 = vpack.c.b16 %v111, %v110
  %v127 = vpack.c.b16 %v113, %v112
  %v128 = vpack.c.b16 %v115, %v114
  %v129 = vpack.c.b16 %v117, %v116
  %v130 = vpack.c.b16 %v119, %v118
  %v131 = vpack.c.b16 %v121, %v120
  %v132 = vpack.c.b16 %v123, %v122
  %v133 = vpack.c.b16 %v125, %v124
  %142 = vmatprep.subr.bf16.mxu0 0
  %143 = vmatpush1.bf16.msra.mxu0 %v133
  %144 = vmatprep.subr.bf16.mxu0 0
  %145 = vmatpush1.bf16.msra.mxu0 %v132
  %146 = vmatprep.subr.bf16.mxu0 0
  %147 = vmatpush1.bf16.msra.mxu0 %v131
  %148 = vmatprep.subr.bf16.mxu0 0
  %149 = vmatpush1.bf16.msra.mxu0 %v130
  %150 = vmatprep.subr.bf16.mxu0 0
  %151 = vmatpush1.bf16.msra.mxu0 %v129
  %152 = vmatprep.subr.bf16.mxu0 0
  %153 = vmatpush1.bf16.msra.mxu0 %v128
  %154 = vmatprep.subr.bf16.mxu0 0
  %155 = vmatpush1.bf16.msra.mxu0 %v127
  %156 = vmatprep.subr.bf16.mxu0 0
  %157 = vmatpush1.bf16.msra.mxu0 %v126
  %158 = vmatprep.subr.bf16.mxu0 0
  %159 = vmatpush2.bf16.msra.mxu0 0
  %160 = vmatprep.subr.bf16.mxu0 0
  %161 = vmatpush2.bf16.msra.mxu0 0
  %162 = vmatprep.subr.bf16.mxu0 0
  %163 = vmatpush2.bf16.msra.mxu0 0
  %164 = vmatprep.subr.bf16.mxu0 0
  %165 = vmatpush2.bf16.msra.mxu0 0
  %166 = vmatprep.subr.bf16.mxu0 0
  %167 = vmatpush2.bf16.msra.mxu0 0
  %168 = vmatprep.subr.bf16.mxu0 0
  %169 = vmatpush2.bf16.msra.mxu0 0
  %170 = vmatprep.subr.bf16.mxu0 0
  %171 = vmatpush2.bf16.msra.mxu0 0
  %172 = vmatprep.subr.bf16.mxu0 0
  %173 = vmatpush2.bf16.msra.mxu0 0
  %174 = vmatprep.mubr.bf16.mxu0 0
  %175 = vmatmul.mubr.bf16.gmra.mxu0 %v70
  %v176 = vpop.f32.mrf.mxu0
  %v177 = vadd.f32 %v92, %v176
  %v178 = vpop.f32.mrf.mxu0
  %v179 = vpop.f32.mrf.mxu0
  %v180 = vpop.f32.mrf.mxu0
  %181 = vdwg.mxu0
  %v182 = vpack.c.bf16 %v177, %v177
  %183 = vst [vmem:[%s5] sm:$0xf] %v182
  // Predicated region
  $region22: #{point_transformer_forward.5} parent=0 // pred_check
    _
  $region23: #{point_transformer_forward.5} parent=0 // pred_check_branch
    %185 = sbr.rel (0) target = $region25
  $region24: #{point_transformer_forward.5} parent=0 // pred_region
    _
  $region25: #{point_transformer_forward.5} parent=0 // pred_fallthru
    _
  // Predicated region
  $region26: #{point_transformer_forward.5} parent=0 // pred_check
    _
  $region27: #{point_transformer_forward.5} parent=0 // pred_check_branch
    %187 = sbr.rel (0) target = $region29
  $region28: #{point_transformer_forward.5} parent=0 // pred_region
    _
  $region29: #{point_transformer_forward.5} parent=0 // pred_fallthru
    _

// kernel: point_transformer_forward.4
$region0: #{point_transformer_forward.4}
  #allocation0 [shape = 'u32[]', space=smem, size = 0x4, offset = 0x4, fixed_abs, tag = 'smem constant byte address 0x4 - core index']
  #allocation1 [shape = 'u32[144,128]{1,0:T(1,128)}', space=vmem, size = 0x12000, scoped, tag = 'internal scratch']
  %s0 = inlined_call_operand.vmem [shape: f32[128,3], index: 0, kind: input, shape index: {}]
  %s1 = inlined_call_operand.vmem [shape: f32[3,128], index: 1, kind: input, shape index: {}]
  %s2 = inlined_call_operand.vmem [shape: f32[1,128], index: 2, kind: input, shape index: {}]
  %s3 = inlined_call_operand.vmem [shape: f32[1,128], index: 3, kind: input, shape index: {}]
  %s4 = inlined_call_operand.vmem [shape: f32[1,128], index: 4, kind: input, shape index: {}]
  %s5 = inlined_call_operand.vmem [shape: bf16[128,256], index: 5, kind: input, shape index: {}]
  %s6 = inlined_call_operand.vmem [shape: f32[1,256], index: 6, kind: input, shape index: {}]
  %s7 = inlined_call_operand.hbm [shape: bf16[256,512], index: 7, kind: input, shape index: {}]
  %s8 = inlined_call_operand.hbm [shape: bf16[256,512], index: 8, kind: input, shape index: {}]
  %s9 = inlined_call_operand.vmem [shape: f32[1,512], index: 9, kind: input, shape index: {}]
  %s10 = inlined_call_operand.vmem [shape: f32[1,512], index: 10, kind: input, shape index: {}]
  %s11 = inlined_call_operand.vmem [shape: f32[1,512], index: 11, kind: input, shape index: {}]
  %s12 = inlined_call_operand.hbm [shape: bf16[512,128], index: 12, kind: input, shape index: {}]
  %s13 = inlined_call_operand.vmem [shape: f32[1,128], index: 13, kind: input, shape index: {}]
  %s14 = inlined_call_operand.vmem [shape: bf16[8,128], index: 14, kind: output, shape index: {}]
  %s15 = sld [smem:[#allocation0]]
  $region78: #{point_transformer_forward.4} parent=0
    _
  %s17 = ssub.s32 1, %s15
  %s18 = scalar_select 0, %s17, %s15
  $region1: #{point_transformer_forward.4} parent=0
    #allocation2 [shape = 'u8[262144]{0}', space=vmem, size = 0x40000, scoped, tag = 'input window, operand 7, single buffered']
    #allocation3 [shape = 's32[1]{0}', space=sflag, size = 0x4, scoped, tag = 'scoped memory for point_transformer_forward.4']
    #allocation4 [shape = 'u8[262144]{0}', space=vmem, size = 0x40000, scoped, tag = 'input window, operand 8, single buffered']
    #allocation5 [shape = 's32[1]{0}', space=sflag, size = 0x4, scoped, tag = 'scoped memory for point_transformer_forward.4']
    #allocation6 [shape = 'u8[131072]{0}', space=vmem, size = 0x20000, scoped, tag = 'input window, operand 12, single buffered']
    %19 = vsyncpa [#allocation3], 0
    %20 = vsyncpa [#allocation5], 0
    // Predicated region
    $region2: #{point_transformer_forward.4} parent=1 // pred_check
      _
    $region3: #{point_transformer_forward.4} parent=1 // pred_check_branch
      %22 = sbr.rel (0) target = $region5
    $region4: #{point_transformer_forward.4} parent=1 // pred_region
      _
    $region5: #{point_transformer_forward.4} parent=1 // pred_fallthru
      _
    // Predicated region
    $region6: #{point_transformer_forward.4} parent=1 // pred_check
      _
    $region7: #{point_transformer_forward.4} parent=1 // pred_check_branch
      %24 = sbr.rel (0) target = $region9
    $region8: #{point_transformer_forward.4} parent=1 // pred_region
      _
    $region9: #{point_transformer_forward.4} parent=1 // pred_fallthru
      _
    // Predicated region
    $region10: #{point_transformer_forward.4} parent=1 // pred_check
      _
    $region11: #{point_transformer_forward.4} parent=1 // pred_check_branch
      %26 = sbr.rel (0) target = $region13
    $region12: #{point_transformer_forward.4} parent=1 // pred_region
      _
    $region13: #{point_transformer_forward.4} parent=1 // pred_fallthru
      _
    // Predicated region
    $region14: #{point_transformer_forward.4} parent=1 // pred_check
      _
    $region15: #{point_transformer_forward.4} parent=1 // pred_check_branch
      %28 = sbr.rel (0) target = $region17
    $region16: #{point_transformer_forward.4} parent=1 // pred_region
      _
    $region17: #{point_transformer_forward.4} parent=1 // pred_fallthru
      _
    // Predicated region
    $region18: #{point_transformer_forward.4} parent=1 // pred_check
      _
    $region19: #{point_transformer_forward.4} parent=1 // pred_check_branch
      %30 = sbr.rel (0) target = $region21
    $region20: #{point_transformer_forward.4} parent=1 // pred_region
      _
    $region21: #{point_transformer_forward.4} parent=1 // pred_fallthru
      _
    // Predicated region
    $region22: #{point_transformer_forward.4} parent=1 // pred_check
      _
    $region23: #{point_transformer_forward.4} parent=1 // pred_check_branch
      %32 = sbr.rel (0) target = $region25
    $region24: #{point_transformer_forward.4} parent=1 // pred_region
      _
    $region25: #{point_transformer_forward.4} parent=1 // pred_fallthru
      _
    // Predicated region
    $region26: #{point_transformer_forward.4} parent=1 // pred_check
      _
    $region27: #{point_transformer_forward.4} parent=1 // pred_check_branch
      %34 = sbr.rel (0) target = $region29
    $region28: #{point_transformer_forward.4} parent=1 // pred_region
      _
    $region29: #{point_transformer_forward.4} parent=1 // pred_fallthru
      _
    // Predicated region
    $region30: #{point_transformer_forward.4} parent=1 // pred_check
      _
    $region31: #{point_transformer_forward.4} parent=1 // pred_check_branch
      %36 = sbr.rel (0) target = $region33
    $region32: #{point_transformer_forward.4} parent=1 // pred_region
      %s38 = ssub.s32 8192, 8192
      %39 = vsyncadd [#allocation3], %s38
      %s40 = sshll.u32 [#allocation2], 4
      %s41 = int_to_ptr.vmem [resolvable:$true] %s40
      %46 = dma.hbm_to_vmem [thread:$0]  %s7, 8192, %s41, [#allocation3], 256, 256, 16
    $region33: #{point_transformer_forward.4} parent=1 // pred_fallthru
      _
    // Predicated region
    $region34: #{point_transformer_forward.4} parent=1 // pred_check
      _
    $region35: #{point_transformer_forward.4} parent=1 // pred_check_branch
      %48 = sbr.rel (0) target = $region37
    $region36: #{point_transformer_forward.4} parent=1 // pred_region
      %s50 = ssub.s32 8192, 8192
      %51 = vsyncadd [#allocation5], %s50
      %s52 = sshll.u32 [#allocation4], 4
      %s53 = int_to_ptr.vmem [resolvable:$true] %s52
      %58 = dma.hbm_to_vmem [thread:$0]  %s8, 8192, %s53, [#allocation5], 256, 256, 16
    $region37: #{point_transformer_forward.4} parent=1 // pred_fallthru
      _
    // Predicated region
    $region38: #{point_transformer_forward.4} parent=1 // pred_check
      _
    $region39: #{point_transformer_forward.4} parent=1 // pred_check_branch
      %60 = sbr.rel (0) target = $region41
    $region40: #{point_transformer_forward.4} parent=1 // pred_region
      _
    $region41: #{point_transformer_forward.4} parent=1 // pred_fallthru
      _
    // Predicated region
    $region42: #{point_transformer_forward.4} parent=1 // pred_check
      _
    $region43: #{point_transformer_forward.4} parent=1 // pred_check_branch
      %62 = sbr.rel (0) target = $region45
    $region44: #{point_transformer_forward.4} parent=1 // pred_region
      _
    $region45: #{point_transformer_forward.4} parent=1 // pred_fallthru
      _
    // Predicated region
    $region46: #{point_transformer_forward.4} parent=1 // pred_check
      _
    $region47: #{point_transformer_forward.4} parent=1 // pred_check_branch
      %64 = sbr.rel (0) target = $region49
    $region48: #{point_transformer_forward.4} parent=1 // pred_region
      _
    $region49: #{point_transformer_forward.4} parent=1 // pred_fallthru
      _
    // Predicated region
    $region50: #{point_transformer_forward.4} parent=1 // pred_check
      _
    $region51: #{point_transformer_forward.4} parent=1 // pred_check_branch
      %66 = sbr.rel (0) target = $region53
    $region52: #{point_transformer_forward.4} parent=1 // pred_region
      %s68 = ssub.s32 4096, 4096
      %69 = vsyncadd [#allocation5], %s68
      %s70 = sshll.u32 [#allocation6], 4
      %s71 = int_to_ptr.vmem [resolvable:$true] %s70
      %76 = dma.hbm_to_vmem [thread:$0]  %s12, 4096, %s71, [#allocation5], 64, 64, 4
    $region53: #{point_transformer_forward.4} parent=1 // pred_fallthru
      _
    // Predicated region
    $region54: #{point_transformer_forward.4} parent=1 // pred_check
      _
    $region55: #{point_transformer_forward.4} parent=1 // pred_check_branch
      %78 = sbr.rel (0) target = $region57
    $region56: #{point_transformer_forward.4} parent=1 // pred_region
      _
    $region57: #{point_transformer_forward.4} parent=1 // pred_fallthru
      _
    // Predicated region
    $region58: #{point_transformer_forward.4} parent=1 // pred_check
      _
    $region59: #{point_transformer_forward.4} parent=1 // pred_check_branch
      %80 = sbr.rel (0) target = $region61
    $region60: #{point_transformer_forward.4} parent=1 // pred_region
      %81 = dma.done [#allocation3], 8192
    $region61: #{point_transformer_forward.4} parent=1 // pred_fallthru
      _
    // Predicated region
    $region62: #{point_transformer_forward.4} parent=1 // pred_check
      _
    $region63: #{point_transformer_forward.4} parent=1 // pred_check_branch
      %83 = sbr.rel (0) target = $region65
    $region64: #{point_transformer_forward.4} parent=1 // pred_region
      %84 = dma.done [#allocation5], 8192
    $region65: #{point_transformer_forward.4} parent=1 // pred_fallthru
      _
    // Predicated region
    $region66: #{point_transformer_forward.4} parent=1 // pred_check
      _
    $region67: #{point_transformer_forward.4} parent=1 // pred_check_branch
      %86 = sbr.rel (0) target = $region69
    $region68: #{point_transformer_forward.4} parent=1 // pred_region
      %87 = dma.done [#allocation5], 4096
    $region69: #{point_transformer_forward.4} parent=1 // pred_fallthru
      _
    %v89 = vld [vmem:[%s0] sm:$0xff]
    %v90 = vld [vmem:[%s0 + $0x8] sm:$0xff]
    %v91 = vld [vmem:[%s0 + $0x10] sm:$0xff]
    %v92 = vld [vmem:[%s0 + $0x18] sm:$0xff]
    %v93 = vld [vmem:[%s0 + $0x20] sm:$0xff]
    %v94 = vld [vmem:[%s0 + $0x28] sm:$0xff]
    %v95 = vld [vmem:[%s0 + $0x30] sm:$0xff]
    %v96 = vld [vmem:[%s0 + $0x38] sm:$0xff]
    %v97 = vld [vmem:[%s0 + $0x40] sm:$0xff]
    %v98 = vld [vmem:[%s0 + $0x48] sm:$0xff]
    %v99 = vld [vmem:[%s0 + $0x50] sm:$0xff]
    %v100 = vld [vmem:[%s0 + $0x58] sm:$0xff]
    %v101 = vld [vmem:[%s0 + $0x60] sm:$0xff]
    %v102 = vld [vmem:[%s0 + $0x68] sm:$0xff]
    %v103 = vld [vmem:[%s0 + $0x70] sm:$0xff]
    %v104 = vld [vmem:[%s0 + $0x78] sm:$0xff]
    %v105 = vld [vmem:[%s1] sm:$0x7]
    %107 = vset.pattern.permute.xlu0 0
    %108 = vperm.xlu0 %107, %v89
    %v109 = vpop.permute.xlu0 %108
    %112 = vset.pattern.permute.xlu0 0
    %113 = vperm.xlu0 %112, %v90
    %v114 = vpop.permute.xlu0 %113
    %117 = vset.pattern.permute.xlu0 0
    %118 = vperm.xlu0 %117, %v91
    %v119 = vpop.permute.xlu0 %118
    %122 = vset.pattern.permute.xlu0 0
    %123 = vperm.xlu0 %122, %v92
    %v124 = vpop.permute.xlu0 %123
    %127 = vset.pattern.permute.xlu0 0
    %128 = vperm.xlu0 %127, %v93
    %v129 = vpop.permute.xlu0 %128
    %132 = vset.pattern.permute.xlu0 0
    %133 = vperm.xlu0 %132, %v94
    %v134 = vpop.permute.xlu0 %133
    %137 = vset.pattern.permute.xlu0 0
    %138 = vperm.xlu0 %137, %v95
    %v139 = vpop.permute.xlu0 %138
    %142 = vset.pattern.permute.xlu0 0
    %143 = vperm.xlu0 %142, %v96
    %v144 = vpop.permute.xlu0 %143
    %147 = vset.pattern.permute.xlu0 0
    %148 = vperm.xlu0 %147, %v97
    %v149 = vpop.permute.xlu0 %148
    %152 = vset.pattern.permute.xlu0 0
    %153 = vperm.xlu0 %152, %v98
    %v154 = vpop.permute.xlu0 %153
    %157 = vset.pattern.permute.xlu0 0
    %158 = vperm.xlu0 %157, %v99
    %v159 = vpop.permute.xlu0 %158
    %162 = vset.pattern.permute.xlu0 0
    %163 = vperm.xlu0 %162, %v100
    %v164 = vpop.permute.xlu0 %163
    %167 = vset.pattern.permute.xlu0 0
    %168 = vperm.xlu0 %167, %v101
    %v169 = vpop.permute.xlu0 %168
    %172 = vset.pattern.permute.xlu0 0
    %173 = vperm.xlu0 %172, %v102
    %v174 = vpop.permute.xlu0 %173
    %177 = vset.pattern.permute.xlu0 0
    %178 = vperm.xlu0 %177, %v103
    %v179 = vpop.permute.xlu0 %178
    %182 = vset.pattern.permute.xlu0 0
    %183 = vperm.xlu0 %182, %v104
    %v184 = vpop.permute.xlu0 %183
    %v186 = vlaneseq
    %v187 = vshrl.u32 %v186, 7
    %v188 = vsub.s32 0, %v187
    %v189 = vrot.slane %v105, %v188
    %v190 = vmul.f32 %v109, %v189
    %v191 = vmul.f32 %v114, %v189
    %v192 = vmul.f32 %v119, %v189
    %v193 = vmul.f32 %v124, %v189
    %v194 = vmul.f32 %v129, %v189
    %v195 = vmul.f32 %v134, %v189
    %v196 = vmul.f32 %v139, %v189
    %v197 = vmul.f32 %v144, %v189
    %v198 = vmul.f32 %v149, %v189
    %v199 = vmul.f32 %v154, %v189
    %v200 = vmul.f32 %v159, %v189
    %v201 = vmul.f32 %v164, %v189
    %v202 = vmul.f32 %v169, %v189
    %v203 = vmul.f32 %v174, %v189
    %v204 = vmul.f32 %v179, %v189
    %v205 = vmul.f32 %v184, %v189
    %206 = vset.pattern.permute.xlu0 1
    %207 = vperm.xlu0 %206, %v89
    %v208 = vpop.permute.xlu0 %207
    %210 = vset.pattern.permute.xlu0 1
    %211 = vperm.xlu0 %210, %v90
    %v212 = vpop.permute.xlu0 %211
    %214 = vset.pattern.permute.xlu0 1
    %215 = vperm.xlu0 %214, %v91
    %v216 = vpop.permute.xlu0 %215
    %218 = vset.pattern.permute.xlu0 1
    %219 = vperm.xlu0 %218, %v92
    %v220 = vpop.permute.xlu0 %219
    %222 = vset.pattern.permute.xlu0 1
    %223 = vperm.xlu0 %222, %v93
    %v224 = vpop.permute.xlu0 %223
    %226 = vset.pattern.permute.xlu0 1
    %227 = vperm.xlu0 %226, %v94
    %v228 = vpop.permute.xlu0 %227
    %230 = vset.pattern.permute.xlu0 1
    %231 = vperm.xlu0 %230, %v95
    %v232 = vpop.permute.xlu0 %231
    %234 = vset.pattern.permute.xlu0 1
    %235 = vperm.xlu0 %234, %v96
    %v236 = vpop.permute.xlu0 %235
    %238 = vset.pattern.permute.xlu0 1
    %239 = vperm.xlu0 %238, %v97
    %v240 = vpop.permute.xlu0 %239
    %242 = vset.pattern.permute.xlu0 1
    %243 = vperm.xlu0 %242, %v98
    %v244 = vpop.permute.xlu0 %243
    %246 = vset.pattern.permute.xlu0 1
    %247 = vperm.xlu0 %246, %v99
    %v248 = vpop.permute.xlu0 %247
    %250 = vset.pattern.permute.xlu0 1
    %251 = vperm.xlu0 %250, %v100
    %v252 = vpop.permute.xlu0 %251
    %254 = vset.pattern.permute.xlu0 1
    %255 = vperm.xlu0 %254, %v101
    %v256 = vpop.permute.xlu0 %255
    %258 = vset.pattern.permute.xlu0 1
    %259 = vperm.xlu0 %258, %v102
    %v260 = vpop.permute.xlu0 %259
    %262 = vset.pattern.permute.xlu0 1
    %263 = vperm.xlu0 %262, %v103
    %v264 = vpop.permute.xlu0 %263
    %266 = vset.pattern.permute.xlu0 1
    %267 = vperm.xlu0 %266, %v104
    %v268 = vpop.permute.xlu0 %267
    %v270 = vlaneseq
    %v271 = vshrl.u32 %v270, 7
    %v272 = vsub.s32 1, %v271
    %v273 = vrot.slane %v105, %v272
    %v274 = vmul.f32 %v208, %v273
    %v275 = vmul.f32 %v212, %v273
    %v276 = vmul.f32 %v216, %v273
    %v277 = vmul.f32 %v220, %v273
    %v278 = vmul.f32 %v224, %v273
    %v279 = vmul.f32 %v228, %v273
    %v280 = vmul.f32 %v232, %v273
    %v281 = vmul.f32 %v236, %v273
    %v282 = vmul.f32 %v240, %v273
    %v283 = vmul.f32 %v244, %v273
    %v284 = vmul.f32 %v248, %v273
    %v285 = vmul.f32 %v252, %v273
    %v286 = vmul.f32 %v256, %v273
    %v287 = vmul.f32 %v260, %v273
    %v288 = vmul.f32 %v264, %v273
    %v289 = vmul.f32 %v268, %v273
    %v290 = vadd.f32 %v190, %v274
    %v291 = vadd.f32 %v191, %v275
    %v292 = vadd.f32 %v192, %v276
    %v293 = vadd.f32 %v193, %v277
    %v294 = vadd.f32 %v194, %v278
    %v295 = vadd.f32 %v195, %v279
    %v296 = vadd.f32 %v196, %v280
    %v297 = vadd.f32 %v197, %v281
    %v298 = vadd.f32 %v198, %v282
    %v299 = vadd.f32 %v199, %v283
    %v300 = vadd.f32 %v200, %v284
    %v301 = vadd.f32 %v201, %v285
    %v302 = vadd.f32 %v202, %v286
    %v303 = vadd.f32 %v203, %v287
    %v304 = vadd.f32 %v204, %v288
    %v305 = vadd.f32 %v205, %v289
    %306 = vset.pattern.permute.xlu0 2
    %307 = vperm.xlu0 %306, %v89
    %v308 = vpop.permute.xlu0 %307
    %310 = vset.pattern.permute.xlu0 2
    %311 = vperm.xlu0 %310, %v90
    %v312 = vpop.permute.xlu0 %311
    %314 = vset.pattern.permute.xlu0 2
    %315 = vperm.xlu0 %314, %v91
    %v316 = vpop.permute.xlu0 %315
    %318 = vset.pattern.permute.xlu0 2
    %319 = vperm.xlu0 %318, %v92
    %v320 = vpop.permute.xlu0 %319
    %322 = vset.pattern.permute.xlu0 2
    %323 = vperm.xlu0 %322, %v93
    %v324 = vpop.permute.xlu0 %323
    %326 = vset.pattern.permute.xlu0 2
    %327 = vperm.xlu0 %326, %v94
    %v328 = vpop.permute.xlu0 %327
    %330 = vset.pattern.permute.xlu0 2
    %331 = vperm.xlu0 %330, %v95
    %v332 = vpop.permute.xlu0 %331
    %334 = vset.pattern.permute.xlu0 2
    %335 = vperm.xlu0 %334, %v96
    %v336 = vpop.permute.xlu0 %335
    %338 = vset.pattern.permute.xlu0 2
    %339 = vperm.xlu0 %338, %v97
    %v340 = vpop.permute.xlu0 %339
    %342 = vset.pattern.permute.xlu0 2
    %343 = vperm.xlu0 %342, %v98
    %v344 = vpop.permute.xlu0 %343
    %346 = vset.pattern.permute.xlu0 2
    %347 = vperm.xlu0 %346, %v99
    %v348 = vpop.permute.xlu0 %347
    %350 = vset.pattern.permute.xlu0 2
    %351 = vperm.xlu0 %350, %v100
    %v352 = vpop.permute.xlu0 %351
    %354 = vset.pattern.permute.xlu0 2
    %355 = vperm.xlu0 %354, %v101
    %v356 = vpop.permute.xlu0 %355
    %358 = vset.pattern.permute.xlu0 2
    %359 = vperm.xlu0 %358, %v102
    %v360 = vpop.permute.xlu0 %359
    %362 = vset.pattern.permute.xlu0 2
    %363 = vperm.xlu0 %362, %v103
    %v364 = vpop.permute.xlu0 %363
    %366 = vset.pattern.permute.xlu0 2
    %367 = vperm.xlu0 %366, %v104
    %v368 = vpop.permute.xlu0 %367
    %v370 = vlaneseq
    %v371 = vshrl.u32 %v370, 7
    %v372 = vsub.s32 2, %v371
    %v373 = vrot.slane %v105, %v372
    %v374 = vmul.f32 %v308, %v373
    %v375 = vmul.f32 %v312, %v373
    %v376 = vmul.f32 %v316, %v373
    %v377 = vmul.f32 %v320, %v373
    %v378 = vmul.f32 %v324, %v373
    %v379 = vmul.f32 %v328, %v373
    %v380 = vmul.f32 %v332, %v373
    %v381 = vmul.f32 %v336, %v373
    %v382 = vmul.f32 %v340, %v373
    %v383 = vmul.f32 %v344, %v373
    %v384 = vmul.f32 %v348, %v373
    %v385 = vmul.f32 %v352, %v373
    %v386 = vmul.f32 %v356, %v373
    %v387 = vmul.f32 %v360, %v373
    %v388 = vmul.f32 %v364, %v373
    %v389 = vmul.f32 %v368, %v373
    %v390 = vadd.f32 %v290, %v374
    %v391 = vadd.f32 %v291, %v375
    %v392 = vadd.f32 %v292, %v376
    %v393 = vadd.f32 %v293, %v377
    %v394 = vadd.f32 %v294, %v378
    %v395 = vadd.f32 %v295, %v379
    %v396 = vadd.f32 %v296, %v380
    %v397 = vadd.f32 %v297, %v381
    %v398 = vadd.f32 %v298, %v382
    %v399 = vadd.f32 %v299, %v383
    %v400 = vadd.f32 %v300, %v384
    %v401 = vadd.f32 %v301, %v385
    %v402 = vadd.f32 %v302, %v386
    %v403 = vadd.f32 %v303, %v387
    %v404 = vadd.f32 %v304, %v388
    %v405 = vadd.f32 %v305, %v389
    %v406 = vld [vmem:[%s2] sm:$0x1]
    %v408 = vlaneseq
    %v409 = vshrl.u32 %v408, 7
    %v410 = vsub.s32 0, %v409
    %v411 = vrot.slane %v406, %v410
    %v413 = vadd.f32 %v390, %v411
    %v414 = vadd.f32 %v391, %v411
    %v415 = vadd.f32 %v392, %v411
    %v416 = vadd.f32 %v393, %v411
    %v417 = vadd.f32 %v394, %v411
    %v418 = vadd.f32 %v395, %v411
    %v419 = vadd.f32 %v396, %v411
    %v420 = vadd.f32 %v397, %v411
    %v421 = vadd.f32 %v398, %v411
    %v422 = vadd.f32 %v399, %v411
    %v423 = vadd.f32 %v400, %v411
    %v424 = vadd.f32 %v401, %v411
    %v425 = vadd.f32 %v402, %v411
    %v426 = vadd.f32 %v403, %v411
    %v427 = vadd.f32 %v404, %v411
    %v428 = vadd.f32 %v405, %v411
    %v429 = vld [vmem:[%s3] sm:$0x1]
    %v431 = vlaneseq
    %v432 = vshrl.u32 %v431, 7
    %v433 = vsub.s32 0, %v432
    %v434 = vrot.slane %v429, %v433
    %v436 = vmul.f32 %v413, %v434
    %v437 = vmul.f32 %v414, %v434
    %v438 = vmul.f32 %v415, %v434
    %v439 = vmul.f32 %v416, %v434
    %v440 = vmul.f32 %v417, %v434
    %v441 = vmul.f32 %v418, %v434
    %v442 = vmul.f32 %v419, %v434
    %v443 = vmul.f32 %v420, %v434
    %v444 = vmul.f32 %v421, %v434
    %v445 = vmul.f32 %v422, %v434
    %v446 = vmul.f32 %v423, %v434
    %v447 = vmul.f32 %v424, %v434
    %v448 = vmul.f32 %v425, %v434
    %v449 = vmul.f32 %v426, %v434
    %v450 = vmul.f32 %v427, %v434
    %v451 = vmul.f32 %v428, %v434
    %v452 = vld [vmem:[%s4] sm:$0x1]
    %v454 = vlaneseq
    %v455 = vshrl.u32 %v454, 7
    %v456 = vsub.s32 0, %v455
    %v457 = vrot.slane %v452, %v456
    %v459 = vadd.f32 %v436, %v457
    %v460 = vadd.f32 %v437, %v457
    %v461 = vadd.f32 %v438, %v457
    %v462 = vadd.f32 %v439, %v457
    %v463 = vadd.f32 %v440, %v457
    %v464 = vadd.f32 %v441, %v457
    %v465 = vadd.f32 %v442, %v457
    %v466 = vadd.f32 %v443, %v457
    %v467 = vadd.f32 %v444, %v457
    %v468 = vadd.f32 %v445, %v457
    %v469 = vadd.f32 %v446, %v457
    %v470 = vadd.f32 %v447, %v457
    %v471 = vadd.f32 %v448, %v457
    %v472 = vadd.f32 %v449, %v457
    %v473 = vadd.f32 %v450, %v457
    %v474 = vadd.f32 %v451, %v457
    %v475 = vmax.f32 %v459, 0.0
    %v476 = vmax.f32 %v460, 0.0
    %v477 = vmax.f32 %v461, 0.0
    %v478 = vmax.f32 %v462, 0.0
    %v479 = vmax.f32 %v463, 0.0
    %v480 = vmax.f32 %v464, 0.0
    %v481 = vmax.f32 %v465, 0.0
    %v482 = vmax.f32 %v466, 0.0
    %v483 = vmax.f32 %v467, 0.0
    %v484 = vmax.f32 %v468, 0.0
    %v485 = vmax.f32 %v469, 0.0
    %v486 = vmax.f32 %v470, 0.0
    %v487 = vmax.f32 %v471, 0.0
    %v488 = vmax.f32 %v472, 0.0
    %v489 = vmax.f32 %v473, 0.0
    %v490 = vmax.f32 %v474, 0.0
    %v491 = vpack.c.bf16 %v476, %v475
    %v492 = vpack.c.bf16 %v478, %v477
    %v493 = vpack.c.bf16 %v480, %v479
    %v494 = vpack.c.bf16 %v482, %v481
    %v495 = vpack.c.bf16 %v484, %v483
    %v496 = vpack.c.bf16 %v486, %v485
    %v497 = vpack.c.bf16 %v488, %v487
    %v498 = vpack.c.bf16 %v490, %v489
    %v499 = vld [vmem:[%s5] sm:$0xff]
    %v500 = vld [vmem:[%s5 + $0x8] sm:$0xff]
    %v501 = vld [vmem:[%s5 + $0x10] sm:$0xff]
    %v502 = vld [vmem:[%s5 + $0x18] sm:$0xff]
    %v503 = vld [vmem:[%s5 + $0x20] sm:$0xff]
    %v504 = vld [vmem:[%s5 + $0x28] sm:$0xff]
    %v505 = vld [vmem:[%s5 + $0x30] sm:$0xff]
    %v506 = vld [vmem:[%s5 + $0x38] sm:$0xff]
    %v507 = vld [vmem:[%s5 + $0x40] sm:$0xff]
    %v508 = vld [vmem:[%s5 + $0x48] sm:$0xff]
    %v509 = vld [vmem:[%s5 + $0x50] sm:$0xff]
    %v510 = vld [vmem:[%s5 + $0x58] sm:$0xff]
    %v511 = vld [vmem:[%s5 + $0x60] sm:$0xff]
    %v512 = vld [vmem:[%s5 + $0x68] sm:$0xff]
    %v513 = vld [vmem:[%s5 + $0x70] sm:$0xff]
    %v514 = vld [vmem:[%s5 + $0x78] sm:$0xff]
    %v515 = vld [vmem:[%s6] sm:$0x3]
    %v517 = vlaneseq
    %v518 = vshrl.u32 %v517, 7
    %v519 = vsub.s32 0, %v518
    %v520 = vrot.slane %v515, %v519
    %v521 = vlaneseq
    %v522 = vshrl.u32 %v521, 7
    %v523 = vsub.s32 1, %v522
    %v524 = vrot.slane %v515, %v523
    %v543 = vunpack.c.l.b16 %v499
    %v544 = vunpack.c.h.b16 %v499
    %v545 = vunpack.c.l.b16 %v500
    %v546 = vunpack.c.h.b16 %v500
    %v547 = vunpack.c.l.b16 %v501
    %v548 = vunpack.c.h.b16 %v501
    %v549 = vunpack.c.l.b16 %v502
    %v550 = vunpack.c.h.b16 %v502
    %v551 = vunpack.c.l.b16 %v503
    %v552 = vunpack.c.h.b16 %v503
    %v553 = vunpack.c.l.b16 %v504
    %v554 = vunpack.c.h.b16 %v504
    %v555 = vunpack.c.l.b16 %v505
    %v556 = vunpack.c.h.b16 %v505
    %v557 = vunpack.c.l.b16 %v506
    %v558 = vunpack.c.h.b16 %v506
    %v559 = vunpack.c.l.b16 %v507
    %v560 = vunpack.c.h.b16 %v507
    %v561 = vunpack.c.l.b16 %v508
    %v562 = vunpack.c.h.b16 %v508
    %v563 = vunpack.c.l.b16 %v509
    %v564 = vunpack.c.h.b16 %v509
    %v565 = vunpack.c.l.b16 %v510
    %v566 = vunpack.c.h.b16 %v510
    %v567 = vunpack.c.l.b16 %v511
    %v568 = vunpack.c.h.b16 %v511
    %v569 = vunpack.c.l.b16 %v512
    %v570 = vunpack.c.h.b16 %v512
    %v571 = vunpack.c.l.b16 %v513
    %v572 = vunpack.c.h.b16 %v513
    %v573 = vunpack.c.l.b16 %v514
    %v574 = vunpack.c.h.b16 %v514
    %v575 = vpack.c.b16 %v545, %v543
    %v576 = vpack.c.b16 %v546, %v544
    %v577 = vpack.c.b16 %v549, %v547
    %v578 = vpack.c.b16 %v550, %v548
    %v579 = vpack.c.b16 %v553, %v551
    %v580 = vpack.c.b16 %v554, %v552
    %v581 = vpack.c.b16 %v557, %v555
    %v582 = vpack.c.b16 %v558, %v556
    %v583 = vpack.c.b16 %v561, %v559
    %v584 = vpack.c.b16 %v562, %v560
    %v585 = vpack.c.b16 %v565, %v563
    %v586 = vpack.c.b16 %v566, %v564
    %v587 = vpack.c.b16 %v569, %v567
    %v588 = vpack.c.b16 %v570, %v568
    %v589 = vpack.c.b16 %v573, %v571
    %v590 = vpack.c.b16 %v574, %v572
    %607 = vmatprep.subr.bf16.mxu0 %v590
    %608 = vmatpush1.bf16.msra.mxu0 %v589
    %609 = vmatprep.subr.bf16.mxu0 %v588
    %610 = vmatpush1.bf16.msra.mxu0 %v587
    %611 = vmatprep.subr.bf16.mxu0 %v586
    %612 = vmatpush1.bf16.msra.mxu0 %v585
    %613 = vmatprep.subr.bf16.mxu0 %v584
    %614 = vmatpush1.bf16.msra.mxu0 %v583
    %615 = vmatprep.subr.bf16.mxu0 %v582
    %616 = vmatpush1.bf16.msra.mxu0 %v581
    %617 = vmatprep.subr.bf16.mxu0 %v580
    %618 = vmatpush1.bf16.msra.mxu0 %v579
    %619 = vmatprep.subr.bf16.mxu0 %v578
    %620 = vmatpush1.bf16.msra.mxu0 %v577
    %621 = vmatprep.subr.bf16.mxu0 %v576
    %622 = vmatpush1.bf16.msra.mxu0 %v575
    %623 = vmatprep.subr.bf16.mxu0 0
    %624 = vmatpush2.bf16.msra.mxu0 0
    %625 = vmatprep.subr.bf16.mxu0 0
    %626 = vmatpush2.bf16.msra.mxu0 0
    %627 = vmatprep.subr.bf16.mxu0 0
    %628 = vmatpush2.bf16.msra.mxu0 0
    %629 = vmatprep.subr.bf16.mxu0 0
    %630 = vmatpush2.bf16.msra.mxu0 0
    %631 = vmatprep.subr.bf16.mxu0 0
    %632 = vmatpush2.bf16.msra.mxu0 0
    %633 = vmatprep.subr.bf16.mxu0 0
    %634 = vmatpush2.bf16.msra.mxu0 0
    %635 = vmatprep.subr.bf16.mxu0 0
    %636 = vmatpush2.bf16.msra.mxu0 0
    %637 = vmatprep.subr.bf16.mxu0 0
    %638 = vmatpush2.bf16.msra.mxu0 0
    %639 = vmatprep.mubr.bf16.mxu0 0
    %640 = vmatmul.mubr.bf16.gmra.mxu0 %v491
    %v641 = vpop.f32.mrf.mxu0
    %v642 = vadd.f32 %v520, %v641
    %v643 = vpop.f32.mrf.mxu0
    %v644 = vadd.f32 %v524, %v643
    %v645 = vpop.f32.mrf.mxu0
    %v646 = vadd.f32 %v520, %v645
    %v647 = vpop.f32.mrf.mxu0
    %v648 = vadd.f32 %v524, %v647
    %649 = vmatprep.mubr.bf16.mxu0 0
    %650 = vmatmul.mubr.bf16.gmra.mxu0 %v492
    %v651 = vpop.f32.mrf.mxu0
    %v652 = vadd.f32 %v520, %v651
    %v653 = vpop.f32.mrf.mxu0
    %v654 = vadd.f32 %v524, %v653
    %v655 = vpop.f32.mrf.mxu0
    %v656 = vadd.f32 %v520, %v655
    %v657 = vpop.f32.mrf.mxu0
    %v658 = vadd.f32 %v524, %v657
    %659 = vmatprep.mubr.bf16.mxu0 0
    %660 = vmatmul.mubr.bf16.gmra.mxu0 %v493
    %v661 = vpop.f32.mrf.mxu0
    %v662 = vadd.f32 %v520, %v661
    %v663 = vpop.f32.mrf.mxu0
    %v664 = vadd.f32 %v524, %v663
    %v665 = vpop.f32.mrf.mxu0
    %v666 = vadd.f32 %v520, %v665
    %v667 = vpop.f32.mrf.mxu0
    %v668 = vadd.f32 %v524, %v667
    %669 = vmatprep.mubr.bf16.mxu0 0
    %670 = vmatmul.mubr.bf16.gmra.mxu0 %v494
    %v671 = vpop.f32.mrf.mxu0
    %v672 = vadd.f32 %v520, %v671
    %v673 = vpop.f32.mrf.mxu0
    %v674 = vadd.f32 %v524, %v673
    %v675 = vpop.f32.mrf.mxu0
    %v676 = vadd.f32 %v520, %v675
    %v677 = vpop.f32.mrf.mxu0
    %v678 = vadd.f32 %v524, %v677
    %679 = vmatprep.mubr.bf16.mxu0 0
    %680 = vmatmul.mubr.bf16.gmra.mxu0 %v495
    %v681 = vpop.f32.mrf.mxu0
    %v682 = vadd.f32 %v520, %v681
    %v683 = vpop.f32.mrf.mxu0
    %v684 = vadd.f32 %v524, %v683
    %v685 = vpop.f32.mrf.mxu0
    %v686 = vadd.f32 %v520, %v685
    %v687 = vpop.f32.mrf.mxu0
    %v688 = vadd.f32 %v524, %v687
    %689 = vmatprep.mubr.bf16.mxu0 0
    %690 = vmatmul.mubr.bf16.gmra.mxu0 %v496
    %v691 = vpop.f32.mrf.mxu0
    %v692 = vadd.f32 %v520, %v691
    %v693 = vpop.f32.mrf.mxu0
    %v694 = vadd.f32 %v524, %v693
    %v695 = vpop.f32.mrf.mxu0
    %v696 = vadd.f32 %v520, %v695
    %v697 = vpop.f32.mrf.mxu0
    %v698 = vadd.f32 %v524, %v697
    %699 = vmatprep.mubr.bf16.mxu0 0
    %700 = vmatmul.mubr.bf16.gmra.mxu0 %v497
    %v701 = vpop.f32.mrf.mxu0
    %v702 = vadd.f32 %v520, %v701
    %v703 = vpop.f32.mrf.mxu0
    %v704 = vadd.f32 %v524, %v703
    %v705 = vpop.f32.mrf.mxu0
    %v706 = vadd.f32 %v520, %v705
    %v707 = vpop.f32.mrf.mxu0
    %v708 = vadd.f32 %v524, %v707
    %709 = vmatprep.mubr.bf16.mxu0 0
    %710 = vmatmul.mubr.bf16.gmra.mxu0 %v498
    %v711 = vpop.f32.mrf.mxu0
    %v712 = vadd.f32 %v520, %v711
    %v713 = vpop.f32.mrf.mxu0
    %v714 = vadd.f32 %v524, %v713
    %v715 = vpop.f32.mrf.mxu0
    %v716 = vadd.f32 %v520, %v715
    %v717 = vpop.f32.mrf.mxu0
    %v718 = vadd.f32 %v524, %v717
    %719 = vdwg.mxu0
    %v720 = vmax.f32 %v642, %v646
    %v721 = vrot.slane %v720, 4
    %v722 = vmax.f32 %v720, %v721
    %v723 = vrot.slane %v722, 2
    %v724 = vmax.f32 %v722, %v723
    %v725 = vrot.slane %v724, 1
    %v726 = vmax.f32 %v724, %v725
    %v727 = vmax.f32 %v644, %v648
    %v728 = vrot.slane %v727, 4
    %v729 = vmax.f32 %v727, %v728
    %v730 = vrot.slane %v729, 2
    %v731 = vmax.f32 %v729, %v730
    %v732 = vrot.slane %v731, 1
    %v733 = vmax.f32 %v731, %v732
    %v734 = vmax.f32 %v652, %v656
    %v735 = vrot.slane %v734, 4
    %v736 = vmax.f32 %v734, %v735
    %v737 = vrot.slane %v736, 2
    %v738 = vmax.f32 %v736, %v737
    %v739 = vrot.slane %v738, 1
    %v740 = vmax.f32 %v738, %v739
    %v741 = vmax.f32 %v654, %v658
    %v742 = vrot.slane %v741, 4
    %v743 = vmax.f32 %v741, %v742
    %v744 = vrot.slane %v743, 2
    %v745 = vmax.f32 %v743, %v744
    %v746 = vrot.slane %v745, 1
    %v747 = vmax.f32 %v745, %v746
    %v748 = vmax.f32 %v662, %v666
    %v749 = vrot.slane %v748, 4
    %v750 = vmax.f32 %v748, %v749
    %v751 = vrot.slane %v750, 2
    %v752 = vmax.f32 %v750, %v751
    %v753 = vrot.slane %v752, 1
    %v754 = vmax.f32 %v752, %v753
    %v755 = vmax.f32 %v664, %v668
    %v756 = vrot.slane %v755, 4
    %v757 = vmax.f32 %v755, %v756
    %v758 = vrot.slane %v757, 2
    %v759 = vmax.f32 %v757, %v758
    %v760 = vrot.slane %v759, 1
    %v761 = vmax.f32 %v759, %v760
    %v762 = vmax.f32 %v672, %v676
    %v763 = vrot.slane %v762, 4
    %v764 = vmax.f32 %v762, %v763
    %v765 = vrot.slane %v764, 2
    %v766 = vmax.f32 %v764, %v765
    %v767 = vrot.slane %v766, 1
    %v768 = vmax.f32 %v766, %v767
    %v769 = vmax.f32 %v674, %v678
    %v770 = vrot.slane %v769, 4
    %v771 = vmax.f32 %v769, %v770
    %v772 = vrot.slane %v771, 2
    %v773 = vmax.f32 %v771, %v772
    %v774 = vrot.slane %v773, 1
    %v775 = vmax.f32 %v773, %v774
    %v776 = vmax.f32 %v682, %v686
    %v777 = vrot.slane %v776, 4
    %v778 = vmax.f32 %v776, %v777
    %v779 = vrot.slane %v778, 2
    %v780 = vmax.f32 %v778, %v779
    %v781 = vrot.slane %v780, 1
    %v782 = vmax.f32 %v780, %v781
    %v783 = vmax.f32 %v684, %v688
    %v784 = vrot.slane %v783, 4
    %v785 = vmax.f32 %v783, %v784
    %v786 = vrot.slane %v785, 2
    %v787 = vmax.f32 %v785, %v786
    %v788 = vrot.slane %v787, 1
    %v789 = vmax.f32 %v787, %v788
    %v790 = vmax.f32 %v692, %v696
    %v791 = vrot.slane %v790, 4
    %v792 = vmax.f32 %v790, %v791
    %v793 = vrot.slane %v792, 2
    %v794 = vmax.f32 %v792, %v793
    %v795 = vrot.slane %v794, 1
    %v796 = vmax.f32 %v794, %v795
    %v797 = vmax.f32 %v694, %v698
    %v798 = vrot.slane %v797, 4
    %v799 = vmax.f32 %v797, %v798
    %v800 = vrot.slane %v799, 2
    %v801 = vmax.f32 %v799, %v800
    %v802 = vrot.slane %v801, 1
    %v803 = vmax.f32 %v801, %v802
    %v804 = vmax.f32 %v702, %v706
    %v805 = vrot.slane %v804, 4
    %v806 = vmax.f32 %v804, %v805
    %v807 = vrot.slane %v806, 2
    %v808 = vmax.f32 %v806, %v807
    %v809 = vrot.slane %v808, 1
    %v810 = vmax.f32 %v808, %v809
    %v811 = vmax.f32 %v704, %v708
    %v812 = vrot.slane %v811, 4
    %v813 = vmax.f32 %v811, %v812
    %v814 = vrot.slane %v813, 2
    %v815 = vmax.f32 %v813, %v814
    %v816 = vrot.slane %v815, 1
    %v817 = vmax.f32 %v815, %v816
    %v818 = vmax.f32 %v712, %v716
    %v819 = vrot.slane %v818, 4
    %v820 = vmax.f32 %v818, %v819
    %v821 = vrot.slane %v820, 2
    %v822 = vmax.f32 %v820, %v821
    %v823 = vrot.slane %v822, 1
    %v824 = vmax.f32 %v822, %v823
    %v825 = vmax.f32 %v714, %v718
    %v826 = vrot.slane %v825, 4
    %v827 = vmax.f32 %v825, %v826
    %v828 = vrot.slane %v827, 2
    %v829 = vmax.f32 %v827, %v828
    %v830 = vrot.slane %v829, 1
    %v831 = vmax.f32 %v829, %v830
    %v832 = vpack.c.bf16 %v726, %v726
    %v833 = vpack.c.bf16 %v733, %v733
    %v834 = vpack.c.bf16 %v740, %v740
    %v835 = vpack.c.bf16 %v747, %v747
    %v836 = vpack.c.bf16 %v754, %v754
    %v837 = vpack.c.bf16 %v761, %v761
    %v838 = vpack.c.bf16 %v768, %v768
    %v839 = vpack.c.bf16 %v775, %v775
    %v840 = vpack.c.bf16 %v782, %v782
    %v841 = vpack.c.bf16 %v789, %v789
    %v842 = vpack.c.bf16 %v796, %v796
    %v843 = vpack.c.bf16 %v803, %v803
    %v844 = vpack.c.bf16 %v810, %v810
    %v845 = vpack.c.bf16 %v817, %v817
    %v846 = vpack.c.bf16 %v824, %v824
    %v847 = vpack.c.bf16 %v831, %v831
    %v848 = vld [vmem:[#allocation2] sm:$0xff]
    %v849 = vld [vmem:[#allocation2 + $0x8] sm:$0xff]
    %v850 = vld [vmem:[#allocation2 + $0x10] sm:$0xff]
    %v851 = vld [vmem:[#allocation2 + $0x18] sm:$0xff]
    %v852 = vld [vmem:[#allocation2 + $0x20] sm:$0xff]
    %v853 = vld [vmem:[#allocation2 + $0x28] sm:$0xff]
    %v854 = vld [vmem:[#allocation2 + $0x30] sm:$0xff]
    %v855 = vld [vmem:[#allocation2 + $0x38] sm:$0xff]
    %v856 = vld [vmem:[#allocation2 + $0x40] sm:$0xff]
    %v857 = vld [vmem:[#allocation2 + $0x48] sm:$0xff]
    %v858 = vld [vmem:[#allocation2 + $0x50] sm:$0xff]
    %v859 = vld [vmem:[#allocation2 + $0x58] sm:$0xff]
    %v860 = vld [vmem:[#allocation2 + $0x60] sm:$0xff]
    %v861 = vld [vmem:[#allocation2 + $0x68] sm:$0xff]
    %v862 = vld [vmem:[#allocation2 + $0x70] sm:$0xff]
    %v863 = vld [vmem:[#allocation2 + $0x78] sm:$0xff]
    %v864 = vld [vmem:[#allocation2 + $0x80] sm:$0xff]
    %v865 = vld [vmem:[#allocation2 + $0x88] sm:$0xff]
    %v866 = vld [vmem:[#allocation2 + $0x90] sm:$0xff]
    %v867 = vld [vmem:[#allocation2 + $0x98] sm:$0xff]
    %v868 = vld [vmem:[#allocation2 + $0xa0] sm:$0xff]
    %v869 = vld [vmem:[#allocation2 + $0xa8] sm:$0xff]
    %v870 = vld [vmem:[#allocation2 + $0xb0] sm:$0xff]
    %v871 = vld [vmem:[#allocation2 + $0xb8] sm:$0xff]
    %v872 = vld [vmem:[#allocation2 + $0xc0] sm:$0xff]
    %v873 = vld [vmem:[#allocation2 + $0xc8] sm:$0xff]
    %v874 = vld [vmem:[#allocation2 + $0xd0] sm:$0xff]
    %v875 = vld [vmem:[#allocation2 + $0xd8] sm:$0xff]
    %v876 = vld [vmem:[#allocation2 + $0xe0] sm:$0xff]
    %v877 = vld [vmem:[#allocation2 + $0xe8] sm:$0xff]
    %v878 = vld [vmem:[#allocation2 + $0xf0] sm:$0xff]
    %v879 = vld [vmem:[#allocation2 + $0xf8] sm:$0xff]
    %v880 = vld [vmem:[#allocation2 + $0x100] sm:$0xff]
    %v881 = vld [vmem:[#allocation2 + $0x108] sm:$0xff]
    %v882 = vld [vmem:[#allocation2 + $0x110] sm:$0xff]
    %v883 = vld [vmem:[#allocation2 + $0x118] sm:$0xff]
    %v884 = vld [vmem:[#allocation2 + $0x120] sm:$0xff]
    %v885 = vld [vmem:[#allocation2 + $0x128] sm:$0xff]
    %v886 = vld [vmem:[#allocation2 + $0x130] sm:$0xff]
    %v887 = vld [vmem:[#allocation2 + $0x138] sm:$0xff]
    %v888 = vld [vmem:[#allocation2 + $0x140] sm:$0xff]
    %v889 = vld [vmem:[#allocation2 + $0x148] sm:$0xff]
    %v890 = vld [vmem:[#allocation2 + $0x150] sm:$0xff]
    %v891 = vld [vmem:[#allocation2 + $0x158] sm:$0xff]
    %v892 = vld [vmem:[#allocation2 + $0x160] sm:$0xff]
    %v893 = vld [vmem:[#allocation2 + $0x168] sm:$0xff]
    %v894 = vld [vmem:[#allocation2 + $0x170] sm:$0xff]
    %v895 = vld [vmem:[#allocation2 + $0x178] sm:$0xff]
    %v896 = vld [vmem:[#allocation2 + $0x180] sm:$0xff]
    %v897 = vld [vmem:[#allocation2 + $0x188] sm:$0xff]
    %v898 = vld [vmem:[#allocation2 + $0x190] sm:$0xff]
    %v899 = vld [vmem:[#allocation2 + $0x198] sm:$0xff]
    %v900 = vld [vmem:[#allocation2 + $0x1a0] sm:$0xff]
    %v901 = vld [vmem:[#allocation2 + $0x1a8] sm:$0xff]
    %v902 = vld [vmem:[#allocation2 + $0x1b0] sm:$0xff]
    %v903 = vld [vmem:[#allocation2 + $0x1b8] sm:$0xff]
    %v904 = vld [vmem:[#allocation2 + $0x1c0] sm:$0xff]
    %v905 = vld [vmem:[#allocation2 + $0x1c8] sm:$0xff]
    %v906 = vld [vmem:[#allocation2 + $0x1d0] sm:$0xff]
    %v907 = vld [vmem:[#allocation2 + $0x1d8] sm:$0xff]
    %v908 = vld [vmem:[#allocation2 + $0x1e0] sm:$0xff]
    %v909 = vld [vmem:[#allocation2 + $0x1e8] sm:$0xff]
    %v910 = vld [vmem:[#allocation2 + $0x1f0] sm:$0xff]
    %v911 = vld [vmem:[#allocation2 + $0x1f8] sm:$0xff]
    %v928 = vunpack.c.l.b16 %v832
    %v929 = vunpack.c.l.b16 %v833
    %v930 = vunpack.c.l.b16 %v834
    %v931 = vunpack.c.l.b16 %v835
    %v932 = vunpack.c.l.b16 %v836
    %v933 = vunpack.c.l.b16 %v837
    %v934 = vunpack.c.l.b16 %v838
    %v935 = vunpack.c.l.b16 %v839
    %v936 = vunpack.c.l.b16 %v840
    %v937 = vunpack.c.l.b16 %v841
    %v938 = vunpack.c.l.b16 %v842
    %v939 = vunpack.c.l.b16 %v843
    %v940 = vunpack.c.l.b16 %v844
    %v941 = vunpack.c.l.b16 %v845
    %v942 = vunpack.c.l.b16 %v846
    %v943 = vunpack.c.l.b16 %v847
    %vm944 = vcmask 1041409
    %v945 = vsel %vm944, %v930, %v928
    %vm946 = vcmask 1042434
    %v947 = vsel %vm946, %v932, %v945
    %vm948 = vcmask 1043459
    %v949 = vsel %vm948, %v934, %v947
    %vm950 = vcmask 1044484
    %v951 = vsel %vm950, %v936, %v949
    %vm952 = vcmask 1045509
    %v953 = vsel %vm952, %v938, %v951
    %vm954 = vcmask 1046534
    %v955 = vsel %vm954, %v940, %v953
    %vm956 = vcmask 1047559
    %v957 = vsel %vm956, %v942, %v955
    %v958 = vsel %vm944, %v931, %v929
    %v959 = vsel %vm946, %v933, %v958
    %v960 = vsel %vm948, %v935, %v959
    %v961 = vsel %vm950, %v937, %v960
    %v962 = vsel %vm952, %v939, %v961
    %v963 = vsel %vm954, %v941, %v962
    %v964 = vsel %vm956, %v943, %v963
    %v965 = vpack.c.b16 %v957, %v957
    %v966 = vpack.c.b16 %v964, %v964
    %v1033 = vunpack.c.l.b16 %v848
    %v1034 = vunpack.c.h.b16 %v848
    %v1035 = vunpack.c.l.b16 %v849
    %v1036 = vunpack.c.h.b16 %v849
    %v1037 = vunpack.c.l.b16 %v850
    %v1038 = vunpack.c.h.b16 %v850
    %v1039 = vunpack.c.l.b16 %v851
    %v1040 = vunpack.c.h.b16 %v851
    %v1041 = vunpack.c.l.b16 %v852
    %v1042 = vunpack.c.h.b16 %v852
    %v1043 = vunpack.c.l.b16 %v853
    %v1044 = vunpack.c.h.b16 %v853
    %v1045 = vunpack.c.l.b16 %v854
    %v1046 = vunpack.c.h.b16 %v854
    %v1047 = vunpack.c.l.b16 %v855
    %v1048 = vunpack.c.h.b16 %v855
    %v1049 = vunpack.c.l.b16 %v856
    %v1050 = vunpack.c.h.b16 %v856
    %v1051 = vunpack.c.l.b16 %v857
    %v1052 = vunpack.c.h.b16 %v857
    %v1053 = vunpack.c.l.b16 %v858
    %v1054 = vunpack.c.h.b16 %v858
    %v1055 = vunpack.c.l.b16 %v859
    %v1056 = vunpack.c.h.b16 %v859
    %v1057 = vunpack.c.l.b16 %v860
    %v1058 = vunpack.c.h.b16 %v860
    %v1059 = vunpack.c.l.b16 %v861
    %v1060 = vunpack.c.h.b16 %v861
    %v1061 = vunpack.c.l.b16 %v862
    %v1062 = vunpack.c.h.b16 %v862
    %v1063 = vunpack.c.l.b16 %v863
    %v1064 = vunpack.c.h.b16 %v863
    %v1065 = vunpack.c.l.b16 %v864
    %v1066 = vunpack.c.h.b16 %v864
    %v1067 = vunpack.c.l.b16 %v865
    %v1068 = vunpack.c.h.b16 %v865
    %v1069 = vunpack.c.l.b16 %v866
    %v1070 = vunpack.c.h.b16 %v866
    %v1071 = vunpack.c.l.b16 %v867
    %v1072 = vunpack.c.h.b16 %v867
    %v1073 = vunpack.c.l.b16 %v868
    %v1074 = vunpack.c.h.b16 %v868
    %v1075 = vunpack.c.l.b16 %v869
    %v1076 = vunpack.c.h.b16 %v869
    %v1077 = vunpack.c.l.b16 %v870
    %v1078 = vunpack.c.h.b16 %v870
    %v1079 = vunpack.c.l.b16 %v871
    %v1080 = vunpack.c.h.b16 %v871
    %v1081 = vunpack.c.l.b16 %v872
    %v1082 = vunpack.c.h.b16 %v872
    %v1083 = vunpack.c.l.b16 %v873
    %v1084 = vunpack.c.h.b16 %v873
    %v1085 = vunpack.c.l.b16 %v874
    %v1086 = vunpack.c.h.b16 %v874
    %v1087 = vunpack.c.l.b16 %v875
    %v1088 = vunpack.c.h.b16 %v875
    %v1089 = vunpack.c.l.b16 %v876
    %v1090 = vunpack.c.h.b16 %v876
    %v1091 = vunpack.c.l.b16 %v877
    %v1092 = vunpack.c.h.b16 %v877
    %v1093 = vunpack.c.l.b16 %v878
    %v1094 = vunpack.c.h.b16 %v878
    %v1095 = vunpack.c.l.b16 %v879
    %v1096 = vunpack.c.h.b16 %v879
    %v1097 = vunpack.c.l.b16 %v880
    %v1098 = vunpack.c.h.b16 %v880
    %v1099 = vunpack.c.l.b16 %v881
    %v1100 = vunpack.c.h.b16 %v881
    %v1101 = vunpack.c.l.b16 %v882
    %v1102 = vunpack.c.h.b16 %v882
    %v1103 = vunpack.c.l.b16 %v883
    %v1104 = vunpack.c.h.b16 %v883
    %v1105 = vunpack.c.l.b16 %v884
    %v1106 = vunpack.c.h.b16 %v884
    %v1107 = vunpack.c.l.b16 %v885
    %v1108 = vunpack.c.h.b16 %v885
    %v1109 = vunpack.c.l.b16 %v886
    %v1110 = vunpack.c.h.b16 %v886
    %v1111 = vunpack.c.l.b16 %v887
    %v1112 = vunpack.c.h.b16 %v887
    %v1113 = vunpack.c.l.b16 %v888
    %v1114 = vunpack.c.h.b16 %v888
    %v1115 = vunpack.c.l.b16 %v889
    %v1116 = vunpack.c.h.b16 %v889
    %v1117 = vunpack.c.l.b16 %v890
    %v1118 = vunpack.c.h.b16 %v890
    %v1119 = vunpack.c.l.b16 %v891
    %v1120 = vunpack.c.h.b16 %v891
    %v1121 = vunpack.c.l.b16 %v892
    %v1122 = vunpack.c.h.b16 %v892
    %v1123 = vunpack.c.l.b16 %v893
    %v1124 = vunpack.c.h.b16 %v893
    %v1125 = vunpack.c.l.b16 %v894
    %v1126 = vunpack.c.h.b16 %v894
    %v1127 = vunpack.c.l.b16 %v895
    %v1128 = vunpack.c.h.b16 %v895
    %v1129 = vunpack.c.l.b16 %v896
    %v1130 = vunpack.c.h.b16 %v896
    %v1131 = vunpack.c.l.b16 %v897
    %v1132 = vunpack.c.h.b16 %v897
    %v1133 = vunpack.c.l.b16 %v898
    %v1134 = vunpack.c.h.b16 %v898
    %v1135 = vunpack.c.l.b16 %v899
    %v1136 = vunpack.c.h.b16 %v899
    %v1137 = vunpack.c.l.b16 %v900
    %v1138 = vunpack.c.h.b16 %v900
    %v1139 = vunpack.c.l.b16 %v901
    %v1140 = vunpack.c.h.b16 %v901
    %v1141 = vunpack.c.l.b16 %v902
    %v1142 = vunpack.c.h.b16 %v902
    %v1143 = vunpack.c.l.b16 %v903
    %v1144 = vunpack.c.h.b16 %v903
    %v1145 = vunpack.c.l.b16 %v904
    %v1146 = vunpack.c.h.b16 %v904
    %v1147 = vunpack.c.l.b16 %v905
    %v1148 = vunpack.c.h.b16 %v905
    %v1149 = vunpack.c.l.b16 %v906
    %v1150 = vunpack.c.h.b16 %v906
    %v1151 = vunpack.c.l.b16 %v907
    %v1152 = vunpack.c.h.b16 %v907
    %v1153 = vunpack.c.l.b16 %v908
    %v1154 = vunpack.c.h.b16 %v908
    %v1155 = vunpack.c.l.b16 %v909
    %v1156 = vunpack.c.h.b16 %v909
    %v1157 = vunpack.c.l.b16 %v910
    %v1158 = vunpack.c.h.b16 %v910
    %v1159 = vunpack.c.l.b16 %v911
    %v1160 = vunpack.c.h.b16 %v911
    %v1161 = vpack.c.b16 %v1037, %v1033
    %v1162 = vpack.c.b16 %v1038, %v1034
    %v1163 = vpack.c.b16 %v1039, %v1035
    %v1164 = vpack.c.b16 %v1040, %v1036
    %v1165 = vpack.c.b16 %v1045, %v1041
    %v1166 = vpack.c.b16 %v1046, %v1042
    %v1167 = vpack.c.b16 %v1047, %v1043
    %v1168 = vpack.c.b16 %v1048, %v1044
    %v1169 = vpack.c.b16 %v1053, %v1049
    %v1170 = vpack.c.b16 %v1054, %v1050
    %v1171 = vpack.c.b16 %v1055, %v1051
    %v1172 = vpack.c.b16 %v1056, %v1052
    %v1173 = vpack.c.b16 %v1061, %v1057
    %v1174 = vpack.c.b16 %v1062, %v1058
    %v1175 = vpack.c.b16 %v1063, %v1059
    %v1176 = vpack.c.b16 %v1064, %v1060
    %v1177 = vpack.c.b16 %v1069, %v1065
    %v1178 = vpack.c.b16 %v1070, %v1066
    %v1179 = vpack.c.b16 %v1071, %v1067
    %v1180 = vpack.c.b16 %v1072, %v1068
    %v1181 = vpack.c.b16 %v1077, %v1073
    %v1182 = vpack.c.b16 %v1078, %v1074
    %v1183 = vpack.c.b16 %v1079, %v1075
    %v1184 = vpack.c.b16 %v1080, %v1076
    %v1185 = vpack.c.b16 %v1085, %v1081
    %v1186 = vpack.c.b16 %v1086, %v1082
    %v1187 = vpack.c.b16 %v1087, %v1083
    %v1188 = vpack.c.b16 %v1088, %v1084
    %v1189 = vpack.c.b16 %v1093, %v1089
    %v1190 = vpack.c.b16 %v1094, %v1090
    %v1191 = vpack.c.b16 %v1095, %v1091
    %v1192 = vpack.c.b16 %v1096, %v1092
    %v1193 = vpack.c.b16 %v1101, %v1097
    %v1194 = vpack.c.b16 %v1102, %v1098
    %v1195 = vpack.c.b16 %v1103, %v1099
    %v1196 = vpack.c.b16 %v1104, %v1100
    %v1197 = vpack.c.b16 %v1109, %v1105
    %v1198 = vpack.c.b16 %v1110, %v1106
    %v1199 = vpack.c.b16 %v1111, %v1107
    %v1200 = vpack.c.b16 %v1112, %v1108
    %v1201 = vpack.c.b16 %v1117, %v1113
    %v1202 = vpack.c.b16 %v1118, %v1114
    %v1203 = vpack.c.b16 %v1119, %v1115
    %v1204 = vpack.c.b16 %v1120, %v1116
    %v1205 = vpack.c.b16 %v1125, %v1121
    %v1206 = vpack.c.b16 %v1126, %v1122
    %v1207 = vpack.c.b16 %v1127, %v1123
    %v1208 = vpack.c.b16 %v1128, %v1124
    %v1209 = vpack.c.b16 %v1133, %v1129
    %v1210 = vpack.c.b16 %v1134, %v1130
    %v1211 = vpack.c.b16 %v1135, %v1131
    %v1212 = vpack.c.b16 %v1136, %v1132
    %v1213 = vpack.c.b16 %v1141, %v1137
    %v1214 = vpack.c.b16 %v1142, %v1138
    %v1215 = vpack.c.b16 %v1143, %v1139
    %v1216 = vpack.c.b16 %v1144, %v1140
    %v1217 = vpack.c.b16 %v1149, %v1145
    %v1218 = vpack.c.b16 %v1150, %v1146
    %v1219 = vpack.c.b16 %v1151, %v1147
    %v1220 = vpack.c.b16 %v1152, %v1148
    %v1221 = vpack.c.b16 %v1157, %v1153
    %v1222 = vpack.c.b16 %v1158, %v1154
    %v1223 = vpack.c.b16 %v1159, %v1155
    %v1224 = vpack.c.b16 %v1160, %v1156
    %1289 = vmatprep.subr.bf16.mxu0 %v1190
    %1290 = vmatpush1.bf16.msra.mxu0 %v1189
    %1291 = vmatprep.subr.bf16.mxu0 %v1186
    %1292 = vmatpush1.bf16.msra.mxu0 %v1185
    %1293 = vmatprep.subr.bf16.mxu0 %v1182
    %1294 = vmatpush1.bf16.msra.mxu0 %v1181
    %1295 = vmatprep.subr.bf16.mxu0 %v1178
    %1296 = vmatpush1.bf16.msra.mxu0 %v1177
    %1297 = vmatprep.subr.bf16.mxu0 %v1174
    %1298 = vmatpush1.bf16.msra.mxu0 %v1173
    %1299 = vmatprep.subr.bf16.mxu0 %v1170
    %1300 = vmatpush1.bf16.msra.mxu0 %v1169
    %1301 = vmatprep.subr.bf16.mxu0 %v1166
    %1302 = vmatpush1.bf16.msra.mxu0 %v1165
    %1303 = vmatprep.subr.bf16.mxu0 %v1162
    %1304 = vmatpush1.bf16.msra.mxu0 %v1161
    %1305 = vmatprep.subr.bf16.mxu0 %v1222
    %1306 = vmatpush2.bf16.msra.mxu0 %v1221
    %1307 = vmatprep.subr.bf16.mxu0 %v1218
    %1308 = vmatpush2.bf16.msra.mxu0 %v1217
    %1309 = vmatprep.subr.bf16.mxu0 %v1214
    %1310 = vmatpush2.bf16.msra.mxu0 %v1213
    %1311 = vmatprep.subr.bf16.mxu0 %v1210
    %1312 = vmatpush2.bf16.msra.mxu0 %v1209
    %1313 = vmatprep.subr.bf16.mxu0 %v1206
    %1314 = vmatpush2.bf16.msra.mxu0 %v1205
    %1315 = vmatprep.subr.bf16.mxu0 %v1202
    %1316 = vmatpush2.bf16.msra.mxu0 %v1201
    %1317 = vmatprep.subr.bf16.mxu0 %v1198
    %1318 = vmatpush2.bf16.msra.mxu0 %v1197
    %1319 = vmatprep.subr.bf16.mxu0 %v1194
    %1320 = vmatpush2.bf16.msra.mxu0 %v1193
    %1321 = vmatprep.mubr.bf16.mxu0 %v966
    %1322 = vmatmul.mubr.bf16.gmra.mxu0 %v965
    %v1323 = vpop.f32.mrf.mxu0
    %v1324 = vadd.f32 0.0, %v1323
    %v1325 = vpop.f32.mrf.mxu0
    %v1326 = vadd.f32 0.0, %v1325
    %v1327 = vpop.f32.mrf.mxu0
    %v1328 = vpop.f32.mrf.mxu0
    %1329 = vdwg.mxu0
    %1330 = vmatprep.subr.bf16.mxu0 %v1192
    %1331 = vmatpush1.bf16.msra.mxu0 %v1191
    %1332 = vmatprep.subr.bf16.mxu0 %v1188
    %1333 = vmatpush1.bf16.msra.mxu0 %v1187
    %1334 = vmatprep.subr.bf16.mxu0 %v1184
    %1335 = vmatpush1.bf16.msra.mxu0 %v1183
    %1336 = vmatprep.subr.bf16.mxu0 %v1180
    %1337 = vmatpush1.bf16.msra.mxu0 %v1179
    %1338 = vmatprep.subr.bf16.mxu0 %v1176
    %1339 = vmatpush1.bf16.msra.mxu0 %v1175
    %1340 = vmatprep.subr.bf16.mxu0 %v1172
    %1341 = vmatpush1.bf16.msra.mxu0 %v1171
    %1342 = vmatprep.subr.bf16.mxu0 %v1168
    %1343 = vmatpush1.bf16.msra.mxu0 %v1167
    %1344 = vmatprep.subr.bf16.mxu0 %v1164
    %1345 = vmatpush1.bf16.msra.mxu0 %v1163
    %1346 = vmatprep.subr.bf16.mxu0 %v1224
    %1347 = vmatpush2.bf16.msra.mxu0 %v1223
    %1348 = vmatprep.subr.bf16.mxu0 %v1220
    %1349 = vmatpush2.bf16.msra.mxu0 %v1219
    %1350 = vmatprep.subr.bf16.mxu0 %v1216
    %1351 = vmatpush2.bf16.msra.mxu0 %v1215
    %1352 = vmatprep.subr.bf16.mxu0 %v1212
    %1353 = vmatpush2.bf16.msra.mxu0 %v1211
    %1354 = vmatprep.subr.bf16.mxu0 %v1208
    %1355 = vmatpush2.bf16.msra.mxu0 %v1207
    %1356 = vmatprep.subr.bf16.mxu0 %v1204
    %1357 = vmatpush2.bf16.msra.mxu0 %v1203
    %1358 = vmatprep.subr.bf16.mxu0 %v1200
    %1359 = vmatpush2.bf16.msra.mxu0 %v1199
    %1360 = vmatprep.subr.bf16.mxu0 %v1196
    %1361 = vmatpush2.bf16.msra.mxu0 %v1195
    %1362 = vmatprep.mubr.bf16.mxu0 %v966
    %1363 = vmatmul.mubr.bf16.gmra.mxu0 %v965
    %v1364 = vpop.f32.mrf.mxu0
    %v1365 = vadd.f32 0.0, %v1364
    %v1366 = vpop.f32.mrf.mxu0
    %v1367 = vadd.f32 0.0, %v1366
    %v1368 = vpop.f32.mrf.mxu0
    %v1369 = vpop.f32.mrf.mxu0
    %1370 = vdwg.mxu0
    %v1371 = vpack.c.bf16 %v646, %v642
    %v1372 = vpack.c.bf16 %v648, %v644
    %v1373 = vpack.c.bf16 %v656, %v652
    %v1374 = vpack.c.bf16 %v658, %v654
    %v1375 = vpack.c.bf16 %v666, %v662
    %v1376 = vpack.c.bf16 %v668, %v664
    %v1377 = vpack.c.bf16 %v676, %v672
    %v1378 = vpack.c.bf16 %v678, %v674
    %v1379 = vpack.c.bf16 %v686, %v682
    %v1380 = vpack.c.bf16 %v688, %v684
    %v1381 = vpack.c.bf16 %v696, %v692
    %v1382 = vpack.c.bf16 %v698, %v694
    %v1383 = vpack.c.bf16 %v706, %v702
    %v1384 = vpack.c.bf16 %v708, %v704
    %v1385 = vpack.c.bf16 %v716, %v712
    %v1386 = vpack.c.bf16 %v718, %v714
    %v1387 = vld [vmem:[#allocation4] sm:$0xff]
    %v1388 = vld [vmem:[#allocation4 + $0x8] sm:$0xff]
    %v1389 = vld [vmem:[#allocation4 + $0x10] sm:$0xff]
    %v1390 = vld [vmem:[#allocation4 + $0x18] sm:$0xff]
    %v1391 = vld [vmem:[#allocation4 + $0x20] sm:$0xff]
    %v1392 = vld [vmem:[#allocation4 + $0x28] sm:$0xff]
    %v1393 = vld [vmem:[#allocation4 + $0x30] sm:$0xff]
    %v1394 = vld [vmem:[#allocation4 + $0x38] sm:$0xff]
    %v1395 = vld [vmem:[#allocation4 + $0x40] sm:$0xff]
    %v1396 = vld [vmem:[#allocation4 + $0x48] sm:$0xff]
    %v1397 = vld [vmem:[#allocation4 + $0x50] sm:$0xff]
    %v1398 = vld [vmem:[#allocation4 + $0x58] sm:$0xff]
    %v1399 = vld [vmem:[#allocation4 + $0x60] sm:$0xff]
    %v1400 = vld [vmem:[#allocation4 + $0x68] sm:$0xff]
    %v1401 = vld [vmem:[#allocation4 + $0x70] sm:$0xff]
    %v1402 = vld [vmem:[#allocation4 + $0x78] sm:$0xff]
    %v1403 = vld [vmem:[#allocation4 + $0x80] sm:$0xff]
    %v1404 = vld [vmem:[#allocation4 + $0x88] sm:$0xff]
    %v1405 = vld [vmem:[#allocation4 + $0x90] sm:$0xff]
    %v1406 = vld [vmem:[#allocation4 + $0x98] sm:$0xff]
    %v1407 = vld [vmem:[#allocation4 + $0xa0] sm:$0xff]
    %v1408 = vld [vmem:[#allocation4 + $0xa8] sm:$0xff]
    %v1409 = vld [vmem:[#allocation4 + $0xb0] sm:$0xff]
    %v1410 = vld [vmem:[#allocation4 + $0xb8] sm:$0xff]
    %v1411 = vld [vmem:[#allocation4 + $0xc0] sm:$0xff]
    %v1412 = vld [vmem:[#allocation4 + $0xc8] sm:$0xff]
    %v1413 = vld [vmem:[#allocation4 + $0xd0] sm:$0xff]
    %v1414 = vld [vmem:[#allocation4 + $0xd8] sm:$0xff]
    %v1415 = vld [vmem:[#allocation4 + $0xe0] sm:$0xff]
    %v1416 = vld [vmem:[#allocation4 + $0xe8] sm:$0xff]
    %v1417 = vld [vmem:[#allocation4 + $0xf0] sm:$0xff]
    %v1418 = vld [vmem:[#allocation4 + $0xf8] sm:$0xff]
    %v1419 = vld [vmem:[#allocation4 + $0x100] sm:$0xff]
    %v1420 = vld [vmem:[#allocation4 + $0x108] sm:$0xff]
    %v1421 = vld [vmem:[#allocation4 + $0x110] sm:$0xff]
    %v1422 = vld [vmem:[#allocation4 + $0x118] sm:$0xff]
    %v1423 = vld [vmem:[#allocation4 + $0x120] sm:$0xff]
    %v1424 = vld [vmem:[#allocation4 + $0x128] sm:$0xff]
    %v1425 = vld [vmem:[#allocation4 + $0x130] sm:$0xff]
    %v1426 = vld [vmem:[#allocation4 + $0x138] sm:$0xff]
    %v1427 = vld [vmem:[#allocation4 + $0x140] sm:$0xff]
    %v1428 = vld [vmem:[#allocation4 + $0x148] sm:$0xff]
    %v1429 = vld [vmem:[#allocation4 + $0x150] sm:$0xff]
    %v1430 = vld [vmem:[#allocation4 + $0x158] sm:$0xff]
    %v1431 = vld [vmem:[#allocation4 + $0x160] sm:$0xff]
    %v1432 = vld [vmem:[#allocation4 + $0x168] sm:$0xff]
    %v1433 = vld [vmem:[#allocation4 + $0x170] sm:$0xff]
    %v1434 = vld [vmem:[#allocation4 + $0x178] sm:$0xff]
    %v1435 = vld [vmem:[#allocation4 + $0x180] sm:$0xff]
    %v1436 = vld [vmem:[#allocation4 + $0x188] sm:$0xff]
    %v1437 = vld [vmem:[#allocation4 + $0x190] sm:$0xff]
    %v1438 = vld [vmem:[#allocation4 + $0x198] sm:$0xff]
    %v1439 = vld [vmem:[#allocation4 + $0x1a0] sm:$0xff]
    %v1440 = vld [vmem:[#allocation4 + $0x1a8] sm:$0xff]
    %v1441 = vld [vmem:[#allocation4 + $0x1b0] sm:$0xff]
    %v1442 = vld [vmem:[#allocation4 + $0x1b8] sm:$0xff]
    %v1443 = vld [vmem:[#allocation4 + $0x1c0] sm:$0xff]
    %v1444 = vld [vmem:[#allocation4 + $0x1c8] sm:$0xff]
    %v1445 = vld [vmem:[#allocation4 + $0x1d0] sm:$0xff]
    %v1446 = vld [vmem:[#allocation4 + $0x1d8] sm:$0xff]
    %v1447 = vld [vmem:[#allocation4 + $0x1e0] sm:$0xff]
    %v1448 = vld [vmem:[#allocation4 + $0x1e8] sm:$0xff]
    %v1449 = vld [vmem:[#allocation4 + $0x1f0] sm:$0xff]
    %v1450 = vld [vmem:[#allocation4 + $0x1f8] sm:$0xff]
    %v1515 = vunpack.c.l.b16 %v1387
    %v1516 = vunpack.c.h.b16 %v1387
    %v1517 = vunpack.c.l.b16 %v1388
    %v1518 = vunpack.c.h.b16 %v1388
    %v1519 = vunpack.c.l.b16 %v1389
    %v1520 = vunpack.c.h.b16 %v1389
    %v1521 = vunpack.c.l.b16 %v1390
    %v1522 = vunpack.c.h.b16 %v1390
    %v1523 = vunpack.c.l.b16 %v1391
    %v1524 = vunpack.c.h.b16 %v1391
    %v1525 = vunpack.c.l.b16 %v1392
    %v1526 = vunpack.c.h.b16 %v1392
    %v1527 = vunpack.c.l.b16 %v1393
    %v1528 = vunpack.c.h.b16 %v1393
    %v1529 = vunpack.c.l.b16 %v1394
    %v1530 = vunpack.c.h.b16 %v1394
    %v1531 = vunpack.c.l.b16 %v1395
    %v1532 = vunpack.c.h.b16 %v1395
    %v1533 = vunpack.c.l.b16 %v1396
    %v1534 = vunpack.c.h.b16 %v1396
    %v1535 = vunpack.c.l.b16 %v1397
    %v1536 = vunpack.c.h.b16 %v1397
    %v1537 = vunpack.c.l.b16 %v1398
    %v1538 = vunpack.c.h.b16 %v1398
    %v1539 = vunpack.c.l.b16 %v1399
    %v1540 = vunpack.c.h.b16 %v1399
    %v1541 = vunpack.c.l.b16 %v1400
    %v1542 = vunpack.c.h.b16 %v1400
    %v1543 = vunpack.c.l.b16 %v1401
    %v1544 = vunpack.c.h.b16 %v1401
    %v1545 = vunpack.c.l.b16 %v1402
    %v1546 = vunpack.c.h.b16 %v1402
    %v1547 = vunpack.c.l.b16 %v1403
    %v1548 = vunpack.c.h.b16 %v1403
    %v1549 = vunpack.c.l.b16 %v1404
    %v1550 = vunpack.c.h.b16 %v1404
    %v1551 = vunpack.c.l.b16 %v1405
    %v1552 = vunpack.c.h.b16 %v1405
    %v1553 = vunpack.c.l.b16 %v1406
    %v1554 = vunpack.c.h.b16 %v1406
    %v1555 = vunpack.c.l.b16 %v1407
    %v1556 = vunpack.c.h.b16 %v1407
    %v1557 = vunpack.c.l.b16 %v1408
    %v1558 = vunpack.c.h.b16 %v1408
    %v1559 = vunpack.c.l.b16 %v1409
    %v1560 = vunpack.c.h.b16 %v1409
    %v1561 = vunpack.c.l.b16 %v1410
    %v1562 = vunpack.c.h.b16 %v1410
    %v1563 = vunpack.c.l.b16 %v1411
    %v1564 = vunpack.c.h.b16 %v1411
    %v1565 = vunpack.c.l.b16 %v1412
    %v1566 = vunpack.c.h.b16 %v1412
    %v1567 = vunpack.c.l.b16 %v1413
    %v1568 = vunpack.c.h.b16 %v1413
    %v1569 = vunpack.c.l.b16 %v1414
    %v1570 = vunpack.c.h.b16 %v1414
    %v1571 = vunpack.c.l.b16 %v1415
    %v1572 = vunpack.c.h.b16 %v1415
    %v1573 = vunpack.c.l.b16 %v1416
    %v1574 = vunpack.c.h.b16 %v1416
    %v1575 = vunpack.c.l.b16 %v1417
    %v1576 = vunpack.c.h.b16 %v1417
    %v1577 = vunpack.c.l.b16 %v1418
    %v1578 = vunpack.c.h.b16 %v1418
    %v1579 = vunpack.c.l.b16 %v1419
    %v1580 = vunpack.c.h.b16 %v1419
    %v1581 = vunpack.c.l.b16 %v1420
    %v1582 = vunpack.c.h.b16 %v1420
    %v1583 = vunpack.c.l.b16 %v1421
    %v1584 = vunpack.c.h.b16 %v1421
    %v1585 = vunpack.c.l.b16 %v1422
    %v1586 = vunpack.c.h.b16 %v1422
    %v1587 = vunpack.c.l.b16 %v1423
    %v1588 = vunpack.c.h.b16 %v1423
    %v1589 = vunpack.c.l.b16 %v1424
    %v1590 = vunpack.c.h.b16 %v1424
    %v1591 = vunpack.c.l.b16 %v1425
    %v1592 = vunpack.c.h.b16 %v1425
    %v1593 = vunpack.c.l.b16 %v1426
    %v1594 = vunpack.c.h.b16 %v1426
    %v1595 = vunpack.c.l.b16 %v1427
    %v1596 = vunpack.c.h.b16 %v1427
    %v1597 = vunpack.c.l.b16 %v1428
    %v1598 = vunpack.c.h.b16 %v1428
    %v1599 = vunpack.c.l.b16 %v1429
    %v1600 = vunpack.c.h.b16 %v1429
    %v1601 = vunpack.c.l.b16 %v1430
    %v1602 = vunpack.c.h.b16 %v1430
    %v1603 = vunpack.c.l.b16 %v1431
    %v1604 = vunpack.c.h.b16 %v1431
    %v1605 = vunpack.c.l.b16 %v1432
    %v1606 = vunpack.c.h.b16 %v1432
    %v1607 = vunpack.c.l.b16 %v1433
    %v1608 = vunpack.c.h.b16 %v1433
    %v1609 = vunpack.c.l.b16 %v1434
    %v1610 = vunpack.c.h.b16 %v1434
    %v1611 = vunpack.c.l.b16 %v1435
    %v1612 = vunpack.c.h.b16 %v1435
    %v1613 = vunpack.c.l.b16 %v1436
    %v1614 = vunpack.c.h.b16 %v1436
    %v1615 = vunpack.c.l.b16 %v1437
    %v1616 = vunpack.c.h.b16 %v1437
    %v1617 = vunpack.c.l.b16 %v1438
    %v1618 = vunpack.c.h.b16 %v1438
    %v1619 = vunpack.c.l.b16 %v1439
    %v1620 = vunpack.c.h.b16 %v1439
    %v1621 = vunpack.c.l.b16 %v1440
    %v1622 = vunpack.c.h.b16 %v1440
    %v1623 = vunpack.c.l.b16 %v1441
    %v1624 = vunpack.c.h.b16 %v1441
    %v1625 = vunpack.c.l.b16 %v1442
    %v1626 = vunpack.c.h.b16 %v1442
    %v1627 = vunpack.c.l.b16 %v1443
    %v1628 = vunpack.c.h.b16 %v1443
    %v1629 = vunpack.c.l.b16 %v1444
    %v1630 = vunpack.c.h.b16 %v1444
    %v1631 = vunpack.c.l.b16 %v1445
    %v1632 = vunpack.c.h.b16 %v1445
    %v1633 = vunpack.c.l.b16 %v1446
    %v1634 = vunpack.c.h.b16 %v1446
    %v1635 = vunpack.c.l.b16 %v1447
    %v1636 = vunpack.c.h.b16 %v1447
    %v1637 = vunpack.c.l.b16 %v1448
    %v1638 = vunpack.c.h.b16 %v1448
    %v1639 = vunpack.c.l.b16 %v1449
    %v1640 = vunpack.c.h.b16 %v1449
    %v1641 = vunpack.c.l.b16 %v1450
    %v1642 = vunpack.c.h.b16 %v1450
    %v1643 = vpack.c.b16 %v1519, %v1515
    %v1644 = vpack.c.b16 %v1520, %v1516
    %v1645 = vpack.c.b16 %v1521, %v1517
    %v1646 = vpack.c.b16 %v1522, %v1518
    %v1647 = vpack.c.b16 %v1527, %v1523
    %v1648 = vpack.c.b16 %v1528, %v1524
    %v1649 = vpack.c.b16 %v1529, %v1525
    %v1650 = vpack.c.b16 %v1530, %v1526
    %v1651 = vpack.c.b16 %v1535, %v1531
    %v1652 = vpack.c.b16 %v1536, %v1532
    %v1653 = vpack.c.b16 %v1537, %v1533
    %v1654 = vpack.c.b16 %v1538, %v1534
    %v1655 = vpack.c.b16 %v1543, %v1539
    %v1656 = vpack.c.b16 %v1544, %v1540
    %v1657 = vpack.c.b16 %v1545, %v1541
    %v1658 = vpack.c.b16 %v1546, %v1542
    %v1659 = vpack.c.b16 %v1551, %v1547
    %v1660 = vpack.c.b16 %v1552, %v1548
    %v1661 = vpack.c.b16 %v1553, %v1549
    %v1662 = vpack.c.b16 %v1554, %v1550
    %v1663 = vpack.c.b16 %v1559, %v1555
    %v1664 = vpack.c.b16 %v1560, %v1556
    %v1665 = vpack.c.b16 %v1561, %v1557
    %v1666 = vpack.c.b16 %v1562, %v1558
    %v1667 = vpack.c.b16 %v1567, %v1563
    %v1668 = vpack.c.b16 %v1568, %v1564
    %v1669 = vpack.c.b16 %v1569, %v1565
    %v1670 = vpack.c.b16 %v1570, %v1566
    %v1671 = vpack.c.b16 %v1575, %v1571
    %v1672 = vpack.c.b16 %v1576, %v1572
    %v1673 = vpack.c.b16 %v1577, %v1573
    %v1674 = vpack.c.b16 %v1578, %v1574
    %v1675 = vpack.c.b16 %v1583, %v1579
    %v1676 = vpack.c.b16 %v1584, %v1580
    %v1677 = vpack.c.b16 %v1585, %v1581
    %v1678 = vpack.c.b16 %v1586, %v1582
    %v1679 = vpack.c.b16 %v1591, %v1587
    %v1680 = vpack.c.b16 %v1592, %v1588
    %v1681 = vpack.c.b16 %v1593, %v1589
    %v1682 = vpack.c.b16 %v1594, %v1590
    %v1683 = vpack.c.b16 %v1599, %v1595
    %v1684 = vpack.c.b16 %v1600, %v1596
    %v1685 = vpack.c.b16 %v1601, %v1597
    %v1686 = vpack.c.b16 %v1602, %v1598
    %v1687 = vpack.c.b16 %v1607, %v1603
    %v1688 = vpack.c.b16 %v1608, %v1604
    %v1689 = vpack.c.b16 %v1609, %v1605
    %v1690 = vpack.c.b16 %v1610, %v1606
    %v1691 = vpack.c.b16 %v1615, %v1611
    %v1692 = vpack.c.b16 %v1616, %v1612
    %v1693 = vpack.c.b16 %v1617, %v1613
    %v1694 = vpack.c.b16 %v1618, %v1614
    %v1695 = vpack.c.b16 %v1623, %v1619
    %v1696 = vpack.c.b16 %v1624, %v1620
    %v1697 = vpack.c.b16 %v1625, %v1621
    %v1698 = vpack.c.b16 %v1626, %v1622
    %v1699 = vpack.c.b16 %v1631, %v1627
    %v1700 = vpack.c.b16 %v1632, %v1628
    %v1701 = vpack.c.b16 %v1633, %v1629
    %v1702 = vpack.c.b16 %v1634, %v1630
    %v1703 = vpack.c.b16 %v1639, %v1635
    %v1704 = vpack.c.b16 %v1640, %v1636
    %v1705 = vpack.c.b16 %v1641, %v1637
    %v1706 = vpack.c.b16 %v1642, %v1638
    %1771 = vmatprep.subr.bf16.mxu0 %v1672
    %1772 = vmatpush1.bf16.msra.mxu0 %v1671
    %1773 = vmatprep.subr.bf16.mxu0 %v1668
    %1774 = vmatpush1.bf16.msra.mxu0 %v1667
    %1775 = vmatprep.subr.bf16.mxu0 %v1664
    %1776 = vmatpush1.bf16.msra.mxu0 %v1663
    %1777 = vmatprep.subr.bf16.mxu0 %v1660
    %1778 = vmatpush1.bf16.msra.mxu0 %v1659
    %1779 = vmatprep.subr.bf16.mxu0 %v1656
    %1780 = vmatpush1.bf16.msra.mxu0 %v1655
    %1781 = vmatprep.subr.bf16.mxu0 %v1652
    %1782 = vmatpush1.bf16.msra.mxu0 %v1651
    %1783 = vmatprep.subr.bf16.mxu0 %v1648
    %1784 = vmatpush1.bf16.msra.mxu0 %v1647
    %1785 = vmatprep.subr.bf16.mxu0 %v1644
    %1786 = vmatpush1.bf16.msra.mxu0 %v1643
    %1787 = vmatprep.subr.bf16.mxu0 %v1704
    %1788 = vmatpush2.bf16.msra.mxu0 %v1703
    %1789 = vmatprep.subr.bf16.mxu0 %v1700
    %1790 = vmatpush2.bf16.msra.mxu0 %v1699
    %1791 = vmatprep.subr.bf16.mxu0 %v1696
    %1792 = vmatpush2.bf16.msra.mxu0 %v1695
    %1793 = vmatprep.subr.bf16.mxu0 %v1692
    %1794 = vmatpush2.bf16.msra.mxu0 %v1691
    %1795 = vmatprep.subr.bf16.mxu0 %v1688
    %1796 = vmatpush2.bf16.msra.mxu0 %v1687
    %1797 = vmatprep.subr.bf16.mxu0 %v1684
    %1798 = vmatpush2.bf16.msra.mxu0 %v1683
    %1799 = vmatprep.subr.bf16.mxu0 %v1680
    %1800 = vmatpush2.bf16.msra.mxu0 %v1679
    %1801 = vmatprep.subr.bf16.mxu0 %v1676
    %1802 = vmatpush2.bf16.msra.mxu0 %v1675
    %1803 = vmatprep.mubr.bf16.mxu0 %v1372
    %1804 = vmatmul.mubr.bf16.gmra.mxu0 %v1371
    %v1805 = vpop.f32.mrf.mxu0
    %v1806 = vadd.f32 0.0, %v1805
    %v1807 = vpop.f32.mrf.mxu0
    %v1808 = vadd.f32 0.0, %v1807
    %v1809 = vpop.f32.mrf.mxu0
    %v1810 = vadd.f32 0.0, %v1809
    %v1811 = vpop.f32.mrf.mxu0
    %v1812 = vadd.f32 0.0, %v1811
    %1813 = vmatprep.mubr.bf16.mxu0 %v1374
    %1814 = vmatmul.mubr.bf16.gmra.mxu0 %v1373
    %v1815 = vpop.f32.mrf.mxu0
    %v1816 = vadd.f32 0.0, %v1815
    %v1817 = vpop.f32.mrf.mxu0
    %v1818 = vadd.f32 0.0, %v1817
    %v1819 = vpop.f32.mrf.mxu0
    %v1820 = vadd.f32 0.0, %v1819
    %v1821 = vpop.f32.mrf.mxu0
    %v1822 = vadd.f32 0.0, %v1821
    %1823 = vmatprep.mubr.bf16.mxu0 %v1376
    %1824 = vmatmul.mubr.bf16.gmra.mxu0 %v1375
    %v1825 = vpop.f32.mrf.mxu0
    %v1826 = vadd.f32 0.0, %v1825
    %v1827 = vpop.f32.mrf.mxu0
    %v1828 = vadd.f32 0.0, %v1827
    %v1829 = vpop.f32.mrf.mxu0
    %v1830 = vadd.f32 0.0, %v1829
    %v1831 = vpop.f32.mrf.mxu0
    %v1832 = vadd.f32 0.0, %v1831
    %1833 = vmatprep.mubr.bf16.mxu0 %v1378
    %1834 = vmatmul.mubr.bf16.gmra.mxu0 %v1377
    %v1835 = vpop.f32.mrf.mxu0
    %v1836 = vadd.f32 0.0, %v1835
    %v1837 = vpop.f32.mrf.mxu0
    %v1838 = vadd.f32 0.0, %v1837
    %v1839 = vpop.f32.mrf.mxu0
    %v1840 = vadd.f32 0.0, %v1839
    %v1841 = vpop.f32.mrf.mxu0
    %v1842 = vadd.f32 0.0, %v1841
    %1843 = vmatprep.mubr.bf16.mxu0 %v1380
    %1844 = vmatmul.mubr.bf16.gmra.mxu0 %v1379
    %v1845 = vpop.f32.mrf.mxu0
    %v1846 = vadd.f32 0.0, %v1845
    %v1847 = vpop.f32.mrf.mxu0
    %v1848 = vadd.f32 0.0, %v1847
    %v1849 = vpop.f32.mrf.mxu0
    %v1850 = vadd.f32 0.0, %v1849
    %v1851 = vpop.f32.mrf.mxu0
    %v1852 = vadd.f32 0.0, %v1851
    %1853 = vmatprep.mubr.bf16.mxu0 %v1382
    %1854 = vmatmul.mubr.bf16.gmra.mxu0 %v1381
    %v1855 = vpop.f32.mrf.mxu0
    %v1856 = vadd.f32 0.0, %v1855
    %v1857 = vpop.f32.mrf.mxu0
    %v1858 = vadd.f32 0.0, %v1857
    %v1859 = vpop.f32.mrf.mxu0
    %v1860 = vadd.f32 0.0, %v1859
    %v1861 = vpop.f32.mrf.mxu0
    %v1862 = vadd.f32 0.0, %v1861
    %1863 = vmatprep.mubr.bf16.mxu0 %v1384
    %1864 = vmatmul.mubr.bf16.gmra.mxu0 %v1383
    %v1865 = vpop.f32.mrf.mxu0
    %v1866 = vadd.f32 0.0, %v1865
    %v1867 = vpop.f32.mrf.mxu0
    %v1868 = vadd.f32 0.0, %v1867
    %v1869 = vpop.f32.mrf.mxu0
    %v1870 = vadd.f32 0.0, %v1869
    %v1871 = vpop.f32.mrf.mxu0
    %v1872 = vadd.f32 0.0, %v1871
    %1873 = vmatprep.mubr.bf16.mxu0 %v1386
    %1874 = vmatmul.mubr.bf16.gmra.mxu0 %v1385
    %v1875 = vpop.f32.mrf.mxu0
    %v1876 = vadd.f32 0.0, %v1875
    %v1877 = vpop.f32.mrf.mxu0
    %v1878 = vadd.f32 0.0, %v1877
    %v1879 = vpop.f32.mrf.mxu0
    %v1880 = vadd.f32 0.0, %v1879
    %v1881 = vpop.f32.mrf.mxu0
    %v1882 = vadd.f32 0.0, %v1881
    %1883 = vdwg.mxu0
    %1884 = vmatprep.subr.bf16.mxu0 %v1674
    %1885 = vmatpush1.bf16.msra.mxu0 %v1673
    %1886 = vmatprep.subr.bf16.mxu0 %v1670
    %1887 = vmatpush1.bf16.msra.mxu0 %v1669
    %1888 = vmatprep.subr.bf16.mxu0 %v1666
    %1889 = vmatpush1.bf16.msra.mxu0 %v1665
    %1890 = vmatprep.subr.bf16.mxu0 %v1662
    %1891 = vmatpush1.bf16.msra.mxu0 %v1661
    %1892 = vmatprep.subr.bf16.mxu0 %v1658
    %1893 = vmatpush1.bf16.msra.mxu0 %v1657
    %1894 = vmatprep.subr.bf16.mxu0 %v1654
    %1895 = vmatpush1.bf16.msra.mxu0 %v1653
    %1896 = vmatprep.subr.bf16.mxu0 %v1650
    %1897 = vmatpush1.bf16.msra.mxu0 %v1649
    %1898 = vmatprep.subr.bf16.mxu0 %v1646
    %1899 = vmatpush1.bf16.msra.mxu0 %v1645
    %1900 = vmatprep.subr.bf16.mxu0 %v1706
    %1901 = vmatpush2.bf16.msra.mxu0 %v1705
    %1902 = vmatprep.subr.bf16.mxu0 %v1702
    %1903 = vmatpush2.bf16.msra.mxu0 %v1701
    %1904 = vmatprep.subr.bf16.mxu0 %v1698
    %1905 = vmatpush2.bf16.msra.mxu0 %v1697
    %1906 = vmatprep.subr.bf16.mxu0 %v1694
    %1907 = vmatpush2.bf16.msra.mxu0 %v1693
    %1908 = vmatprep.subr.bf16.mxu0 %v1690
    %1909 = vmatpush2.bf16.msra.mxu0 %v1689
    %1910 = vmatprep.subr.bf16.mxu0 %v1686
    %1911 = vmatpush2.bf16.msra.mxu0 %v1685
    %1912 = vmatprep.subr.bf16.mxu0 %v1682
    %1913 = vmatpush2.bf16.msra.mxu0 %v1681
    %1914 = vmatprep.subr.bf16.mxu0 %v1678
    %1915 = vmatpush2.bf16.msra.mxu0 %v1677
    %1916 = vmatprep.mubr.bf16.mxu0 %v1372
    %1917 = vmatmul.mubr.bf16.gmra.mxu0 %v1371
    %v1918 = vpop.f32.mrf.mxu0
    %v1919 = vadd.f32 0.0, %v1918
    %v1920 = vpop.f32.mrf.mxu0
    %v1921 = vadd.f32 0.0, %v1920
    %v1922 = vpop.f32.mrf.mxu0
    %v1923 = vadd.f32 0.0, %v1922
    %v1924 = vpop.f32.mrf.mxu0
    %v1925 = vadd.f32 0.0, %v1924
    %1926 = vmatprep.mubr.bf16.mxu0 %v1374
    %1927 = vmatmul.mubr.bf16.gmra.mxu0 %v1373
    %v1928 = vpop.f32.mrf.mxu0
    %v1929 = vadd.f32 0.0, %v1928
    %v1930 = vpop.f32.mrf.mxu0
    %v1931 = vadd.f32 0.0, %v1930
    %v1932 = vpop.f32.mrf.mxu0
    %v1933 = vadd.f32 0.0, %v1932
    %v1934 = vpop.f32.mrf.mxu0
    %v1935 = vadd.f32 0.0, %v1934
    %1936 = vmatprep.mubr.bf16.mxu0 %v1376
    %1937 = vmatmul.mubr.bf16.gmra.mxu0 %v1375
    %v1938 = vpop.f32.mrf.mxu0
    %v1939 = vadd.f32 0.0, %v1938
    %v1940 = vpop.f32.mrf.mxu0
    %v1941 = vadd.f32 0.0, %v1940
    %v1942 = vpop.f32.mrf.mxu0
    %v1943 = vadd.f32 0.0, %v1942
    %v1944 = vpop.f32.mrf.mxu0
    %v1945 = vadd.f32 0.0, %v1944
    %1946 = vmatprep.mubr.bf16.mxu0 %v1378
    %1947 = vmatmul.mubr.bf16.gmra.mxu0 %v1377
    %v1948 = vpop.f32.mrf.mxu0
    %v1949 = vadd.f32 0.0, %v1948
    %v1950 = vpop.f32.mrf.mxu0
    %v1951 = vadd.f32 0.0, %v1950
    %v1952 = vpop.f32.mrf.mxu0
    %v1953 = vadd.f32 0.0, %v1952
    %v1954 = vpop.f32.mrf.mxu0
    %v1955 = vadd.f32 0.0, %v1954
    %1956 = vmatprep.mubr.bf16.mxu0 %v1380
    %1957 = vmatmul.mubr.bf16.gmra.mxu0 %v1379
    %v1958 = vpop.f32.mrf.mxu0
    %v1959 = vadd.f32 0.0, %v1958
    %v1960 = vpop.f32.mrf.mxu0
    %v1961 = vadd.f32 0.0, %v1960
    %v1962 = vpop.f32.mrf.mxu0
    %v1963 = vadd.f32 0.0, %v1962
    %v1964 = vpop.f32.mrf.mxu0
    %v1965 = vadd.f32 0.0, %v1964
    %1966 = vmatprep.mubr.bf16.mxu0 %v1382
    %1967 = vmatmul.mubr.bf16.gmra.mxu0 %v1381
    %v1968 = vpop.f32.mrf.mxu0
    %v1969 = vadd.f32 0.0, %v1968
    %v1970 = vpop.f32.mrf.mxu0
    %v1971 = vadd.f32 0.0, %v1970
    %v1972 = vpop.f32.mrf.mxu0
    %v1973 = vadd.f32 0.0, %v1972
    %v1974 = vpop.f32.mrf.mxu0
    %v1975 = vadd.f32 0.0, %v1974
    %1976 = vmatprep.mubr.bf16.mxu0 %v1384
    %1977 = vmatmul.mubr.bf16.gmra.mxu0 %v1383
    %v1978 = vpop.f32.mrf.mxu0
    %v1979 = vadd.f32 0.0, %v1978
    %v1980 = vpop.f32.mrf.mxu0
    %v1981 = vadd.f32 0.0, %v1980
    %v1982 = vpop.f32.mrf.mxu0
    %v1983 = vadd.f32 0.0, %v1982
    %v1984 = vpop.f32.mrf.mxu0
    %v1985 = vadd.f32 0.0, %v1984
    %1986 = vmatprep.mubr.bf16.mxu0 %v1386
    %1987 = vmatmul.mubr.bf16.gmra.mxu0 %v1385
    %v1988 = vpop.f32.mrf.mxu0
    %v1989 = vadd.f32 0.0, %v1988
    %v1990 = vpop.f32.mrf.mxu0
    %v1991 = vadd.f32 0.0, %v1990
    %v1992 = vpop.f32.mrf.mxu0
    %v1993 = vadd.f32 0.0, %v1992
    %v1994 = vpop.f32.mrf.mxu0
    %v1995 = vadd.f32 0.0, %v1994
    %1996 = vdwg.mxu0
    %v2001 = vcombine.low %v1324, %v1326
    %v2002 = vcombine.high %v1324, %v1326
    %v2003 = vcombine.low %v1365, %v1367
    %v2004 = vcombine.high %v1365, %v1367
    %v2006 = vunpack.c.l.s4 1966171168
    %v2007 = vunpack.c.0.s8 %v2006
    %v2008 = vlaneseq
    %v2009 = vshrl.u32 %v2008, 7
    %v2010 = vsub.s32 %v2007, %v2009
    %v2011 = vrot.slane %v2001, %v2010
    %v2013 = vunpack.c.l.s4 1966171168
    %v2014 = vunpack.c.0.s8 %v2013
    %v2015 = vlaneseq
    %v2016 = vshrl.u32 %v2015, 7
    %v2017 = vsub.s32 %v2014, %v2016
    %v2018 = vrot.slane %v2002, %v2017
    %v2020 = vunpack.c.l.s4 1966171168
    %v2021 = vunpack.c.0.s8 %v2020
    %v2022 = vlaneseq
    %v2023 = vshrl.u32 %v2022, 7
    %v2024 = vsub.s32 %v2021, %v2023
    %v2025 = vrot.slane %v2003, %v2024
    %v2027 = vunpack.c.l.s4 1966171168
    %v2028 = vunpack.c.0.s8 %v2027
    %v2029 = vlaneseq
    %v2030 = vshrl.u32 %v2029, 7
    %v2031 = vsub.s32 %v2028, %v2030
    %v2032 = vrot.slane %v2004, %v2031
    %v2033 = vcombine.low %v2011, %v2025
    %v2034 = vcombine.high %v2011, %v2025
    %v2035 = vcombine.low %v2018, %v2032
    %v2036 = vcombine.high %v2018, %v2032
    %v2038 = vunpack.c.l.s4 1966171168
    %v2039 = vunpack.c.0.s8 %v2038
    %v2040 = vlaneseq
    %v2041 = vshrl.u32 %v2040, 7
    %v2042 = vsub.s32 %v2039, %v2041
    %v2043 = vrot.slane %v2033, %v2042
    %v2045 = vunpack.c.l.s4 1966171168
    %v2046 = vunpack.c.0.s8 %v2045
    %v2047 = vlaneseq
    %v2048 = vshrl.u32 %v2047, 7
    %v2049 = vsub.s32 %v2046, %v2048
    %v2050 = vrot.slane %v2035, %v2049
    %v2052 = vunpack.c.l.s4 1966171168
    %v2053 = vunpack.c.0.s8 %v2052
    %v2054 = vlaneseq
    %v2055 = vshrl.u32 %v2054, 7
    %v2056 = vsub.s32 %v2053, %v2055
    %v2057 = vrot.slane %v2034, %v2056
    %v2059 = vunpack.c.l.s4 1966171168
    %v2060 = vunpack.c.0.s8 %v2059
    %v2061 = vlaneseq
    %v2062 = vshrl.u32 %v2061, 7
    %v2063 = vsub.s32 %v2060, %v2062
    %v2064 = vrot.slane %v2036, %v2063
    %v2065 = vcombine.high %v2043, %v2043
    %v2066 = vcombine.high %v2050, %v2050
    %v2067 = vcombine.high %v2057, %v2057
    %v2068 = vcombine.high %v2064, %v2064
    %v2069 = vlaneseq
    %v2070 = vshrl.u32 %v2069, 7
    %v2071 = vsub.s32 0, %v2070
    %v2072 = vrot.slane %v2043, %v2071
    %v2073 = vlaneseq
    %v2074 = vshrl.u32 %v2073, 7
    %v2075 = vsub.s32 1, %v2074
    %v2076 = vrot.slane %v2043, %v2075
    %v2077 = vlaneseq
    %v2078 = vshrl.u32 %v2077, 7
    %v2079 = vsub.s32 2, %v2078
    %v2080 = vrot.slane %v2043, %v2079
    %v2081 = vlaneseq
    %v2082 = vshrl.u32 %v2081, 7
    %v2083 = vsub.s32 3, %v2082
    %v2084 = vrot.slane %v2043, %v2083
    %v2085 = vlaneseq
    %v2086 = vshrl.u32 %v2085, 7
    %v2087 = vsub.s32 0, %v2086
    %v2088 = vrot.slane %v2057, %v2087
    %v2089 = vlaneseq
    %v2090 = vshrl.u32 %v2089, 7
    %v2091 = vsub.s32 1, %v2090
    %v2092 = vrot.slane %v2057, %v2091
    %v2093 = vlaneseq
    %v2094 = vshrl.u32 %v2093, 7
    %v2095 = vsub.s32 2, %v2094
    %v2096 = vrot.slane %v2057, %v2095
    %v2097 = vlaneseq
    %v2098 = vshrl.u32 %v2097, 7
    %v2099 = vsub.s32 3, %v2098
    %v2100 = vrot.slane %v2057, %v2099
    %v2101 = vlaneseq
    %v2102 = vshrl.u32 %v2101, 7
    %v2103 = vsub.s32 0, %v2102
    %v2104 = vrot.slane %v2065, %v2103
    %v2105 = vlaneseq
    %v2106 = vshrl.u32 %v2105, 7
    %v2107 = vsub.s32 1, %v2106
    %v2108 = vrot.slane %v2065, %v2107
    %v2109 = vlaneseq
    %v2110 = vshrl.u32 %v2109, 7
    %v2111 = vsub.s32 2, %v2110
    %v2112 = vrot.slane %v2065, %v2111
    %v2113 = vlaneseq
    %v2114 = vshrl.u32 %v2113, 7
    %v2115 = vsub.s32 3, %v2114
    %v2116 = vrot.slane %v2065, %v2115
    %v2117 = vlaneseq
    %v2118 = vshrl.u32 %v2117, 7
    %v2119 = vsub.s32 0, %v2118
    %v2120 = vrot.slane %v2067, %v2119
    %v2121 = vlaneseq
    %v2122 = vshrl.u32 %v2121, 7
    %v2123 = vsub.s32 1, %v2122
    %v2124 = vrot.slane %v2067, %v2123
    %v2125 = vlaneseq
    %v2126 = vshrl.u32 %v2125, 7
    %v2127 = vsub.s32 2, %v2126
    %v2128 = vrot.slane %v2067, %v2127
    %v2129 = vlaneseq
    %v2130 = vshrl.u32 %v2129, 7
    %v2131 = vsub.s32 3, %v2130
    %v2132 = vrot.slane %v2067, %v2131
    %v2133 = vlaneseq
    %v2134 = vshrl.u32 %v2133, 7
    %v2135 = vsub.s32 0, %v2134
    %v2136 = vrot.slane %v2050, %v2135
    %v2137 = vlaneseq
    %v2138 = vshrl.u32 %v2137, 7
    %v2139 = vsub.s32 1, %v2138
    %v2140 = vrot.slane %v2050, %v2139
    %v2141 = vlaneseq
    %v2142 = vshrl.u32 %v2141, 7
    %v2143 = vsub.s32 2, %v2142
    %v2144 = vrot.slane %v2050, %v2143
    %v2145 = vlaneseq
    %v2146 = vshrl.u32 %v2145, 7
    %v2147 = vsub.s32 3, %v2146
    %v2148 = vrot.slane %v2050, %v2147
    %v2149 = vlaneseq
    %v2150 = vshrl.u32 %v2149, 7
    %v2151 = vsub.s32 0, %v2150
    %v2152 = vrot.slane %v2064, %v2151
    %v2153 = vlaneseq
    %v2154 = vshrl.u32 %v2153, 7
    %v2155 = vsub.s32 1, %v2154
    %v2156 = vrot.slane %v2064, %v2155
    %v2157 = vlaneseq
    %v2158 = vshrl.u32 %v2157, 7
    %v2159 = vsub.s32 2, %v2158
    %v2160 = vrot.slane %v2064, %v2159
    %v2161 = vlaneseq
    %v2162 = vshrl.u32 %v2161, 7
    %v2163 = vsub.s32 3, %v2162
    %v2164 = vrot.slane %v2064, %v2163
    %v2165 = vlaneseq
    %v2166 = vshrl.u32 %v2165, 7
    %v2167 = vsub.s32 0, %v2166
    %v2168 = vrot.slane %v2066, %v2167
    %v2169 = vlaneseq
    %v2170 = vshrl.u32 %v2169, 7
    %v2171 = vsub.s32 1, %v2170
    %v2172 = vrot.slane %v2066, %v2171
    %v2173 = vlaneseq
    %v2174 = vshrl.u32 %v2173, 7
    %v2175 = vsub.s32 2, %v2174
    %v2176 = vrot.slane %v2066, %v2175
    %v2177 = vlaneseq
    %v2178 = vshrl.u32 %v2177, 7
    %v2179 = vsub.s32 3, %v2178
    %v2180 = vrot.slane %v2066, %v2179
    %v2181 = vlaneseq
    %v2182 = vshrl.u32 %v2181, 7
    %v2183 = vsub.s32 0, %v2182
    %v2184 = vrot.slane %v2068, %v2183
    %v2185 = vlaneseq
    %v2186 = vshrl.u32 %v2185, 7
    %v2187 = vsub.s32 1, %v2186
    %v2188 = vrot.slane %v2068, %v2187
    %v2189 = vlaneseq
    %v2190 = vshrl.u32 %v2189, 7
    %v2191 = vsub.s32 2, %v2190
    %v2192 = vrot.slane %v2068, %v2191
    %v2193 = vlaneseq
    %v2194 = vshrl.u32 %v2193, 7
    %v2195 = vsub.s32 3, %v2194
    %v2196 = vrot.slane %v2068, %v2195
    %v2229 = vadd.f32 %v1806, %v2072
    %v2230 = vadd.f32 %v1808, %v2076
    %v2231 = vadd.f32 %v1919, %v2080
    %v2232 = vadd.f32 %v1921, %v2084
    %v2233 = vadd.f32 %v1810, %v2072
    %v2234 = vadd.f32 %v1812, %v2076
    %v2235 = vadd.f32 %v1923, %v2080
    %v2236 = vadd.f32 %v1925, %v2084
    %v2237 = vadd.f32 %v1816, %v2088
    %v2238 = vadd.f32 %v1818, %v2092
    %v2239 = vadd.f32 %v1929, %v2096
    %v2240 = vadd.f32 %v1931, %v2100
    %v2241 = vadd.f32 %v1820, %v2088
    %v2242 = vadd.f32 %v1822, %v2092
    %v2243 = vadd.f32 %v1933, %v2096
    %v2244 = vadd.f32 %v1935, %v2100
    %v2245 = vadd.f32 %v1826, %v2104
    %v2246 = vadd.f32 %v1828, %v2108
    %v2247 = vadd.f32 %v1939, %v2112
    %v2248 = vadd.f32 %v1941, %v2116
    %v2249 = vadd.f32 %v1830, %v2104
    %v2250 = vadd.f32 %v1832, %v2108
    %v2251 = vadd.f32 %v1943, %v2112
    %v2252 = vadd.f32 %v1945, %v2116
    %v2253 = vadd.f32 %v1836, %v2120
    %v2254 = vadd.f32 %v1838, %v2124
    %v2255 = vadd.f32 %v1949, %v2128
    %v2256 = vadd.f32 %v1951, %v2132
    %v2257 = vadd.f32 %v1840, %v2120
    %v2258 = vadd.f32 %v1842, %v2124
    %v2259 = vadd.f32 %v1953, %v2128
    %v2260 = vadd.f32 %v1955, %v2132
    %v2261 = vadd.f32 %v1846, %v2136
    %v2262 = vadd.f32 %v1848, %v2140
    %v2263 = vadd.f32 %v1959, %v2144
    %v2264 = vadd.f32 %v1961, %v2148
    %v2265 = vadd.f32 %v1850, %v2136
    %v2266 = vadd.f32 %v1852, %v2140
    %v2267 = vadd.f32 %v1963, %v2144
    %v2268 = vadd.f32 %v1965, %v2148
    %v2269 = vadd.f32 %v1856, %v2152
    %v2270 = vadd.f32 %v1858, %v2156
    %v2271 = vadd.f32 %v1969, %v2160
    %v2272 = vadd.f32 %v1971, %v2164
    %v2273 = vadd.f32 %v1860, %v2152
    %v2274 = vadd.f32 %v1862, %v2156
    %v2275 = vadd.f32 %v1973, %v2160
    %v2276 = vadd.f32 %v1975, %v2164
    %v2277 = vadd.f32 %v1866, %v2168
    %v2278 = vadd.f32 %v1868, %v2172
    %v2279 = vadd.f32 %v1979, %v2176
    %v2280 = vadd.f32 %v1981, %v2180
    %v2281 = vadd.f32 %v1870, %v2168
    %v2282 = vadd.f32 %v1872, %v2172
    %v2283 = vadd.f32 %v1983, %v2176
    %v2284 = vadd.f32 %v1985, %v2180
    %v2285 = vadd.f32 %v1876, %v2184
    %v2286 = vadd.f32 %v1878, %v2188
    %v2287 = vadd.f32 %v1989, %v2192
    %v2288 = vadd.f32 %v1991, %v2196
    %v2289 = vadd.f32 %v1880, %v2184
    %v2290 = vadd.f32 %v1882, %v2188
    %v2291 = vadd.f32 %v1993, %v2192
    %v2292 = vadd.f32 %v1995, %v2196
    %v2293 = vld [vmem:[%s9] sm:$0xf]
    %v2295 = vlaneseq
    %v2296 = vshrl.u32 %v2295, 7
    %v2297 = vsub.s32 0, %v2296
    %v2298 = vrot.slane %v2293, %v2297
    %v2299 = vlaneseq
    %v2300 = vshrl.u32 %v2299, 7
    %v2301 = vsub.s32 1, %v2300
    %v2302 = vrot.slane %v2293, %v2301
    %v2303 = vlaneseq
    %v2304 = vshrl.u32 %v2303, 7
    %v2305 = vsub.s32 2, %v2304
    %v2306 = vrot.slane %v2293, %v2305
    %v2307 = vlaneseq
    %v2308 = vshrl.u32 %v2307, 7
    %v2309 = vsub.s32 3, %v2308
    %v2310 = vrot.slane %v2293, %v2309
    %v2315 = vadd.f32 %v2229, %v2298
    %v2316 = vadd.f32 %v2230, %v2302
    %v2317 = vadd.f32 %v2231, %v2306
    %v2318 = vadd.f32 %v2232, %v2310
    %v2319 = vadd.f32 %v2233, %v2298
    %v2320 = vadd.f32 %v2234, %v2302
    %v2321 = vadd.f32 %v2235, %v2306
    %v2322 = vadd.f32 %v2236, %v2310
    %v2323 = vadd.f32 %v2237, %v2298
    %v2324 = vadd.f32 %v2238, %v2302
    %v2325 = vadd.f32 %v2239, %v2306
    %v2326 = vadd.f32 %v2240, %v2310
    %v2327 = vadd.f32 %v2241, %v2298
    %v2328 = vadd.f32 %v2242, %v2302
    %v2329 = vadd.f32 %v2243, %v2306
    %v2330 = vadd.f32 %v2244, %v2310
    %v2331 = vadd.f32 %v2245, %v2298
    %v2332 = vadd.f32 %v2246, %v2302
    %v2333 = vadd.f32 %v2247, %v2306
    %v2334 = vadd.f32 %v2248, %v2310
    %v2335 = vadd.f32 %v2249, %v2298
    %v2336 = vadd.f32 %v2250, %v2302
    %v2337 = vadd.f32 %v2251, %v2306
    %v2338 = vadd.f32 %v2252, %v2310
    %v2339 = vadd.f32 %v2253, %v2298
    %v2340 = vadd.f32 %v2254, %v2302
    %v2341 = vadd.f32 %v2255, %v2306
    %v2342 = vadd.f32 %v2256, %v2310
    %v2343 = vadd.f32 %v2257, %v2298
    %v2344 = vadd.f32 %v2258, %v2302
    %v2345 = vadd.f32 %v2259, %v2306
    %v2346 = vadd.f32 %v2260, %v2310
    %v2347 = vadd.f32 %v2261, %v2298
    %v2348 = vadd.f32 %v2262, %v2302
    %v2349 = vadd.f32 %v2263, %v2306
    %v2350 = vadd.f32 %v2264, %v2310
    %v2351 = vadd.f32 %v2265, %v2298
    %v2352 = vadd.f32 %v2266, %v2302
    %v2353 = vadd.f32 %v2267, %v2306
    %v2354 = vadd.f32 %v2268, %v2310
    %v2355 = vadd.f32 %v2269, %v2298
    %v2356 = vadd.f32 %v2270, %v2302
    %v2357 = vadd.f32 %v2271, %v2306
    %v2358 = vadd.f32 %v2272, %v2310
    %v2359 = vadd.f32 %v2273, %v2298
    %v2360 = vadd.f32 %v2274, %v2302
    %v2361 = vadd.f32 %v2275, %v2306
    %v2362 = vadd.f32 %v2276, %v2310
    %v2363 = vadd.f32 %v2277, %v2298
    %v2364 = vadd.f32 %v2278, %v2302
    %v2365 = vadd.f32 %v2279, %v2306
    %v2366 = vadd.f32 %v2280, %v2310
    %v2367 = vadd.f32 %v2281, %v2298
    %v2368 = vadd.f32 %v2282, %v2302
    %v2369 = vadd.f32 %v2283, %v2306
    %v2370 = vadd.f32 %v2284, %v2310
    %v2371 = vadd.f32 %v2285, %v2298
    %v2372 = vadd.f32 %v2286, %v2302
    %v2373 = vadd.f32 %v2287, %v2306
    %v2374 = vadd.f32 %v2288, %v2310
    %v2375 = vadd.f32 %v2289, %v2298
    %v2376 = vadd.f32 %v2290, %v2302
    %v2377 = vadd.f32 %v2291, %v2306
    %v2378 = vadd.f32 %v2292, %v2310
    %v2379 = vld [vmem:[%s10] sm:$0xf]
    %v2381 = vlaneseq
    %v2382 = vshrl.u32 %v2381, 7
    %v2383 = vsub.s32 0, %v2382
    %v2384 = vrot.slane %v2379, %v2383
    %v2385 = vlaneseq
    %v2386 = vshrl.u32 %v2385, 7
    %v2387 = vsub.s32 1, %v2386
    %v2388 = vrot.slane %v2379, %v2387
    %v2389 = vlaneseq
    %v2390 = vshrl.u32 %v2389, 7
    %v2391 = vsub.s32 2, %v2390
    %v2392 = vrot.slane %v2379, %v2391
    %v2393 = vlaneseq
    %v2394 = vshrl.u32 %v2393, 7
    %v2395 = vsub.s32 3, %v2394
    %v2396 = vrot.slane %v2379, %v2395
    %v2401 = vmul.f32 %v2315, %v2384
    %v2402 = vmul.f32 %v2316, %v2388
    %v2403 = vmul.f32 %v2317, %v2392
    %v2404 = vmul.f32 %v2318, %v2396
    %v2405 = vmul.f32 %v2319, %v2384
    %v2406 = vmul.f32 %v2320, %v2388
    %v2407 = vmul.f32 %v2321, %v2392
    %v2408 = vmul.f32 %v2322, %v2396
    %v2409 = vmul.f32 %v2323, %v2384
    %v2410 = vmul.f32 %v2324, %v2388
    %v2411 = vmul.f32 %v2325, %v2392
    %v2412 = vmul.f32 %v2326, %v2396
    %v2413 = vmul.f32 %v2327, %v2384
    %v2414 = vmul.f32 %v2328, %v2388
    %v2415 = vmul.f32 %v2329, %v2392
    %v2416 = vmul.f32 %v2330, %v2396
    %v2417 = vmul.f32 %v2331, %v2384
    %v2418 = vmul.f32 %v2332, %v2388
    %v2419 = vmul.f32 %v2333, %v2392
    %v2420 = vmul.f32 %v2334, %v2396
    %v2421 = vmul.f32 %v2335, %v2384
    %v2422 = vmul.f32 %v2336, %v2388
    %v2423 = vmul.f32 %v2337, %v2392
    %v2424 = vmul.f32 %v2338, %v2396
    %v2425 = vmul.f32 %v2339, %v2384
    %v2426 = vmul.f32 %v2340, %v2388
    %v2427 = vmul.f32 %v2341, %v2392
    %v2428 = vmul.f32 %v2342, %v2396
    %v2429 = vmul.f32 %v2343, %v2384
    %v2430 = vmul.f32 %v2344, %v2388
    %v2431 = vmul.f32 %v2345, %v2392
    %v2432 = vmul.f32 %v2346, %v2396
    %v2433 = vmul.f32 %v2347, %v2384
    %v2434 = vmul.f32 %v2348, %v2388
    %v2435 = vmul.f32 %v2349, %v2392
    %v2436 = vmul.f32 %v2350, %v2396
    %v2437 = vmul.f32 %v2351, %v2384
    %v2438 = vmul.f32 %v2352, %v2388
    %v2439 = vmul.f32 %v2353, %v2392
    %v2440 = vmul.f32 %v2354, %v2396
    %v2441 = vmul.f32 %v2355, %v2384
    %v2442 = vmul.f32 %v2356, %v2388
    %v2443 = vmul.f32 %v2357, %v2392
    %v2444 = vmul.f32 %v2358, %v2396
    %v2445 = vmul.f32 %v2359, %v2384
    %v2446 = vmul.f32 %v2360, %v2388
    %v2447 = vmul.f32 %v2361, %v2392
    %v2448 = vmul.f32 %v2362, %v2396
    %v2449 = vmul.f32 %v2363, %v2384
    %v2450 = vmul.f32 %v2364, %v2388
    %v2451 = vmul.f32 %v2365, %v2392
    %v2452 = vmul.f32 %v2366, %v2396
    %v2453 = vmul.f32 %v2367, %v2384
    %v2454 = vmul.f32 %v2368, %v2388
    %v2455 = vmul.f32 %v2369, %v2392
    %v2456 = vmul.f32 %v2370, %v2396
    %v2457 = vmul.f32 %v2371, %v2384
    %v2458 = vmul.f32 %v2372, %v2388
    %v2459 = vmul.f32 %v2373, %v2392
    %v2460 = vmul.f32 %v2374, %v2396
    %v2461 = vmul.f32 %v2375, %v2384
    %v2462 = vmul.f32 %v2376, %v2388
    %v2463 = vmul.f32 %v2377, %v2392
    %v2464 = vmul.f32 %v2378, %v2396
    %v2465 = vld [vmem:[%s11] sm:$0xf]
    %v2467 = vlaneseq
    %v2468 = vshrl.u32 %v2467, 7
    %v2469 = vsub.s32 0, %v2468
    %v2470 = vrot.slane %v2465, %v2469
    %v2471 = vlaneseq
    %v2472 = vshrl.u32 %v2471, 7
    %v2473 = vsub.s32 1, %v2472
    %v2474 = vrot.slane %v2465, %v2473
    %v2475 = vlaneseq
    %v2476 = vshrl.u32 %v2475, 7
    %v2477 = vsub.s32 2, %v2476
    %v2478 = vrot.slane %v2465, %v2477
    %v2479 = vlaneseq
    %v2480 = vshrl.u32 %v2479, 7
    %v2481 = vsub.s32 3, %v2480
    %v2482 = vrot.slane %v2465, %v2481
    %v2487 = vadd.f32 %v2401, %v2470
    %v2488 = vadd.f32 %v2402, %v2474
    %v2489 = vadd.f32 %v2403, %v2478
    %v2490 = vadd.f32 %v2404, %v2482
    %v2491 = vadd.f32 %v2405, %v2470
    %v2492 = vadd.f32 %v2406, %v2474
    %v2493 = vadd.f32 %v2407, %v2478
    %v2494 = vadd.f32 %v2408, %v2482
    %v2495 = vadd.f32 %v2409, %v2470
    %v2496 = vadd.f32 %v2410, %v2474
    %v2497 = vadd.f32 %v2411, %v2478
    %v2498 = vadd.f32 %v2412, %v2482
    %v2499 = vadd.f32 %v2413, %v2470
    %v2500 = vadd.f32 %v2414, %v2474
    %v2501 = vadd.f32 %v2415, %v2478
    %v2502 = vadd.f32 %v2416, %v2482
    %v2503 = vadd.f32 %v2417, %v2470
    %v2504 = vadd.f32 %v2418, %v2474
    %v2505 = vadd.f32 %v2419, %v2478
    %v2506 = vadd.f32 %v2420, %v2482
    %v2507 = vadd.f32 %v2421, %v2470
    %v2508 = vadd.f32 %v2422, %v2474
    %v2509 = vadd.f32 %v2423, %v2478
    %v2510 = vadd.f32 %v2424, %v2482
    %v2511 = vadd.f32 %v2425, %v2470
    %v2512 = vadd.f32 %v2426, %v2474
    %v2513 = vadd.f32 %v2427, %v2478
    %v2514 = vadd.f32 %v2428, %v2482
    %v2515 = vadd.f32 %v2429, %v2470
    %v2516 = vadd.f32 %v2430, %v2474
    %v2517 = vadd.f32 %v2431, %v2478
    %v2518 = vadd.f32 %v2432, %v2482
    %v2519 = vadd.f32 %v2433, %v2470
    %v2520 = vadd.f32 %v2434, %v2474
    %v2521 = vadd.f32 %v2435, %v2478
    %v2522 = vadd.f32 %v2436, %v2482
    %v2523 = vadd.f32 %v2437, %v2470
    %v2524 = vadd.f32 %v2438, %v2474
    %v2525 = vadd.f32 %v2439, %v2478
    %v2526 = vadd.f32 %v2440, %v2482
    %v2527 = vadd.f32 %v2441, %v2470
    %v2528 = vadd.f32 %v2442, %v2474
    %v2529 = vadd.f32 %v2443, %v2478
    %v2530 = vadd.f32 %v2444, %v2482
    %v2531 = vadd.f32 %v2445, %v2470
    %v2532 = vadd.f32 %v2446, %v2474
    %v2533 = vadd.f32 %v2447, %v2478
    %v2534 = vadd.f32 %v2448, %v2482
    %v2535 = vadd.f32 %v2449, %v2470
    %v2536 = vadd.f32 %v2450, %v2474
    %v2537 = vadd.f32 %v2451, %v2478
    %v2538 = vadd.f32 %v2452, %v2482
    %v2539 = vadd.f32 %v2453, %v2470
    %v2540 = vadd.f32 %v2454, %v2474
    %v2541 = vadd.f32 %v2455, %v2478
    %v2542 = vadd.f32 %v2456, %v2482
    %v2543 = vadd.f32 %v2457, %v2470
    %v2544 = vadd.f32 %v2458, %v2474
    %v2545 = vadd.f32 %v2459, %v2478
    %v2546 = vadd.f32 %v2460, %v2482
    %v2547 = vadd.f32 %v2461, %v2470
    %v2548 = vadd.f32 %v2462, %v2474
    %v2549 = vadd.f32 %v2463, %v2478
    %v2550 = vadd.f32 %v2464, %v2482
    %v2551 = vmax.f32 %v2487, 0.0
    %v2552 = vmax.f32 %v2488, 0.0
    %v2553 = vmax.f32 %v2489, 0.0
    %v2554 = vmax.f32 %v2490, 0.0
    %v2555 = vmax.f32 %v2491, 0.0
    %v2556 = vmax.f32 %v2492, 0.0
    %v2557 = vmax.f32 %v2493, 0.0
    %v2558 = vmax.f32 %v2494, 0.0
    %v2559 = vmax.f32 %v2495, 0.0
    %v2560 = vmax.f32 %v2496, 0.0
    %v2561 = vmax.f32 %v2497, 0.0
    %v2562 = vmax.f32 %v2498, 0.0
    %v2563 = vmax.f32 %v2499, 0.0
    %v2564 = vmax.f32 %v2500, 0.0
    %v2565 = vmax.f32 %v2501, 0.0
    %v2566 = vmax.f32 %v2502, 0.0
    %v2567 = vmax.f32 %v2503, 0.0
    %v2568 = vmax.f32 %v2504, 0.0
    %v2569 = vmax.f32 %v2505, 0.0
    %v2570 = vmax.f32 %v2506, 0.0
    %v2571 = vmax.f32 %v2507, 0.0
    %v2572 = vmax.f32 %v2508, 0.0
    %v2573 = vmax.f32 %v2509, 0.0
    %v2574 = vmax.f32 %v2510, 0.0
    %v2575 = vmax.f32 %v2511, 0.0
    %v2576 = vmax.f32 %v2512, 0.0
    %v2577 = vmax.f32 %v2513, 0.0
    %v2578 = vmax.f32 %v2514, 0.0
    %v2579 = vmax.f32 %v2515, 0.0
    %v2580 = vmax.f32 %v2516, 0.0
    %v2581 = vmax.f32 %v2517, 0.0
    %v2582 = vmax.f32 %v2518, 0.0
    %v2583 = vmax.f32 %v2519, 0.0
    %v2584 = vmax.f32 %v2520, 0.0
    %v2585 = vmax.f32 %v2521, 0.0
    %v2586 = vmax.f32 %v2522, 0.0
    %v2587 = vmax.f32 %v2523, 0.0
    %v2588 = vmax.f32 %v2524, 0.0
    %v2589 = vmax.f32 %v2525, 0.0
    %v2590 = vmax.f32 %v2526, 0.0
    %v2591 = vmax.f32 %v2527, 0.0
    %v2592 = vmax.f32 %v2528, 0.0
    %v2593 = vmax.f32 %v2529, 0.0
    %v2594 = vmax.f32 %v2530, 0.0
    %v2595 = vmax.f32 %v2531, 0.0
    %v2596 = vmax.f32 %v2532, 0.0
    %v2597 = vmax.f32 %v2533, 0.0
    %v2598 = vmax.f32 %v2534, 0.0
    %v2599 = vmax.f32 %v2535, 0.0
    %v2600 = vmax.f32 %v2536, 0.0
    %v2601 = vmax.f32 %v2537, 0.0
    %v2602 = vmax.f32 %v2538, 0.0
    %v2603 = vmax.f32 %v2539, 0.0
    %v2604 = vmax.f32 %v2540, 0.0
    %v2605 = vmax.f32 %v2541, 0.0
    %v2606 = vmax.f32 %v2542, 0.0
    %v2607 = vmax.f32 %v2543, 0.0
    %v2608 = vmax.f32 %v2544, 0.0
    %v2609 = vmax.f32 %v2545, 0.0
    %v2610 = vmax.f32 %v2546, 0.0
    %v2611 = vmax.f32 %v2547, 0.0
    %v2612 = vmax.f32 %v2548, 0.0
    %v2613 = vmax.f32 %v2549, 0.0
    %v2614 = vmax.f32 %v2550, 0.0
    %v2615 = vpack.c.bf16 %v2555, %v2551
    %v2616 = vpack.c.bf16 %v2556, %v2552
    %v2617 = vpack.c.bf16 %v2557, %v2553
    %v2618 = vpack.c.bf16 %v2558, %v2554
    %v2619 = vpack.c.bf16 %v2563, %v2559
    %v2620 = vpack.c.bf16 %v2564, %v2560
    %v2621 = vpack.c.bf16 %v2565, %v2561
    %v2622 = vpack.c.bf16 %v2566, %v2562
    %v2623 = vpack.c.bf16 %v2571, %v2567
    %v2624 = vpack.c.bf16 %v2572, %v2568
    %v2625 = vpack.c.bf16 %v2573, %v2569
    %v2626 = vpack.c.bf16 %v2574, %v2570
    %v2627 = vpack.c.bf16 %v2579, %v2575
    %v2628 = vpack.c.bf16 %v2580, %v2576
    %v2629 = vpack.c.bf16 %v2581, %v2577
    %v2630 = vpack.c.bf16 %v2582, %v2578
    %v2631 = vpack.c.bf16 %v2587, %v2583
    %v2632 = vpack.c.bf16 %v2588, %v2584
    %v2633 = vpack.c.bf16 %v2589, %v2585
    %v2634 = vpack.c.bf16 %v2590, %v2586
    %v2635 = vpack.c.bf16 %v2595, %v2591
    %v2636 = vpack.c.bf16 %v2596, %v2592
    %v2637 = vpack.c.bf16 %v2597, %v2593
    %v2638 = vpack.c.bf16 %v2598, %v2594
    %v2639 = vpack.c.bf16 %v2603, %v2599
    %v2640 = vpack.c.bf16 %v2604, %v2600
    %v2641 = vpack.c.bf16 %v2605, %v2601
    %v2642 = vpack.c.bf16 %v2606, %v2602
    %v2643 = vpack.c.bf16 %v2611, %v2607
    %v2644 = vpack.c.bf16 %v2612, %v2608
    %v2645 = vpack.c.bf16 %v2613, %v2609
    %v2646 = vpack.c.bf16 %v2614, %v2610
    %v2647 = vld [vmem:[#allocation6] sm:$0xf]
    %v2648 = vld [vmem:[#allocation6 + $0x4] sm:$0xf]
    %v2649 = vld [vmem:[#allocation6 + $0x8] sm:$0xf]
    %v2650 = vld [vmem:[#allocation6 + $0xc] sm:$0xf]
    %v2651 = vld [vmem:[#allocation6 + $0x10] sm:$0xf]
    %v2652 = vld [vmem:[#allocation6 + $0x14] sm:$0xf]
    %v2653 = vld [vmem:[#allocation6 + $0x18] sm:$0xf]
    %v2654 = vld [vmem:[#allocation6 + $0x1c] sm:$0xf]
    %v2655 = vld [vmem:[#allocation6 + $0x20] sm:$0xf]
    %v2656 = vld [vmem:[#allocation6 + $0x24] sm:$0xf]
    %v2657 = vld [vmem:[#allocation6 + $0x28] sm:$0xf]
    %v2658 = vld [vmem:[#allocation6 + $0x2c] sm:$0xf]
    %v2659 = vld [vmem:[#allocation6 + $0x30] sm:$0xf]
    %v2660 = vld [vmem:[#allocation6 + $0x34] sm:$0xf]
    %v2661 = vld [vmem:[#allocation6 + $0x38] sm:$0xf]
    %v2662 = vld [vmem:[#allocation6 + $0x3c] sm:$0xf]
    %v2663 = vld [vmem:[#allocation6 + $0x40] sm:$0xf]
    %v2664 = vld [vmem:[#allocation6 + $0x44] sm:$0xf]
    %v2665 = vld [vmem:[#allocation6 + $0x48] sm:$0xf]
    %v2666 = vld [vmem:[#allocation6 + $0x4c] sm:$0xf]
    %v2667 = vld [vmem:[#allocation6 + $0x50] sm:$0xf]
    %v2668 = vld [vmem:[#allocation6 + $0x54] sm:$0xf]
    %v2669 = vld [vmem:[#allocation6 + $0x58] sm:$0xf]
    %v2670 = vld [vmem:[#allocation6 + $0x5c] sm:$0xf]
    %v2671 = vld [vmem:[#allocation6 + $0x60] sm:$0xf]
    %v2672 = vld [vmem:[#allocation6 + $0x64] sm:$0xf]
    %v2673 = vld [vmem:[#allocation6 + $0x68] sm:$0xf]
    %v2674 = vld [vmem:[#allocation6 + $0x6c] sm:$0xf]
    %v2675 = vld [vmem:[#allocation6 + $0x70] sm:$0xf]
    %v2676 = vld [vmem:[#allocation6 + $0x74] sm:$0xf]
    %v2677 = vld [vmem:[#allocation6 + $0x78] sm:$0xf]
    %v2678 = vld [vmem:[#allocation6 + $0x7c] sm:$0xf]
    %v2679 = vld [vmem:[#allocation6 + $0x80] sm:$0xf]
    %v2680 = vld [vmem:[#allocation6 + $0x84] sm:$0xf]
    %v2681 = vld [vmem:[#allocation6 + $0x88] sm:$0xf]
    %v2682 = vld [vmem:[#allocation6 + $0x8c] sm:$0xf]
    %v2683 = vld [vmem:[#allocation6 + $0x90] sm:$0xf]
    %v2684 = vld [vmem:[#allocation6 + $0x94] sm:$0xf]
    %v2685 = vld [vmem:[#allocation6 + $0x98] sm:$0xf]
    %v2686 = vld [vmem:[#allocation6 + $0x9c] sm:$0xf]
    %v2687 = vld [vmem:[#allocation6 + $0xa0] sm:$0xf]
    %v2688 = vld [vmem:[#allocation6 + $0xa4] sm:$0xf]
    %v2689 = vld [vmem:[#allocation6 + $0xa8] sm:$0xf]
    %v2690 = vld [vmem:[#allocation6 + $0xac] sm:$0xf]
    %v2691 = vld [vmem:[#allocation6 + $0xb0] sm:$0xf]
    %v2692 = vld [vmem:[#allocation6 + $0xb4] sm:$0xf]
    %v2693 = vld [vmem:[#allocation6 + $0xb8] sm:$0xf]
    %v2694 = vld [vmem:[#allocation6 + $0xbc] sm:$0xf]
    %v2695 = vld [vmem:[#allocation6 + $0xc0] sm:$0xf]
    %v2696 = vld [vmem:[#allocation6 + $0xc4] sm:$0xf]
    %v2697 = vld [vmem:[#allocation6 + $0xc8] sm:$0xf]
    %v2698 = vld [vmem:[#allocation6 + $0xcc] sm:$0xf]
    %v2699 = vld [vmem:[#allocation6 + $0xd0] sm:$0xf]
    %v2700 = vld [vmem:[#allocation6 + $0xd4] sm:$0xf]
    %v2701 = vld [vmem:[#allocation6 + $0xd8] sm:$0xf]
    %v2702 = vld [vmem:[#allocation6 + $0xdc] sm:$0xf]
    %v2703 = vld [vmem:[#allocation6 + $0xe0] sm:$0xf]
    %v2704 = vld [vmem:[#allocation6 + $0xe4] sm:$0xf]
    %v2705 = vld [vmem:[#allocation6 + $0xe8] sm:$0xf]
    %v2706 = vld [vmem:[#allocation6 + $0xec] sm:$0xf]
    %v2707 = vld [vmem:[#allocation6 + $0xf0] sm:$0xf]
    %v2708 = vld [vmem:[#allocation6 + $0xf4] sm:$0xf]
    %v2709 = vld [vmem:[#allocation6 + $0xf8] sm:$0xf]
    %v2710 = vld [vmem:[#allocation6 + $0xfc] sm:$0xf]
    %v2711 = vld [vmem:[%s13] sm:$0x1]
    %v2713 = vlaneseq
    %v2714 = vshrl.u32 %v2713, 7
    %v2715 = vsub.s32 0, %v2714
    %v2716 = vrot.slane %v2711, %v2715
    %v2782 = vunpack.c.l.b16 %v2647
    %v2783 = vunpack.c.l.b16 %v2648
    %v2784 = vunpack.c.l.b16 %v2649
    %v2785 = vunpack.c.l.b16 %v2650
    %v2786 = vunpack.c.l.b16 %v2651
    %v2787 = vunpack.c.l.b16 %v2652
    %v2788 = vunpack.c.l.b16 %v2653
    %v2789 = vunpack.c.l.b16 %v2654
    %v2790 = vunpack.c.l.b16 %v2655
    %v2791 = vunpack.c.l.b16 %v2656
    %v2792 = vunpack.c.l.b16 %v2657
    %v2793 = vunpack.c.l.b16 %v2658
    %v2794 = vunpack.c.l.b16 %v2659
    %v2795 = vunpack.c.l.b16 %v2660
    %v2796 = vunpack.c.l.b16 %v2661
    %v2797 = vunpack.c.l.b16 %v2662
    %v2798 = vunpack.c.l.b16 %v2663
    %v2799 = vunpack.c.l.b16 %v2664
    %v2800 = vunpack.c.l.b16 %v2665
    %v2801 = vunpack.c.l.b16 %v2666
    %v2802 = vunpack.c.l.b16 %v2667
    %v2803 = vunpack.c.l.b16 %v2668
    %v2804 = vunpack.c.l.b16 %v2669
    %v2805 = vunpack.c.l.b16 %v2670
    %v2806 = vunpack.c.l.b16 %v2671
    %v2807 = vunpack.c.l.b16 %v2672
    %v2808 = vunpack.c.l.b16 %v2673
    %v2809 = vunpack.c.l.b16 %v2674
    %v2810 = vunpack.c.l.b16 %v2675
    %v2811 = vunpack.c.l.b16 %v2676
    %v2812 = vunpack.c.l.b16 %v2677
    %v2813 = vunpack.c.l.b16 %v2678
    %v2814 = vunpack.c.l.b16 %v2679
    %v2815 = vunpack.c.l.b16 %v2680
    %v2816 = vunpack.c.l.b16 %v2681
    %v2817 = vunpack.c.l.b16 %v2682
    %v2818 = vunpack.c.l.b16 %v2683
    %v2819 = vunpack.c.l.b16 %v2684
    %v2820 = vunpack.c.l.b16 %v2685
    %v2821 = vunpack.c.l.b16 %v2686
    %v2822 = vunpack.c.l.b16 %v2687
    %v2823 = vunpack.c.l.b16 %v2688
    %v2824 = vunpack.c.l.b16 %v2689
    %v2825 = vunpack.c.l.b16 %v2690
    %v2826 = vunpack.c.l.b16 %v2691
    %v2827 = vunpack.c.l.b16 %v2692
    %v2828 = vunpack.c.l.b16 %v2693
    %v2829 = vunpack.c.l.b16 %v2694
    %v2830 = vunpack.c.l.b16 %v2695
    %v2831 = vunpack.c.l.b16 %v2696
    %v2832 = vunpack.c.l.b16 %v2697
    %v2833 = vunpack.c.l.b16 %v2698
    %v2834 = vunpack.c.l.b16 %v2699
    %v2835 = vunpack.c.l.b16 %v2700
    %v2836 = vunpack.c.l.b16 %v2701
    %v2837 = vunpack.c.l.b16 %v2702
    %v2838 = vunpack.c.l.b16 %v2703
    %v2839 = vunpack.c.l.b16 %v2704
    %v2840 = vunpack.c.l.b16 %v2705
    %v2841 = vunpack.c.l.b16 %v2706
    %v2842 = vunpack.c.l.b16 %v2707
    %v2843 = vunpack.c.l.b16 %v2708
    %v2844 = vunpack.c.l.b16 %v2709
    %v2845 = vunpack.c.l.b16 %v2710
    %v2846 = vpack.c.b16 %v2783, %v2782
    %v2847 = vpack.c.b16 %v2785, %v2784
    %v2848 = vpack.c.b16 %v2787, %v2786
    %v2849 = vpack.c.b16 %v2789, %v2788
    %v2850 = vpack.c.b16 %v2791, %v2790
    %v2851 = vpack.c.b16 %v2793, %v2792
    %v2852 = vpack.c.b16 %v2795, %v2794
    %v2853 = vpack.c.b16 %v2797, %v2796
    %v2854 = vpack.c.b16 %v2799, %v2798
    %v2855 = vpack.c.b16 %v2801, %v2800
    %v2856 = vpack.c.b16 %v2803, %v2802
    %v2857 = vpack.c.b16 %v2805, %v2804
    %v2858 = vpack.c.b16 %v2807, %v2806
    %v2859 = vpack.c.b16 %v2809, %v2808
    %v2860 = vpack.c.b16 %v2811, %v2810
    %v2861 = vpack.c.b16 %v2813, %v2812
    %v2862 = vpack.c.b16 %v2815, %v2814
    %v2863 = vpack.c.b16 %v2817, %v2816
    %v2864 = vpack.c.b16 %v2819, %v2818
    %v2865 = vpack.c.b16 %v2821, %v2820
    %v2866 = vpack.c.b16 %v2823, %v2822
    %v2867 = vpack.c.b16 %v2825, %v2824
    %v2868 = vpack.c.b16 %v2827, %v2826
    %v2869 = vpack.c.b16 %v2829, %v2828
    %v2870 = vpack.c.b16 %v2831, %v2830
    %v2871 = vpack.c.b16 %v2833, %v2832
    %v2872 = vpack.c.b16 %v2835, %v2834
    %v2873 = vpack.c.b16 %v2837, %v2836
    %v2874 = vpack.c.b16 %v2839, %v2838
    %v2875 = vpack.c.b16 %v2841, %v2840
    %v2876 = vpack.c.b16 %v2843, %v2842
    %v2877 = vpack.c.b16 %v2845, %v2844
    %2910 = vmatprep.subr.bf16.mxu0 0
    %2911 = vmatpush1.bf16.msra.mxu0 %v2853
    %2912 = vmatprep.subr.bf16.mxu0 0
    %2913 = vmatpush1.bf16.msra.mxu0 %v2852
    %2914 = vmatprep.subr.bf16.mxu0 0
    %2915 = vmatpush1.bf16.msra.mxu0 %v2851
    %2916 = vmatprep.subr.bf16.mxu0 0
    %2917 = vmatpush1.bf16.msra.mxu0 %v2850
    %2918 = vmatprep.subr.bf16.mxu0 0
    %2919 = vmatpush1.bf16.msra.mxu0 %v2849
    %2920 = vmatprep.subr.bf16.mxu0 0
    %2921 = vmatpush1.bf16.msra.mxu0 %v2848
    %2922 = vmatprep.subr.bf16.mxu0 0
    %2923 = vmatpush1.bf16.msra.mxu0 %v2847
    %2924 = vmatprep.subr.bf16.mxu0 0
    %2925 = vmatpush1.bf16.msra.mxu0 %v2846
    %2926 = vmatprep.subr.bf16.mxu0 0
    %2927 = vmatpush2.bf16.msra.mxu0 %v2861
    %2928 = vmatprep.subr.bf16.mxu0 0
    %2929 = vmatpush2.bf16.msra.mxu0 %v2860
    %2930 = vmatprep.subr.bf16.mxu0 0
    %2931 = vmatpush2.bf16.msra.mxu0 %v2859
    %2932 = vmatprep.subr.bf16.mxu0 0
    %2933 = vmatpush2.bf16.msra.mxu0 %v2858
    %2934 = vmatprep.subr.bf16.mxu0 0
    %2935 = vmatpush2.bf16.msra.mxu0 %v2857
    %2936 = vmatprep.subr.bf16.mxu0 0
    %2937 = vmatpush2.bf16.msra.mxu0 %v2856
    %2938 = vmatprep.subr.bf16.mxu0 0
    %2939 = vmatpush2.bf16.msra.mxu0 %v2855
    %2940 = vmatprep.subr.bf16.mxu0 0
    %2941 = vmatpush2.bf16.msra.mxu0 %v2854
    %2942 = vmatprep.mubr.bf16.mxu0 %v2616
    %2943 = vmatmul.mubr.bf16.gmra.mxu0 %v2615
    %v2944 = vpop.f32.mrf.mxu0
    %v2945 = vadd.f32 %v2716, %v2944
    %v2946 = vpop.f32.mrf.mxu0
    %v2947 = vpop.f32.mrf.mxu0
    %v2948 = vadd.f32 %v2716, %v2947
    %v2949 = vpop.f32.mrf.mxu0
    %2950 = vmatprep.mubr.bf16.mxu0 %v2620
    %2951 = vmatmul.mubr.bf16.gmra.mxu0 %v2619
    %v2952 = vpop.f32.mrf.mxu0
    %v2953 = vadd.f32 %v2716, %v2952
    %v2954 = vpop.f32.mrf.mxu0
    %v2955 = vpop.f32.mrf.mxu0
    %v2956 = vadd.f32 %v2716, %v2955
    %v2957 = vpop.f32.mrf.mxu0
    %2958 = vmatprep.mubr.bf16.mxu0 %v2624
    %2959 = vmatmul.mubr.bf16.gmra.mxu0 %v2623
    %v2960 = vpop.f32.mrf.mxu0
    %v2961 = vadd.f32 %v2716, %v2960
    %v2962 = vpop.f32.mrf.mxu0
    %v2963 = vpop.f32.mrf.mxu0
    %v2964 = vadd.f32 %v2716, %v2963
    %v2965 = vpop.f32.mrf.mxu0
    %2966 = vmatprep.mubr.bf16.mxu0 %v2628
    %2967 = vmatmul.mubr.bf16.gmra.mxu0 %v2627
    %v2968 = vpop.f32.mrf.mxu0
    %v2969 = vadd.f32 %v2716, %v2968
    %v2970 = vpop.f32.mrf.mxu0
    %v2971 = vpop.f32.mrf.mxu0
    %v2972 = vadd.f32 %v2716, %v2971
    %v2973 = vpop.f32.mrf.mxu0
    %2974 = vmatprep.mubr.bf16.mxu0 %v2632
    %2975 = vmatmul.mubr.bf16.gmra.mxu0 %v2631
    %v2976 = vpop.f32.mrf.mxu0
    %v2977 = vadd.f32 %v2716, %v2976
    %v2978 = vpop.f32.mrf.mxu0
    %v2979 = vpop.f32.mrf.mxu0
    %v2980 = vadd.f32 %v2716, %v2979
    %v2981 = vpop.f32.mrf.mxu0
    %2982 = vmatprep.mubr.bf16.mxu0 %v2636
    %2983 = vmatmul.mubr.bf16.gmra.mxu0 %v2635
    %v2984 = vpop.f32.mrf.mxu0
    %v2985 = vadd.f32 %v2716, %v2984
    %v2986 = vpop.f32.mrf.mxu0
    %v2987 = vpop.f32.mrf.mxu0
    %v2988 = vadd.f32 %v2716, %v2987
    %v2989 = vpop.f32.mrf.mxu0
    %2990 = vmatprep.mubr.bf16.mxu0 %v2640
    %2991 = vmatmul.mubr.bf16.gmra.mxu0 %v2639
    %v2992 = vpop.f32.mrf.mxu0
    %v2993 = vadd.f32 %v2716, %v2992
    %v2994 = vpop.f32.mrf.mxu0
    %v2995 = vpop.f32.mrf.mxu0
    %v2996 = vadd.f32 %v2716, %v2995
    %v2997 = vpop.f32.mrf.mxu0
    %2998 = vmatprep.mubr.bf16.mxu0 %v2644
    %2999 = vmatmul.mubr.bf16.gmra.mxu0 %v2643
    %v3000 = vpop.f32.mrf.mxu0
    %v3001 = vadd.f32 %v2716, %v3000
    %v3002 = vpop.f32.mrf.mxu0
    %v3003 = vpop.f32.mrf.mxu0
    %v3004 = vadd.f32 %v2716, %v3003
    %v3005 = vpop.f32.mrf.mxu0
    %3006 = vdwg.mxu0
    %3007 = vmatprep.subr.bf16.mxu0 0
    %3008 = vmatpush1.bf16.msra.mxu0 %v2869
    %3009 = vmatprep.subr.bf16.mxu0 0
    %3010 = vmatpush1.bf16.msra.mxu0 %v2868
    %3011 = vmatprep.subr.bf16.mxu0 0
    %3012 = vmatpush1.bf16.msra.mxu0 %v2867
    %3013 = vmatprep.subr.bf16.mxu0 0
    %3014 = vmatpush1.bf16.msra.mxu0 %v2866
    %3015 = vmatprep.subr.bf16.mxu0 0
    %3016 = vmatpush1.bf16.msra.mxu0 %v2865
    %3017 = vmatprep.subr.bf16.mxu0 0
    %3018 = vmatpush1.bf16.msra.mxu0 %v2864
    %3019 = vmatprep.subr.bf16.mxu0 0
    %3020 = vmatpush1.bf16.msra.mxu0 %v2863
    %3021 = vmatprep.subr.bf16.mxu0 0
    %3022 = vmatpush1.bf16.msra.mxu0 %v2862
    %3023 = vmatprep.subr.bf16.mxu0 0
    %3024 = vmatpush2.bf16.msra.mxu0 %v2877
    %3025 = vmatprep.subr.bf16.mxu0 0
    %3026 = vmatpush2.bf16.msra.mxu0 %v2876
    %3027 = vmatprep.subr.bf16.mxu0 0
    %3028 = vmatpush2.bf16.msra.mxu0 %v2875
    %3029 = vmatprep.subr.bf16.mxu0 0
    %3030 = vmatpush2.bf16.msra.mxu0 %v2874
    %3031 = vmatprep.subr.bf16.mxu0 0
    %3032 = vmatpush2.bf16.msra.mxu0 %v2873
    %3033 = vmatprep.subr.bf16.mxu0 0
    %3034 = vmatpush2.bf16.msra.mxu0 %v2872
    %3035 = vmatprep.subr.bf16.mxu0 0
    %3036 = vmatpush2.bf16.msra.mxu0 %v2871
    %3037 = vmatprep.subr.bf16.mxu0 0
    %3038 = vmatpush2.bf16.msra.mxu0 %v2870
    %3039 = vmatprep.mubr.bf16.mxu0 %v2618
    %3040 = vmatmul.mubr.bf16.gmra.mxu0 %v2617
    %v3041 = vpop.f32.mrf.mxu0
    %v3042 = vadd.f32 %v2945, %v3041
    %v3043 = vpop.f32.mrf.mxu0
    %v3044 = vpop.f32.mrf.mxu0
    %v3045 = vadd.f32 %v2948, %v3044
    %v3046 = vpop.f32.mrf.mxu0
    %3047 = vmatprep.mubr.bf16.mxu0 %v2622
    %3048 = vmatmul.mubr.bf16.gmra.mxu0 %v2621
    %v3049 = vpop.f32.mrf.mxu0
    %v3050 = vadd.f32 %v2953, %v3049
    %v3051 = vpop.f32.mrf.mxu0
    %v3052 = vpop.f32.mrf.mxu0
    %v3053 = vadd.f32 %v2956, %v3052
    %v3054 = vpop.f32.mrf.mxu0
    %3055 = vmatprep.mubr.bf16.mxu0 %v2626
    %3056 = vmatmul.mubr.bf16.gmra.mxu0 %v2625
    %v3057 = vpop.f32.mrf.mxu0
    %v3058 = vadd.f32 %v2961, %v3057
    %v3059 = vpop.f32.mrf.mxu0
    %v3060 = vpop.f32.mrf.mxu0
    %v3061 = vadd.f32 %v2964, %v3060
    %v3062 = vpop.f32.mrf.mxu0
    %3063 = vmatprep.mubr.bf16.mxu0 %v2630
    %3064 = vmatmul.mubr.bf16.gmra.mxu0 %v2629
    %v3065 = vpop.f32.mrf.mxu0
    %v3066 = vadd.f32 %v2969, %v3065
    %v3067 = vpop.f32.mrf.mxu0
    %v3068 = vpop.f32.mrf.mxu0
    %v3069 = vadd.f32 %v2972, %v3068
    %v3070 = vpop.f32.mrf.mxu0
    %3071 = vmatprep.mubr.bf16.mxu0 %v2634
    %3072 = vmatmul.mubr.bf16.gmra.mxu0 %v2633
    %v3073 = vpop.f32.mrf.mxu0
    %v3074 = vadd.f32 %v2977, %v3073
    %v3075 = vpop.f32.mrf.mxu0
    %v3076 = vpop.f32.mrf.mxu0
    %v3077 = vadd.f32 %v2980, %v3076
    %v3078 = vpop.f32.mrf.mxu0
    %3079 = vmatprep.mubr.bf16.mxu0 %v2638
    %3080 = vmatmul.mubr.bf16.gmra.mxu0 %v2637
    %v3081 = vpop.f32.mrf.mxu0
    %v3082 = vadd.f32 %v2985, %v3081
    %v3083 = vpop.f32.mrf.mxu0
    %v3084 = vpop.f32.mrf.mxu0
    %v3085 = vadd.f32 %v2988, %v3084
    %v3086 = vpop.f32.mrf.mxu0
    %3087 = vmatprep.mubr.bf16.mxu0 %v2642
    %3088 = vmatmul.mubr.bf16.gmra.mxu0 %v2641
    %v3089 = vpop.f32.mrf.mxu0
    %v3090 = vadd.f32 %v2993, %v3089
    %v3091 = vpop.f32.mrf.mxu0
    %v3092 = vpop.f32.mrf.mxu0
    %v3093 = vadd.f32 %v2996, %v3092
    %v3094 = vpop.f32.mrf.mxu0
    %3095 = vmatprep.mubr.bf16.mxu0 %v2646
    %3096 = vmatmul.mubr.bf16.gmra.mxu0 %v2645
    %v3097 = vpop.f32.mrf.mxu0
    %v3098 = vadd.f32 %v3001, %v3097
    %v3099 = vpop.f32.mrf.mxu0
    %v3100 = vpop.f32.mrf.mxu0
    %v3101 = vadd.f32 %v3004, %v3100
    %v3102 = vpop.f32.mrf.mxu0
    %3103 = vdwg.mxu0
    %v3104 = vmax.f32 %v3042, %v3045
    %v3105 = vrot.slane %v3104, 4
    %v3106 = vmax.f32 %v3104, %v3105
    %v3107 = vrot.slane %v3106, 2
    %v3108 = vmax.f32 %v3106, %v3107
    %v3109 = vrot.slane %v3108, 1
    %v3110 = vmax.f32 %v3108, %v3109
    %v3111 = vmax.f32 %v3050, %v3053
    %v3112 = vrot.slane %v3111, 4
    %v3113 = vmax.f32 %v3111, %v3112
    %v3114 = vrot.slane %v3113, 2
    %v3115 = vmax.f32 %v3113, %v3114
    %v3116 = vrot.slane %v3115, 1
    %v3117 = vmax.f32 %v3115, %v3116
    %v3118 = vmax.f32 %v3058, %v3061
    %v3119 = vrot.slane %v3118, 4
    %v3120 = vmax.f32 %v3118, %v3119
    %v3121 = vrot.slane %v3120, 2
    %v3122 = vmax.f32 %v3120, %v3121
    %v3123 = vrot.slane %v3122, 1
    %v3124 = vmax.f32 %v3122, %v3123
    %v3125 = vmax.f32 %v3066, %v3069
    %v3126 = vrot.slane %v3125, 4
    %v3127 = vmax.f32 %v3125, %v3126
    %v3128 = vrot.slane %v3127, 2
    %v3129 = vmax.f32 %v3127, %v3128
    %v3130 = vrot.slane %v3129, 1
    %v3131 = vmax.f32 %v3129, %v3130
    %v3132 = vmax.f32 %v3074, %v3077
    %v3133 = vrot.slane %v3132, 4
    %v3134 = vmax.f32 %v3132, %v3133
    %v3135 = vrot.slane %v3134, 2
    %v3136 = vmax.f32 %v3134, %v3135
    %v3137 = vrot.slane %v3136, 1
    %v3138 = vmax.f32 %v3136, %v3137
    %v3139 = vmax.f32 %v3082, %v3085
    %v3140 = vrot.slane %v3139, 4
    %v3141 = vmax.f32 %v3139, %v3140
    %v3142 = vrot.slane %v3141, 2
    %v3143 = vmax.f32 %v3141, %v3142
    %v3144 = vrot.slane %v3143, 1
    %v3145 = vmax.f32 %v3143, %v3144
    %v3146 = vmax.f32 %v3090, %v3093
    %v3147 = vrot.slane %v3146, 4
    %v3148 = vmax.f32 %v3146, %v3147
    %v3149 = vrot.slane %v3148, 2
    %v3150 = vmax.f32 %v3148, %v3149
    %v3151 = vrot.slane %v3150, 1
    %v3152 = vmax.f32 %v3150, %v3151
    %v3153 = vmax.f32 %v3098, %v3101
    %v3154 = vrot.slane %v3153, 4
    %v3155 = vmax.f32 %v3153, %v3154
    %v3156 = vrot.slane %v3155, 2
    %v3157 = vmax.f32 %v3155, %v3156
    %v3158 = vrot.slane %v3157, 1
    %v3159 = vmax.f32 %v3157, %v3158
    %v3160 = vpack.c.bf16 %v3110, %v3110
    %v3161 = vpack.c.bf16 %v3117, %v3117
    %v3162 = vpack.c.bf16 %v3124, %v3124
    %v3163 = vpack.c.bf16 %v3131, %v3131
    %v3164 = vpack.c.bf16 %v3138, %v3138
    %v3165 = vpack.c.bf16 %v3145, %v3145
    %v3166 = vpack.c.bf16 %v3152, %v3152
    %v3167 = vpack.c.bf16 %v3159, %v3159
    %v3176 = vunpack.c.l.b16 %v3160
    %v3177 = vunpack.c.l.b16 %v3161
    %v3178 = vunpack.c.l.b16 %v3162
    %v3179 = vunpack.c.l.b16 %v3163
    %v3180 = vunpack.c.l.b16 %v3164
    %v3181 = vunpack.c.l.b16 %v3165
    %v3182 = vunpack.c.l.b16 %v3166
    %v3183 = vunpack.c.l.b16 %v3167
    %v3184 = vpack.c.b16 %v3176, %v3176
    %v3185 = vpack.c.b16 %v3177, %v3177
    %v3186 = vpack.c.b16 %v3178, %v3178
    %v3187 = vpack.c.b16 %v3179, %v3179
    %v3188 = vpack.c.b16 %v3180, %v3180
    %v3189 = vpack.c.b16 %v3181, %v3181
    %v3190 = vpack.c.b16 %v3182, %v3182
    %v3191 = vpack.c.b16 %v3183, %v3183
    %v3192 = vunpack.c.l.b16 %v3184
    %v3193 = vunpack.c.l.b16 %v3185
    %v3194 = vunpack.c.l.b16 %v3186
    %v3195 = vunpack.c.l.b16 %v3187
    %v3196 = vunpack.c.l.b16 %v3188
    %v3197 = vunpack.c.l.b16 %v3189
    %v3198 = vunpack.c.l.b16 %v3190
    %v3199 = vunpack.c.l.b16 %v3191
    %v3200 = vsel %vm944, %v3193, %v3192
    %v3201 = vsel %vm946, %v3194, %v3200
    %v3202 = vsel %vm948, %v3195, %v3201
    %v3203 = vsel %vm950, %v3196, %v3202
    %v3204 = vsel %vm952, %v3197, %v3203
    %v3205 = vsel %vm954, %v3198, %v3204
    %v3206 = vsel %vm956, %v3199, %v3205
    %v3207 = vpack.c.b16 %v3206, %v3206
    %3209 = vst [vmem:[%s14] sm:$0xf] %v3207
    // Predicated region
    $region70: #{point_transformer_forward.4} parent=1 // pred_check
      _
    $region71: #{point_transformer_forward.4} parent=1 // pred_check_branch
      %3211 = sbr.rel (0) target = $region73
    $region72: #{point_transformer_forward.4} parent=1 // pred_region
      _
    $region73: #{point_transformer_forward.4} parent=1 // pred_fallthru
      _
    // Predicated region
    $region74: #{point_transformer_forward.4} parent=1 // pred_check
      _
    $region75: #{point_transformer_forward.4} parent=1 // pred_check_branch
      %3213 = sbr.rel (0) target = $region77
    $region76: #{point_transformer_forward.4} parent=1 // pred_region
      _
    $region77: #{point_transformer_forward.4} parent=1 // pred_fallthru
      _
    %3214 = vsyncpa [#allocation3], 1
    %3215 = vsyncpa [#allocation5], 1

// kernel: point_transformer_forward.6
$region0: #{point_transformer_forward.6}
  #allocation0 [shape = 'u32[]', space=smem, size = 0x4, offset = 0x4, fixed_abs, tag = 'smem constant byte address 0x4 - core index']
  #allocation1 [shape = 'u32[144,128]{1,0:T(1,128)}', space=vmem, size = 0x12000, scoped, tag = 'internal scratch']
  %s0 = inlined_call_operand.vmem [shape: bf16[2,4,128], index: 0, kind: input, shape index: {}]
  %s1 = inlined_call_operand.vmem [shape: bf16[2,4,128], index: 1, kind: input, shape index: {}]
  %s2 = inlined_call_operand.vmem [shape: f32[1,128], index: 2, kind: input, shape index: {}]
  %s3 = inlined_call_operand.vmem [shape: f32[1,128], index: 3, kind: input, shape index: {}]
  %s4 = inlined_call_operand.vmem [shape: bf16[128,384], index: 4, kind: input, shape index: {}]
  %s5 = inlined_call_operand.vmem [shape: bf16[128,128], index: 5, kind: input, shape index: {}]
  %s6 = inlined_call_operand.vmem [shape: f32[1,128], index: 6, kind: input, shape index: {}]
  %s7 = inlined_call_operand.vmem [shape: f32[1,128], index: 7, kind: input, shape index: {}]
  %s8 = inlined_call_operand.vmem [shape: f32[1,128], index: 8, kind: input, shape index: {}]
  %s9 = inlined_call_operand.vmem [shape: bf16[128,512], index: 9, kind: input, shape index: {}]
  %s10 = inlined_call_operand.vmem [shape: f32[1,512], index: 10, kind: input, shape index: {}]
  %s11 = inlined_call_operand.vmem [shape: bf16[512,128], index: 11, kind: input, shape index: {}]
  %s12 = inlined_call_operand.vmem [shape: f32[1,128], index: 12, kind: input, shape index: {}]
  %s13 = inlined_call_operand.vmem [shape: f32[1,128], index: 13, kind: input, shape index: {}]
  %s14 = inlined_call_operand.vmem [shape: f32[1,128], index: 14, kind: input, shape index: {}]
  %s15 = inlined_call_operand.vmem [shape: bf16[2,4,128], index: 15, kind: output, shape index: {}]
  %s16 = sld [smem:[#allocation0]]
  $region93: #{point_transformer_forward.6} parent=0
    _
  %s18 = ssub.s32 1, %s16
  %s19 = scalar_select 0, %s18, %s16
  loop: start=0, step=1, limit=4
  $region2: #{point_transformer_forward.6} parent=0 // loop_pre_header
    _
  $region3: #{point_transformer_forward.6} parent=0 // loop_header
    %s21 = sphi 0, %s25
    %p22 = scmp.ge.s32.totalorder %s21, 4
    %s31 = sphi 0, %s33
    %s34 = sphi 0, %s31
    %s35 = sphi 0, %s34
    %s51 = sphi 0, %s35
    %s57 = sphi 0, %s59
    %s60 = sphi 0, %s57
    %s61 = sphi 0, %s60
    %s77 = sphi 0, %s61
    %s81 = sphi 0, %s81
    %s83 = sphi 0, %s81
    %s84 = sphi 0, %s83
    %s98 = sphi 0, %s84
    %s102 = sphi 0, %s102
    %s104 = sphi 0, %s102
    %s105 = sphi 0, %s104
    %s119 = sphi 0, %s105
    %s123 = sphi 0, %s123
    %s125 = sphi 0, %s123
    %s126 = sphi 0, %s125
    %s140 = sphi 0, %s126
    %s144 = sphi 0, %s144
    %s146 = sphi 0, %s144
    %s147 = sphi 0, %s146
    %s161 = sphi 0, %s147
    %s165 = sphi 0, %s165
    %s167 = sphi 0, %s165
    %s168 = sphi 0, %s167
    %s182 = sphi 0, %s168
    %s186 = sphi 0, %s186
    %s188 = sphi 0, %s186
    %s189 = sphi 0, %s188
    %s203 = sphi 0, %s189
    %s207 = sphi 0, %s207
    %s209 = sphi 0, %s207
    %s210 = sphi 0, %s209
    %s224 = sphi 0, %s210
    %s228 = sphi 0, %s228
    %s230 = sphi 0, %s228
    %s231 = sphi 0, %s230
    %s245 = sphi 0, %s231
    %s249 = sphi 0, %s249
    %s251 = sphi 0, %s249
    %s252 = sphi 0, %s251
    %s266 = sphi 0, %s252
    %s270 = sphi 0, %s270
    %s272 = sphi 0, %s270
    %s273 = sphi 0, %s272
    %s287 = sphi 0, %s273
    %s291 = sphi 0, %s291
    %s293 = sphi 0, %s291
    %s294 = sphi 0, %s293
    %s308 = sphi 0, %s294
    %s312 = sphi 0, %s312
    %s314 = sphi 0, %s312
    %s315 = sphi 0, %s314
    %s329 = sphi 0, %s315
    %s333 = sphi 0, %s333
    %s335 = sphi 0, %s333
    %s336 = sphi 0, %s335
    %s350 = sphi 0, %s336
    %s356 = sphi 0, %s358
    %s359 = sphi 0, %s356
    %s360 = sphi 0, %s359
    %s376 = sphi 0, %s360
  $region4: #{point_transformer_forward.6} parent=0 // loop_header_branch
    %24 = sbr.rel (%p22) target = $region8
  $region5: #{point_transformer_forward.6} parent=0 // loop_body
    %s26 = ssub.s32 %s21, 1
    %s27 = ssub.s32 %s21, 2
    %s28 = sadd.s32 %s21, 1
    %s29 = ssub.s32 %s21, %s28
    %p30 = scmp.eq.s32.totalorder %s29, 0
    %s32 = sadd.s32 %s31, 1
    %s33 = scalar_select %p30, %s31, %s32
    %p36 = pneg %p30
    %p37 = scmp.eq.s32.totalorder %s21, 1
    %p38 = por %p36, %p37
    %p39 = scmp.ne.s32.totalorder %s31, %s34
    %p40 = scmp.eq.s32.totalorder %s21, 0
    %p41 = por %p39, %p40
    %p42 = scmp.ne.s32.totalorder %s31, %s34
    %p43 = scmp.eq.s32.totalorder %s26, 1
    %p44 = por %p42, %p43
    %p45 = scmp.ne.s32.totalorder %s34, %s35
    %p46 = scmp.eq.s32.totalorder %s26, 0
    %p47 = por %p45, %p46
    %p48 = scmp.ne.s32.totalorder %s34, %s35
    %p49 = scmp.eq.s32.totalorder %s27, 1
    %p50 = por %p48, %p49
    %p52 = scmp.ne.s32.totalorder %s35, %s51
    %p53 = scmp.eq.s32.totalorder %s27, 0
    %p54 = por %p52, %p53
    %s55 = ssub.s32 %s21, %s28
    %p56 = scmp.eq.s32.totalorder %s55, 0
    %s58 = sadd.s32 %s57, 1
    %s59 = scalar_select %p56, %s57, %s58
    %p62 = pneg %p56
    %p63 = scmp.eq.s32.totalorder %s21, 1
    %p64 = por %p62, %p63
    %p65 = scmp.ne.s32.totalorder %s57, %s60
    %p66 = scmp.eq.s32.totalorder %s21, 0
    %p67 = por %p65, %p66
    %p68 = scmp.ne.s32.totalorder %s57, %s60
    %p69 = scmp.eq.s32.totalorder %s26, 1
    %p70 = por %p68, %p69
    %p71 = scmp.ne.s32.totalorder %s60, %s61
    %p72 = scmp.eq.s32.totalorder %s26, 0
    %p73 = por %p71, %p72
    %p74 = scmp.ne.s32.totalorder %s60, %s61
    %p75 = scmp.eq.s32.totalorder %s27, 1
    %p76 = por %p74, %p75
    %p78 = scmp.ne.s32.totalorder %s61, %s77
    %p79 = scmp.eq.s32.totalorder %s27, 0
    %p80 = por %p78, %p79
    %s82 = sadd.s32 %s81, 1
    %p85 = scmp.eq.s32.totalorder %s21, 1
    %p86 = scmp.ne.s32.totalorder %s81, %s83
    %p87 = scmp.eq.s32.totalorder %s21, 0
    %p88 = por %p86, %p87
    %p89 = scmp.ne.s32.totalorder %s81, %s83
    %p90 = scmp.eq.s32.totalorder %s26, 1
    %p91 = por %p89, %p90
    %p92 = scmp.ne.s32.totalorder %s83, %s84
    %p93 = scmp.eq.s32.totalorder %s26, 0
    %p94 = por %p92, %p93
    %p95 = scmp.ne.s32.totalorder %s83, %s84
    %p96 = scmp.eq.s32.totalorder %s27, 1
    %p97 = por %p95, %p96
    %p99 = scmp.ne.s32.totalorder %s84, %s98
    %p100 = scmp.eq.s32.totalorder %s27, 0
    %p101 = por %p99, %p100
    %s103 = sadd.s32 %s102, 1
    %p106 = scmp.eq.s32.totalorder %s21, 1
    %p107 = scmp.ne.s32.totalorder %s102, %s104
    %p108 = scmp.eq.s32.totalorder %s21, 0
    %p109 = por %p107, %p108
    %p110 = scmp.ne.s32.totalorder %s102, %s104
    %p111 = scmp.eq.s32.totalorder %s26, 1
    %p112 = por %p110, %p111
    %p113 = scmp.ne.s32.totalorder %s104, %s105
    %p114 = scmp.eq.s32.totalorder %s26, 0
    %p115 = por %p113, %p114
    %p116 = scmp.ne.s32.totalorder %s104, %s105
    %p117 = scmp.eq.s32.totalorder %s27, 1
    %p118 = por %p116, %p117
    %p120 = scmp.ne.s32.totalorder %s105, %s119
    %p121 = scmp.eq.s32.totalorder %s27, 0
    %p122 = por %p120, %p121
    %s124 = sadd.s32 %s123, 1
    %p127 = scmp.eq.s32.totalorder %s21, 1
    %p128 = scmp.ne.s32.totalorder %s123, %s125
    %p129 = scmp.eq.s32.totalorder %s21, 0
    %p130 = por %p128, %p129
    %p131 = scmp.ne.s32.totalorder %s123, %s125
    %p132 = scmp.eq.s32.totalorder %s26, 1
    %p133 = por %p131, %p132
    %p134 = scmp.ne.s32.totalorder %s125, %s126
    %p135 = scmp.eq.s32.totalorder %s26, 0
    %p136 = por %p134, %p135
    %p137 = scmp.ne.s32.totalorder %s125, %s126
    %p138 = scmp.eq.s32.totalorder %s27, 1
    %p139 = por %p137, %p138
    %p141 = scmp.ne.s32.totalorder %s126, %s140
    %p142 = scmp.eq.s32.totalorder %s27, 0
    %p143 = por %p141, %p142
    %s145 = sadd.s32 %s144, 1
    %p148 = scmp.eq.s32.totalorder %s21, 1
    %p149 = scmp.ne.s32.totalorder %s144, %s146
    %p150 = scmp.eq.s32.totalorder %s21, 0
    %p151 = por %p149, %p150
    %p152 = scmp.ne.s32.totalorder %s144, %s146
    %p153 = scmp.eq.s32.totalorder %s26, 1
    %p154 = por %p152, %p153
    %p155 = scmp.ne.s32.totalorder %s146, %s147
    %p156 = scmp.eq.s32.totalorder %s26, 0
    %p157 = por %p155, %p156
    %p158 = scmp.ne.s32.totalorder %s146, %s147
    %p159 = scmp.eq.s32.totalorder %s27, 1
    %p160 = por %p158, %p159
    %p162 = scmp.ne.s32.totalorder %s147, %s161
    %p163 = scmp.eq.s32.totalorder %s27, 0
    %p164 = por %p162, %p163
    %s166 = sadd.s32 %s165, 1
    %p169 = scmp.eq.s32.totalorder %s21, 1
    %p170 = scmp.ne.s32.totalorder %s165, %s167
    %p171 = scmp.eq.s32.totalorder %s21, 0
    %p172 = por %p170, %p171
    %p173 = scmp.ne.s32.totalorder %s165, %s167
    %p174 = scmp.eq.s32.totalorder %s26, 1
    %p175 = por %p173, %p174
    %p176 = scmp.ne.s32.totalorder %s167, %s168
    %p177 = scmp.eq.s32.totalorder %s26, 0
    %p178 = por %p176, %p177
    %p179 = scmp.ne.s32.totalorder %s167, %s168
    %p180 = scmp.eq.s32.totalorder %s27, 1
    %p181 = por %p179, %p180
    %p183 = scmp.ne.s32.totalorder %s168, %s182
    %p184 = scmp.eq.s32.totalorder %s27, 0
    %p185 = por %p183, %p184
    %s187 = sadd.s32 %s186, 1
    %p190 = scmp.eq.s32.totalorder %s21, 1
    %p191 = scmp.ne.s32.totalorder %s186, %s188
    %p192 = scmp.eq.s32.totalorder %s21, 0
    %p193 = por %p191, %p192
    %p194 = scmp.ne.s32.totalorder %s186, %s188
    %p195 = scmp.eq.s32.totalorder %s26, 1
    %p196 = por %p194, %p195
    %p197 = scmp.ne.s32.totalorder %s188, %s189
    %p198 = scmp.eq.s32.totalorder %s26, 0
    %p199 = por %p197, %p198
    %p200 = scmp.ne.s32.totalorder %s188, %s189
    %p201 = scmp.eq.s32.totalorder %s27, 1
    %p202 = por %p200, %p201
    %p204 = scmp.ne.s32.totalorder %s189, %s203
    %p205 = scmp.eq.s32.totalorder %s27, 0
    %p206 = por %p204, %p205
    %s208 = sadd.s32 %s207, 1
    %p211 = scmp.eq.s32.totalorder %s21, 1
    %p212 = scmp.ne.s32.totalorder %s207, %s209
    %p213 = scmp.eq.s32.totalorder %s21, 0
    %p214 = por %p212, %p213
    %p215 = scmp.ne.s32.totalorder %s207, %s209
    %p216 = scmp.eq.s32.totalorder %s26, 1
    %p217 = por %p215, %p216
    %p218 = scmp.ne.s32.totalorder %s209, %s210
    %p219 = scmp.eq.s32.totalorder %s26, 0
    %p220 = por %p218, %p219
    %p221 = scmp.ne.s32.totalorder %s209, %s210
    %p222 = scmp.eq.s32.totalorder %s27, 1
    %p223 = por %p221, %p222
    %p225 = scmp.ne.s32.totalorder %s210, %s224
    %p226 = scmp.eq.s32.totalorder %s27, 0
    %p227 = por %p225, %p226
    %s229 = sadd.s32 %s228, 1
    %p232 = scmp.eq.s32.totalorder %s21, 1
    %p233 = scmp.ne.s32.totalorder %s228, %s230
    %p234 = scmp.eq.s32.totalorder %s21, 0
    %p235 = por %p233, %p234
    %p236 = scmp.ne.s32.totalorder %s228, %s230
    %p237 = scmp.eq.s32.totalorder %s26, 1
    %p238 = por %p236, %p237
    %p239 = scmp.ne.s32.totalorder %s230, %s231
    %p240 = scmp.eq.s32.totalorder %s26, 0
    %p241 = por %p239, %p240
    %p242 = scmp.ne.s32.totalorder %s230, %s231
    %p243 = scmp.eq.s32.totalorder %s27, 1
    %p244 = por %p242, %p243
    %p246 = scmp.ne.s32.totalorder %s231, %s245
    %p247 = scmp.eq.s32.totalorder %s27, 0
    %p248 = por %p246, %p247
    %s250 = sadd.s32 %s249, 1
    %p253 = scmp.eq.s32.totalorder %s21, 1
    %p254 = scmp.ne.s32.totalorder %s249, %s251
    %p255 = scmp.eq.s32.totalorder %s21, 0
    %p256 = por %p254, %p255
    %p257 = scmp.ne.s32.totalorder %s249, %s251
    %p258 = scmp.eq.s32.totalorder %s26, 1
    %p259 = por %p257, %p258
    %p260 = scmp.ne.s32.totalorder %s251, %s252
    %p261 = scmp.eq.s32.totalorder %s26, 0
    %p262 = por %p260, %p261
    %p263 = scmp.ne.s32.totalorder %s251, %s252
    %p264 = scmp.eq.s32.totalorder %s27, 1
    %p265 = por %p263, %p264
    %p267 = scmp.ne.s32.totalorder %s252, %s266
    %p268 = scmp.eq.s32.totalorder %s27, 0
    %p269 = por %p267, %p268
    %s271 = sadd.s32 %s270, 1
    %p274 = scmp.eq.s32.totalorder %s21, 1
    %p275 = scmp.ne.s32.totalorder %s270, %s272
    %p276 = scmp.eq.s32.totalorder %s21, 0
    %p277 = por %p275, %p276
    %p278 = scmp.ne.s32.totalorder %s270, %s272
    %p279 = scmp.eq.s32.totalorder %s26, 1
    %p280 = por %p278, %p279
    %p281 = scmp.ne.s32.totalorder %s272, %s273
    %p282 = scmp.eq.s32.totalorder %s26, 0
    %p283 = por %p281, %p282
    %p284 = scmp.ne.s32.totalorder %s272, %s273
    %p285 = scmp.eq.s32.totalorder %s27, 1
    %p286 = por %p284, %p285
    %p288 = scmp.ne.s32.totalorder %s273, %s287
    %p289 = scmp.eq.s32.totalorder %s27, 0
    %p290 = por %p288, %p289
    %s292 = sadd.s32 %s291, 1
    %p295 = scmp.eq.s32.totalorder %s21, 1
    %p296 = scmp.ne.s32.totalorder %s291, %s293
    %p297 = scmp.eq.s32.totalorder %s21, 0
    %p298 = por %p296, %p297
    %p299 = scmp.ne.s32.totalorder %s291, %s293
    %p300 = scmp.eq.s32.totalorder %s26, 1
    %p301 = por %p299, %p300
    %p302 = scmp.ne.s32.totalorder %s293, %s294
    %p303 = scmp.eq.s32.totalorder %s26, 0
    %p304 = por %p302, %p303
    %p305 = scmp.ne.s32.totalorder %s293, %s294
    %p306 = scmp.eq.s32.totalorder %s27, 1
    %p307 = por %p305, %p306
    %p309 = scmp.ne.s32.totalorder %s294, %s308
    %p310 = scmp.eq.s32.totalorder %s27, 0
    %p311 = por %p309, %p310
    %s313 = sadd.s32 %s312, 1
    %p316 = scmp.eq.s32.totalorder %s21, 1
    %p317 = scmp.ne.s32.totalorder %s312, %s314
    %p318 = scmp.eq.s32.totalorder %s21, 0
    %p319 = por %p317, %p318
    %p320 = scmp.ne.s32.totalorder %s312, %s314
    %p321 = scmp.eq.s32.totalorder %s26, 1
    %p322 = por %p320, %p321
    %p323 = scmp.ne.s32.totalorder %s314, %s315
    %p324 = scmp.eq.s32.totalorder %s26, 0
    %p325 = por %p323, %p324
    %p326 = scmp.ne.s32.totalorder %s314, %s315
    %p327 = scmp.eq.s32.totalorder %s27, 1
    %p328 = por %p326, %p327
    %p330 = scmp.ne.s32.totalorder %s315, %s329
    %p331 = scmp.eq.s32.totalorder %s27, 0
    %p332 = por %p330, %p331
    %s334 = sadd.s32 %s333, 1
    %p337 = scmp.eq.s32.totalorder %s21, 1
    %p338 = scmp.ne.s32.totalorder %s333, %s335
    %p339 = scmp.eq.s32.totalorder %s21, 0
    %p340 = por %p338, %p339
    %p341 = scmp.ne.s32.totalorder %s333, %s335
    %p342 = scmp.eq.s32.totalorder %s26, 1
    %p343 = por %p341, %p342
    %p344 = scmp.ne.s32.totalorder %s335, %s336
    %p345 = scmp.eq.s32.totalorder %s26, 0
    %p346 = por %p344, %p345
    %p347 = scmp.ne.s32.totalorder %s335, %s336
    %p348 = scmp.eq.s32.totalorder %s27, 1
    %p349 = por %p347, %p348
    %p351 = scmp.ne.s32.totalorder %s336, %s350
    %p352 = scmp.eq.s32.totalorder %s27, 0
    %p353 = por %p351, %p352
    %s354 = ssub.s32 %s21, %s28
    %p355 = scmp.eq.s32.totalorder %s354, 0
    %s357 = sadd.s32 %s356, 1
    %s358 = scalar_select %p355, %s356, %s357
    %p361 = pneg %p355
    %p362 = scmp.eq.s32.totalorder %s21, 1
    %p363 = por %p361, %p362
    %p364 = scmp.ne.s32.totalorder %s356, %s359
    %p365 = scmp.eq.s32.totalorder %s21, 0
    %p366 = por %p364, %p365
    %p367 = scmp.ne.s32.totalorder %s356, %s359
    %p368 = scmp.eq.s32.totalorder %s26, 1
    %p369 = por %p367, %p368
    %p370 = scmp.ne.s32.totalorder %s359, %s360
    %p371 = scmp.eq.s32.totalorder %s26, 0
    %p372 = por %p370, %p371
    %p373 = scmp.ne.s32.totalorder %s359, %s360
    %p374 = scmp.eq.s32.totalorder %s27, 1
    %p375 = por %p373, %p374
    %p377 = scmp.ne.s32.totalorder %s360, %s376
    %p378 = scmp.eq.s32.totalorder %s27, 0
    %p379 = por %p377, %p378
    %p380 = scmp.le.s32.totalorder 1, %s21
    %p381 = scmp.lt.s32.totalorder %s21, 3
    %p382 = pnand %p380, %p381
    %p383 = pneg %p382
    // Predicated region
    $region9: #{point_transformer_forward.6} parent=5 // pred_check
      _
    $region10: #{point_transformer_forward.6} parent=5 // pred_check_branch
      %385 = sbr.rel (%p382) target = $region12
    $region11: #{point_transformer_forward.6} parent=5 // pred_region
      %s386 = ssub.s32 %s21, 1
      // Predicated region
      $region13: #{point_transformer_forward.6} parent=11 // pred_check
        %p387 = pneg %p94
      $region14: #{point_transformer_forward.6} parent=11 // pred_check_branch
        %389 = sbr.rel (%p387) target = $region16
      $region15: #{point_transformer_forward.6} parent=11 // pred_region
        _
      $region16: #{point_transformer_forward.6} parent=11 // pred_fallthru
        _
      // Predicated region
      $region17: #{point_transformer_forward.6} parent=11 // pred_check
        %p390 = pneg %p115
      $region18: #{point_transformer_forward.6} parent=11 // pred_check_branch
        %392 = sbr.rel (%p390) target = $region20
      $region19: #{point_transformer_forward.6} parent=11 // pred_region
        _
      $region20: #{point_transformer_forward.6} parent=11 // pred_fallthru
        _
      // Predicated region
      $region21: #{point_transformer_forward.6} parent=11 // pred_check
        %p393 = pneg %p136
      $region22: #{point_transformer_forward.6} parent=11 // pred_check_branch
        %395 = sbr.rel (%p393) target = $region24
      $region23: #{point_transformer_forward.6} parent=11 // pred_region
        _
      $region24: #{point_transformer_forward.6} parent=11 // pred_fallthru
        _
      // Predicated region
      $region25: #{point_transformer_forward.6} parent=11 // pred_check
        %p396 = pneg %p157
      $region26: #{point_transformer_forward.6} parent=11 // pred_check_branch
        %398 = sbr.rel (%p396) target = $region28
      $region27: #{point_transformer_forward.6} parent=11 // pred_region
        _
      $region28: #{point_transformer_forward.6} parent=11 // pred_fallthru
        _
      // Predicated region
      $region29: #{point_transformer_forward.6} parent=11 // pred_check
        %p399 = pneg %p178
      $region30: #{point_transformer_forward.6} parent=11 // pred_check_branch
        %401 = sbr.rel (%p399) target = $region32
      $region31: #{point_transformer_forward.6} parent=11 // pred_region
        _
      $region32: #{point_transformer_forward.6} parent=11 // pred_fallthru
        _
      // Predicated region
      $region33: #{point_transformer_forward.6} parent=11 // pred_check
        %p402 = pneg %p199
      $region34: #{point_transformer_forward.6} parent=11 // pred_check_branch
        %404 = sbr.rel (%p402) target = $region36
      $region35: #{point_transformer_forward.6} parent=11 // pred_region
        _
      $region36: #{point_transformer_forward.6} parent=11 // pred_fallthru
        _
      // Predicated region
      $region37: #{point_transformer_forward.6} parent=11 // pred_check
        %p405 = pneg %p220
      $region38: #{point_transformer_forward.6} parent=11 // pred_check_branch
        %407 = sbr.rel (%p405) target = $region40
      $region39: #{point_transformer_forward.6} parent=11 // pred_region
        _
      $region40: #{point_transformer_forward.6} parent=11 // pred_fallthru
        _
      // Predicated region
      $region41: #{point_transformer_forward.6} parent=11 // pred_check
        %p408 = pneg %p241
      $region42: #{point_transformer_forward.6} parent=11 // pred_check_branch
        %410 = sbr.rel (%p408) target = $region44
      $region43: #{point_transformer_forward.6} parent=11 // pred_region
        _
      $region44: #{point_transformer_forward.6} parent=11 // pred_fallthru
        _
      // Predicated region
      $region45: #{point_transformer_forward.6} parent=11 // pred_check
        %p411 = pneg %p262
      $region46: #{point_transformer_forward.6} parent=11 // pred_check_branch
        %413 = sbr.rel (%p411) target = $region48
      $region47: #{point_transformer_forward.6} parent=11 // pred_region
        _
      $region48: #{point_transformer_forward.6} parent=11 // pred_fallthru
        _
      // Predicated region
      $region49: #{point_transformer_forward.6} parent=11 // pred_check
        %p414 = pneg %p283
      $region50: #{point_transformer_forward.6} parent=11 // pred_check_branch
        %416 = sbr.rel (%p414) target = $region52
      $region51: #{point_transformer_forward.6} parent=11 // pred_region
        _
      $region52: #{point_transformer_forward.6} parent=11 // pred_fallthru
        _
      // Predicated region
      $region53: #{point_transformer_forward.6} parent=11 // pred_check
        %p417 = pneg %p304
      $region54: #{point_transformer_forward.6} parent=11 // pred_check_branch
        %419 = sbr.rel (%p417) target = $region56
      $region55: #{point_transformer_forward.6} parent=11 // pred_region
        _
      $region56: #{point_transformer_forward.6} parent=11 // pred_fallthru
        _
      // Predicated region
      $region57: #{point_transformer_forward.6} parent=11 // pred_check
        %p420 = pneg %p325
      $region58: #{point_transformer_forward.6} parent=11 // pred_check_branch
        %422 = sbr.rel (%p420) target = $region60
      $region59: #{point_transformer_forward.6} parent=11 // pred_region
        _
      $region60: #{point_transformer_forward.6} parent=11 // pred_fallthru
        _
      // Predicated region
      $region61: #{point_transformer_forward.6} parent=11 // pred_check
        %p423 = pneg %p346
      $region62: #{point_transformer_forward.6} parent=11 // pred_check_branch
        %425 = sbr.rel (%p423) target = $region64
      $region63: #{point_transformer_forward.6} parent=11 // pred_region
        _
      $region64: #{point_transformer_forward.6} parent=11 // pred_fallthru
        _
    $region12: #{point_transformer_forward.6} parent=5 // pred_fallthru
      _
    %p426 = scmp.lt.s32.totalorder %s21, 2
    // Predicated region
    $region65: #{point_transformer_forward.6} parent=5 // pred_check
      %p427 = pneg %p426
    $region66: #{point_transformer_forward.6} parent=5 // pred_check_branch
      %429 = sbr.rel (%p427) target = $region68
    $region67: #{point_transformer_forward.6} parent=5 // pred_region
      // Predicated region
      $region69: #{point_transformer_forward.6} parent=67 // pred_check
        %p430 = pneg %p41
      $region70: #{point_transformer_forward.6} parent=67 // pred_check_branch
        %432 = sbr.rel (%p430) target = $region72
      $region71: #{point_transformer_forward.6} parent=67 // pred_region
        %p433 = scmp.lt.s32.totalorder %s21, 1
        %s434 = scalar_select %p433, %s21, 1
        %s435 = smul.addr %s434, 2
        %s436 = scalar_lea.vmem %s0, %s435
      $region72: #{point_transformer_forward.6} parent=67 // pred_fallthru
        _
      // Predicated region
      $region73: #{point_transformer_forward.6} parent=67 // pred_check
        %p437 = pneg %p67
      $region74: #{point_transformer_forward.6} parent=67 // pred_check_branch
        %439 = sbr.rel (%p437) target = $region76
      $region75: #{point_transformer_forward.6} parent=67 // pred_region
        %p440 = scmp.lt.s32.totalorder %s21, 1
        %s441 = scalar_select %p440, %s21, 1
        %s442 = smul.addr %s441, 2
        %s443 = scalar_lea.vmem %s1, %s442
      $region76: #{point_transformer_forward.6} parent=67 // pred_fallthru
        _
    $region68: #{point_transformer_forward.6} parent=5 // pred_fallthru
      _
    %p444 = scmp.le.s32.totalorder 1, %s21
    %p445 = scmp.lt.s32.totalorder %s21, 3
    %p446 = pnand %p444, %p445
    %p447 = pneg %p446
    // Predicated region
    $region77: #{point_transformer_forward.6} parent=5 // pred_check
      _
    $region78: #{point_transformer_forward.6} parent=5 // pred_check_branch
      %449 = sbr.rel (%p446) target = $region80
    $region79: #{point_transformer_forward.6} parent=5 // pred_region
      %s450 = ssub.s32 %s21, 1
      %p451 = scmp.lt.s32.totalorder %s26, 1
      %s452 = scalar_select %p451, %s26, 1
      %s453 = smul.addr %s452, 2
      %s454 = scalar_lea.vmem %s0, %s453
      %p455 = pneg %p47
      %p456 = pneg %p44
      %p457 = scmp.lt.s32.totalorder %s26, 1
      %s458 = scalar_select %p457, %s26, 1
      %s459 = smul.addr %s458, 2
      %s460 = scalar_lea.vmem %s1, %s459
      %p461 = pneg %p73
      %p462 = pneg %p70
      %p463 = pneg %p94
      %p464 = pneg %p91
      %p465 = pneg %p115
      %p466 = pneg %p112
      %p467 = pneg %p136
      %p468 = pneg %p133
      %p469 = pneg %p157
      %p470 = pneg %p154
      %p471 = pneg %p178
      %p472 = pneg %p175
      %p473 = pneg %p199
      %p474 = pneg %p196
      %p475 = pneg %p220
      %p476 = pneg %p217
      %p477 = pneg %p241
      %p478 = pneg %p238
      %p479 = pneg %p262
      %p480 = pneg %p259
      %p481 = pneg %p283
      %p482 = pneg %p280
      %p483 = pneg %p304
      %p484 = pneg %p301
      %p485 = pneg %p325
      %p486 = pneg %p322
      %p487 = pneg %p346
      %p488 = pneg %p343
      %p489 = pneg %p372
      %p490 = pneg %p369
      %p491 = scmp.lt.s32.totalorder %s26, 1
      %s492 = scalar_select %p491, %s26, 1
      %s493 = smul.addr %s492, 2
      %s494 = scalar_lea.vmem %s15, %s493
      %p495 = scmp.lt.s32.totalorder %s26, 1
      %s496 = scalar_select %p495, %s26, 1
      %s497 = smul.addr %s496, 2
      %s498 = scalar_lea.vmem %s0, %s497
      %p499 = scmp.lt.s32.totalorder %s26, 1
      %s500 = scalar_select %p499, %s26, 1
      %s501 = smul.addr %s500, 2
      %s502 = scalar_lea.vmem %s1, %s501
      %p503 = scmp.lt.s32.totalorder %s26, 1
      %s504 = scalar_select %p503, %s26, 1
      %s505 = smul.addr %s504, 2
      %s506 = scalar_lea.vmem %s15, %s505
      %v508 = vld [vmem:[%s498] sm:$0x3]
      %v509 = vunpack.c.l.bf16 %v508
      %v510 = vld [vmem:[%s502] sm:$0x3]
      %v511 = vunpack.c.l.bf16 %v510
      %v512 = vadd.f32 %v509, %v511
      %v513 = vld [vmem:[%s2] sm:$0x1]
      %v514 = vld [vmem:[%s3] sm:$0x1]
      %vm515 = vcmask 1043456
      %v516 = vsel %vm515, %v512, 0.0
      %517 = vadd.xlane.f32.xlu0 %v516
      %v518 = vpop.xlane.xlu0 %517
      %v519 = vrcp.pop 128.0
      %v520 = vmul.f32 %v518, %v519
      %v521 = vsub.f32 %v512, %v520
      %v522 = vmul.f32 %v521, %v521
      %v523 = vsel %vm515, %v522, 0.0
      %524 = vadd.xlane.f32.xlu0 %v523
      %v525 = vpop.xlane.xlu0 %524
      %v526 = vmul.f32 %v525, %v519
      %v527 = vadd.f32 %v526, 1e-05
      %v528 = vrsqrt.pop %v527
      %v529 = vmul.f32 %v521, %v528
      %v531 = vlaneseq
      %v532 = vshrl.u32 %v531, 7
      %v533 = vsub.s32 0, %v532
      %v534 = vrot.slane %v513, %v533
      %v536 = vmul.f32 %v529, %v534
      %v538 = vlaneseq
      %v539 = vshrl.u32 %v538, 7
      %v540 = vsub.s32 0, %v539
      %v541 = vrot.slane %v514, %v540
      %v543 = vadd.f32 %v536, %v541
      %v544 = vpack.c.bf16 %v543, %v543
      %v545 = vld [vmem:[%s4] sm:$0xff]
      %v546 = vld [vmem:[%s4 + $0x8] sm:$0xf]
      %v547 = vld [vmem:[%s4 + $0xc] sm:$0xff]
      %v548 = vld [vmem:[%s4 + $0x14] sm:$0xf]
      %v549 = vld [vmem:[%s4 + $0x18] sm:$0xff]
      %v550 = vld [vmem:[%s4 + $0x20] sm:$0xf]
      %v551 = vld [vmem:[%s4 + $0x24] sm:$0xff]
      %v552 = vld [vmem:[%s4 + $0x2c] sm:$0xf]
      %v553 = vld [vmem:[%s4 + $0x30] sm:$0xff]
      %v554 = vld [vmem:[%s4 + $0x38] sm:$0xf]
      %v555 = vld [vmem:[%s4 + $0x3c] sm:$0xff]
      %v556 = vld [vmem:[%s4 + $0x44] sm:$0xf]
      %v557 = vld [vmem:[%s4 + $0x48] sm:$0xff]
      %v558 = vld [vmem:[%s4 + $0x50] sm:$0xf]
      %v559 = vld [vmem:[%s4 + $0x54] sm:$0xff]
      %v560 = vld [vmem:[%s4 + $0x5c] sm:$0xf]
      %v561 = vld [vmem:[%s4 + $0x60] sm:$0xff]
      %v562 = vld [vmem:[%s4 + $0x68] sm:$0xf]
      %v563 = vld [vmem:[%s4 + $0x6c] sm:$0xff]
      %v564 = vld [vmem:[%s4 + $0x74] sm:$0xf]
      %v565 = vld [vmem:[%s4 + $0x78] sm:$0xff]
      %v566 = vld [vmem:[%s4 + $0x80] sm:$0xf]
      %v567 = vld [vmem:[%s4 + $0x84] sm:$0xff]
      %v568 = vld [vmem:[%s4 + $0x8c] sm:$0xf]
      %v569 = vld [vmem:[%s4 + $0x90] sm:$0xff]
      %v570 = vld [vmem:[%s4 + $0x98] sm:$0xf]
      %v571 = vld [vmem:[%s4 + $0x9c] sm:$0xff]
      %v572 = vld [vmem:[%s4 + $0xa4] sm:$0xf]
      %v573 = vld [vmem:[%s4 + $0xa8] sm:$0xff]
      %v574 = vld [vmem:[%s4 + $0xb0] sm:$0xf]
      %v575 = vld [vmem:[%s4 + $0xb4] sm:$0xff]
      %v576 = vld [vmem:[%s4 + $0xbc] sm:$0xf]
      %v609 = vunpack.c.l.b16 %v545
      %v610 = vunpack.c.h.b16 %v545
      %v611 = vunpack.c.l.b16 %v546
      %v612 = vunpack.c.l.b16 %v547
      %v613 = vunpack.c.h.b16 %v547
      %v614 = vunpack.c.l.b16 %v548
      %v615 = vunpack.c.l.b16 %v549
      %v616 = vunpack.c.h.b16 %v549
      %v617 = vunpack.c.l.b16 %v550
      %v618 = vunpack.c.l.b16 %v551
      %v619 = vunpack.c.h.b16 %v551
      %v620 = vunpack.c.l.b16 %v552
      %v621 = vunpack.c.l.b16 %v553
      %v622 = vunpack.c.h.b16 %v553
      %v623 = vunpack.c.l.b16 %v554
      %v624 = vunpack.c.l.b16 %v555
      %v625 = vunpack.c.h.b16 %v555
      %v626 = vunpack.c.l.b16 %v556
      %v627 = vunpack.c.l.b16 %v557
      %v628 = vunpack.c.h.b16 %v557
      %v629 = vunpack.c.l.b16 %v558
      %v630 = vunpack.c.l.b16 %v559
      %v631 = vunpack.c.h.b16 %v559
      %v632 = vunpack.c.l.b16 %v560
      %v633 = vunpack.c.l.b16 %v561
      %v634 = vunpack.c.h.b16 %v561
      %v635 = vunpack.c.l.b16 %v562
      %v636 = vunpack.c.l.b16 %v563
      %v637 = vunpack.c.h.b16 %v563
      %v638 = vunpack.c.l.b16 %v564
      %v639 = vunpack.c.l.b16 %v565
      %v640 = vunpack.c.h.b16 %v565
      %v641 = vunpack.c.l.b16 %v566
      %v642 = vunpack.c.l.b16 %v567
      %v643 = vunpack.c.h.b16 %v567
      %v644 = vunpack.c.l.b16 %v568
      %v645 = vunpack.c.l.b16 %v569
      %v646 = vunpack.c.h.b16 %v569
      %v647 = vunpack.c.l.b16 %v570
      %v648 = vunpack.c.l.b16 %v571
      %v649 = vunpack.c.h.b16 %v571
      %v650 = vunpack.c.l.b16 %v572
      %v651 = vunpack.c.l.b16 %v573
      %v652 = vunpack.c.h.b16 %v573
      %v653 = vunpack.c.l.b16 %v574
      %v654 = vunpack.c.l.b16 %v575
      %v655 = vunpack.c.h.b16 %v575
      %v656 = vunpack.c.l.b16 %v576
      %v657 = vpack.c.b16 %v612, %v609
      %v658 = vpack.c.b16 %v613, %v610
      %v659 = vpack.c.b16 %v614, %v611
      %v660 = vpack.c.b16 %v618, %v615
      %v661 = vpack.c.b16 %v619, %v616
      %v662 = vpack.c.b16 %v620, %v617
      %v663 = vpack.c.b16 %v624, %v621
      %v664 = vpack.c.b16 %v625, %v622
      %v665 = vpack.c.b16 %v626, %v623
      %v666 = vpack.c.b16 %v630, %v627
      %v667 = vpack.c.b16 %v631, %v628
      %v668 = vpack.c.b16 %v632, %v629
      %v669 = vpack.c.b16 %v636, %v633
      %v670 = vpack.c.b16 %v637, %v634
      %v671 = vpack.c.b16 %v638, %v635
      %v672 = vpack.c.b16 %v642, %v639
      %v673 = vpack.c.b16 %v643, %v640
      %v674 = vpack.c.b16 %v644, %v641
      %v675 = vpack.c.b16 %v648, %v645
      %v676 = vpack.c.b16 %v649, %v646
      %v677 = vpack.c.b16 %v650, %v647
      %v678 = vpack.c.b16 %v654, %v651
      %v679 = vpack.c.b16 %v655, %v652
      %v680 = vpack.c.b16 %v656, %v653
      %705 = vmatprep.subr.bf16.mxu0 %v679
      %706 = vmatpush1.bf16.msra.mxu0 %v678
      %707 = vmatprep.subr.bf16.mxu0 %v676
      %708 = vmatpush1.bf16.msra.mxu0 %v675
      %709 = vmatprep.subr.bf16.mxu0 %v673
      %710 = vmatpush1.bf16.msra.mxu0 %v672
      %711 = vmatprep.subr.bf16.mxu0 %v670
      %712 = vmatpush1.bf16.msra.mxu0 %v669
      %713 = vmatprep.subr.bf16.mxu0 %v667
      %714 = vmatpush1.bf16.msra.mxu0 %v666
      %715 = vmatprep.subr.bf16.mxu0 %v664
      %716 = vmatpush1.bf16.msra.mxu0 %v663
      %717 = vmatprep.subr.bf16.mxu0 %v661
      %718 = vmatpush1.bf16.msra.mxu0 %v660
      %719 = vmatprep.subr.bf16.mxu0 %v658
      %720 = vmatpush1.bf16.msra.mxu0 %v657
      %721 = vmatprep.subr.bf16.mxu0 0
      %722 = vmatpush2.bf16.msra.mxu0 0
      %723 = vmatprep.subr.bf16.mxu0 0
      %724 = vmatpush2.bf16.msra.mxu0 0
      %725 = vmatprep.subr.bf16.mxu0 0
      %726 = vmatpush2.bf16.msra.mxu0 0
      %727 = vmatprep.subr.bf16.mxu0 0
      %728 = vmatpush2.bf16.msra.mxu0 0
      %729 = vmatprep.subr.bf16.mxu0 0
      %730 = vmatpush2.bf16.msra.mxu0 0
      %731 = vmatprep.subr.bf16.mxu0 0
      %732 = vmatpush2.bf16.msra.mxu0 0
      %733 = vmatprep.subr.bf16.mxu0 0
      %734 = vmatpush2.bf16.msra.mxu0 0
      %735 = vmatprep.subr.bf16.mxu0 0
      %736 = vmatpush2.bf16.msra.mxu0 0
      %737 = vmatprep.mubr.bf16.mxu0 0
      %738 = vmatmul.mubr.bf16.gmra.mxu0 %v544
      %v739 = vpop.f32.mrf.mxu0
      %v740 = vadd.f32 0.0, %v739
      %v741 = vpop.f32.mrf.mxu0
      %v742 = vadd.f32 0.0, %v741
      %v743 = vpop.f32.mrf.mxu0
      %v744 = vpop.f32.mrf.mxu0
      %745 = vdwg.mxu0
      %746 = vmatprep.subr.bf16.mxu0 0
      %747 = vmatpush1.bf16.msra.mxu0 %v680
      %748 = vmatprep.subr.bf16.mxu0 0
      %749 = vmatpush1.bf16.msra.mxu0 %v677
      %750 = vmatprep.subr.bf16.mxu0 0
      %751 = vmatpush1.bf16.msra.mxu0 %v674
      %752 = vmatprep.subr.bf16.mxu0 0
      %753 = vmatpush1.bf16.msra.mxu0 %v671
      %754 = vmatprep.subr.bf16.mxu0 0
      %755 = vmatpush1.bf16.msra.mxu0 %v668
      %756 = vmatprep.subr.bf16.mxu0 0
      %757 = vmatpush1.bf16.msra.mxu0 %v665
      %758 = vmatprep.subr.bf16.mxu0 0
      %759 = vmatpush1.bf16.msra.mxu0 %v662
      %760 = vmatprep.subr.bf16.mxu0 0
      %761 = vmatpush1.bf16.msra.mxu0 %v659
      %762 = vmatprep.subr.bf16.mxu0 0
      %763 = vmatpush2.bf16.msra.mxu0 0
      %764 = vmatprep.subr.bf16.mxu0 0
      %765 = vmatpush2.bf16.msra.mxu0 0
      %766 = vmatprep.subr.bf16.mxu0 0
      %767 = vmatpush2.bf16.msra.mxu0 0
      %768 = vmatprep.subr.bf16.mxu0 0
      %769 = vmatpush2.bf16.msra.mxu0 0
      %770 = vmatprep.subr.bf16.mxu0 0
      %771 = vmatpush2.bf16.msra.mxu0 0
      %772 = vmatprep.subr.bf16.mxu0 0
      %773 = vmatpush2.bf16.msra.mxu0 0
      %774 = vmatprep.subr.bf16.mxu0 0
      %775 = vmatpush2.bf16.msra.mxu0 0
      %776 = vmatprep.subr.bf16.mxu0 0
      %777 = vmatpush2.bf16.msra.mxu0 0
      %778 = vmatprep.mubr.bf16.mxu0 0
      %779 = vmatmul.mubr.bf16.gmra.mxu0 %v544
      %v780 = vpop.f32.mrf.mxu0
      %v781 = vadd.f32 0.0, %v780
      %v782 = vpop.f32.mrf.mxu0
      %v783 = vpop.f32.mrf.mxu0
      %v784 = vpop.f32.mrf.mxu0
      %785 = vdwg.mxu0
      %v786 = vmul.f32 %v740, 0.17677669
      %v787 = vpack.c.bf16 %v786, %v786
      %v788 = vpack.c.bf16 %v742, %v742
      %v789 = vpack.c.bf16 %v781, %v781
      %vm790 = vcmask 261120
      %v792 = vsel %vm790, %v787, 0
      %v795 = vsel %vm790, %v788, 0
      %797 = vmatprep.subr.bf16.mxu0 0
      %798 = vmatpush1.bf16.xpose.msra.mxu0 0
      %799 = vmatprep.subr.bf16.mxu0 0
      %800 = vmatpush1.bf16.xpose.msra.mxu0 0
      %801 = vmatprep.subr.bf16.mxu0 0
      %802 = vmatpush1.bf16.xpose.msra.mxu0 0
      %803 = vmatprep.subr.bf16.mxu0 0
      %804 = vmatpush1.bf16.xpose.msra.mxu0 0
      %805 = vmatprep.subr.bf16.mxu0 0
      %806 = vmatpush1.bf16.xpose.msra.mxu0 0
      %807 = vmatprep.subr.bf16.mxu0 0
      %808 = vmatpush1.bf16.xpose.msra.mxu0 0
      %809 = vmatprep.subr.bf16.mxu0 0
      %810 = vmatpush1.bf16.xpose.msra.mxu0 0
      %811 = vmatprep.subr.bf16.mxu0 0
      %812 = vmatpush1.bf16.xpose.msra.mxu0 %v795
      %813 = vmatprep.subr.bf16.mxu0 0
      %814 = vmatpush2.bf16.xpose.msra.mxu0 0
      %815 = vmatprep.subr.bf16.mxu0 0
      %816 = vmatpush2.bf16.xpose.msra.mxu0 0
      %817 = vmatprep.subr.bf16.mxu0 0
      %818 = vmatpush2.bf16.xpose.msra.mxu0 0
      %819 = vmatprep.subr.bf16.mxu0 0
      %820 = vmatpush2.bf16.xpose.msra.mxu0 0
      %821 = vmatprep.subr.bf16.mxu0 0
      %822 = vmatpush2.bf16.xpose.msra.mxu0 0
      %823 = vmatprep.subr.bf16.mxu0 0
      %824 = vmatpush2.bf16.xpose.msra.mxu0 0
      %825 = vmatprep.subr.bf16.mxu0 0
      %826 = vmatpush2.bf16.xpose.msra.mxu0 0
      %827 = vmatprep.subr.bf16.mxu0 0
      %828 = vmatpush2.bf16.xpose.msra.mxu0 0
      %829 = vmatprep.mubr.bf16.mxu0 0
      %830 = vmatmul.mubr.bf16.gmra.mxu0 %v792
      %v831 = vpop.f32.mrf.mxu0
      %v832 = vadd.f32 0.0, %v831
      %v833 = vpop.f32.mrf.mxu0
      %v834 = vpop.f32.mrf.mxu0
      %v835 = vpop.f32.mrf.mxu0
      %836 = vdwg.mxu0
      %vm837 = vcmask 27648
      %v838 = vsel %vm837, %v832, -inf
      %839 = vmax.xlane.f32.xlu0 %v838
      %v840 = vpop.xlane.xlu0 %839
      %v841 = vsub.f32 %v832, %v840
      %v842 = vmul.f32 %v841, 1.442695
      %v843 = vpow.pop %v842
      %v844 = vsel %vm837, %v843, 0.0
      %845 = vadd.xlane.f32.xlu0 %v844
      %v846 = vpop.xlane.xlu0 %845
      %v847 = vrcp.pop %v846
      %v848 = vmul.f32 %v843, %v847
      %v849 = vpack.c.bf16 %v848, %v848
      %vm850 = vcmask 31744
      %v852 = vsel %vm850, %v849, 0
      %vm854 = vcmask 1041408
      %v856 = vsel %vm854, %v789, 0
      %858 = vmatprep.subr.bf16.mxu0 0
      %859 = vmatpush1.bf16.msra.mxu0 0
      %860 = vmatprep.subr.bf16.mxu0 0
      %861 = vmatpush1.bf16.msra.mxu0 0
      %862 = vmatprep.subr.bf16.mxu0 0
      %863 = vmatpush1.bf16.msra.mxu0 0
      %864 = vmatprep.subr.bf16.mxu0 0
      %865 = vmatpush1.bf16.msra.mxu0 0
      %866 = vmatprep.subr.bf16.mxu0 0
      %867 = vmatpush1.bf16.msra.mxu0 0
      %868 = vmatprep.subr.bf16.mxu0 0
      %869 = vmatpush1.bf16.msra.mxu0 0
      %870 = vmatprep.subr.bf16.mxu0 0
      %871 = vmatpush1.bf16.msra.mxu0 0
      %872 = vmatprep.subr.bf16.mxu0 0
      %873 = vmatpush1.bf16.msra.mxu0 %v856
      %874 = vmatprep.subr.bf16.mxu0 0
      %875 = vmatpush2.bf16.msra.mxu0 0
      %876 = vmatprep.subr.bf16.mxu0 0
      %877 = vmatpush2.bf16.msra.mxu0 0
      %878 = vmatprep.subr.bf16.mxu0 0
      %879 = vmatpush2.bf16.msra.mxu0 0
      %880 = vmatprep.subr.bf16.mxu0 0
      %881 = vmatpush2.bf16.msra.mxu0 0
      %882 = vmatprep.subr.bf16.mxu0 0
      %883 = vmatpush2.bf16.msra.mxu0 0
      %884 = vmatprep.subr.bf16.mxu0 0
      %885 = vmatpush2.bf16.msra.mxu0 0
      %886 = vmatprep.subr.bf16.mxu0 0
      %887 = vmatpush2.bf16.msra.mxu0 0
      %888 = vmatprep.subr.bf16.mxu0 0
      %889 = vmatpush2.bf16.msra.mxu0 0
      %890 = vmatprep.mubr.bf16.mxu0 0
      %891 = vmatmul.mubr.bf16.gmra.mxu0 %v852
      %v892 = vpop.f32.mrf.mxu0
      %v893 = vadd.f32 0.0, %v892
      %v894 = vpop.f32.mrf.mxu0
      %v895 = vpop.f32.mrf.mxu0
      %v896 = vpop.f32.mrf.mxu0
      %897 = vdwg.mxu0
      %899 = vrot.lane.b32.xlu0 %v787, 96
      %v900 = vpop.permute.xlu0 %899
      %902 = vrot.lane.b32.xlu0 %v788, 96
      %v903 = vpop.permute.xlu0 %902
      %v905 = vsel %vm790, %v900, 0
      %v908 = vsel %vm790, %v903, 0
      %910 = vmatprep.subr.bf16.mxu0 0
      %911 = vmatpush1.bf16.xpose.msra.mxu0 0
      %912 = vmatprep.subr.bf16.mxu0 0
      %913 = vmatpush1.bf16.xpose.msra.mxu0 0
      %914 = vmatprep.subr.bf16.mxu0 0
      %915 = vmatpush1.bf16.xpose.msra.mxu0 0
      %916 = vmatprep.subr.bf16.mxu0 0
      %917 = vmatpush1.bf16.xpose.msra.mxu0 0
      %918 = vmatprep.subr.bf16.mxu0 0
      %919 = vmatpush1.bf16.xpose.msra.mxu0 0
      %920 = vmatprep.subr.bf16.mxu0 0
      %921 = vmatpush1.bf16.xpose.msra.mxu0 0
      %922 = vmatprep.subr.bf16.mxu0 0
      %923 = vmatpush1.bf16.xpose.msra.mxu0 0
      %924 = vmatprep.subr.bf16.mxu0 0
      %925 = vmatpush1.bf16.xpose.msra.mxu0 %v908
      %926 = vmatprep.subr.bf16.mxu0 0
      %927 = vmatpush2.bf16.xpose.msra.mxu0 0
      %928 = vmatprep.subr.bf16.mxu0 0
      %929 = vmatpush2.bf16.xpose.msra.mxu0 0
      %930 = vmatprep.subr.bf16.mxu0 0
      %931 = vmatpush2.bf16.xpose.msra.mxu0 0
      %932 = vmatprep.subr.bf16.mxu0 0
      %933 = vmatpush2.bf16.xpose.msra.mxu0 0
      %934 = vmatprep.subr.bf16.mxu0 0
      %935 = vmatpush2.bf16.xpose.msra.mxu0 0
      %936 = vmatprep.subr.bf16.mxu0 0
      %937 = vmatpush2.bf16.xpose.msra.mxu0 0
      %938 = vmatprep.subr.bf16.mxu0 0
      %939 = vmatpush2.bf16.xpose.msra.mxu0 0
      %940 = vmatprep.subr.bf16.mxu0 0
      %941 = vmatpush2.bf16.xpose.msra.mxu0 0
      %942 = vmatprep.mubr.bf16.mxu0 0
      %943 = vmatmul.mubr.bf16.gmra.mxu0 %v905
      %v944 = vpop.f32.mrf.mxu0
      %v945 = vadd.f32 0.0, %v944
      %v946 = vpop.f32.mrf.mxu0
      %v947 = vpop.f32.mrf.mxu0
      %v948 = vpop.f32.mrf.mxu0
      %949 = vdwg.mxu0
      %v950 = vsel %vm837, %v945, -inf
      %951 = vmax.xlane.f32.xlu0 %v950
      %v952 = vpop.xlane.xlu0 %951
      %v953 = vsub.f32 %v945, %v952
      %v954 = vmul.f32 %v953, 1.442695
      %v955 = vpow.pop %v954
      %v956 = vsel %vm837, %v955, 0.0
      %957 = vadd.xlane.f32.xlu0 %v956
      %v958 = vpop.xlane.xlu0 %957
      %v959 = vrcp.pop %v958
      %v960 = vmul.f32 %v955, %v959
      %v961 = vpack.c.bf16 %v960, %v960
      %963 = vrot.lane.b32.xlu0 %v789, 96
      %v964 = vpop.permute.xlu0 %963
      %v966 = vsel %vm850, %v961, 0
      %v969 = vsel %vm854, %v964, 0
      %971 = vmatprep.subr.bf16.mxu0 0
      %972 = vmatpush1.bf16.msra.mxu0 0
      %973 = vmatprep.subr.bf16.mxu0 0
      %974 = vmatpush1.bf16.msra.mxu0 0
      %975 = vmatprep.subr.bf16.mxu0 0
      %976 = vmatpush1.bf16.msra.mxu0 0
      %977 = vmatprep.subr.bf16.mxu0 0
      %978 = vmatpush1.bf16.msra.mxu0 0
      %979 = vmatprep.subr.bf16.mxu0 0
      %980 = vmatpush1.bf16.msra.mxu0 0
      %981 = vmatprep.subr.bf16.mxu0 0
      %982 = vmatpush1.bf16.msra.mxu0 0
      %983 = vmatprep.subr.bf16.mxu0 0
      %984 = vmatpush1.bf16.msra.mxu0 0
      %985 = vmatprep.subr.bf16.mxu0 0
      %986 = vmatpush1.bf16.msra.mxu0 %v969
      %987 = vmatprep.subr.bf16.mxu0 0
      %988 = vmatpush2.bf16.msra.mxu0 0
      %989 = vmatprep.subr.bf16.mxu0 0
      %990 = vmatpush2.bf16.msra.mxu0 0
      %991 = vmatprep.subr.bf16.mxu0 0
      %992 = vmatpush2.bf16.msra.mxu0 0
      %993 = vmatprep.subr.bf16.mxu0 0
      %994 = vmatpush2.bf16.msra.mxu0 0
      %995 = vmatprep.subr.bf16.mxu0 0
      %996 = vmatpush2.bf16.msra.mxu0 0
      %997 = vmatprep.subr.bf16.mxu0 0
      %998 = vmatpush2.bf16.msra.mxu0 0
      %999 = vmatprep.subr.bf16.mxu0 0
      %1000 = vmatpush2.bf16.msra.mxu0 0
      %1001 = vmatprep.subr.bf16.mxu0 0
      %1002 = vmatpush2.bf16.msra.mxu0 0
      %1003 = vmatprep.mubr.bf16.mxu0 0
      %1004 = vmatmul.mubr.bf16.gmra.mxu0 %v966
      %v1005 = vpop.f32.mrf.mxu0
      %v1006 = vadd.f32 0.0, %v1005
      %v1007 = vpop.f32.mrf.mxu0
      %v1008 = vpop.f32.mrf.mxu0
      %v1009 = vpop.f32.mrf.mxu0
      %1010 = vdwg.mxu0
      %1011 = vrot.lane.b32.xlu0 %v787, 64
      %v1012 = vpop.permute.xlu0 %1011
      %1013 = vrot.lane.b32.xlu0 %v788, 64
      %v1014 = vpop.permute.xlu0 %1013
      %v1016 = vsel %vm790, %v1012, 0
      %v1019 = vsel %vm790, %v1014, 0
      %1021 = vmatprep.subr.bf16.mxu0 0
      %1022 = vmatpush1.bf16.xpose.msra.mxu0 0
      %1023 = vmatprep.subr.bf16.mxu0 0
      %1024 = vmatpush1.bf16.xpose.msra.mxu0 0
      %1025 = vmatprep.subr.bf16.mxu0 0
      %1026 = vmatpush1.bf16.xpose.msra.mxu0 0
      %1027 = vmatprep.subr.bf16.mxu0 0
      %1028 = vmatpush1.bf16.xpose.msra.mxu0 0
      %1029 = vmatprep.subr.bf16.mxu0 0
      %1030 = vmatpush1.bf16.xpose.msra.mxu0 0
      %1031 = vmatprep.subr.bf16.mxu0 0
      %1032 = vmatpush1.bf16.xpose.msra.mxu0 0
      %1033 = vmatprep.subr.bf16.mxu0 0
      %1034 = vmatpush1.bf16.xpose.msra.mxu0 0
      %1035 = vmatprep.subr.bf16.mxu0 0
      %1036 = vmatpush1.bf16.xpose.msra.mxu0 %v1019
      %1037 = vmatprep.subr.bf16.mxu0 0
      %1038 = vmatpush2.bf16.xpose.msra.mxu0 0
      %1039 = vmatprep.subr.bf16.mxu0 0
      %1040 = vmatpush2.bf16.xpose.msra.mxu0 0
      %1041 = vmatprep.subr.bf16.mxu0 0
      %1042 = vmatpush2.bf16.xpose.msra.mxu0 0
      %1043 = vmatprep.subr.bf16.mxu0 0
      %1044 = vmatpush2.bf16.xpose.msra.mxu0 0
      %1045 = vmatprep.subr.bf16.mxu0 0
      %1046 = vmatpush2.bf16.xpose.msra.mxu0 0
      %1047 = vmatprep.subr.bf16.mxu0 0
      %1048 = vmatpush2.bf16.xpose.msra.mxu0 0
      %1049 = vmatprep.subr.bf16.mxu0 0
      %1050 = vmatpush2.bf16.xpose.msra.mxu0 0
      %1051 = vmatprep.subr.bf16.mxu0 0
      %1052 = vmatpush2.bf16.xpose.msra.mxu0 0
      %1053 = vmatprep.mubr.bf16.mxu0 0
      %1054 = vmatmul.mubr.bf16.gmra.mxu0 %v1016
      %v1055 = vpop.f32.mrf.mxu0
      %v1056 = vadd.f32 0.0, %v1055
      %v1057 = vpop.f32.mrf.mxu0
      %v1058 = vpop.f32.mrf.mxu0
      %v1059 = vpop.f32.mrf.mxu0
      %1060 = vdwg.mxu0
      %v1061 = vsel %vm837, %v1056, -inf
      %1062 = vmax.xlane.f32.xlu0 %v1061
      %v1063 = vpop.xlane.xlu0 %1062
      %v1064 = vsub.f32 %v1056, %v1063
      %v1065 = vmul.f32 %v1064, 1.442695
      %v1066 = vpow.pop %v1065
      %v1067 = vsel %vm837, %v1066, 0.0
      %1068 = vadd.xlane.f32.xlu0 %v1067
      %v1069 = vpop.xlane.xlu0 %1068
      %v1070 = vrcp.pop %v1069
      %v1071 = vmul.f32 %v1066, %v1070
      %v1072 = vpack.c.bf16 %v1071, %v1071
      %1073 = vrot.lane.b32.xlu0 %v789, 64
      %v1074 = vpop.permute.xlu0 %1073
      %v1076 = vsel %vm850, %v1072, 0
      %v1079 = vsel %vm854, %v1074, 0
      %1081 = vmatprep.subr.bf16.mxu0 0
      %1082 = vmatpush1.bf16.msra.mxu0 0
      %1083 = vmatprep.subr.bf16.mxu0 0
      %1084 = vmatpush1.bf16.msra.mxu0 0
      %1085 = vmatprep.subr.bf16.mxu0 0
      %1086 = vmatpush1.bf16.msra.mxu0 0
      %1087 = vmatprep.subr.bf16.mxu0 0
      %1088 = vmatpush1.bf16.msra.mxu0 0
      %1089 = vmatprep.subr.bf16.mxu0 0
      %1090 = vmatpush1.bf16.msra.mxu0 0
      %1091 = vmatprep.subr.bf16.mxu0 0
      %1092 = vmatpush1.bf16.msra.mxu0 0
      %1093 = vmatprep.subr.bf16.mxu0 0
      %1094 = vmatpush1.bf16.msra.mxu0 0
      %1095 = vmatprep.subr.bf16.mxu0 0
      %1096 = vmatpush1.bf16.msra.mxu0 %v1079
      %1097 = vmatprep.subr.bf16.mxu0 0
      %1098 = vmatpush2.bf16.msra.mxu0 0
      %1099 = vmatprep.subr.bf16.mxu0 0
      %1100 = vmatpush2.bf16.msra.mxu0 0
      %1101 = vmatprep.subr.bf16.mxu0 0
      %1102 = vmatpush2.bf16.msra.mxu0 0
      %1103 = vmatprep.subr.bf16.mxu0 0
      %1104 = vmatpush2.bf16.msra.mxu0 0
      %1105 = vmatprep.subr.bf16.mxu0 0
      %1106 = vmatpush2.bf16.msra.mxu0 0
      %1107 = vmatprep.subr.bf16.mxu0 0
      %1108 = vmatpush2.bf16.msra.mxu0 0
      %1109 = vmatprep.subr.bf16.mxu0 0
      %1110 = vmatpush2.bf16.msra.mxu0 0
      %1111 = vmatprep.subr.bf16.mxu0 0
      %1112 = vmatpush2.bf16.msra.mxu0 0
      %1113 = vmatprep.mubr.bf16.mxu0 0
      %1114 = vmatmul.mubr.bf16.gmra.mxu0 %v1076
      %v1115 = vpop.f32.mrf.mxu0
      %v1116 = vadd.f32 0.0, %v1115
      %v1117 = vpop.f32.mrf.mxu0
      %v1118 = vpop.f32.mrf.mxu0
      %v1119 = vpop.f32.mrf.mxu0
      %1120 = vdwg.mxu0
      %1121 = vrot.lane.b32.xlu0 %v787, 32
      %v1122 = vpop.permute.xlu0 %1121
      %1123 = vrot.lane.b32.xlu0 %v788, 32
      %v1124 = vpop.permute.xlu0 %1123
      %v1126 = vsel %vm790, %v1122, 0
      %v1129 = vsel %vm790, %v1124, 0
      %1131 = vmatprep.subr.bf16.mxu0 0
      %1132 = vmatpush1.bf16.xpose.msra.mxu0 0
      %1133 = vmatprep.subr.bf16.mxu0 0
      %1134 = vmatpush1.bf16.xpose.msra.mxu0 0
      %1135 = vmatprep.subr.bf16.mxu0 0
      %1136 = vmatpush1.bf16.xpose.msra.mxu0 0
      %1137 = vmatprep.subr.bf16.mxu0 0
      %1138 = vmatpush1.bf16.xpose.msra.mxu0 0
      %1139 = vmatprep.subr.bf16.mxu0 0
      %1140 = vmatpush1.bf16.xpose.msra.mxu0 0
      %1141 = vmatprep.subr.bf16.mxu0 0
      %1142 = vmatpush1.bf16.xpose.msra.mxu0 0
      %1143 = vmatprep.subr.bf16.mxu0 0
      %1144 = vmatpush1.bf16.xpose.msra.mxu0 0
      %1145 = vmatprep.subr.bf16.mxu0 0
      %1146 = vmatpush1.bf16.xpose.msra.mxu0 %v1129
      %1147 = vmatprep.subr.bf16.mxu0 0
      %1148 = vmatpush2.bf16.xpose.msra.mxu0 0
      %1149 = vmatprep.subr.bf16.mxu0 0
      %1150 = vmatpush2.bf16.xpose.msra.mxu0 0
      %1151 = vmatprep.subr.bf16.mxu0 0
      %1152 = vmatpush2.bf16.xpose.msra.mxu0 0
      %1153 = vmatprep.subr.bf16.mxu0 0
      %1154 = vmatpush2.bf16.xpose.msra.mxu0 0
      %1155 = vmatprep.subr.bf16.mxu0 0
      %1156 = vmatpush2.bf16.xpose.msra.mxu0 0
      %1157 = vmatprep.subr.bf16.mxu0 0
      %1158 = vmatpush2.bf16.xpose.msra.mxu0 0
      %1159 = vmatprep.subr.bf16.mxu0 0
      %1160 = vmatpush2.bf16.xpose.msra.mxu0 0
      %1161 = vmatprep.subr.bf16.mxu0 0
      %1162 = vmatpush2.bf16.xpose.msra.mxu0 0
      %1163 = vmatprep.mubr.bf16.mxu0 0
      %1164 = vmatmul.mubr.bf16.gmra.mxu0 %v1126
      %v1165 = vpop.f32.mrf.mxu0
      %v1166 = vadd.f32 0.0, %v1165
      %v1167 = vpop.f32.mrf.mxu0
      %v1168 = vpop.f32.mrf.mxu0
      %v1169 = vpop.f32.mrf.mxu0
      %1170 = vdwg.mxu0
      %v1171 = vsel %vm837, %v1166, -inf
      %1172 = vmax.xlane.f32.xlu0 %v1171
      %v1173 = vpop.xlane.xlu0 %1172
      %v1174 = vsub.f32 %v1166, %v1173
      %v1175 = vmul.f32 %v1174, 1.442695
      %v1176 = vpow.pop %v1175
      %v1177 = vsel %vm837, %v1176, 0.0
      %1178 = vadd.xlane.f32.xlu0 %v1177
      %v1179 = vpop.xlane.xlu0 %1178
      %v1180 = vrcp.pop %v1179
      %v1181 = vmul.f32 %v1176, %v1180
      %v1182 = vpack.c.bf16 %v1181, %v1181
      %1183 = vrot.lane.b32.xlu0 %v789, 32
      %v1184 = vpop.permute.xlu0 %1183
      %v1186 = vsel %vm850, %v1182, 0
      %v1189 = vsel %vm854, %v1184, 0
      %1191 = vmatprep.subr.bf16.mxu0 0
      %1192 = vmatpush1.bf16.msra.mxu0 0
      %1193 = vmatprep.subr.bf16.mxu0 0
      %1194 = vmatpush1.bf16.msra.mxu0 0
      %1195 = vmatprep.subr.bf16.mxu0 0
      %1196 = vmatpush1.bf16.msra.mxu0 0
      %1197 = vmatprep.subr.bf16.mxu0 0
      %1198 = vmatpush1.bf16.msra.mxu0 0
      %1199 = vmatprep.subr.bf16.mxu0 0
      %1200 = vmatpush1.bf16.msra.mxu0 0
      %1201 = vmatprep.subr.bf16.mxu0 0
      %1202 = vmatpush1.bf16.msra.mxu0 0
      %1203 = vmatprep.subr.bf16.mxu0 0
      %1204 = vmatpush1.bf16.msra.mxu0 0
      %1205 = vmatprep.subr.bf16.mxu0 0
      %1206 = vmatpush1.bf16.msra.mxu0 %v1189
      %1207 = vmatprep.subr.bf16.mxu0 0
      %1208 = vmatpush2.bf16.msra.mxu0 0
      %1209 = vmatprep.subr.bf16.mxu0 0
      %1210 = vmatpush2.bf16.msra.mxu0 0
      %1211 = vmatprep.subr.bf16.mxu0 0
      %1212 = vmatpush2.bf16.msra.mxu0 0
      %1213 = vmatprep.subr.bf16.mxu0 0
      %1214 = vmatpush2.bf16.msra.mxu0 0
      %1215 = vmatprep.subr.bf16.mxu0 0
      %1216 = vmatpush2.bf16.msra.mxu0 0
      %1217 = vmatprep.subr.bf16.mxu0 0
      %1218 = vmatpush2.bf16.msra.mxu0 0
      %1219 = vmatprep.subr.bf16.mxu0 0
      %1220 = vmatpush2.bf16.msra.mxu0 0
      %1221 = vmatprep.subr.bf16.mxu0 0
      %1222 = vmatpush2.bf16.msra.mxu0 0
      %1223 = vmatprep.mubr.bf16.mxu0 0
      %1224 = vmatmul.mubr.bf16.gmra.mxu0 %v1186
      %v1225 = vpop.f32.mrf.mxu0
      %v1226 = vadd.f32 0.0, %v1225
      %v1227 = vpop.f32.mrf.mxu0
      %v1228 = vpop.f32.mrf.mxu0
      %v1229 = vpop.f32.mrf.mxu0
      %1230 = vdwg.mxu0
      %1232 = vrot.lane.b32.xlu0 %v1006, 32
      %v1233 = vpop.permute.xlu0 %1232
      %1236 = vrot.lane.b32.xlu0 %v1116, 64
      %v1237 = vpop.permute.xlu0 %1236
      %1240 = vrot.lane.b32.xlu0 %v1226, 96
      %v1241 = vpop.permute.xlu0 %1240
      %v1243 = vsel %vm790, %v893, %v1233
      %vm1244 = vcmask 523264
      %v1245 = vsel %vm1244, %v1243, %v1237
      %vm1246 = vcmask 785408
      %v1247 = vsel %vm1246, %v1245, %v1241
      %v1248 = vpack.c.bf16 %v1247, %v1247
      %v1249 = vld [vmem:[%s5] sm:$0xf]
      %v1250 = vld [vmem:[%s5 + $0x4] sm:$0xf]
      %v1251 = vld [vmem:[%s5 + $0x8] sm:$0xf]
      %v1252 = vld [vmem:[%s5 + $0xc] sm:$0xf]
      %v1253 = vld [vmem:[%s5 + $0x10] sm:$0xf]
      %v1254 = vld [vmem:[%s5 + $0x14] sm:$0xf]
      %v1255 = vld [vmem:[%s5 + $0x18] sm:$0xf]
      %v1256 = vld [vmem:[%s5 + $0x1c] sm:$0xf]
      %v1257 = vld [vmem:[%s5 + $0x20] sm:$0xf]
      %v1258 = vld [vmem:[%s5 + $0x24] sm:$0xf]
      %v1259 = vld [vmem:[%s5 + $0x28] sm:$0xf]
      %v1260 = vld [vmem:[%s5 + $0x2c] sm:$0xf]
      %v1261 = vld [vmem:[%s5 + $0x30] sm:$0xf]
      %v1262 = vld [vmem:[%s5 + $0x34] sm:$0xf]
      %v1263 = vld [vmem:[%s5 + $0x38] sm:$0xf]
      %v1264 = vld [vmem:[%s5 + $0x3c] sm:$0xf]
      %v1265 = vld [vmem:[%s6] sm:$0x1]
      %v1267 = vlaneseq
      %v1268 = vshrl.u32 %v1267, 7
      %v1269 = vsub.s32 0, %v1268
      %v1270 = vrot.slane %v1265, %v1269
      %v1288 = vunpack.c.l.b16 %v1249
      %v1289 = vunpack.c.l.b16 %v1250
      %v1290 = vunpack.c.l.b16 %v1251
      %v1291 = vunpack.c.l.b16 %v1252
      %v1292 = vunpack.c.l.b16 %v1253
      %v1293 = vunpack.c.l.b16 %v1254
      %v1294 = vunpack.c.l.b16 %v1255
      %v1295 = vunpack.c.l.b16 %v1256
      %v1296 = vunpack.c.l.b16 %v1257
      %v1297 = vunpack.c.l.b16 %v1258
      %v1298 = vunpack.c.l.b16 %v1259
      %v1299 = vunpack.c.l.b16 %v1260
      %v1300 = vunpack.c.l.b16 %v1261
      %v1301 = vunpack.c.l.b16 %v1262
      %v1302 = vunpack.c.l.b16 %v1263
      %v1303 = vunpack.c.l.b16 %v1264
      %v1304 = vpack.c.b16 %v1289, %v1288
      %v1305 = vpack.c.b16 %v1291, %v1290
      %v1306 = vpack.c.b16 %v1293, %v1292
      %v1307 = vpack.c.b16 %v1295, %v1294
      %v1308 = vpack.c.b16 %v1297, %v1296
      %v1309 = vpack.c.b16 %v1299, %v1298
      %v1310 = vpack.c.b16 %v1301, %v1300
      %v1311 = vpack.c.b16 %v1303, %v1302
      %1320 = vmatprep.subr.bf16.mxu0 0
      %1321 = vmatpush1.bf16.msra.mxu0 %v1311
      %1322 = vmatprep.subr.bf16.mxu0 0
      %1323 = vmatpush1.bf16.msra.mxu0 %v1310
      %1324 = vmatprep.subr.bf16.mxu0 0
      %1325 = vmatpush1.bf16.msra.mxu0 %v1309
      %1326 = vmatprep.subr.bf16.mxu0 0
      %1327 = vmatpush1.bf16.msra.mxu0 %v1308
      %1328 = vmatprep.subr.bf16.mxu0 0
      %1329 = vmatpush1.bf16.msra.mxu0 %v1307
      %1330 = vmatprep.subr.bf16.mxu0 0
      %1331 = vmatpush1.bf16.msra.mxu0 %v1306
      %1332 = vmatprep.subr.bf16.mxu0 0
      %1333 = vmatpush1.bf16.msra.mxu0 %v1305
      %1334 = vmatprep.subr.bf16.mxu0 0
      %1335 = vmatpush1.bf16.msra.mxu0 %v1304
      %1336 = vmatprep.subr.bf16.mxu0 0
      %1337 = vmatpush2.bf16.msra.mxu0 0
      %1338 = vmatprep.subr.bf16.mxu0 0
      %1339 = vmatpush2.bf16.msra.mxu0 0
      %1340 = vmatprep.subr.bf16.mxu0 0
      %1341 = vmatpush2.bf16.msra.mxu0 0
      %1342 = vmatprep.subr.bf16.mxu0 0
      %1343 = vmatpush2.bf16.msra.mxu0 0
      %1344 = vmatprep.subr.bf16.mxu0 0
      %1345 = vmatpush2.bf16.msra.mxu0 0
      %1346 = vmatprep.subr.bf16.mxu0 0
      %1347 = vmatpush2.bf16.msra.mxu0 0
      %1348 = vmatprep.subr.bf16.mxu0 0
      %1349 = vmatpush2.bf16.msra.mxu0 0
      %1350 = vmatprep.subr.bf16.mxu0 0
      %1351 = vmatpush2.bf16.msra.mxu0 0
      %1352 = vmatprep.mubr.bf16.mxu0 0
      %1353 = vmatmul.mubr.bf16.gmra.mxu0 %v1248
      %v1354 = vpop.f32.mrf.mxu0
      %v1355 = vadd.f32 %v1270, %v1354
      %v1356 = vpop.f32.mrf.mxu0
      %v1357 = vpop.f32.mrf.mxu0
      %v1358 = vpop.f32.mrf.mxu0
      %1359 = vdwg.mxu0
      %v1360 = vadd.f32 %v512, %v1355
      %v1361 = vld [vmem:[%s7] sm:$0x1]
      %v1362 = vld [vmem:[%s8] sm:$0x1]
      %v1363 = vsel %vm515, %v1360, 0.0
      %1364 = vadd.xlane.f32.xlu0 %v1363
      %v1365 = vpop.xlane.xlu0 %1364
      %v1366 = vmul.f32 %v1365, %v519
      %v1367 = vsub.f32 %v1360, %v1366
      %v1368 = vmul.f32 %v1367, %v1367
      %v1369 = vsel %vm515, %v1368, 0.0
      %1370 = vadd.xlane.f32.xlu0 %v1369
      %v1371 = vpop.xlane.xlu0 %1370
      %v1372 = vmul.f32 %v1371, %v519
      %v1373 = vadd.f32 %v1372, 1e-05
      %v1374 = vrsqrt.pop %v1373
      %v1375 = vmul.f32 %v1367, %v1374
      %v1377 = vlaneseq
      %v1378 = vshrl.u32 %v1377, 7
      %v1379 = vsub.s32 0, %v1378
      %v1380 = vrot.slane %v1361, %v1379
      %v1382 = vmul.f32 %v1375, %v1380
      %v1384 = vlaneseq
      %v1385 = vshrl.u32 %v1384, 7
      %v1386 = vsub.s32 0, %v1385
      %v1387 = vrot.slane %v1362, %v1386
      %v1389 = vadd.f32 %v1382, %v1387
      %v1390 = vpack.c.bf16 %v1389, %v1389
      %v1391 = vld [vmem:[%s9] sm:$0xff]
      %v1392 = vld [vmem:[%s9 + $0x8] sm:$0xff]
      %v1393 = vld [vmem:[%s9 + $0x10] sm:$0xff]
      %v1394 = vld [vmem:[%s9 + $0x18] sm:$0xff]
      %v1395 = vld [vmem:[%s9 + $0x20] sm:$0xff]
      %v1396 = vld [vmem:[%s9 + $0x28] sm:$0xff]
      %v1397 = vld [vmem:[%s9 + $0x30] sm:$0xff]
      %v1398 = vld [vmem:[%s9 + $0x38] sm:$0xff]
      %v1399 = vld [vmem:[%s9 + $0x40] sm:$0xff]
      %v1400 = vld [vmem:[%s9 + $0x48] sm:$0xff]
      %v1401 = vld [vmem:[%s9 + $0x50] sm:$0xff]
      %v1402 = vld [vmem:[%s9 + $0x58] sm:$0xff]
      %v1403 = vld [vmem:[%s9 + $0x60] sm:$0xff]
      %v1404 = vld [vmem:[%s9 + $0x68] sm:$0xff]
      %v1405 = vld [vmem:[%s9 + $0x70] sm:$0xff]
      %v1406 = vld [vmem:[%s9 + $0x78] sm:$0xff]
      %v1407 = vld [vmem:[%s9 + $0x80] sm:$0xff]
      %v1408 = vld [vmem:[%s9 + $0x88] sm:$0xff]
      %v1409 = vld [vmem:[%s9 + $0x90] sm:$0xff]
      %v1410 = vld [vmem:[%s9 + $0x98] sm:$0xff]
      %v1411 = vld [vmem:[%s9 + $0xa0] sm:$0xff]
      %v1412 = vld [vmem:[%s9 + $0xa8] sm:$0xff]
      %v1413 = vld [vmem:[%s9 + $0xb0] sm:$0xff]
      %v1414 = vld [vmem:[%s9 + $0xb8] sm:$0xff]
      %v1415 = vld [vmem:[%s9 + $0xc0] sm:$0xff]
      %v1416 = vld [vmem:[%s9 + $0xc8] sm:$0xff]
      %v1417 = vld [vmem:[%s9 + $0xd0] sm:$0xff]
      %v1418 = vld [vmem:[%s9 + $0xd8] sm:$0xff]
      %v1419 = vld [vmem:[%s9 + $0xe0] sm:$0xff]
      %v1420 = vld [vmem:[%s9 + $0xe8] sm:$0xff]
      %v1421 = vld [vmem:[%s9 + $0xf0] sm:$0xff]
      %v1422 = vld [vmem:[%s9 + $0xf8] sm:$0xff]
      %v1423 = vld [vmem:[%s10] sm:$0xf]
      %v1425 = vlaneseq
      %v1426 = vshrl.u32 %v1425, 7
      %v1427 = vsub.s32 0, %v1426
      %v1428 = vrot.slane %v1423, %v1427
      %v1429 = vlaneseq
      %v1430 = vshrl.u32 %v1429, 7
      %v1431 = vsub.s32 1, %v1430
      %v1432 = vrot.slane %v1423, %v1431
      %v1433 = vlaneseq
      %v1434 = vshrl.u32 %v1433, 7
      %v1435 = vsub.s32 2, %v1434
      %v1436 = vrot.slane %v1423, %v1435
      %v1437 = vlaneseq
      %v1438 = vshrl.u32 %v1437, 7
      %v1439 = vsub.s32 3, %v1438
      %v1440 = vrot.slane %v1423, %v1439
      %v1477 = vunpack.c.l.b16 %v1391
      %v1478 = vunpack.c.h.b16 %v1391
      %v1479 = vunpack.c.l.b16 %v1392
      %v1480 = vunpack.c.h.b16 %v1392
      %v1481 = vunpack.c.l.b16 %v1393
      %v1482 = vunpack.c.h.b16 %v1393
      %v1483 = vunpack.c.l.b16 %v1394
      %v1484 = vunpack.c.h.b16 %v1394
      %v1485 = vunpack.c.l.b16 %v1395
      %v1486 = vunpack.c.h.b16 %v1395
      %v1487 = vunpack.c.l.b16 %v1396
      %v1488 = vunpack.c.h.b16 %v1396
      %v1489 = vunpack.c.l.b16 %v1397
      %v1490 = vunpack.c.h.b16 %v1397
      %v1491 = vunpack.c.l.b16 %v1398
      %v1492 = vunpack.c.h.b16 %v1398
      %v1493 = vunpack.c.l.b16 %v1399
      %v1494 = vunpack.c.h.b16 %v1399
      %v1495 = vunpack.c.l.b16 %v1400
      %v1496 = vunpack.c.h.b16 %v1400
      %v1497 = vunpack.c.l.b16 %v1401
      %v1498 = vunpack.c.h.b16 %v1401
      %v1499 = vunpack.c.l.b16 %v1402
      %v1500 = vunpack.c.h.b16 %v1402
      %v1501 = vunpack.c.l.b16 %v1403
      %v1502 = vunpack.c.h.b16 %v1403
      %v1503 = vunpack.c.l.b16 %v1404
      %v1504 = vunpack.c.h.b16 %v1404
      %v1505 = vunpack.c.l.b16 %v1405
      %v1506 = vunpack.c.h.b16 %v1405
      %v1507 = vunpack.c.l.b16 %v1406
      %v1508 = vunpack.c.h.b16 %v1406
      %v1509 = vunpack.c.l.b16 %v1407
      %v1510 = vunpack.c.h.b16 %v1407
      %v1511 = vunpack.c.l.b16 %v1408
      %v1512 = vunpack.c.h.b16 %v1408
      %v1513 = vunpack.c.l.b16 %v1409
      %v1514 = vunpack.c.h.b16 %v1409
      %v1515 = vunpack.c.l.b16 %v1410
      %v1516 = vunpack.c.h.b16 %v1410
      %v1517 = vunpack.c.l.b16 %v1411
      %v1518 = vunpack.c.h.b16 %v1411
      %v1519 = vunpack.c.l.b16 %v1412
      %v1520 = vunpack.c.h.b16 %v1412
      %v1521 = vunpack.c.l.b16 %v1413
      %v1522 = vunpack.c.h.b16 %v1413
      %v1523 = vunpack.c.l.b16 %v1414
      %v1524 = vunpack.c.h.b16 %v1414
      %v1525 = vunpack.c.l.b16 %v1415
      %v1526 = vunpack.c.h.b16 %v1415
      %v1527 = vunpack.c.l.b16 %v1416
      %v1528 = vunpack.c.h.b16 %v1416
      %v1529 = vunpack.c.l.b16 %v1417
      %v1530 = vunpack.c.h.b16 %v1417
      %v1531 = vunpack.c.l.b16 %v1418
      %v1532 = vunpack.c.h.b16 %v1418
      %v1533 = vunpack.c.l.b16 %v1419
      %v1534 = vunpack.c.h.b16 %v1419
      %v1535 = vunpack.c.l.b16 %v1420
      %v1536 = vunpack.c.h.b16 %v1420
      %v1537 = vunpack.c.l.b16 %v1421
      %v1538 = vunpack.c.h.b16 %v1421
      %v1539 = vunpack.c.l.b16 %v1422
      %v1540 = vunpack.c.h.b16 %v1422
      %v1541 = vpack.c.b16 %v1481, %v1477
      %v1542 = vpack.c.b16 %v1482, %v1478
      %v1543 = vpack.c.b16 %v1483, %v1479
      %v1544 = vpack.c.b16 %v1484, %v1480
      %v1545 = vpack.c.b16 %v1489, %v1485
      %v1546 = vpack.c.b16 %v1490, %v1486
      %v1547 = vpack.c.b16 %v1491, %v1487
      %v1548 = vpack.c.b16 %v1492, %v1488
      %v1549 = vpack.c.b16 %v1497, %v1493
      %v1550 = vpack.c.b16 %v1498, %v1494
      %v1551 = vpack.c.b16 %v1499, %v1495
      %v1552 = vpack.c.b16 %v1500, %v1496
      %v1553 = vpack.c.b16 %v1505, %v1501
      %v1554 = vpack.c.b16 %v1506, %v1502
      %v1555 = vpack.c.b16 %v1507, %v1503
      %v1556 = vpack.c.b16 %v1508, %v1504
      %v1557 = vpack.c.b16 %v1513, %v1509
      %v1558 = vpack.c.b16 %v1514, %v1510
      %v1559 = vpack.c.b16 %v1515, %v1511
      %v1560 = vpack.c.b16 %v1516, %v1512
      %v1561 = vpack.c.b16 %v1521, %v1517
      %v1562 = vpack.c.b16 %v1522, %v1518
      %v1563 = vpack.c.b16 %v1523, %v1519
      %v1564 = vpack.c.b16 %v1524, %v1520
      %v1565 = vpack.c.b16 %v1529, %v1525
      %v1566 = vpack.c.b16 %v1530, %v1526
      %v1567 = vpack.c.b16 %v1531, %v1527
      %v1568 = vpack.c.b16 %v1532, %v1528
      %v1569 = vpack.c.b16 %v1537, %v1533
      %v1570 = vpack.c.b16 %v1538, %v1534
      %v1571 = vpack.c.b16 %v1539, %v1535
      %v1572 = vpack.c.b16 %v1540, %v1536
      %1605 = vmatprep.subr.bf16.mxu0 %v1570
      %1606 = vmatpush1.bf16.msra.mxu0 %v1569
      %1607 = vmatprep.subr.bf16.mxu0 %v1566
      %1608 = vmatpush1.bf16.msra.mxu0 %v1565
      %1609 = vmatprep.subr.bf16.mxu0 %v1562
      %1610 = vmatpush1.bf16.msra.mxu0 %v1561
      %1611 = vmatprep.subr.bf16.mxu0 %v1558
      %1612 = vmatpush1.bf16.msra.mxu0 %v1557
      %1613 = vmatprep.subr.bf16.mxu0 %v1554
      %1614 = vmatpush1.bf16.msra.mxu0 %v1553
      %1615 = vmatprep.subr.bf16.mxu0 %v1550
      %1616 = vmatpush1.bf16.msra.mxu0 %v1549
      %1617 = vmatprep.subr.bf16.mxu0 %v1546
      %1618 = vmatpush1.bf16.msra.mxu0 %v1545
      %1619 = vmatprep.subr.bf16.mxu0 %v1542
      %1620 = vmatpush1.bf16.msra.mxu0 %v1541
      %1621 = vmatprep.subr.bf16.mxu0 0
      %1622 = vmatpush2.bf16.msra.mxu0 0
      %1623 = vmatprep.subr.bf16.mxu0 0
      %1624 = vmatpush2.bf16.msra.mxu0 0
      %1625 = vmatprep.subr.bf16.mxu0 0
      %1626 = vmatpush2.bf16.msra.mxu0 0
      %1627 = vmatprep.subr.bf16.mxu0 0
      %1628 = vmatpush2.bf16.msra.mxu0 0
      %1629 = vmatprep.subr.bf16.mxu0 0
      %1630 = vmatpush2.bf16.msra.mxu0 0
      %1631 = vmatprep.subr.bf16.mxu0 0
      %1632 = vmatpush2.bf16.msra.mxu0 0
      %1633 = vmatprep.subr.bf16.mxu0 0
      %1634 = vmatpush2.bf16.msra.mxu0 0
      %1635 = vmatprep.subr.bf16.mxu0 0
      %1636 = vmatpush2.bf16.msra.mxu0 0
      %1637 = vmatprep.mubr.bf16.mxu0 0
      %1638 = vmatmul.mubr.bf16.gmra.mxu0 %v1390
      %v1639 = vpop.f32.mrf.mxu0
      %v1640 = vadd.f32 %v1428, %v1639
      %v1641 = vpop.f32.mrf.mxu0
      %v1642 = vadd.f32 %v1432, %v1641
      %v1643 = vpop.f32.mrf.mxu0
      %v1644 = vpop.f32.mrf.mxu0
      %1645 = vdwg.mxu0
      %1646 = vmatprep.subr.bf16.mxu0 %v1572
      %1647 = vmatpush1.bf16.msra.mxu0 %v1571
      %1648 = vmatprep.subr.bf16.mxu0 %v1568
      %1649 = vmatpush1.bf16.msra.mxu0 %v1567
      %1650 = vmatprep.subr.bf16.mxu0 %v1564
      %1651 = vmatpush1.bf16.msra.mxu0 %v1563
      %1652 = vmatprep.subr.bf16.mxu0 %v1560
      %1653 = vmatpush1.bf16.msra.mxu0 %v1559
      %1654 = vmatprep.subr.bf16.mxu0 %v1556
      %1655 = vmatpush1.bf16.msra.mxu0 %v1555
      %1656 = vmatprep.subr.bf16.mxu0 %v1552
      %1657 = vmatpush1.bf16.msra.mxu0 %v1551
      %1658 = vmatprep.subr.bf16.mxu0 %v1548
      %1659 = vmatpush1.bf16.msra.mxu0 %v1547
      %1660 = vmatprep.subr.bf16.mxu0 %v1544
      %1661 = vmatpush1.bf16.msra.mxu0 %v1543
      %1662 = vmatprep.subr.bf16.mxu0 0
      %1663 = vmatpush2.bf16.msra.mxu0 0
      %1664 = vmatprep.subr.bf16.mxu0 0
      %1665 = vmatpush2.bf16.msra.mxu0 0
      %1666 = vmatprep.subr.bf16.mxu0 0
      %1667 = vmatpush2.bf16.msra.mxu0 0
      %1668 = vmatprep.subr.bf16.mxu0 0
      %1669 = vmatpush2.bf16.msra.mxu0 0
      %1670 = vmatprep.subr.bf16.mxu0 0
      %1671 = vmatpush2.bf16.msra.mxu0 0
      %1672 = vmatprep.subr.bf16.mxu0 0
      %1673 = vmatpush2.bf16.msra.mxu0 0
      %1674 = vmatprep.subr.bf16.mxu0 0
      %1675 = vmatpush2.bf16.msra.mxu0 0
      %1676 = vmatprep.subr.bf16.mxu0 0
      %1677 = vmatpush2.bf16.msra.mxu0 0
      %1678 = vmatprep.mubr.bf16.mxu0 0
      %1679 = vmatmul.mubr.bf16.gmra.mxu0 %v1390
      %v1680 = vpop.f32.mrf.mxu0
      %v1681 = vadd.f32 %v1436, %v1680
      %v1682 = vpop.f32.mrf.mxu0
      %v1683 = vadd.f32 %v1440, %v1682
      %v1684 = vpop.f32.mrf.mxu0
      %v1685 = vpop.f32.mrf.mxu0
      %1686 = vdwg.mxu0
      %v1687 = vmul.f32 %v1640, 0.5
      %v1688 = vmul.f32 %v1642, 0.5
      %v1689 = vmul.f32 %v1681, 0.5
      %v1690 = vmul.f32 %v1683, 0.5
      %v1691 = vmul.f32 %v1640, 0.044715
      %v1692 = vmul.f32 %v1642, 0.044715
      %v1693 = vmul.f32 %v1681, 0.044715
      %v1694 = vmul.f32 %v1683, 0.044715
      %v1695 = vmul.f32 %v1691, %v1640
      %v1696 = vmul.f32 %v1692, %v1642
      %v1697 = vmul.f32 %v1693, %v1681
      %v1698 = vmul.f32 %v1694, %v1683
      %v1699 = vmul.f32 %v1695, %v1640
      %v1700 = vmul.f32 %v1696, %v1642
      %v1701 = vmul.f32 %v1697, %v1681
      %v1702 = vmul.f32 %v1698, %v1683
      %v1703 = vadd.f32 %v1640, %v1699
      %v1704 = vadd.f32 %v1642, %v1700
      %v1705 = vadd.f32 %v1681, %v1701
      %v1706 = vadd.f32 %v1683, %v1702
      %v1707 = vmul.f32 %v1703, 0.7978846
      %v1708 = vmul.f32 %v1704, 0.7978846
      %v1709 = vmul.f32 %v1705, 0.7978846
      %v1710 = vmul.f32 %v1706, 0.7978846
      %v1711 = vtanh.pop %v1707
      %v1712 = vtanh.pop %v1708
      %v1713 = vtanh.pop %v1709
      %v1714 = vtanh.pop %v1710
      %v1715 = vadd.f32 %v1711, 1.0
      %v1716 = vadd.f32 %v1712, 1.0
      %v1717 = vadd.f32 %v1713, 1.0
      %v1718 = vadd.f32 %v1714, 1.0
      %v1719 = vmul.f32 %v1687, %v1715
      %v1720 = vmul.f32 %v1688, %v1716
      %v1721 = vmul.f32 %v1689, %v1717
      %v1722 = vmul.f32 %v1690, %v1718
      %v1723 = vpack.c.bf16 %v1719, %v1719
      %v1724 = vpack.c.bf16 %v1720, %v1720
      %v1725 = vpack.c.bf16 %v1721, %v1721
      %v1726 = vpack.c.bf16 %v1722, %v1722
      %v1727 = vld [vmem:[%s11] sm:$0xf]
      %v1728 = vld [vmem:[%s11 + $0x4] sm:$0xf]
      %v1729 = vld [vmem:[%s11 + $0x8] sm:$0xf]
      %v1730 = vld [vmem:[%s11 + $0xc] sm:$0xf]
      %v1731 = vld [vmem:[%s11 + $0x10] sm:$0xf]
      %v1732 = vld [vmem:[%s11 + $0x14] sm:$0xf]
      %v1733 = vld [vmem:[%s11 + $0x18] sm:$0xf]
      %v1734 = vld [vmem:[%s11 + $0x1c] sm:$0xf]
      %v1735 = vld [vmem:[%s11 + $0x20] sm:$0xf]
      %v1736 = vld [vmem:[%s11 + $0x24] sm:$0xf]
      %v1737 = vld [vmem:[%s11 + $0x28] sm:$0xf]
      %v1738 = vld [vmem:[%s11 + $0x2c] sm:$0xf]
      %v1739 = vld [vmem:[%s11 + $0x30] sm:$0xf]
      %v1740 = vld [vmem:[%s11 + $0x34] sm:$0xf]
      %v1741 = vld [vmem:[%s11 + $0x38] sm:$0xf]
      %v1742 = vld [vmem:[%s11 + $0x3c] sm:$0xf]
      %v1743 = vld [vmem:[%s11 + $0x40] sm:$0xf]
      %v1744 = vld [vmem:[%s11 + $0x44] sm:$0xf]
      %v1745 = vld [vmem:[%s11 + $0x48] sm:$0xf]
      %v1746 = vld [vmem:[%s11 + $0x4c] sm:$0xf]
      %v1747 = vld [vmem:[%s11 + $0x50] sm:$0xf]
      %v1748 = vld [vmem:[%s11 + $0x54] sm:$0xf]
      %v1749 = vld [vmem:[%s11 + $0x58] sm:$0xf]
      %v1750 = vld [vmem:[%s11 + $0x5c] sm:$0xf]
      %v1751 = vld [vmem:[%s11 + $0x60] sm:$0xf]
      %v1752 = vld [vmem:[%s11 + $0x64] sm:$0xf]
      %v1753 = vld [vmem:[%s11 + $0x68] sm:$0xf]
      %v1754 = vld [vmem:[%s11 + $0x6c] sm:$0xf]
      %v1755 = vld [vmem:[%s11 + $0x70] sm:$0xf]
      %v1756 = vld [vmem:[%s11 + $0x74] sm:$0xf]
      %v1757 = vld [vmem:[%s11 + $0x78] sm:$0xf]
      %v1758 = vld [vmem:[%s11 + $0x7c] sm:$0xf]
      %v1759 = vld [vmem:[%s11 + $0x80] sm:$0xf]
      %v1760 = vld [vmem:[%s11 + $0x84] sm:$0xf]
      %v1761 = vld [vmem:[%s11 + $0x88] sm:$0xf]
      %v1762 = vld [vmem:[%s11 + $0x8c] sm:$0xf]
      %v1763 = vld [vmem:[%s11 + $0x90] sm:$0xf]
      %v1764 = vld [vmem:[%s11 + $0x94] sm:$0xf]
      %v1765 = vld [vmem:[%s11 + $0x98] sm:$0xf]
      %v1766 = vld [vmem:[%s11 + $0x9c] sm:$0xf]
      %v1767 = vld [vmem:[%s11 + $0xa0] sm:$0xf]
      %v1768 = vld [vmem:[%s11 + $0xa4] sm:$0xf]
      %v1769 = vld [vmem:[%s11 + $0xa8] sm:$0xf]
      %v1770 = vld [vmem:[%s11 + $0xac] sm:$0xf]
      %v1771 = vld [vmem:[%s11 + $0xb0] sm:$0xf]
      %v1772 = vld [vmem:[%s11 + $0xb4] sm:$0xf]
      %v1773 = vld [vmem:[%s11 + $0xb8] sm:$0xf]
      %v1774 = vld [vmem:[%s11 + $0xbc] sm:$0xf]
      %v1775 = vld [vmem:[%s11 + $0xc0] sm:$0xf]
      %v1776 = vld [vmem:[%s11 + $0xc4] sm:$0xf]
      %v1777 = vld [vmem:[%s11 + $0xc8] sm:$0xf]
      %v1778 = vld [vmem:[%s11 + $0xcc] sm:$0xf]
      %v1779 = vld [vmem:[%s11 + $0xd0] sm:$0xf]
      %v1780 = vld [vmem:[%s11 + $0xd4] sm:$0xf]
      %v1781 = vld [vmem:[%s11 + $0xd8] sm:$0xf]
      %v1782 = vld [vmem:[%s11 + $0xdc] sm:$0xf]
      %v1783 = vld [vmem:[%s11 + $0xe0] sm:$0xf]
      %v1784 = vld [vmem:[%s11 + $0xe4] sm:$0xf]
      %v1785 = vld [vmem:[%s11 + $0xe8] sm:$0xf]
      %v1786 = vld [vmem:[%s11 + $0xec] sm:$0xf]
      %v1787 = vld [vmem:[%s11 + $0xf0] sm:$0xf]
      %v1788 = vld [vmem:[%s11 + $0xf4] sm:$0xf]
      %v1789 = vld [vmem:[%s11 + $0xf8] sm:$0xf]
      %v1790 = vld [vmem:[%s11 + $0xfc] sm:$0xf]
      %v1791 = vld [vmem:[%s12] sm:$0x1]
      %v1793 = vlaneseq
      %v1794 = vshrl.u32 %v1793, 7
      %v1795 = vsub.s32 0, %v1794
      %v1796 = vrot.slane %v1791, %v1795
      %v1862 = vunpack.c.l.b16 %v1727
      %v1863 = vunpack.c.l.b16 %v1728
      %v1864 = vunpack.c.l.b16 %v1729
      %v1865 = vunpack.c.l.b16 %v1730
      %v1866 = vunpack.c.l.b16 %v1731
      %v1867 = vunpack.c.l.b16 %v1732
      %v1868 = vunpack.c.l.b16 %v1733
      %v1869 = vunpack.c.l.b16 %v1734
      %v1870 = vunpack.c.l.b16 %v1735
      %v1871 = vunpack.c.l.b16 %v1736
      %v1872 = vunpack.c.l.b16 %v1737
      %v1873 = vunpack.c.l.b16 %v1738
      %v1874 = vunpack.c.l.b16 %v1739
      %v1875 = vunpack.c.l.b16 %v1740
      %v1876 = vunpack.c.l.b16 %v1741
      %v1877 = vunpack.c.l.b16 %v1742
      %v1878 = vunpack.c.l.b16 %v1743
      %v1879 = vunpack.c.l.b16 %v1744
      %v1880 = vunpack.c.l.b16 %v1745
      %v1881 = vunpack.c.l.b16 %v1746
      %v1882 = vunpack.c.l.b16 %v1747
      %v1883 = vunpack.c.l.b16 %v1748
      %v1884 = vunpack.c.l.b16 %v1749
      %v1885 = vunpack.c.l.b16 %v1750
      %v1886 = vunpack.c.l.b16 %v1751
      %v1887 = vunpack.c.l.b16 %v1752
      %v1888 = vunpack.c.l.b16 %v1753
      %v1889 = vunpack.c.l.b16 %v1754
      %v1890 = vunpack.c.l.b16 %v1755
      %v1891 = vunpack.c.l.b16 %v1756
      %v1892 = vunpack.c.l.b16 %v1757
      %v1893 = vunpack.c.l.b16 %v1758
      %v1894 = vunpack.c.l.b16 %v1759
      %v1895 = vunpack.c.l.b16 %v1760
      %v1896 = vunpack.c.l.b16 %v1761
      %v1897 = vunpack.c.l.b16 %v1762
      %v1898 = vunpack.c.l.b16 %v1763
      %v1899 = vunpack.c.l.b16 %v1764
      %v1900 = vunpack.c.l.b16 %v1765
      %v1901 = vunpack.c.l.b16 %v1766
      %v1902 = vunpack.c.l.b16 %v1767
      %v1903 = vunpack.c.l.b16 %v1768
      %v1904 = vunpack.c.l.b16 %v1769
      %v1905 = vunpack.c.l.b16 %v1770
      %v1906 = vunpack.c.l.b16 %v1771
      %v1907 = vunpack.c.l.b16 %v1772
      %v1908 = vunpack.c.l.b16 %v1773
      %v1909 = vunpack.c.l.b16 %v1774
      %v1910 = vunpack.c.l.b16 %v1775
      %v1911 = vunpack.c.l.b16 %v1776
      %v1912 = vunpack.c.l.b16 %v1777
      %v1913 = vunpack.c.l.b16 %v1778
      %v1914 = vunpack.c.l.b16 %v1779
      %v1915 = vunpack.c.l.b16 %v1780
      %v1916 = vunpack.c.l.b16 %v1781
      %v1917 = vunpack.c.l.b16 %v1782
      %v1918 = vunpack.c.l.b16 %v1783
      %v1919 = vunpack.c.l.b16 %v1784
      %v1920 = vunpack.c.l.b16 %v1785
      %v1921 = vunpack.c.l.b16 %v1786
      %v1922 = vunpack.c.l.b16 %v1787
      %v1923 = vunpack.c.l.b16 %v1788
      %v1924 = vunpack.c.l.b16 %v1789
      %v1925 = vunpack.c.l.b16 %v1790
      %v1926 = vpack.c.b16 %v1863, %v1862
      %v1927 = vpack.c.b16 %v1865, %v1864
      %v1928 = vpack.c.b16 %v1867, %v1866
      %v1929 = vpack.c.b16 %v1869, %v1868
      %v1930 = vpack.c.b16 %v1871, %v1870
      %v1931 = vpack.c.b16 %v1873, %v1872
      %v1932 = vpack.c.b16 %v1875, %v1874
      %v1933 = vpack.c.b16 %v1877, %v1876
      %v1934 = vpack.c.b16 %v1879, %v1878
      %v1935 = vpack.c.b16 %v1881, %v1880
      %v1936 = vpack.c.b16 %v1883, %v1882
      %v1937 = vpack.c.b16 %v1885, %v1884
      %v1938 = vpack.c.b16 %v1887, %v1886
      %v1939 = vpack.c.b16 %v1889, %v1888
      %v1940 = vpack.c.b16 %v1891, %v1890
      %v1941 = vpack.c.b16 %v1893, %v1892
      %v1942 = vpack.c.b16 %v1895, %v1894
      %v1943 = vpack.c.b16 %v1897, %v1896
      %v1944 = vpack.c.b16 %v1899, %v1898
      %v1945 = vpack.c.b16 %v1901, %v1900
      %v1946 = vpack.c.b16 %v1903, %v1902
      %v1947 = vpack.c.b16 %v1905, %v1904
      %v1948 = vpack.c.b16 %v1907, %v1906
      %v1949 = vpack.c.b16 %v1909, %v1908
      %v1950 = vpack.c.b16 %v1911, %v1910
      %v1951 = vpack.c.b16 %v1913, %v1912
      %v1952 = vpack.c.b16 %v1915, %v1914
      %v1953 = vpack.c.b16 %v1917, %v1916
      %v1954 = vpack.c.b16 %v1919, %v1918
      %v1955 = vpack.c.b16 %v1921, %v1920
      %v1956 = vpack.c.b16 %v1923, %v1922
      %v1957 = vpack.c.b16 %v1925, %v1924
      %1990 = vmatprep.subr.bf16.mxu0 0
      %1991 = vmatpush1.bf16.msra.mxu0 %v1933
      %1992 = vmatprep.subr.bf16.mxu0 0
      %1993 = vmatpush1.bf16.msra.mxu0 %v1932
      %1994 = vmatprep.subr.bf16.mxu0 0
      %1995 = vmatpush1.bf16.msra.mxu0 %v1931
      %1996 = vmatprep.subr.bf16.mxu0 0
      %1997 = vmatpush1.bf16.msra.mxu0 %v1930
      %1998 = vmatprep.subr.bf16.mxu0 0
      %1999 = vmatpush1.bf16.msra.mxu0 %v1929
      %2000 = vmatprep.subr.bf16.mxu0 0
      %2001 = vmatpush1.bf16.msra.mxu0 %v1928
      %2002 = vmatprep.subr.bf16.mxu0 0
      %2003 = vmatpush1.bf16.msra.mxu0 %v1927
      %2004 = vmatprep.subr.bf16.mxu0 0
      %2005 = vmatpush1.bf16.msra.mxu0 %v1926
      %2006 = vmatprep.subr.bf16.mxu0 0
      %2007 = vmatpush2.bf16.msra.mxu0 %v1941
      %2008 = vmatprep.subr.bf16.mxu0 0
      %2009 = vmatpush2.bf16.msra.mxu0 %v1940
      %2010 = vmatprep.subr.bf16.mxu0 0
      %2011 = vmatpush2.bf16.msra.mxu0 %v1939
      %2012 = vmatprep.subr.bf16.mxu0 0
      %2013 = vmatpush2.bf16.msra.mxu0 %v1938
      %2014 = vmatprep.subr.bf16.mxu0 0
      %2015 = vmatpush2.bf16.msra.mxu0 %v1937
      %2016 = vmatprep.subr.bf16.mxu0 0
      %2017 = vmatpush2.bf16.msra.mxu0 %v1936
      %2018 = vmatprep.subr.bf16.mxu0 0
      %2019 = vmatpush2.bf16.msra.mxu0 %v1935
      %2020 = vmatprep.subr.bf16.mxu0 0
      %2021 = vmatpush2.bf16.msra.mxu0 %v1934
      %2022 = vmatprep.mubr.bf16.mxu0 %v1724
      %2023 = vmatmul.mubr.bf16.gmra.mxu0 %v1723
      %v2024 = vpop.f32.mrf.mxu0
      %v2025 = vadd.f32 %v1796, %v2024
      %v2026 = vpop.f32.mrf.mxu0
      %v2027 = vpop.f32.mrf.mxu0
      %v2028 = vpop.f32.mrf.mxu0
      %2029 = vdwg.mxu0
      %2030 = vmatprep.subr.bf16.mxu0 0
      %2031 = vmatpush1.bf16.msra.mxu0 %v1949
      %2032 = vmatprep.subr.bf16.mxu0 0
      %2033 = vmatpush1.bf16.msra.mxu0 %v1948
      %2034 = vmatprep.subr.bf16.mxu0 0
      %2035 = vmatpush1.bf16.msra.mxu0 %v1947
      %2036 = vmatprep.subr.bf16.mxu0 0
      %2037 = vmatpush1.bf16.msra.mxu0 %v1946
      %2038 = vmatprep.subr.bf16.mxu0 0
      %2039 = vmatpush1.bf16.msra.mxu0 %v1945
      %2040 = vmatprep.subr.bf16.mxu0 0
      %2041 = vmatpush1.bf16.msra.mxu0 %v1944
      %2042 = vmatprep.subr.bf16.mxu0 0
      %2043 = vmatpush1.bf16.msra.mxu0 %v1943
      %2044 = vmatprep.subr.bf16.mxu0 0
      %2045 = vmatpush1.bf16.msra.mxu0 %v1942
      %2046 = vmatprep.subr.bf16.mxu0 0
      %2047 = vmatpush2.bf16.msra.mxu0 %v1957
      %2048 = vmatprep.subr.bf16.mxu0 0
      %2049 = vmatpush2.bf16.msra.mxu0 %v1956
      %2050 = vmatprep.subr.bf16.mxu0 0
      %2051 = vmatpush2.bf16.msra.mxu0 %v1955
      %2052 = vmatprep.subr.bf16.mxu0 0
      %2053 = vmatpush2.bf16.msra.mxu0 %v1954
      %2054 = vmatprep.subr.bf16.mxu0 0
      %2055 = vmatpush2.bf16.msra.mxu0 %v1953
      %2056 = vmatprep.subr.bf16.mxu0 0
      %2057 = vmatpush2.bf16.msra.mxu0 %v1952
      %2058 = vmatprep.subr.bf16.mxu0 0
      %2059 = vmatpush2.bf16.msra.mxu0 %v1951
      %2060 = vmatprep.subr.bf16.mxu0 0
      %2061 = vmatpush2.bf16.msra.mxu0 %v1950
      %2062 = vmatprep.mubr.bf16.mxu0 %v1726
      %2063 = vmatmul.mubr.bf16.gmra.mxu0 %v1725
      %v2064 = vpop.f32.mrf.mxu0
      %v2065 = vadd.f32 %v2025, %v2064
      %v2066 = vpop.f32.mrf.mxu0
      %v2067 = vpop.f32.mrf.mxu0
      %v2068 = vpop.f32.mrf.mxu0
      %2069 = vdwg.mxu0
      %v2070 = vadd.f32 %v1360, %v2065
      %v2071 = vpack.c.bf16 %v2070, %v2070
      %2072 = vst [vmem:[%s506] sm:$0x3] %v2071
      %p2073 = scmp.lt.s32.totalorder %s26, 1
      %s2074 = scalar_select %p2073, %s26, 1
      %s2075 = smul.addr %s2074, 2
      %s2076 = scalar_lea.vmem %s15, %s2075
      // Predicated region
      $region81: #{point_transformer_forward.6} parent=79 // pred_check
        %p2077 = pneg %p369
      $region82: #{point_transformer_forward.6} parent=79 // pred_check_branch
        %2079 = sbr.rel (%p2077) target = $region84
      $region83: #{point_transformer_forward.6} parent=79 // pred_region
        _
      $region84: #{point_transformer_forward.6} parent=79 // pred_fallthru
        _
    $region80: #{point_transformer_forward.6} parent=5 // pred_fallthru
      _
    %p2080 = scmp.le.s32.totalorder 2, %s21
    // Predicated region
    $region85: #{point_transformer_forward.6} parent=5 // pred_check
      %p2081 = pneg %p2080
    $region86: #{point_transformer_forward.6} parent=5 // pred_check_branch
      %2083 = sbr.rel (%p2081) target = $region88
    $region87: #{point_transformer_forward.6} parent=5 // pred_region
      %s2084 = ssub.s32 %s21, 2
      // Predicated region
      $region89: #{point_transformer_forward.6} parent=87 // pred_check
        %p2085 = pneg %p375
      $region90: #{point_transformer_forward.6} parent=87 // pred_check_branch
        %2087 = sbr.rel (%p2085) target = $region92
      $region91: #{point_transformer_forward.6} parent=87 // pred_region
        %p2088 = scmp.lt.s32.totalorder %s27, 1
        %s2089 = scalar_select %p2088, %s27, 1
        %s2090 = smul.addr %s2089, 2
        %s2091 = scalar_lea.vmem %s15, %s2090
      $region92: #{point_transformer_forward.6} parent=87 // pred_fallthru
        _
    $region88: #{point_transformer_forward.6} parent=5 // pred_fallthru
      _
  $region6: #{point_transformer_forward.6} parent=0 // loop_footer
    %s25 = sadd.s32 1, %s21
  $region7: #{point_transformer_forward.6} parent=0 // loop_footer_branch
    %20 = sbr.rel target = $region3
  $region8: #{point_transformer_forward.6} parent=0 // loop_exit
    _

// kernel: point_transformer_forward.7
$region0: #{point_transformer_forward.7}
  #allocation0 [shape = 'u32[]', space=smem, size = 0x4, offset = 0x4, fixed_abs, tag = 'smem constant byte address 0x4 - core index']
  #allocation1 [shape = 'u32[144,128]{1,0:T(1,128)}', space=vmem, size = 0x12000, scoped, tag = 'internal scratch']
  %s0 = inlined_call_operand.vmem [shape: bf16[2,4,128], index: 0, kind: input, shape index: {}]
  %s1 = inlined_call_operand.vmem [shape: bf16[2,4,128], index: 1, kind: input, shape index: {}]
  %s2 = inlined_call_operand.vmem [shape: f32[1,128], index: 2, kind: input, shape index: {}]
  %s3 = inlined_call_operand.vmem [shape: f32[1,128], index: 3, kind: input, shape index: {}]
  %s4 = inlined_call_operand.vmem [shape: bf16[128,384], index: 4, kind: input, shape index: {}]
  %s5 = inlined_call_operand.vmem [shape: bf16[128,128], index: 5, kind: input, shape index: {}]
  %s6 = inlined_call_operand.vmem [shape: f32[1,128], index: 6, kind: input, shape index: {}]
  %s7 = inlined_call_operand.vmem [shape: f32[1,128], index: 7, kind: input, shape index: {}]
  %s8 = inlined_call_operand.vmem [shape: f32[1,128], index: 8, kind: input, shape index: {}]
  %s9 = inlined_call_operand.vmem [shape: bf16[128,512], index: 9, kind: input, shape index: {}]
  %s10 = inlined_call_operand.vmem [shape: f32[1,512], index: 10, kind: input, shape index: {}]
  %s11 = inlined_call_operand.vmem [shape: bf16[512,128], index: 11, kind: input, shape index: {}]
  %s12 = inlined_call_operand.vmem [shape: f32[1,128], index: 12, kind: input, shape index: {}]
  %s13 = inlined_call_operand.vmem [shape: f32[1,128], index: 13, kind: input, shape index: {}]
  %s14 = inlined_call_operand.vmem [shape: f32[1,128], index: 14, kind: input, shape index: {}]
  %s15 = inlined_call_operand.hbm [shape: f32[2,4,128], index: 15, kind: output, shape index: {}]
  %s16 = sld [smem:[#allocation0]]
  $region93: #{point_transformer_forward.7} parent=0
    _
  %s18 = ssub.s32 1, %s16
  %s19 = scalar_select 0, %s18, %s16
  $region1: #{point_transformer_forward.7} parent=0
    #allocation2 [shape = 'u8[4096]{0}', space=vmem, size = 0x1000, scoped, tag = 'output window, operand 0']
    #allocation3 [shape = 's32[2]{0}', space=sflag, size = 0x8, scoped, tag = 'scoped memory for point_transformer_forward.7']
    %20 = vsyncpa [#allocation3], 0
    %s21 = scalar_lea.sflag [#allocation3], 1
    %22 = vsyncpa %s21, 0
    loop: start=0, step=1, limit=4
    $region2: #{point_transformer_forward.7} parent=1 // loop_pre_header
      _
    $region3: #{point_transformer_forward.7} parent=1 // loop_header
      %s24 = sphi 0, %s28
      %p25 = scmp.ge.s32.totalorder %s24, 4
      %s34 = sphi 0, %s36
      %s37 = sphi 0, %s34
      %s38 = sphi 0, %s37
      %s54 = sphi 0, %s38
      %s60 = sphi 0, %s62
      %s63 = sphi 0, %s60
      %s64 = sphi 0, %s63
      %s80 = sphi 0, %s64
      %s84 = sphi 0, %s84
      %s86 = sphi 0, %s84
      %s87 = sphi 0, %s86
      %s101 = sphi 0, %s87
      %s105 = sphi 0, %s105
      %s107 = sphi 0, %s105
      %s108 = sphi 0, %s107
      %s122 = sphi 0, %s108
      %s126 = sphi 0, %s126
      %s128 = sphi 0, %s126
      %s129 = sphi 0, %s128
      %s143 = sphi 0, %s129
      %s147 = sphi 0, %s147
      %s149 = sphi 0, %s147
      %s150 = sphi 0, %s149
      %s164 = sphi 0, %s150
      %s168 = sphi 0, %s168
      %s170 = sphi 0, %s168
      %s171 = sphi 0, %s170
      %s185 = sphi 0, %s171
      %s189 = sphi 0, %s189
      %s191 = sphi 0, %s189
      %s192 = sphi 0, %s191
      %s206 = sphi 0, %s192
      %s210 = sphi 0, %s210
      %s212 = sphi 0, %s210
      %s213 = sphi 0, %s212
      %s227 = sphi 0, %s213
      %s231 = sphi 0, %s231
      %s233 = sphi 0, %s231
      %s234 = sphi 0, %s233
      %s248 = sphi 0, %s234
      %s252 = sphi 0, %s252
      %s254 = sphi 0, %s252
      %s255 = sphi 0, %s254
      %s269 = sphi 0, %s255
      %s273 = sphi 0, %s273
      %s275 = sphi 0, %s273
      %s276 = sphi 0, %s275
      %s290 = sphi 0, %s276
      %s294 = sphi 0, %s294
      %s296 = sphi 0, %s294
      %s297 = sphi 0, %s296
      %s311 = sphi 0, %s297
      %s315 = sphi 0, %s315
      %s317 = sphi 0, %s315
      %s318 = sphi 0, %s317
      %s332 = sphi 0, %s318
      %s336 = sphi 0, %s336
      %s338 = sphi 0, %s336
      %s339 = sphi 0, %s338
      %s353 = sphi 0, %s339
      %s359 = sphi 0, %s361
      %s362 = sphi 0, %s359
      %s363 = sphi 0, %s362
      %s379 = sphi 0, %s363
    $region4: #{point_transformer_forward.7} parent=1 // loop_header_branch
      %27 = sbr.rel (%p25) target = $region8
    $region5: #{point_transformer_forward.7} parent=1 // loop_body
      %s29 = ssub.s32 %s24, 1
      %s30 = ssub.s32 %s24, 2
      %s31 = sadd.s32 %s24, 1
      %s32 = ssub.s32 %s24, %s31
      %p33 = scmp.eq.s32.totalorder %s32, 0
      %s35 = sadd.s32 %s34, 1
      %s36 = scalar_select %p33, %s34, %s35
      %p39 = pneg %p33
      %p40 = scmp.eq.s32.totalorder %s24, 1
      %p41 = por %p39, %p40
      %p42 = scmp.ne.s32.totalorder %s34, %s37
      %p43 = scmp.eq.s32.totalorder %s24, 0
      %p44 = por %p42, %p43
      %p45 = scmp.ne.s32.totalorder %s34, %s37
      %p46 = scmp.eq.s32.totalorder %s29, 1
      %p47 = por %p45, %p46
      %p48 = scmp.ne.s32.totalorder %s37, %s38
      %p49 = scmp.eq.s32.totalorder %s29, 0
      %p50 = por %p48, %p49
      %p51 = scmp.ne.s32.totalorder %s37, %s38
      %p52 = scmp.eq.s32.totalorder %s30, 1
      %p53 = por %p51, %p52
      %p55 = scmp.ne.s32.totalorder %s38, %s54
      %p56 = scmp.eq.s32.totalorder %s30, 0
      %p57 = por %p55, %p56
      %s58 = ssub.s32 %s24, %s31
      %p59 = scmp.eq.s32.totalorder %s58, 0
      %s61 = sadd.s32 %s60, 1
      %s62 = scalar_select %p59, %s60, %s61
      %p65 = pneg %p59
      %p66 = scmp.eq.s32.totalorder %s24, 1
      %p67 = por %p65, %p66
      %p68 = scmp.ne.s32.totalorder %s60, %s63
      %p69 = scmp.eq.s32.totalorder %s24, 0
      %p70 = por %p68, %p69
      %p71 = scmp.ne.s32.totalorder %s60, %s63
      %p72 = scmp.eq.s32.totalorder %s29, 1
      %p73 = por %p71, %p72
      %p74 = scmp.ne.s32.totalorder %s63, %s64
      %p75 = scmp.eq.s32.totalorder %s29, 0
      %p76 = por %p74, %p75
      %p77 = scmp.ne.s32.totalorder %s63, %s64
      %p78 = scmp.eq.s32.totalorder %s30, 1
      %p79 = por %p77, %p78
      %p81 = scmp.ne.s32.totalorder %s64, %s80
      %p82 = scmp.eq.s32.totalorder %s30, 0
      %p83 = por %p81, %p82
      %s85 = sadd.s32 %s84, 1
      %p88 = scmp.eq.s32.totalorder %s24, 1
      %p89 = scmp.ne.s32.totalorder %s84, %s86
      %p90 = scmp.eq.s32.totalorder %s24, 0
      %p91 = por %p89, %p90
      %p92 = scmp.ne.s32.totalorder %s84, %s86
      %p93 = scmp.eq.s32.totalorder %s29, 1
      %p94 = por %p92, %p93
      %p95 = scmp.ne.s32.totalorder %s86, %s87
      %p96 = scmp.eq.s32.totalorder %s29, 0
      %p97 = por %p95, %p96
      %p98 = scmp.ne.s32.totalorder %s86, %s87
      %p99 = scmp.eq.s32.totalorder %s30, 1
      %p100 = por %p98, %p99
      %p102 = scmp.ne.s32.totalorder %s87, %s101
      %p103 = scmp.eq.s32.totalorder %s30, 0
      %p104 = por %p102, %p103
      %s106 = sadd.s32 %s105, 1
      %p109 = scmp.eq.s32.totalorder %s24, 1
      %p110 = scmp.ne.s32.totalorder %s105, %s107
      %p111 = scmp.eq.s32.totalorder %s24, 0
      %p112 = por %p110, %p111
      %p113 = scmp.ne.s32.totalorder %s105, %s107
      %p114 = scmp.eq.s32.totalorder %s29, 1
      %p115 = por %p113, %p114
      %p116 = scmp.ne.s32.totalorder %s107, %s108
      %p117 = scmp.eq.s32.totalorder %s29, 0
      %p118 = por %p116, %p117
      %p119 = scmp.ne.s32.totalorder %s107, %s108
      %p120 = scmp.eq.s32.totalorder %s30, 1
      %p121 = por %p119, %p120
      %p123 = scmp.ne.s32.totalorder %s108, %s122
      %p124 = scmp.eq.s32.totalorder %s30, 0
      %p125 = por %p123, %p124
      %s127 = sadd.s32 %s126, 1
      %p130 = scmp.eq.s32.totalorder %s24, 1
      %p131 = scmp.ne.s32.totalorder %s126, %s128
      %p132 = scmp.eq.s32.totalorder %s24, 0
      %p133 = por %p131, %p132
      %p134 = scmp.ne.s32.totalorder %s126, %s128
      %p135 = scmp.eq.s32.totalorder %s29, 1
      %p136 = por %p134, %p135
      %p137 = scmp.ne.s32.totalorder %s128, %s129
      %p138 = scmp.eq.s32.totalorder %s29, 0
      %p139 = por %p137, %p138
      %p140 = scmp.ne.s32.totalorder %s128, %s129
      %p141 = scmp.eq.s32.totalorder %s30, 1
      %p142 = por %p140, %p141
      %p144 = scmp.ne.s32.totalorder %s129, %s143
      %p145 = scmp.eq.s32.totalorder %s30, 0
      %p146 = por %p144, %p145
      %s148 = sadd.s32 %s147, 1
      %p151 = scmp.eq.s32.totalorder %s24, 1
      %p152 = scmp.ne.s32.totalorder %s147, %s149
      %p153 = scmp.eq.s32.totalorder %s24, 0
      %p154 = por %p152, %p153
      %p155 = scmp.ne.s32.totalorder %s147, %s149
      %p156 = scmp.eq.s32.totalorder %s29, 1
      %p157 = por %p155, %p156
      %p158 = scmp.ne.s32.totalorder %s149, %s150
      %p159 = scmp.eq.s32.totalorder %s29, 0
      %p160 = por %p158, %p159
      %p161 = scmp.ne.s32.totalorder %s149, %s150
      %p162 = scmp.eq.s32.totalorder %s30, 1
      %p163 = por %p161, %p162
      %p165 = scmp.ne.s32.totalorder %s150, %s164
      %p166 = scmp.eq.s32.totalorder %s30, 0
      %p167 = por %p165, %p166
      %s169 = sadd.s32 %s168, 1
      %p172 = scmp.eq.s32.totalorder %s24, 1
      %p173 = scmp.ne.s32.totalorder %s168, %s170
      %p174 = scmp.eq.s32.totalorder %s24, 0
      %p175 = por %p173, %p174
      %p176 = scmp.ne.s32.totalorder %s168, %s170
      %p177 = scmp.eq.s32.totalorder %s29, 1
      %p178 = por %p176, %p177
      %p179 = scmp.ne.s32.totalorder %s170, %s171
      %p180 = scmp.eq.s32.totalorder %s29, 0
      %p181 = por %p179, %p180
      %p182 = scmp.ne.s32.totalorder %s170, %s171
      %p183 = scmp.eq.s32.totalorder %s30, 1
      %p184 = por %p182, %p183
      %p186 = scmp.ne.s32.totalorder %s171, %s185
      %p187 = scmp.eq.s32.totalorder %s30, 0
      %p188 = por %p186, %p187
      %s190 = sadd.s32 %s189, 1
      %p193 = scmp.eq.s32.totalorder %s24, 1
      %p194 = scmp.ne.s32.totalorder %s189, %s191
      %p195 = scmp.eq.s32.totalorder %s24, 0
      %p196 = por %p194, %p195
      %p197 = scmp.ne.s32.totalorder %s189, %s191
      %p198 = scmp.eq.s32.totalorder %s29, 1
      %p199 = por %p197, %p198
      %p200 = scmp.ne.s32.totalorder %s191, %s192
      %p201 = scmp.eq.s32.totalorder %s29, 0
      %p202 = por %p200, %p201
      %p203 = scmp.ne.s32.totalorder %s191, %s192
      %p204 = scmp.eq.s32.totalorder %s30, 1
      %p205 = por %p203, %p204
      %p207 = scmp.ne.s32.totalorder %s192, %s206
      %p208 = scmp.eq.s32.totalorder %s30, 0
      %p209 = por %p207, %p208
      %s211 = sadd.s32 %s210, 1
      %p214 = scmp.eq.s32.totalorder %s24, 1
      %p215 = scmp.ne.s32.totalorder %s210, %s212
      %p216 = scmp.eq.s32.totalorder %s24, 0
      %p217 = por %p215, %p216
      %p218 = scmp.ne.s32.totalorder %s210, %s212
      %p219 = scmp.eq.s32.totalorder %s29, 1
      %p220 = por %p218, %p219
      %p221 = scmp.ne.s32.totalorder %s212, %s213
      %p222 = scmp.eq.s32.totalorder %s29, 0
      %p223 = por %p221, %p222
      %p224 = scmp.ne.s32.totalorder %s212, %s213
      %p225 = scmp.eq.s32.totalorder %s30, 1
      %p226 = por %p224, %p225
      %p228 = scmp.ne.s32.totalorder %s213, %s227
      %p229 = scmp.eq.s32.totalorder %s30, 0
      %p230 = por %p228, %p229
      %s232 = sadd.s32 %s231, 1
      %p235 = scmp.eq.s32.totalorder %s24, 1
      %p236 = scmp.ne.s32.totalorder %s231, %s233
      %p237 = scmp.eq.s32.totalorder %s24, 0
      %p238 = por %p236, %p237
      %p239 = scmp.ne.s32.totalorder %s231, %s233
      %p240 = scmp.eq.s32.totalorder %s29, 1
      %p241 = por %p239, %p240
      %p242 = scmp.ne.s32.totalorder %s233, %s234
      %p243 = scmp.eq.s32.totalorder %s29, 0
      %p244 = por %p242, %p243
      %p245 = scmp.ne.s32.totalorder %s233, %s234
      %p246 = scmp.eq.s32.totalorder %s30, 1
      %p247 = por %p245, %p246
      %p249 = scmp.ne.s32.totalorder %s234, %s248
      %p250 = scmp.eq.s32.totalorder %s30, 0
      %p251 = por %p249, %p250
      %s253 = sadd.s32 %s252, 1
      %p256 = scmp.eq.s32.totalorder %s24, 1
      %p257 = scmp.ne.s32.totalorder %s252, %s254
      %p258 = scmp.eq.s32.totalorder %s24, 0
      %p259 = por %p257, %p258
      %p260 = scmp.ne.s32.totalorder %s252, %s254
      %p261 = scmp.eq.s32.totalorder %s29, 1
      %p262 = por %p260, %p261
      %p263 = scmp.ne.s32.totalorder %s254, %s255
      %p264 = scmp.eq.s32.totalorder %s29, 0
      %p265 = por %p263, %p264
      %p266 = scmp.ne.s32.totalorder %s254, %s255
      %p267 = scmp.eq.s32.totalorder %s30, 1
      %p268 = por %p266, %p267
      %p270 = scmp.ne.s32.totalorder %s255, %s269
      %p271 = scmp.eq.s32.totalorder %s30, 0
      %p272 = por %p270, %p271
      %s274 = sadd.s32 %s273, 1
      %p277 = scmp.eq.s32.totalorder %s24, 1
      %p278 = scmp.ne.s32.totalorder %s273, %s275
      %p279 = scmp.eq.s32.totalorder %s24, 0
      %p280 = por %p278, %p279
      %p281 = scmp.ne.s32.totalorder %s273, %s275
      %p282 = scmp.eq.s32.totalorder %s29, 1
      %p283 = por %p281, %p282
      %p284 = scmp.ne.s32.totalorder %s275, %s276
      %p285 = scmp.eq.s32.totalorder %s29, 0
      %p286 = por %p284, %p285
      %p287 = scmp.ne.s32.totalorder %s275, %s276
      %p288 = scmp.eq.s32.totalorder %s30, 1
      %p289 = por %p287, %p288
      %p291 = scmp.ne.s32.totalorder %s276, %s290
      %p292 = scmp.eq.s32.totalorder %s30, 0
      %p293 = por %p291, %p292
      %s295 = sadd.s32 %s294, 1
      %p298 = scmp.eq.s32.totalorder %s24, 1
      %p299 = scmp.ne.s32.totalorder %s294, %s296
      %p300 = scmp.eq.s32.totalorder %s24, 0
      %p301 = por %p299, %p300
      %p302 = scmp.ne.s32.totalorder %s294, %s296
      %p303 = scmp.eq.s32.totalorder %s29, 1
      %p304 = por %p302, %p303
      %p305 = scmp.ne.s32.totalorder %s296, %s297
      %p306 = scmp.eq.s32.totalorder %s29, 0
      %p307 = por %p305, %p306
      %p308 = scmp.ne.s32.totalorder %s296, %s297
      %p309 = scmp.eq.s32.totalorder %s30, 1
      %p310 = por %p308, %p309
      %p312 = scmp.ne.s32.totalorder %s297, %s311
      %p313 = scmp.eq.s32.totalorder %s30, 0
      %p314 = por %p312, %p313
      %s316 = sadd.s32 %s315, 1
      %p319 = scmp.eq.s32.totalorder %s24, 1
      %p320 = scmp.ne.s32.totalorder %s315, %s317
      %p321 = scmp.eq.s32.totalorder %s24, 0
      %p322 = por %p320, %p321
      %p323 = scmp.ne.s32.totalorder %s315, %s317
      %p324 = scmp.eq.s32.totalorder %s29, 1
      %p325 = por %p323, %p324
      %p326 = scmp.ne.s32.totalorder %s317, %s318
      %p327 = scmp.eq.s32.totalorder %s29, 0
      %p328 = por %p326, %p327
      %p329 = scmp.ne.s32.totalorder %s317, %s318
      %p330 = scmp.eq.s32.totalorder %s30, 1
      %p331 = por %p329, %p330
      %p333 = scmp.ne.s32.totalorder %s318, %s332
      %p334 = scmp.eq.s32.totalorder %s30, 0
      %p335 = por %p333, %p334
      %s337 = sadd.s32 %s336, 1
      %p340 = scmp.eq.s32.totalorder %s24, 1
      %p341 = scmp.ne.s32.totalorder %s336, %s338
      %p342 = scmp.eq.s32.totalorder %s24, 0
      %p343 = por %p341, %p342
      %p344 = scmp.ne.s32.totalorder %s336, %s338
      %p345 = scmp.eq.s32.totalorder %s29, 1
      %p346 = por %p344, %p345
      %p347 = scmp.ne.s32.totalorder %s338, %s339
      %p348 = scmp.eq.s32.totalorder %s29, 0
      %p349 = por %p347, %p348
      %p350 = scmp.ne.s32.totalorder %s338, %s339
      %p351 = scmp.eq.s32.totalorder %s30, 1
      %p352 = por %p350, %p351
      %p354 = scmp.ne.s32.totalorder %s339, %s353
      %p355 = scmp.eq.s32.totalorder %s30, 0
      %p356 = por %p354, %p355
      %s357 = ssub.s32 %s24, %s31
      %p358 = scmp.eq.s32.totalorder %s357, 0
      %s360 = sadd.s32 %s359, 1
      %s361 = scalar_select %p358, %s359, %s360
      %p364 = pneg %p358
      %p365 = scmp.eq.s32.totalorder %s24, 1
      %p366 = por %p364, %p365
      %p367 = scmp.ne.s32.totalorder %s359, %s362
      %p368 = scmp.eq.s32.totalorder %s24, 0
      %p369 = por %p367, %p368
      %p370 = scmp.ne.s32.totalorder %s359, %s362
      %p371 = scmp.eq.s32.totalorder %s29, 1
      %p372 = por %p370, %p371
      %p373 = scmp.ne.s32.totalorder %s362, %s363
      %p374 = scmp.eq.s32.totalorder %s29, 0
      %p375 = por %p373, %p374
      %p376 = scmp.ne.s32.totalorder %s362, %s363
      %p377 = scmp.eq.s32.totalorder %s30, 1
      %p378 = por %p376, %p377
      %p380 = scmp.ne.s32.totalorder %s363, %s379
      %p381 = scmp.eq.s32.totalorder %s30, 0
      %p382 = por %p380, %p381
      %p383 = scmp.le.s32.totalorder 1, %s24
      %p384 = scmp.lt.s32.totalorder %s24, 3
      %p385 = pnand %p383, %p384
      %p386 = pneg %p385
      // Predicated region
      $region9: #{point_transformer_forward.7} parent=5 // pred_check
        _
      $region10: #{point_transformer_forward.7} parent=5 // pred_check_branch
        %388 = sbr.rel (%p385) target = $region12
      $region11: #{point_transformer_forward.7} parent=5 // pred_region
        %s389 = ssub.s32 %s24, 1
        // Predicated region
        $region13: #{point_transformer_forward.7} parent=11 // pred_check
          %p390 = pneg %p97
        $region14: #{point_transformer_forward.7} parent=11 // pred_check_branch
          %392 = sbr.rel (%p390) target = $region16
        $region15: #{point_transformer_forward.7} parent=11 // pred_region
          _
        $region16: #{point_transformer_forward.7} parent=11 // pred_fallthru
          _
        // Predicated region
        $region17: #{point_transformer_forward.7} parent=11 // pred_check
          %p393 = pneg %p118
        $region18: #{point_transformer_forward.7} parent=11 // pred_check_branch
          %395 = sbr.rel (%p393) target = $region20
        $region19: #{point_transformer_forward.7} parent=11 // pred_region
          _
        $region20: #{point_transformer_forward.7} parent=11 // pred_fallthru
          _
        // Predicated region
        $region21: #{point_transformer_forward.7} parent=11 // pred_check
          %p396 = pneg %p139
        $region22: #{point_transformer_forward.7} parent=11 // pred_check_branch
          %398 = sbr.rel (%p396) target = $region24
        $region23: #{point_transformer_forward.7} parent=11 // pred_region
          _
        $region24: #{point_transformer_forward.7} parent=11 // pred_fallthru
          _
        // Predicated region
        $region25: #{point_transformer_forward.7} parent=11 // pred_check
          %p399 = pneg %p160
        $region26: #{point_transformer_forward.7} parent=11 // pred_check_branch
          %401 = sbr.rel (%p399) target = $region28
        $region27: #{point_transformer_forward.7} parent=11 // pred_region
          _
        $region28: #{point_transformer_forward.7} parent=11 // pred_fallthru
          _
        // Predicated region
        $region29: #{point_transformer_forward.7} parent=11 // pred_check
          %p402 = pneg %p181
        $region30: #{point_transformer_forward.7} parent=11 // pred_check_branch
          %404 = sbr.rel (%p402) target = $region32
        $region31: #{point_transformer_forward.7} parent=11 // pred_region
          _
        $region32: #{point_transformer_forward.7} parent=11 // pred_fallthru
          _
        // Predicated region
        $region33: #{point_transformer_forward.7} parent=11 // pred_check
          %p405 = pneg %p202
        $region34: #{point_transformer_forward.7} parent=11 // pred_check_branch
          %407 = sbr.rel (%p405) target = $region36
        $region35: #{point_transformer_forward.7} parent=11 // pred_region
          _
        $region36: #{point_transformer_forward.7} parent=11 // pred_fallthru
          _
        // Predicated region
        $region37: #{point_transformer_forward.7} parent=11 // pred_check
          %p408 = pneg %p223
        $region38: #{point_transformer_forward.7} parent=11 // pred_check_branch
          %410 = sbr.rel (%p408) target = $region40
        $region39: #{point_transformer_forward.7} parent=11 // pred_region
          _
        $region40: #{point_transformer_forward.7} parent=11 // pred_fallthru
          _
        // Predicated region
        $region41: #{point_transformer_forward.7} parent=11 // pred_check
          %p411 = pneg %p244
        $region42: #{point_transformer_forward.7} parent=11 // pred_check_branch
          %413 = sbr.rel (%p411) target = $region44
        $region43: #{point_transformer_forward.7} parent=11 // pred_region
          _
        $region44: #{point_transformer_forward.7} parent=11 // pred_fallthru
          _
        // Predicated region
        $region45: #{point_transformer_forward.7} parent=11 // pred_check
          %p414 = pneg %p265
        $region46: #{point_transformer_forward.7} parent=11 // pred_check_branch
          %416 = sbr.rel (%p414) target = $region48
        $region47: #{point_transformer_forward.7} parent=11 // pred_region
          _
        $region48: #{point_transformer_forward.7} parent=11 // pred_fallthru
          _
        // Predicated region
        $region49: #{point_transformer_forward.7} parent=11 // pred_check
          %p417 = pneg %p286
        $region50: #{point_transformer_forward.7} parent=11 // pred_check_branch
          %419 = sbr.rel (%p417) target = $region52
        $region51: #{point_transformer_forward.7} parent=11 // pred_region
          _
        $region52: #{point_transformer_forward.7} parent=11 // pred_fallthru
          _
        // Predicated region
        $region53: #{point_transformer_forward.7} parent=11 // pred_check
          %p420 = pneg %p307
        $region54: #{point_transformer_forward.7} parent=11 // pred_check_branch
          %422 = sbr.rel (%p420) target = $region56
        $region55: #{point_transformer_forward.7} parent=11 // pred_region
          _
        $region56: #{point_transformer_forward.7} parent=11 // pred_fallthru
          _
        // Predicated region
        $region57: #{point_transformer_forward.7} parent=11 // pred_check
          %p423 = pneg %p328
        $region58: #{point_transformer_forward.7} parent=11 // pred_check_branch
          %425 = sbr.rel (%p423) target = $region60
        $region59: #{point_transformer_forward.7} parent=11 // pred_region
          _
        $region60: #{point_transformer_forward.7} parent=11 // pred_fallthru
          _
        // Predicated region
        $region61: #{point_transformer_forward.7} parent=11 // pred_check
          %p426 = pneg %p349
        $region62: #{point_transformer_forward.7} parent=11 // pred_check_branch
          %428 = sbr.rel (%p426) target = $region64
        $region63: #{point_transformer_forward.7} parent=11 // pred_region
          _
        $region64: #{point_transformer_forward.7} parent=11 // pred_fallthru
          _
      $region12: #{point_transformer_forward.7} parent=5 // pred_fallthru
        _
      %p429 = scmp.lt.s32.totalorder %s24, 2
      // Predicated region
      $region65: #{point_transformer_forward.7} parent=5 // pred_check
        %p430 = pneg %p429
      $region66: #{point_transformer_forward.7} parent=5 // pred_check_branch
        %432 = sbr.rel (%p430) target = $region68
      $region67: #{point_transformer_forward.7} parent=5 // pred_region
        // Predicated region
        $region69: #{point_transformer_forward.7} parent=67 // pred_check
          %p433 = pneg %p44
        $region70: #{point_transformer_forward.7} parent=67 // pred_check_branch
          %435 = sbr.rel (%p433) target = $region72
        $region71: #{point_transformer_forward.7} parent=67 // pred_region
          %p436 = scmp.lt.s32.totalorder %s24, 1
          %s437 = scalar_select %p436, %s24, 1
          %s438 = smul.addr %s437, 2
          %s439 = scalar_lea.vmem %s0, %s438
        $region72: #{point_transformer_forward.7} parent=67 // pred_fallthru
          _
        // Predicated region
        $region73: #{point_transformer_forward.7} parent=67 // pred_check
          %p440 = pneg %p70
        $region74: #{point_transformer_forward.7} parent=67 // pred_check_branch
          %442 = sbr.rel (%p440) target = $region76
        $region75: #{point_transformer_forward.7} parent=67 // pred_region
          %p443 = scmp.lt.s32.totalorder %s24, 1
          %s444 = scalar_select %p443, %s24, 1
          %s445 = smul.addr %s444, 2
          %s446 = scalar_lea.vmem %s1, %s445
        $region76: #{point_transformer_forward.7} parent=67 // pred_fallthru
          _
      $region68: #{point_transformer_forward.7} parent=5 // pred_fallthru
        _
      %p447 = scmp.le.s32.totalorder 1, %s24
      %p448 = scmp.lt.s32.totalorder %s24, 3
      %p449 = pnand %p447, %p448
      %p450 = pneg %p449
      // Predicated region
      $region77: #{point_transformer_forward.7} parent=5 // pred_check
        _
      $region78: #{point_transformer_forward.7} parent=5 // pred_check_branch
        %452 = sbr.rel (%p449) target = $region80
      $region79: #{point_transformer_forward.7} parent=5 // pred_region
        %s453 = ssub.s32 %s24, 1
        %p454 = scmp.lt.s32.totalorder %s29, 1
        %s455 = scalar_select %p454, %s29, 1
        %s456 = smul.addr %s455, 2
        %s457 = scalar_lea.vmem %s0, %s456
        %p458 = pneg %p50
        %p459 = pneg %p47
        %p460 = scmp.lt.s32.totalorder %s29, 1
        %s461 = scalar_select %p460, %s29, 1
        %s462 = smul.addr %s461, 2
        %s463 = scalar_lea.vmem %s1, %s462
        %p464 = pneg %p76
        %p465 = pneg %p73
        %p466 = pneg %p97
        %p467 = pneg %p94
        %p468 = pneg %p118
        %p469 = pneg %p115
        %p470 = pneg %p139
        %p471 = pneg %p136
        %p472 = pneg %p160
        %p473 = pneg %p157
        %p474 = pneg %p181
        %p475 = pneg %p178
        %p476 = pneg %p202
        %p477 = pneg %p199
        %p478 = pneg %p223
        %p479 = pneg %p220
        %p480 = pneg %p244
        %p481 = pneg %p241
        %p482 = pneg %p265
        %p483 = pneg %p262
        %p484 = pneg %p286
        %p485 = pneg %p283
        %p486 = pneg %p307
        %p487 = pneg %p304
        %p488 = pneg %p328
        %p489 = pneg %p325
        %p490 = pneg %p349
        %p491 = pneg %p346
        %p492 = pneg %p375
        %p493 = pneg %p372
        %s494 = sand.u32 %s362, 1
        %s495 = scalar_lea.sflag [#allocation3], %s494
        %s496 = sand.u32 %s362, 1
        %s497 = smul.addr %s496, 4
        %s498 = scalar_lea.vmem [#allocation2], %s497
        %p499 = scmp.lt.s32.totalorder %s29, 1
        %s500 = scalar_select %p499, %s29, 1
        %s501 = smul.addr %s500, 2
        %s502 = scalar_lea.vmem %s0, %s501
        %p503 = scmp.lt.s32.totalorder %s29, 1
        %s504 = scalar_select %p503, %s29, 1
        %s505 = smul.addr %s504, 2
        %s506 = scalar_lea.vmem %s1, %s505
        %v508 = vld [vmem:[%s502] sm:$0x3]
        %v509 = vunpack.c.l.bf16 %v508
        %v510 = vld [vmem:[%s506] sm:$0x3]
        %v511 = vunpack.c.l.bf16 %v510
        %v512 = vadd.f32 %v509, %v511
        %v513 = vld [vmem:[%s2] sm:$0x1]
        %v514 = vld [vmem:[%s3] sm:$0x1]
        %vm515 = vcmask 1043456
        %v516 = vsel %vm515, %v512, 0.0
        %517 = vadd.xlane.f32.xlu0 %v516
        %v518 = vpop.xlane.xlu0 %517
        %v519 = vrcp.pop 128.0
        %v520 = vmul.f32 %v518, %v519
        %v521 = vsub.f32 %v512, %v520
        %v522 = vmul.f32 %v521, %v521
        %v523 = vsel %vm515, %v522, 0.0
        %524 = vadd.xlane.f32.xlu0 %v523
        %v525 = vpop.xlane.xlu0 %524
        %v526 = vmul.f32 %v525, %v519
        %v527 = vadd.f32 %v526, 1e-05
        %v528 = vrsqrt.pop %v527
        %v529 = vmul.f32 %v521, %v528
        %v531 = vlaneseq
        %v532 = vshrl.u32 %v531, 7
        %v533 = vsub.s32 0, %v532
        %v534 = vrot.slane %v513, %v533
        %v536 = vmul.f32 %v529, %v534
        %v538 = vlaneseq
        %v539 = vshrl.u32 %v538, 7
        %v540 = vsub.s32 0, %v539
        %v541 = vrot.slane %v514, %v540
        %v543 = vadd.f32 %v536, %v541
        %v544 = vpack.c.bf16 %v543, %v543
        %v545 = vld [vmem:[%s4] sm:$0xff]
        %v546 = vld [vmem:[%s4 + $0x8] sm:$0xf]
        %v547 = vld [vmem:[%s4 + $0xc] sm:$0xff]
        %v548 = vld [vmem:[%s4 + $0x14] sm:$0xf]
        %v549 = vld [vmem:[%s4 + $0x18] sm:$0xff]
        %v550 = vld [vmem:[%s4 + $0x20] sm:$0xf]
        %v551 = vld [vmem:[%s4 + $0x24] sm:$0xff]
        %v552 = vld [vmem:[%s4 + $0x2c] sm:$0xf]
        %v553 = vld [vmem:[%s4 + $0x30] sm:$0xff]
        %v554 = vld [vmem:[%s4 + $0x38] sm:$0xf]
        %v555 = vld [vmem:[%s4 + $0x3c] sm:$0xff]
        %v556 = vld [vmem:[%s4 + $0x44] sm:$0xf]
        %v557 = vld [vmem:[%s4 + $0x48] sm:$0xff]
        %v558 = vld [vmem:[%s4 + $0x50] sm:$0xf]
        %v559 = vld [vmem:[%s4 + $0x54] sm:$0xff]
        %v560 = vld [vmem:[%s4 + $0x5c] sm:$0xf]
        %v561 = vld [vmem:[%s4 + $0x60] sm:$0xff]
        %v562 = vld [vmem:[%s4 + $0x68] sm:$0xf]
        %v563 = vld [vmem:[%s4 + $0x6c] sm:$0xff]
        %v564 = vld [vmem:[%s4 + $0x74] sm:$0xf]
        %v565 = vld [vmem:[%s4 + $0x78] sm:$0xff]
        %v566 = vld [vmem:[%s4 + $0x80] sm:$0xf]
        %v567 = vld [vmem:[%s4 + $0x84] sm:$0xff]
        %v568 = vld [vmem:[%s4 + $0x8c] sm:$0xf]
        %v569 = vld [vmem:[%s4 + $0x90] sm:$0xff]
        %v570 = vld [vmem:[%s4 + $0x98] sm:$0xf]
        %v571 = vld [vmem:[%s4 + $0x9c] sm:$0xff]
        %v572 = vld [vmem:[%s4 + $0xa4] sm:$0xf]
        %v573 = vld [vmem:[%s4 + $0xa8] sm:$0xff]
        %v574 = vld [vmem:[%s4 + $0xb0] sm:$0xf]
        %v575 = vld [vmem:[%s4 + $0xb4] sm:$0xff]
        %v576 = vld [vmem:[%s4 + $0xbc] sm:$0xf]
        %v609 = vunpack.c.l.b16 %v545
        %v610 = vunpack.c.h.b16 %v545
        %v611 = vunpack.c.l.b16 %v546
        %v612 = vunpack.c.l.b16 %v547
        %v613 = vunpack.c.h.b16 %v547
        %v614 = vunpack.c.l.b16 %v548
        %v615 = vunpack.c.l.b16 %v549
        %v616 = vunpack.c.h.b16 %v549
        %v617 = vunpack.c.l.b16 %v550
        %v618 = vunpack.c.l.b16 %v551
        %v619 = vunpack.c.h.b16 %v551
        %v620 = vunpack.c.l.b16 %v552
        %v621 = vunpack.c.l.b16 %v553
        %v622 = vunpack.c.h.b16 %v553
        %v623 = vunpack.c.l.b16 %v554
        %v624 = vunpack.c.l.b16 %v555
        %v625 = vunpack.c.h.b16 %v555
        %v626 = vunpack.c.l.b16 %v556
        %v627 = vunpack.c.l.b16 %v557
        %v628 = vunpack.c.h.b16 %v557
        %v629 = vunpack.c.l.b16 %v558
        %v630 = vunpack.c.l.b16 %v559
        %v631 = vunpack.c.h.b16 %v559
        %v632 = vunpack.c.l.b16 %v560
        %v633 = vunpack.c.l.b16 %v561
        %v634 = vunpack.c.h.b16 %v561
        %v635 = vunpack.c.l.b16 %v562
        %v636 = vunpack.c.l.b16 %v563
        %v637 = vunpack.c.h.b16 %v563
        %v638 = vunpack.c.l.b16 %v564
        %v639 = vunpack.c.l.b16 %v565
        %v640 = vunpack.c.h.b16 %v565
        %v641 = vunpack.c.l.b16 %v566
        %v642 = vunpack.c.l.b16 %v567
        %v643 = vunpack.c.h.b16 %v567
        %v644 = vunpack.c.l.b16 %v568
        %v645 = vunpack.c.l.b16 %v569
        %v646 = vunpack.c.h.b16 %v569
        %v647 = vunpack.c.l.b16 %v570
        %v648 = vunpack.c.l.b16 %v571
        %v649 = vunpack.c.h.b16 %v571
        %v650 = vunpack.c.l.b16 %v572
        %v651 = vunpack.c.l.b16 %v573
        %v652 = vunpack.c.h.b16 %v573
        %v653 = vunpack.c.l.b16 %v574
        %v654 = vunpack.c.l.b16 %v575
        %v655 = vunpack.c.h.b16 %v575
        %v656 = vunpack.c.l.b16 %v576
        %v657 = vpack.c.b16 %v612, %v609
        %v658 = vpack.c.b16 %v613, %v610
        %v659 = vpack.c.b16 %v614, %v611
        %v660 = vpack.c.b16 %v618, %v615
        %v661 = vpack.c.b16 %v619, %v616
        %v662 = vpack.c.b16 %v620, %v617
        %v663 = vpack.c.b16 %v624, %v621
        %v664 = vpack.c.b16 %v625, %v622
        %v665 = vpack.c.b16 %v626, %v623
        %v666 = vpack.c.b16 %v630, %v627
        %v667 = vpack.c.b16 %v631, %v628
        %v668 = vpack.c.b16 %v632, %v629
        %v669 = vpack.c.b16 %v636, %v633
        %v670 = vpack.c.b16 %v637, %v634
        %v671 = vpack.c.b16 %v638, %v635
        %v672 = vpack.c.b16 %v642, %v639
        %v673 = vpack.c.b16 %v643, %v640
        %v674 = vpack.c.b16 %v644, %v641
        %v675 = vpack.c.b16 %v648, %v645
        %v676 = vpack.c.b16 %v649, %v646
        %v677 = vpack.c.b16 %v650, %v647
        %v678 = vpack.c.b16 %v654, %v651
        %v679 = vpack.c.b16 %v655, %v652
        %v680 = vpack.c.b16 %v656, %v653
        %705 = vmatprep.subr.bf16.mxu0 %v679
        %706 = vmatpush1.bf16.msra.mxu0 %v678
        %707 = vmatprep.subr.bf16.mxu0 %v676
        %708 = vmatpush1.bf16.msra.mxu0 %v675
        %709 = vmatprep.subr.bf16.mxu0 %v673
        %710 = vmatpush1.bf16.msra.mxu0 %v672
        %711 = vmatprep.subr.bf16.mxu0 %v670
        %712 = vmatpush1.bf16.msra.mxu0 %v669
        %713 = vmatprep.subr.bf16.mxu0 %v667
        %714 = vmatpush1.bf16.msra.mxu0 %v666
        %715 = vmatprep.subr.bf16.mxu0 %v664
        %716 = vmatpush1.bf16.msra.mxu0 %v663
        %717 = vmatprep.subr.bf16.mxu0 %v661
        %718 = vmatpush1.bf16.msra.mxu0 %v660
        %719 = vmatprep.subr.bf16.mxu0 %v658
        %720 = vmatpush1.bf16.msra.mxu0 %v657
        %721 = vmatprep.subr.bf16.mxu0 0
        %722 = vmatpush2.bf16.msra.mxu0 0
        %723 = vmatprep.subr.bf16.mxu0 0
        %724 = vmatpush2.bf16.msra.mxu0 0
        %725 = vmatprep.subr.bf16.mxu0 0
        %726 = vmatpush2.bf16.msra.mxu0 0
        %727 = vmatprep.subr.bf16.mxu0 0
        %728 = vmatpush2.bf16.msra.mxu0 0
        %729 = vmatprep.subr.bf16.mxu0 0
        %730 = vmatpush2.bf16.msra.mxu0 0
        %731 = vmatprep.subr.bf16.mxu0 0
        %732 = vmatpush2.bf16.msra.mxu0 0
        %733 = vmatprep.subr.bf16.mxu0 0
        %734 = vmatpush2.bf16.msra.mxu0 0
        %735 = vmatprep.subr.bf16.mxu0 0
        %736 = vmatpush2.bf16.msra.mxu0 0
        %737 = vmatprep.mubr.bf16.mxu0 0
        %738 = vmatmul.mubr.bf16.gmra.mxu0 %v544
        %v739 = vpop.f32.mrf.mxu0
        %v740 = vadd.f32 0.0, %v739
        %v741 = vpop.f32.mrf.mxu0
        %v742 = vadd.f32 0.0, %v741
        %v743 = vpop.f32.mrf.mxu0
        %v744 = vpop.f32.mrf.mxu0
        %745 = vdwg.mxu0
        %746 = vmatprep.subr.bf16.mxu0 0
        %747 = vmatpush1.bf16.msra.mxu0 %v680
        %748 = vmatprep.subr.bf16.mxu0 0
        %749 = vmatpush1.bf16.msra.mxu0 %v677
        %750 = vmatprep.subr.bf16.mxu0 0
        %751 = vmatpush1.bf16.msra.mxu0 %v674
        %752 = vmatprep.subr.bf16.mxu0 0
        %753 = vmatpush1.bf16.msra.mxu0 %v671
        %754 = vmatprep.subr.bf16.mxu0 0
        %755 = vmatpush1.bf16.msra.mxu0 %v668
        %756 = vmatprep.subr.bf16.mxu0 0
        %757 = vmatpush1.bf16.msra.mxu0 %v665
        %758 = vmatprep.subr.bf16.mxu0 0
        %759 = vmatpush1.bf16.msra.mxu0 %v662
        %760 = vmatprep.subr.bf16.mxu0 0
        %761 = vmatpush1.bf16.msra.mxu0 %v659
        %762 = vmatprep.subr.bf16.mxu0 0
        %763 = vmatpush2.bf16.msra.mxu0 0
        %764 = vmatprep.subr.bf16.mxu0 0
        %765 = vmatpush2.bf16.msra.mxu0 0
        %766 = vmatprep.subr.bf16.mxu0 0
        %767 = vmatpush2.bf16.msra.mxu0 0
        %768 = vmatprep.subr.bf16.mxu0 0
        %769 = vmatpush2.bf16.msra.mxu0 0
        %770 = vmatprep.subr.bf16.mxu0 0
        %771 = vmatpush2.bf16.msra.mxu0 0
        %772 = vmatprep.subr.bf16.mxu0 0
        %773 = vmatpush2.bf16.msra.mxu0 0
        %774 = vmatprep.subr.bf16.mxu0 0
        %775 = vmatpush2.bf16.msra.mxu0 0
        %776 = vmatprep.subr.bf16.mxu0 0
        %777 = vmatpush2.bf16.msra.mxu0 0
        %778 = vmatprep.mubr.bf16.mxu0 0
        %779 = vmatmul.mubr.bf16.gmra.mxu0 %v544
        %v780 = vpop.f32.mrf.mxu0
        %v781 = vadd.f32 0.0, %v780
        %v782 = vpop.f32.mrf.mxu0
        %v783 = vpop.f32.mrf.mxu0
        %v784 = vpop.f32.mrf.mxu0
        %785 = vdwg.mxu0
        %v786 = vmul.f32 %v740, 0.17677669
        %v787 = vpack.c.bf16 %v786, %v786
        %v788 = vpack.c.bf16 %v742, %v742
        %v789 = vpack.c.bf16 %v781, %v781
        %vm790 = vcmask 261120
        %v792 = vsel %vm790, %v787, 0
        %v795 = vsel %vm790, %v788, 0
        %797 = vmatprep.subr.bf16.mxu0 0
        %798 = vmatpush1.bf16.xpose.msra.mxu0 0
        %799 = vmatprep.subr.bf16.mxu0 0
        %800 = vmatpush1.bf16.xpose.msra.mxu0 0
        %801 = vmatprep.subr.bf16.mxu0 0
        %802 = vmatpush1.bf16.xpose.msra.mxu0 0
        %803 = vmatprep.subr.bf16.mxu0 0
        %804 = vmatpush1.bf16.xpose.msra.mxu0 0
        %805 = vmatprep.subr.bf16.mxu0 0
        %806 = vmatpush1.bf16.xpose.msra.mxu0 0
        %807 = vmatprep.subr.bf16.mxu0 0
        %808 = vmatpush1.bf16.xpose.msra.mxu0 0
        %809 = vmatprep.subr.bf16.mxu0 0
        %810 = vmatpush1.bf16.xpose.msra.mxu0 0
        %811 = vmatprep.subr.bf16.mxu0 0
        %812 = vmatpush1.bf16.xpose.msra.mxu0 %v795
        %813 = vmatprep.subr.bf16.mxu0 0
        %814 = vmatpush2.bf16.xpose.msra.mxu0 0
        %815 = vmatprep.subr.bf16.mxu0 0
        %816 = vmatpush2.bf16.xpose.msra.mxu0 0
        %817 = vmatprep.subr.bf16.mxu0 0
        %818 = vmatpush2.bf16.xpose.msra.mxu0 0
        %819 = vmatprep.subr.bf16.mxu0 0
        %820 = vmatpush2.bf16.xpose.msra.mxu0 0
        %821 = vmatprep.subr.bf16.mxu0 0
        %822 = vmatpush2.bf16.xpose.msra.mxu0 0
        %823 = vmatprep.subr.bf16.mxu0 0
        %824 = vmatpush2.bf16.xpose.msra.mxu0 0
        %825 = vmatprep.subr.bf16.mxu0 0
        %826 = vmatpush2.bf16.xpose.msra.mxu0 0
        %827 = vmatprep.subr.bf16.mxu0 0
        %828 = vmatpush2.bf16.xpose.msra.mxu0 0
        %829 = vmatprep.mubr.bf16.mxu0 0
        %830 = vmatmul.mubr.bf16.gmra.mxu0 %v792
        %v831 = vpop.f32.mrf.mxu0
        %v832 = vadd.f32 0.0, %v831
        %v833 = vpop.f32.mrf.mxu0
        %v834 = vpop.f32.mrf.mxu0
        %v835 = vpop.f32.mrf.mxu0
        %836 = vdwg.mxu0
        %vm837 = vcmask 27648
        %v838 = vsel %vm837, %v832, -inf
        %839 = vmax.xlane.f32.xlu0 %v838
        %v840 = vpop.xlane.xlu0 %839
        %v841 = vsub.f32 %v832, %v840
        %v842 = vmul.f32 %v841, 1.442695
        %v843 = vpow.pop %v842
        %v844 = vsel %vm837, %v843, 0.0
        %845 = vadd.xlane.f32.xlu0 %v844
        %v846 = vpop.xlane.xlu0 %845
        %v847 = vrcp.pop %v846
        %v848 = vmul.f32 %v843, %v847
        %v849 = vpack.c.bf16 %v848, %v848
        %vm850 = vcmask 31744
        %v852 = vsel %vm850, %v849, 0
        %vm854 = vcmask 1041408
        %v856 = vsel %vm854, %v789, 0
        %858 = vmatprep.subr.bf16.mxu0 0
        %859 = vmatpush1.bf16.msra.mxu0 0
        %860 = vmatprep.subr.bf16.mxu0 0
        %861 = vmatpush1.bf16.msra.mxu0 0
        %862 = vmatprep.subr.bf16.mxu0 0
        %863 = vmatpush1.bf16.msra.mxu0 0
        %864 = vmatprep.subr.bf16.mxu0 0
        %865 = vmatpush1.bf16.msra.mxu0 0
        %866 = vmatprep.subr.bf16.mxu0 0
        %867 = vmatpush1.bf16.msra.mxu0 0
        %868 = vmatprep.subr.bf16.mxu0 0
        %869 = vmatpush1.bf16.msra.mxu0 0
        %870 = vmatprep.subr.bf16.mxu0 0
        %871 = vmatpush1.bf16.msra.mxu0 0
        %872 = vmatprep.subr.bf16.mxu0 0
        %873 = vmatpush1.bf16.msra.mxu0 %v856
        %874 = vmatprep.subr.bf16.mxu0 0
        %875 = vmatpush2.bf16.msra.mxu0 0
        %876 = vmatprep.subr.bf16.mxu0 0
        %877 = vmatpush2.bf16.msra.mxu0 0
        %878 = vmatprep.subr.bf16.mxu0 0
        %879 = vmatpush2.bf16.msra.mxu0 0
        %880 = vmatprep.subr.bf16.mxu0 0
        %881 = vmatpush2.bf16.msra.mxu0 0
        %882 = vmatprep.subr.bf16.mxu0 0
        %883 = vmatpush2.bf16.msra.mxu0 0
        %884 = vmatprep.subr.bf16.mxu0 0
        %885 = vmatpush2.bf16.msra.mxu0 0
        %886 = vmatprep.subr.bf16.mxu0 0
        %887 = vmatpush2.bf16.msra.mxu0 0
        %888 = vmatprep.subr.bf16.mxu0 0
        %889 = vmatpush2.bf16.msra.mxu0 0
        %890 = vmatprep.mubr.bf16.mxu0 0
        %891 = vmatmul.mubr.bf16.gmra.mxu0 %v852
        %v892 = vpop.f32.mrf.mxu0
        %v893 = vadd.f32 0.0, %v892
        %v894 = vpop.f32.mrf.mxu0
        %v895 = vpop.f32.mrf.mxu0
        %v896 = vpop.f32.mrf.mxu0
        %897 = vdwg.mxu0
        %899 = vrot.lane.b32.xlu0 %v787, 96
        %v900 = vpop.permute.xlu0 %899
        %902 = vrot.lane.b32.xlu0 %v788, 96
        %v903 = vpop.permute.xlu0 %902
        %v905 = vsel %vm790, %v900, 0
        %v908 = vsel %vm790, %v903, 0
        %910 = vmatprep.subr.bf16.mxu0 0
        %911 = vmatpush1.bf16.xpose.msra.mxu0 0
        %912 = vmatprep.subr.bf16.mxu0 0
        %913 = vmatpush1.bf16.xpose.msra.mxu0 0
        %914 = vmatprep.subr.bf16.mxu0 0
        %915 = vmatpush1.bf16.xpose.msra.mxu0 0
        %916 = vmatprep.subr.bf16.mxu0 0
        %917 = vmatpush1.bf16.xpose.msra.mxu0 0
        %918 = vmatprep.subr.bf16.mxu0 0
        %919 = vmatpush1.bf16.xpose.msra.mxu0 0
        %920 = vmatprep.subr.bf16.mxu0 0
        %921 = vmatpush1.bf16.xpose.msra.mxu0 0
        %922 = vmatprep.subr.bf16.mxu0 0
        %923 = vmatpush1.bf16.xpose.msra.mxu0 0
        %924 = vmatprep.subr.bf16.mxu0 0
        %925 = vmatpush1.bf16.xpose.msra.mxu0 %v908
        %926 = vmatprep.subr.bf16.mxu0 0
        %927 = vmatpush2.bf16.xpose.msra.mxu0 0
        %928 = vmatprep.subr.bf16.mxu0 0
        %929 = vmatpush2.bf16.xpose.msra.mxu0 0
        %930 = vmatprep.subr.bf16.mxu0 0
        %931 = vmatpush2.bf16.xpose.msra.mxu0 0
        %932 = vmatprep.subr.bf16.mxu0 0
        %933 = vmatpush2.bf16.xpose.msra.mxu0 0
        %934 = vmatprep.subr.bf16.mxu0 0
        %935 = vmatpush2.bf16.xpose.msra.mxu0 0
        %936 = vmatprep.subr.bf16.mxu0 0
        %937 = vmatpush2.bf16.xpose.msra.mxu0 0
        %938 = vmatprep.subr.bf16.mxu0 0
        %939 = vmatpush2.bf16.xpose.msra.mxu0 0
        %940 = vmatprep.subr.bf16.mxu0 0
        %941 = vmatpush2.bf16.xpose.msra.mxu0 0
        %942 = vmatprep.mubr.bf16.mxu0 0
        %943 = vmatmul.mubr.bf16.gmra.mxu0 %v905
        %v944 = vpop.f32.mrf.mxu0
        %v945 = vadd.f32 0.0, %v944
        %v946 = vpop.f32.mrf.mxu0
        %v947 = vpop.f32.mrf.mxu0
        %v948 = vpop.f32.mrf.mxu0
        %949 = vdwg.mxu0
        %v950 = vsel %vm837, %v945, -inf
        %951 = vmax.xlane.f32.xlu0 %v950
        %v952 = vpop.xlane.xlu0 %951
        %v953 = vsub.f32 %v945, %v952
        %v954 = vmul.f32 %v953, 1.442695
        %v955 = vpow.pop %v954
        %v956 = vsel %vm837, %v955, 0.0
        %957 = vadd.xlane.f32.xlu0 %v956
        %v958 = vpop.xlane.xlu0 %957
        %v959 = vrcp.pop %v958
        %v960 = vmul.f32 %v955, %v959
        %v961 = vpack.c.bf16 %v960, %v960
        %963 = vrot.lane.b32.xlu0 %v789, 96
        %v964 = vpop.permute.xlu0 %963
        %v966 = vsel %vm850, %v961, 0
        %v969 = vsel %vm854, %v964, 0
        %971 = vmatprep.subr.bf16.mxu0 0
        %972 = vmatpush1.bf16.msra.mxu0 0
        %973 = vmatprep.subr.bf16.mxu0 0
        %974 = vmatpush1.bf16.msra.mxu0 0
        %975 = vmatprep.subr.bf16.mxu0 0
        %976 = vmatpush1.bf16.msra.mxu0 0
        %977 = vmatprep.subr.bf16.mxu0 0
        %978 = vmatpush1.bf16.msra.mxu0 0
        %979 = vmatprep.subr.bf16.mxu0 0
        %980 = vmatpush1.bf16.msra.mxu0 0
        %981 = vmatprep.subr.bf16.mxu0 0
        %982 = vmatpush1.bf16.msra.mxu0 0
        %983 = vmatprep.subr.bf16.mxu0 0
        %984 = vmatpush1.bf16.msra.mxu0 0
        %985 = vmatprep.subr.bf16.mxu0 0
        %986 = vmatpush1.bf16.msra.mxu0 %v969
        %987 = vmatprep.subr.bf16.mxu0 0
        %988 = vmatpush2.bf16.msra.mxu0 0
        %989 = vmatprep.subr.bf16.mxu0 0
        %990 = vmatpush2.bf16.msra.mxu0 0
        %991 = vmatprep.subr.bf16.mxu0 0
        %992 = vmatpush2.bf16.msra.mxu0 0
        %993 = vmatprep.subr.bf16.mxu0 0
        %994 = vmatpush2.bf16.msra.mxu0 0
        %995 = vmatprep.subr.bf16.mxu0 0
        %996 = vmatpush2.bf16.msra.mxu0 0
        %997 = vmatprep.subr.bf16.mxu0 0
        %998 = vmatpush2.bf16.msra.mxu0 0
        %999 = vmatprep.subr.bf16.mxu0 0
        %1000 = vmatpush2.bf16.msra.mxu0 0
        %1001 = vmatprep.subr.bf16.mxu0 0
        %1002 = vmatpush2.bf16.msra.mxu0 0
        %1003 = vmatprep.mubr.bf16.mxu0 0
        %1004 = vmatmul.mubr.bf16.gmra.mxu0 %v966
        %v1005 = vpop.f32.mrf.mxu0
        %v1006 = vadd.f32 0.0, %v1005
        %v1007 = vpop.f32.mrf.mxu0
        %v1008 = vpop.f32.mrf.mxu0
        %v1009 = vpop.f32.mrf.mxu0
        %1010 = vdwg.mxu0
        %1011 = vrot.lane.b32.xlu0 %v787, 64
        %v1012 = vpop.permute.xlu0 %1011
        %1013 = vrot.lane.b32.xlu0 %v788, 64
        %v1014 = vpop.permute.xlu0 %1013
        %v1016 = vsel %vm790, %v1012, 0
        %v1019 = vsel %vm790, %v1014, 0
        %1021 = vmatprep.subr.bf16.mxu0 0
        %1022 = vmatpush1.bf16.xpose.msra.mxu0 0
        %1023 = vmatprep.subr.bf16.mxu0 0
        %1024 = vmatpush1.bf16.xpose.msra.mxu0 0
        %1025 = vmatprep.subr.bf16.mxu0 0
        %1026 = vmatpush1.bf16.xpose.msra.mxu0 0
        %1027 = vmatprep.subr.bf16.mxu0 0
        %1028 = vmatpush1.bf16.xpose.msra.mxu0 0
        %1029 = vmatprep.subr.bf16.mxu0 0
        %1030 = vmatpush1.bf16.xpose.msra.mxu0 0
        %1031 = vmatprep.subr.bf16.mxu0 0
        %1032 = vmatpush1.bf16.xpose.msra.mxu0 0
        %1033 = vmatprep.subr.bf16.mxu0 0
        %1034 = vmatpush1.bf16.xpose.msra.mxu0 0
        %1035 = vmatprep.subr.bf16.mxu0 0
        %1036 = vmatpush1.bf16.xpose.msra.mxu0 %v1019
        %1037 = vmatprep.subr.bf16.mxu0 0
        %1038 = vmatpush2.bf16.xpose.msra.mxu0 0
        %1039 = vmatprep.subr.bf16.mxu0 0
        %1040 = vmatpush2.bf16.xpose.msra.mxu0 0
        %1041 = vmatprep.subr.bf16.mxu0 0
        %1042 = vmatpush2.bf16.xpose.msra.mxu0 0
        %1043 = vmatprep.subr.bf16.mxu0 0
        %1044 = vmatpush2.bf16.xpose.msra.mxu0 0
        %1045 = vmatprep.subr.bf16.mxu0 0
        %1046 = vmatpush2.bf16.xpose.msra.mxu0 0
        %1047 = vmatprep.subr.bf16.mxu0 0
        %1048 = vmatpush2.bf16.xpose.msra.mxu0 0
        %1049 = vmatprep.subr.bf16.mxu0 0
        %1050 = vmatpush2.bf16.xpose.msra.mxu0 0
        %1051 = vmatprep.subr.bf16.mxu0 0
        %1052 = vmatpush2.bf16.xpose.msra.mxu0 0
        %1053 = vmatprep.mubr.bf16.mxu0 0
        %1054 = vmatmul.mubr.bf16.gmra.mxu0 %v1016
        %v1055 = vpop.f32.mrf.mxu0
        %v1056 = vadd.f32 0.0, %v1055
        %v1057 = vpop.f32.mrf.mxu0
        %v1058 = vpop.f32.mrf.mxu0
        %v1059 = vpop.f32.mrf.mxu0
        %1060 = vdwg.mxu0
        %v1061 = vsel %vm837, %v1056, -inf
        %1062 = vmax.xlane.f32.xlu0 %v1061
        %v1063 = vpop.xlane.xlu0 %1062
        %v1064 = vsub.f32 %v1056, %v1063
        %v1065 = vmul.f32 %v1064, 1.442695
        %v1066 = vpow.pop %v1065
        %v1067 = vsel %vm837, %v1066, 0.0
        %1068 = vadd.xlane.f32.xlu0 %v1067
        %v1069 = vpop.xlane.xlu0 %1068
        %v1070 = vrcp.pop %v1069
        %v1071 = vmul.f32 %v1066, %v1070
        %v1072 = vpack.c.bf16 %v1071, %v1071
        %1073 = vrot.lane.b32.xlu0 %v789, 64
        %v1074 = vpop.permute.xlu0 %1073
        %v1076 = vsel %vm850, %v1072, 0
        %v1079 = vsel %vm854, %v1074, 0
        %1081 = vmatprep.subr.bf16.mxu0 0
        %1082 = vmatpush1.bf16.msra.mxu0 0
        %1083 = vmatprep.subr.bf16.mxu0 0
        %1084 = vmatpush1.bf16.msra.mxu0 0
        %1085 = vmatprep.subr.bf16.mxu0 0
        %1086 = vmatpush1.bf16.msra.mxu0 0
        %1087 = vmatprep.subr.bf16.mxu0 0
        %1088 = vmatpush1.bf16.msra.mxu0 0
        %1089 = vmatprep.subr.bf16.mxu0 0
        %1090 = vmatpush1.bf16.msra.mxu0 0
        %1091 = vmatprep.subr.bf16.mxu0 0
        %1092 = vmatpush1.bf16.msra.mxu0 0
        %1093 = vmatprep.subr.bf16.mxu0 0
        %1094 = vmatpush1.bf16.msra.mxu0 0
        %1095 = vmatprep.subr.bf16.mxu0 0
        %1096 = vmatpush1.bf16.msra.mxu0 %v1079
        %1097 = vmatprep.subr.bf16.mxu0 0
        %1098 = vmatpush2.bf16.msra.mxu0 0
        %1099 = vmatprep.subr.bf16.mxu0 0
        %1100 = vmatpush2.bf16.msra.mxu0 0
        %1101 = vmatprep.subr.bf16.mxu0 0
        %1102 = vmatpush2.bf16.msra.mxu0 0
        %1103 = vmatprep.subr.bf16.mxu0 0
        %1104 = vmatpush2.bf16.msra.mxu0 0
        %1105 = vmatprep.subr.bf16.mxu0 0
        %1106 = vmatpush2.bf16.msra.mxu0 0
        %1107 = vmatprep.subr.bf16.mxu0 0
        %1108 = vmatpush2.bf16.msra.mxu0 0
        %1109 = vmatprep.subr.bf16.mxu0 0
        %1110 = vmatpush2.bf16.msra.mxu0 0
        %1111 = vmatprep.subr.bf16.mxu0 0
        %1112 = vmatpush2.bf16.msra.mxu0 0
        %1113 = vmatprep.mubr.bf16.mxu0 0
        %1114 = vmatmul.mubr.bf16.gmra.mxu0 %v1076
        %v1115 = vpop.f32.mrf.mxu0
        %v1116 = vadd.f32 0.0, %v1115
        %v1117 = vpop.f32.mrf.mxu0
        %v1118 = vpop.f32.mrf.mxu0
        %v1119 = vpop.f32.mrf.mxu0
        %1120 = vdwg.mxu0
        %1121 = vrot.lane.b32.xlu0 %v787, 32
        %v1122 = vpop.permute.xlu0 %1121
        %1123 = vrot.lane.b32.xlu0 %v788, 32
        %v1124 = vpop.permute.xlu0 %1123
        %v1126 = vsel %vm790, %v1122, 0
        %v1129 = vsel %vm790, %v1124, 0
        %1131 = vmatprep.subr.bf16.mxu0 0
        %1132 = vmatpush1.bf16.xpose.msra.mxu0 0
        %1133 = vmatprep.subr.bf16.mxu0 0
        %1134 = vmatpush1.bf16.xpose.msra.mxu0 0
        %1135 = vmatprep.subr.bf16.mxu0 0
        %1136 = vmatpush1.bf16.xpose.msra.mxu0 0
        %1137 = vmatprep.subr.bf16.mxu0 0
        %1138 = vmatpush1.bf16.xpose.msra.mxu0 0
        %1139 = vmatprep.subr.bf16.mxu0 0
        %1140 = vmatpush1.bf16.xpose.msra.mxu0 0
        %1141 = vmatprep.subr.bf16.mxu0 0
        %1142 = vmatpush1.bf16.xpose.msra.mxu0 0
        %1143 = vmatprep.subr.bf16.mxu0 0
        %1144 = vmatpush1.bf16.xpose.msra.mxu0 0
        %1145 = vmatprep.subr.bf16.mxu0 0
        %1146 = vmatpush1.bf16.xpose.msra.mxu0 %v1129
        %1147 = vmatprep.subr.bf16.mxu0 0
        %1148 = vmatpush2.bf16.xpose.msra.mxu0 0
        %1149 = vmatprep.subr.bf16.mxu0 0
        %1150 = vmatpush2.bf16.xpose.msra.mxu0 0
        %1151 = vmatprep.subr.bf16.mxu0 0
        %1152 = vmatpush2.bf16.xpose.msra.mxu0 0
        %1153 = vmatprep.subr.bf16.mxu0 0
        %1154 = vmatpush2.bf16.xpose.msra.mxu0 0
        %1155 = vmatprep.subr.bf16.mxu0 0
        %1156 = vmatpush2.bf16.xpose.msra.mxu0 0
        %1157 = vmatprep.subr.bf16.mxu0 0
        %1158 = vmatpush2.bf16.xpose.msra.mxu0 0
        %1159 = vmatprep.subr.bf16.mxu0 0
        %1160 = vmatpush2.bf16.xpose.msra.mxu0 0
        %1161 = vmatprep.subr.bf16.mxu0 0
        %1162 = vmatpush2.bf16.xpose.msra.mxu0 0
        %1163 = vmatprep.mubr.bf16.mxu0 0
        %1164 = vmatmul.mubr.bf16.gmra.mxu0 %v1126
        %v1165 = vpop.f32.mrf.mxu0
        %v1166 = vadd.f32 0.0, %v1165
        %v1167 = vpop.f32.mrf.mxu0
        %v1168 = vpop.f32.mrf.mxu0
        %v1169 = vpop.f32.mrf.mxu0
        %1170 = vdwg.mxu0
        %v1171 = vsel %vm837, %v1166, -inf
        %1172 = vmax.xlane.f32.xlu0 %v1171
        %v1173 = vpop.xlane.xlu0 %1172
        %v1174 = vsub.f32 %v1166, %v1173
        %v1175 = vmul.f32 %v1174, 1.442695
        %v1176 = vpow.pop %v1175
        %v1177 = vsel %vm837, %v1176, 0.0
        %1178 = vadd.xlane.f32.xlu0 %v1177
        %v1179 = vpop.xlane.xlu0 %1178
        %v1180 = vrcp.pop %v1179
        %v1181 = vmul.f32 %v1176, %v1180
        %v1182 = vpack.c.bf16 %v1181, %v1181
        %1183 = vrot.lane.b32.xlu0 %v789, 32
        %v1184 = vpop.permute.xlu0 %1183
        %v1186 = vsel %vm850, %v1182, 0
        %v1189 = vsel %vm854, %v1184, 0
        %1191 = vmatprep.subr.bf16.mxu0 0
        %1192 = vmatpush1.bf16.msra.mxu0 0
        %1193 = vmatprep.subr.bf16.mxu0 0
        %1194 = vmatpush1.bf16.msra.mxu0 0
        %1195 = vmatprep.subr.bf16.mxu0 0
        %1196 = vmatpush1.bf16.msra.mxu0 0
        %1197 = vmatprep.subr.bf16.mxu0 0
        %1198 = vmatpush1.bf16.msra.mxu0 0
        %1199 = vmatprep.subr.bf16.mxu0 0
        %1200 = vmatpush1.bf16.msra.mxu0 0
        %1201 = vmatprep.subr.bf16.mxu0 0
        %1202 = vmatpush1.bf16.msra.mxu0 0
        %1203 = vmatprep.subr.bf16.mxu0 0
        %1204 = vmatpush1.bf16.msra.mxu0 0
        %1205 = vmatprep.subr.bf16.mxu0 0
        %1206 = vmatpush1.bf16.msra.mxu0 %v1189
        %1207 = vmatprep.subr.bf16.mxu0 0
        %1208 = vmatpush2.bf16.msra.mxu0 0
        %1209 = vmatprep.subr.bf16.mxu0 0
        %1210 = vmatpush2.bf16.msra.mxu0 0
        %1211 = vmatprep.subr.bf16.mxu0 0
        %1212 = vmatpush2.bf16.msra.mxu0 0
        %1213 = vmatprep.subr.bf16.mxu0 0
        %1214 = vmatpush2.bf16.msra.mxu0 0
        %1215 = vmatprep.subr.bf16.mxu0 0
        %1216 = vmatpush2.bf16.msra.mxu0 0
        %1217 = vmatprep.subr.bf16.mxu0 0
        %1218 = vmatpush2.bf16.msra.mxu0 0
        %1219 = vmatprep.subr.bf16.mxu0 0
        %1220 = vmatpush2.bf16.msra.mxu0 0
        %1221 = vmatprep.subr.bf16.mxu0 0
        %1222 = vmatpush2.bf16.msra.mxu0 0
        %1223 = vmatprep.mubr.bf16.mxu0 0
        %1224 = vmatmul.mubr.bf16.gmra.mxu0 %v1186
        %v1225 = vpop.f32.mrf.mxu0
        %v1226 = vadd.f32 0.0, %v1225
        %v1227 = vpop.f32.mrf.mxu0
        %v1228 = vpop.f32.mrf.mxu0
        %v1229 = vpop.f32.mrf.mxu0
        %1230 = vdwg.mxu0
        %1232 = vrot.lane.b32.xlu0 %v1006, 32
        %v1233 = vpop.permute.xlu0 %1232
        %1236 = vrot.lane.b32.xlu0 %v1116, 64
        %v1237 = vpop.permute.xlu0 %1236
        %1240 = vrot.lane.b32.xlu0 %v1226, 96
        %v1241 = vpop.permute.xlu0 %1240
        %v1243 = vsel %vm790, %v893, %v1233
        %vm1244 = vcmask 523264
        %v1245 = vsel %vm1244, %v1243, %v1237
        %vm1246 = vcmask 785408
        %v1247 = vsel %vm1246, %v1245, %v1241
        %v1248 = vpack.c.bf16 %v1247, %v1247
        %v1249 = vld [vmem:[%s5] sm:$0xf]
        %v1250 = vld [vmem:[%s5 + $0x4] sm:$0xf]
        %v1251 = vld [vmem:[%s5 + $0x8] sm:$0xf]
        %v1252 = vld [vmem:[%s5 + $0xc] sm:$0xf]
        %v1253 = vld [vmem:[%s5 + $0x10] sm:$0xf]
        %v1254 = vld [vmem:[%s5 + $0x14] sm:$0xf]
        %v1255 = vld [vmem:[%s5 + $0x18] sm:$0xf]
        %v1256 = vld [vmem:[%s5 + $0x1c] sm:$0xf]
        %v1257 = vld [vmem:[%s5 + $0x20] sm:$0xf]
        %v1258 = vld [vmem:[%s5 + $0x24] sm:$0xf]
        %v1259 = vld [vmem:[%s5 + $0x28] sm:$0xf]
        %v1260 = vld [vmem:[%s5 + $0x2c] sm:$0xf]
        %v1261 = vld [vmem:[%s5 + $0x30] sm:$0xf]
        %v1262 = vld [vmem:[%s5 + $0x34] sm:$0xf]
        %v1263 = vld [vmem:[%s5 + $0x38] sm:$0xf]
        %v1264 = vld [vmem:[%s5 + $0x3c] sm:$0xf]
        %v1265 = vld [vmem:[%s6] sm:$0x1]
        %v1267 = vlaneseq
        %v1268 = vshrl.u32 %v1267, 7
        %v1269 = vsub.s32 0, %v1268
        %v1270 = vrot.slane %v1265, %v1269
        %v1288 = vunpack.c.l.b16 %v1249
        %v1289 = vunpack.c.l.b16 %v1250
        %v1290 = vunpack.c.l.b16 %v1251
        %v1291 = vunpack.c.l.b16 %v1252
        %v1292 = vunpack.c.l.b16 %v1253
        %v1293 = vunpack.c.l.b16 %v1254
        %v1294 = vunpack.c.l.b16 %v1255
        %v1295 = vunpack.c.l.b16 %v1256
        %v1296 = vunpack.c.l.b16 %v1257
        %v1297 = vunpack.c.l.b16 %v1258
        %v1298 = vunpack.c.l.b16 %v1259
        %v1299 = vunpack.c.l.b16 %v1260
        %v1300 = vunpack.c.l.b16 %v1261
        %v1301 = vunpack.c.l.b16 %v1262
        %v1302 = vunpack.c.l.b16 %v1263
        %v1303 = vunpack.c.l.b16 %v1264
        %v1304 = vpack.c.b16 %v1289, %v1288
        %v1305 = vpack.c.b16 %v1291, %v1290
        %v1306 = vpack.c.b16 %v1293, %v1292
        %v1307 = vpack.c.b16 %v1295, %v1294
        %v1308 = vpack.c.b16 %v1297, %v1296
        %v1309 = vpack.c.b16 %v1299, %v1298
        %v1310 = vpack.c.b16 %v1301, %v1300
        %v1311 = vpack.c.b16 %v1303, %v1302
        %1320 = vmatprep.subr.bf16.mxu0 0
        %1321 = vmatpush1.bf16.msra.mxu0 %v1311
        %1322 = vmatprep.subr.bf16.mxu0 0
        %1323 = vmatpush1.bf16.msra.mxu0 %v1310
        %1324 = vmatprep.subr.bf16.mxu0 0
        %1325 = vmatpush1.bf16.msra.mxu0 %v1309
        %1326 = vmatprep.subr.bf16.mxu0 0
        %1327 = vmatpush1.bf16.msra.mxu0 %v1308
        %1328 = vmatprep.subr.bf16.mxu0 0
        %1329 = vmatpush1.bf16.msra.mxu0 %v1307
        %1330 = vmatprep.subr.bf16.mxu0 0
        %1331 = vmatpush1.bf16.msra.mxu0 %v1306
        %1332 = vmatprep.subr.bf16.mxu0 0
        %1333 = vmatpush1.bf16.msra.mxu0 %v1305
        %1334 = vmatprep.subr.bf16.mxu0 0
        %1335 = vmatpush1.bf16.msra.mxu0 %v1304
        %1336 = vmatprep.subr.bf16.mxu0 0
        %1337 = vmatpush2.bf16.msra.mxu0 0
        %1338 = vmatprep.subr.bf16.mxu0 0
        %1339 = vmatpush2.bf16.msra.mxu0 0
        %1340 = vmatprep.subr.bf16.mxu0 0
        %1341 = vmatpush2.bf16.msra.mxu0 0
        %1342 = vmatprep.subr.bf16.mxu0 0
        %1343 = vmatpush2.bf16.msra.mxu0 0
        %1344 = vmatprep.subr.bf16.mxu0 0
        %1345 = vmatpush2.bf16.msra.mxu0 0
        %1346 = vmatprep.subr.bf16.mxu0 0
        %1347 = vmatpush2.bf16.msra.mxu0 0
        %1348 = vmatprep.subr.bf16.mxu0 0
        %1349 = vmatpush2.bf16.msra.mxu0 0
        %1350 = vmatprep.subr.bf16.mxu0 0
        %1351 = vmatpush2.bf16.msra.mxu0 0
        %1352 = vmatprep.mubr.bf16.mxu0 0
        %1353 = vmatmul.mubr.bf16.gmra.mxu0 %v1248
        %v1354 = vpop.f32.mrf.mxu0
        %v1355 = vadd.f32 %v1270, %v1354
        %v1356 = vpop.f32.mrf.mxu0
        %v1357 = vpop.f32.mrf.mxu0
        %v1358 = vpop.f32.mrf.mxu0
        %1359 = vdwg.mxu0
        %v1360 = vadd.f32 %v512, %v1355
        %v1361 = vld [vmem:[%s7] sm:$0x1]
        %v1362 = vld [vmem:[%s8] sm:$0x1]
        %v1363 = vsel %vm515, %v1360, 0.0
        %1364 = vadd.xlane.f32.xlu0 %v1363
        %v1365 = vpop.xlane.xlu0 %1364
        %v1366 = vmul.f32 %v1365, %v519
        %v1367 = vsub.f32 %v1360, %v1366
        %v1368 = vmul.f32 %v1367, %v1367
        %v1369 = vsel %vm515, %v1368, 0.0
        %1370 = vadd.xlane.f32.xlu0 %v1369
        %v1371 = vpop.xlane.xlu0 %1370
        %v1372 = vmul.f32 %v1371, %v519
        %v1373 = vadd.f32 %v1372, 1e-05
        %v1374 = vrsqrt.pop %v1373
        %v1375 = vmul.f32 %v1367, %v1374
        %v1377 = vlaneseq
        %v1378 = vshrl.u32 %v1377, 7
        %v1379 = vsub.s32 0, %v1378
        %v1380 = vrot.slane %v1361, %v1379
        %v1382 = vmul.f32 %v1375, %v1380
        %v1384 = vlaneseq
        %v1385 = vshrl.u32 %v1384, 7
        %v1386 = vsub.s32 0, %v1385
        %v1387 = vrot.slane %v1362, %v1386
        %v1389 = vadd.f32 %v1382, %v1387
        %v1390 = vpack.c.bf16 %v1389, %v1389
        %v1391 = vld [vmem:[%s9] sm:$0xff]
        %v1392 = vld [vmem:[%s9 + $0x8] sm:$0xff]
        %v1393 = vld [vmem:[%s9 + $0x10] sm:$0xff]
        %v1394 = vld [vmem:[%s9 + $0x18] sm:$0xff]
        %v1395 = vld [vmem:[%s9 + $0x20] sm:$0xff]
        %v1396 = vld [vmem:[%s9 + $0x28] sm:$0xff]
        %v1397 = vld [vmem:[%s9 + $0x30] sm:$0xff]
        %v1398 = vld [vmem:[%s9 + $0x38] sm:$0xff]
        %v1399 = vld [vmem:[%s9 + $0x40] sm:$0xff]
        %v1400 = vld [vmem:[%s9 + $0x48] sm:$0xff]
        %v1401 = vld [vmem:[%s9 + $0x50] sm:$0xff]
        %v1402 = vld [vmem:[%s9 + $0x58] sm:$0xff]
        %v1403 = vld [vmem:[%s9 + $0x60] sm:$0xff]
        %v1404 = vld [vmem:[%s9 + $0x68] sm:$0xff]
        %v1405 = vld [vmem:[%s9 + $0x70] sm:$0xff]
        %v1406 = vld [vmem:[%s9 + $0x78] sm:$0xff]
        %v1407 = vld [vmem:[%s9 + $0x80] sm:$0xff]
        %v1408 = vld [vmem:[%s9 + $0x88] sm:$0xff]
        %v1409 = vld [vmem:[%s9 + $0x90] sm:$0xff]
        %v1410 = vld [vmem:[%s9 + $0x98] sm:$0xff]
        %v1411 = vld [vmem:[%s9 + $0xa0] sm:$0xff]
        %v1412 = vld [vmem:[%s9 + $0xa8] sm:$0xff]
        %v1413 = vld [vmem:[%s9 + $0xb0] sm:$0xff]
        %v1414 = vld [vmem:[%s9 + $0xb8] sm:$0xff]
        %v1415 = vld [vmem:[%s9 + $0xc0] sm:$0xff]
        %v1416 = vld [vmem:[%s9 + $0xc8] sm:$0xff]
        %v1417 = vld [vmem:[%s9 + $0xd0] sm:$0xff]
        %v1418 = vld [vmem:[%s9 + $0xd8] sm:$0xff]
        %v1419 = vld [vmem:[%s9 + $0xe0] sm:$0xff]
        %v1420 = vld [vmem:[%s9 + $0xe8] sm:$0xff]
        %v1421 = vld [vmem:[%s9 + $0xf0] sm:$0xff]
        %v1422 = vld [vmem:[%s9 + $0xf8] sm:$0xff]
        %v1423 = vld [vmem:[%s10] sm:$0xf]
        %v1425 = vlaneseq
        %v1426 = vshrl.u32 %v1425, 7
        %v1427 = vsub.s32 0, %v1426
        %v1428 = vrot.slane %v1423, %v1427
        %v1429 = vlaneseq
        %v1430 = vshrl.u32 %v1429, 7
        %v1431 = vsub.s32 1, %v1430
        %v1432 = vrot.slane %v1423, %v1431
        %v1433 = vlaneseq
        %v1434 = vshrl.u32 %v1433, 7
        %v1435 = vsub.s32 2, %v1434
        %v1436 = vrot.slane %v1423, %v1435
        %v1437 = vlaneseq
        %v1438 = vshrl.u32 %v1437, 7
        %v1439 = vsub.s32 3, %v1438
        %v1440 = vrot.slane %v1423, %v1439
        %v1477 = vunpack.c.l.b16 %v1391
        %v1478 = vunpack.c.h.b16 %v1391
        %v1479 = vunpack.c.l.b16 %v1392
        %v1480 = vunpack.c.h.b16 %v1392
        %v1481 = vunpack.c.l.b16 %v1393
        %v1482 = vunpack.c.h.b16 %v1393
        %v1483 = vunpack.c.l.b16 %v1394
        %v1484 = vunpack.c.h.b16 %v1394
        %v1485 = vunpack.c.l.b16 %v1395
        %v1486 = vunpack.c.h.b16 %v1395
        %v1487 = vunpack.c.l.b16 %v1396
        %v1488 = vunpack.c.h.b16 %v1396
        %v1489 = vunpack.c.l.b16 %v1397
        %v1490 = vunpack.c.h.b16 %v1397
        %v1491 = vunpack.c.l.b16 %v1398
        %v1492 = vunpack.c.h.b16 %v1398
        %v1493 = vunpack.c.l.b16 %v1399
        %v1494 = vunpack.c.h.b16 %v1399
        %v1495 = vunpack.c.l.b16 %v1400
        %v1496 = vunpack.c.h.b16 %v1400
        %v1497 = vunpack.c.l.b16 %v1401
        %v1498 = vunpack.c.h.b16 %v1401
        %v1499 = vunpack.c.l.b16 %v1402
        %v1500 = vunpack.c.h.b16 %v1402
        %v1501 = vunpack.c.l.b16 %v1403
        %v1502 = vunpack.c.h.b16 %v1403
        %v1503 = vunpack.c.l.b16 %v1404
        %v1504 = vunpack.c.h.b16 %v1404
        %v1505 = vunpack.c.l.b16 %v1405
        %v1506 = vunpack.c.h.b16 %v1405
        %v1507 = vunpack.c.l.b16 %v1406
        %v1508 = vunpack.c.h.b16 %v1406
        %v1509 = vunpack.c.l.b16 %v1407
        %v1510 = vunpack.c.h.b16 %v1407
        %v1511 = vunpack.c.l.b16 %v1408
        %v1512 = vunpack.c.h.b16 %v1408
        %v1513 = vunpack.c.l.b16 %v1409
        %v1514 = vunpack.c.h.b16 %v1409
        %v1515 = vunpack.c.l.b16 %v1410
        %v1516 = vunpack.c.h.b16 %v1410
        %v1517 = vunpack.c.l.b16 %v1411
        %v1518 = vunpack.c.h.b16 %v1411
        %v1519 = vunpack.c.l.b16 %v1412
        %v1520 = vunpack.c.h.b16 %v1412
        %v1521 = vunpack.c.l.b16 %v1413
        %v1522 = vunpack.c.h.b16 %v1413
        %v1523 = vunpack.c.l.b16 %v1414
        %v1524 = vunpack.c.h.b16 %v1414
        %v1525 = vunpack.c.l.b16 %v1415
        %v1526 = vunpack.c.h.b16 %v1415
        %v1527 = vunpack.c.l.b16 %v1416
        %v1528 = vunpack.c.h.b16 %v1416
        %v1529 = vunpack.c.l.b16 %v1417
        %v1530 = vunpack.c.h.b16 %v1417
        %v1531 = vunpack.c.l.b16 %v1418
        %v1532 = vunpack.c.h.b16 %v1418
        %v1533 = vunpack.c.l.b16 %v1419
        %v1534 = vunpack.c.h.b16 %v1419
        %v1535 = vunpack.c.l.b16 %v1420
        %v1536 = vunpack.c.h.b16 %v1420
        %v1537 = vunpack.c.l.b16 %v1421
        %v1538 = vunpack.c.h.b16 %v1421
        %v1539 = vunpack.c.l.b16 %v1422
        %v1540 = vunpack.c.h.b16 %v1422
        %v1541 = vpack.c.b16 %v1481, %v1477
        %v1542 = vpack.c.b16 %v1482, %v1478
        %v1543 = vpack.c.b16 %v1483, %v1479
        %v1544 = vpack.c.b16 %v1484, %v1480
        %v1545 = vpack.c.b16 %v1489, %v1485
        %v1546 = vpack.c.b16 %v1490, %v1486
        %v1547 = vpack.c.b16 %v1491, %v1487
        %v1548 = vpack.c.b16 %v1492, %v1488
        %v1549 = vpack.c.b16 %v1497, %v1493
        %v1550 = vpack.c.b16 %v1498, %v1494
        %v1551 = vpack.c.b16 %v1499, %v1495
        %v1552 = vpack.c.b16 %v1500, %v1496
        %v1553 = vpack.c.b16 %v1505, %v1501
        %v1554 = vpack.c.b16 %v1506, %v1502
        %v1555 = vpack.c.b16 %v1507, %v1503
        %v1556 = vpack.c.b16 %v1508, %v1504
        %v1557 = vpack.c.b16 %v1513, %v1509
        %v1558 = vpack.c.b16 %v1514, %v1510
        %v1559 = vpack.c.b16 %v1515, %v1511
        %v1560 = vpack.c.b16 %v1516, %v1512
        %v1561 = vpack.c.b16 %v1521, %v1517
        %v1562 = vpack.c.b16 %v1522, %v1518
        %v1563 = vpack.c.b16 %v1523, %v1519
        %v1564 = vpack.c.b16 %v1524, %v1520
        %v1565 = vpack.c.b16 %v1529, %v1525
        %v1566 = vpack.c.b16 %v1530, %v1526
        %v1567 = vpack.c.b16 %v1531, %v1527
        %v1568 = vpack.c.b16 %v1532, %v1528
        %v1569 = vpack.c.b16 %v1537, %v1533
        %v1570 = vpack.c.b16 %v1538, %v1534
        %v1571 = vpack.c.b16 %v1539, %v1535
        %v1572 = vpack.c.b16 %v1540, %v1536
        %1605 = vmatprep.subr.bf16.mxu0 %v1570
        %1606 = vmatpush1.bf16.msra.mxu0 %v1569
        %1607 = vmatprep.subr.bf16.mxu0 %v1566
        %1608 = vmatpush1.bf16.msra.mxu0 %v1565
        %1609 = vmatprep.subr.bf16.mxu0 %v1562
        %1610 = vmatpush1.bf16.msra.mxu0 %v1561
        %1611 = vmatprep.subr.bf16.mxu0 %v1558
        %1612 = vmatpush1.bf16.msra.mxu0 %v1557
        %1613 = vmatprep.subr.bf16.mxu0 %v1554
        %1614 = vmatpush1.bf16.msra.mxu0 %v1553
        %1615 = vmatprep.subr.bf16.mxu0 %v1550
        %1616 = vmatpush1.bf16.msra.mxu0 %v1549
        %1617 = vmatprep.subr.bf16.mxu0 %v1546
        %1618 = vmatpush1.bf16.msra.mxu0 %v1545
        %1619 = vmatprep.subr.bf16.mxu0 %v1542
        %1620 = vmatpush1.bf16.msra.mxu0 %v1541
        %1621 = vmatprep.subr.bf16.mxu0 0
        %1622 = vmatpush2.bf16.msra.mxu0 0
        %1623 = vmatprep.subr.bf16.mxu0 0
        %1624 = vmatpush2.bf16.msra.mxu0 0
        %1625 = vmatprep.subr.bf16.mxu0 0
        %1626 = vmatpush2.bf16.msra.mxu0 0
        %1627 = vmatprep.subr.bf16.mxu0 0
        %1628 = vmatpush2.bf16.msra.mxu0 0
        %1629 = vmatprep.subr.bf16.mxu0 0
        %1630 = vmatpush2.bf16.msra.mxu0 0
        %1631 = vmatprep.subr.bf16.mxu0 0
        %1632 = vmatpush2.bf16.msra.mxu0 0
        %1633 = vmatprep.subr.bf16.mxu0 0
        %1634 = vmatpush2.bf16.msra.mxu0 0
        %1635 = vmatprep.subr.bf16.mxu0 0
        %1636 = vmatpush2.bf16.msra.mxu0 0
        %1637 = vmatprep.mubr.bf16.mxu0 0
        %1638 = vmatmul.mubr.bf16.gmra.mxu0 %v1390
        %v1639 = vpop.f32.mrf.mxu0
        %v1640 = vadd.f32 %v1428, %v1639
        %v1641 = vpop.f32.mrf.mxu0
        %v1642 = vadd.f32 %v1432, %v1641
        %v1643 = vpop.f32.mrf.mxu0
        %v1644 = vpop.f32.mrf.mxu0
        %1645 = vdwg.mxu0
        %1646 = vmatprep.subr.bf16.mxu0 %v1572
        %1647 = vmatpush1.bf16.msra.mxu0 %v1571
        %1648 = vmatprep.subr.bf16.mxu0 %v1568
        %1649 = vmatpush1.bf16.msra.mxu0 %v1567
        %1650 = vmatprep.subr.bf16.mxu0 %v1564
        %1651 = vmatpush1.bf16.msra.mxu0 %v1563
        %1652 = vmatprep.subr.bf16.mxu0 %v1560
        %1653 = vmatpush1.bf16.msra.mxu0 %v1559
        %1654 = vmatprep.subr.bf16.mxu0 %v1556
        %1655 = vmatpush1.bf16.msra.mxu0 %v1555
        %1656 = vmatprep.subr.bf16.mxu0 %v1552
        %1657 = vmatpush1.bf16.msra.mxu0 %v1551
        %1658 = vmatprep.subr.bf16.mxu0 %v1548
        %1659 = vmatpush1.bf16.msra.mxu0 %v1547
        %1660 = vmatprep.subr.bf16.mxu0 %v1544
        %1661 = vmatpush1.bf16.msra.mxu0 %v1543
        %1662 = vmatprep.subr.bf16.mxu0 0
        %1663 = vmatpush2.bf16.msra.mxu0 0
        %1664 = vmatprep.subr.bf16.mxu0 0
        %1665 = vmatpush2.bf16.msra.mxu0 0
        %1666 = vmatprep.subr.bf16.mxu0 0
        %1667 = vmatpush2.bf16.msra.mxu0 0
        %1668 = vmatprep.subr.bf16.mxu0 0
        %1669 = vmatpush2.bf16.msra.mxu0 0
        %1670 = vmatprep.subr.bf16.mxu0 0
        %1671 = vmatpush2.bf16.msra.mxu0 0
        %1672 = vmatprep.subr.bf16.mxu0 0
        %1673 = vmatpush2.bf16.msra.mxu0 0
        %1674 = vmatprep.subr.bf16.mxu0 0
        %1675 = vmatpush2.bf16.msra.mxu0 0
        %1676 = vmatprep.subr.bf16.mxu0 0
        %1677 = vmatpush2.bf16.msra.mxu0 0
        %1678 = vmatprep.mubr.bf16.mxu0 0
        %1679 = vmatmul.mubr.bf16.gmra.mxu0 %v1390
        %v1680 = vpop.f32.mrf.mxu0
        %v1681 = vadd.f32 %v1436, %v1680
        %v1682 = vpop.f32.mrf.mxu0
        %v1683 = vadd.f32 %v1440, %v1682
        %v1684 = vpop.f32.mrf.mxu0
        %v1685 = vpop.f32.mrf.mxu0
        %1686 = vdwg.mxu0
        %v1687 = vmul.f32 %v1640, 0.5
        %v1688 = vmul.f32 %v1642, 0.5
        %v1689 = vmul.f32 %v1681, 0.5
        %v1690 = vmul.f32 %v1683, 0.5
        %v1691 = vmul.f32 %v1640, 0.044715
        %v1692 = vmul.f32 %v1642, 0.044715
        %v1693 = vmul.f32 %v1681, 0.044715
        %v1694 = vmul.f32 %v1683, 0.044715
        %v1695 = vmul.f32 %v1691, %v1640
        %v1696 = vmul.f32 %v1692, %v1642
        %v1697 = vmul.f32 %v1693, %v1681
        %v1698 = vmul.f32 %v1694, %v1683
        %v1699 = vmul.f32 %v1695, %v1640
        %v1700 = vmul.f32 %v1696, %v1642
        %v1701 = vmul.f32 %v1697, %v1681
        %v1702 = vmul.f32 %v1698, %v1683
        %v1703 = vadd.f32 %v1640, %v1699
        %v1704 = vadd.f32 %v1642, %v1700
        %v1705 = vadd.f32 %v1681, %v1701
        %v1706 = vadd.f32 %v1683, %v1702
        %v1707 = vmul.f32 %v1703, 0.7978846
        %v1708 = vmul.f32 %v1704, 0.7978846
        %v1709 = vmul.f32 %v1705, 0.7978846
        %v1710 = vmul.f32 %v1706, 0.7978846
        %v1711 = vtanh.pop %v1707
        %v1712 = vtanh.pop %v1708
        %v1713 = vtanh.pop %v1709
        %v1714 = vtanh.pop %v1710
        %v1715 = vadd.f32 %v1711, 1.0
        %v1716 = vadd.f32 %v1712, 1.0
        %v1717 = vadd.f32 %v1713, 1.0
        %v1718 = vadd.f32 %v1714, 1.0
        %v1719 = vmul.f32 %v1687, %v1715
        %v1720 = vmul.f32 %v1688, %v1716
        %v1721 = vmul.f32 %v1689, %v1717
        %v1722 = vmul.f32 %v1690, %v1718
        %v1723 = vpack.c.bf16 %v1719, %v1719
        %v1724 = vpack.c.bf16 %v1720, %v1720
        %v1725 = vpack.c.bf16 %v1721, %v1721
        %v1726 = vpack.c.bf16 %v1722, %v1722
        %v1727 = vld [vmem:[%s11] sm:$0xf]
        %v1728 = vld [vmem:[%s11 + $0x4] sm:$0xf]
        %v1729 = vld [vmem:[%s11 + $0x8] sm:$0xf]
        %v1730 = vld [vmem:[%s11 + $0xc] sm:$0xf]
        %v1731 = vld [vmem:[%s11 + $0x10] sm:$0xf]
        %v1732 = vld [vmem:[%s11 + $0x14] sm:$0xf]
        %v1733 = vld [vmem:[%s11 + $0x18] sm:$0xf]
        %v1734 = vld [vmem:[%s11 + $0x1c] sm:$0xf]
        %v1735 = vld [vmem:[%s11 + $0x20] sm:$0xf]
        %v1736 = vld [vmem:[%s11 + $0x24] sm:$0xf]
        %v1737 = vld [vmem:[%s11 + $0x28] sm:$0xf]
        %v1738 = vld [vmem:[%s11 + $0x2c] sm:$0xf]
        %v1739 = vld [vmem:[%s11 + $0x30] sm:$0xf]
        %v1740 = vld [vmem:[%s11 + $0x34] sm:$0xf]
        %v1741 = vld [vmem:[%s11 + $0x38] sm:$0xf]
        %v1742 = vld [vmem:[%s11 + $0x3c] sm:$0xf]
        %v1743 = vld [vmem:[%s11 + $0x40] sm:$0xf]
        %v1744 = vld [vmem:[%s11 + $0x44] sm:$0xf]
        %v1745 = vld [vmem:[%s11 + $0x48] sm:$0xf]
        %v1746 = vld [vmem:[%s11 + $0x4c] sm:$0xf]
        %v1747 = vld [vmem:[%s11 + $0x50] sm:$0xf]
        %v1748 = vld [vmem:[%s11 + $0x54] sm:$0xf]
        %v1749 = vld [vmem:[%s11 + $0x58] sm:$0xf]
        %v1750 = vld [vmem:[%s11 + $0x5c] sm:$0xf]
        %v1751 = vld [vmem:[%s11 + $0x60] sm:$0xf]
        %v1752 = vld [vmem:[%s11 + $0x64] sm:$0xf]
        %v1753 = vld [vmem:[%s11 + $0x68] sm:$0xf]
        %v1754 = vld [vmem:[%s11 + $0x6c] sm:$0xf]
        %v1755 = vld [vmem:[%s11 + $0x70] sm:$0xf]
        %v1756 = vld [vmem:[%s11 + $0x74] sm:$0xf]
        %v1757 = vld [vmem:[%s11 + $0x78] sm:$0xf]
        %v1758 = vld [vmem:[%s11 + $0x7c] sm:$0xf]
        %v1759 = vld [vmem:[%s11 + $0x80] sm:$0xf]
        %v1760 = vld [vmem:[%s11 + $0x84] sm:$0xf]
        %v1761 = vld [vmem:[%s11 + $0x88] sm:$0xf]
        %v1762 = vld [vmem:[%s11 + $0x8c] sm:$0xf]
        %v1763 = vld [vmem:[%s11 + $0x90] sm:$0xf]
        %v1764 = vld [vmem:[%s11 + $0x94] sm:$0xf]
        %v1765 = vld [vmem:[%s11 + $0x98] sm:$0xf]
        %v1766 = vld [vmem:[%s11 + $0x9c] sm:$0xf]
        %v1767 = vld [vmem:[%s11 + $0xa0] sm:$0xf]
        %v1768 = vld [vmem:[%s11 + $0xa4] sm:$0xf]
        %v1769 = vld [vmem:[%s11 + $0xa8] sm:$0xf]
        %v1770 = vld [vmem:[%s11 + $0xac] sm:$0xf]
        %v1771 = vld [vmem:[%s11 + $0xb0] sm:$0xf]
        %v1772 = vld [vmem:[%s11 + $0xb4] sm:$0xf]
        %v1773 = vld [vmem:[%s11 + $0xb8] sm:$0xf]
        %v1774 = vld [vmem:[%s11 + $0xbc] sm:$0xf]
        %v1775 = vld [vmem:[%s11 + $0xc0] sm:$0xf]
        %v1776 = vld [vmem:[%s11 + $0xc4] sm:$0xf]
        %v1777 = vld [vmem:[%s11 + $0xc8] sm:$0xf]
        %v1778 = vld [vmem:[%s11 + $0xcc] sm:$0xf]
        %v1779 = vld [vmem:[%s11 + $0xd0] sm:$0xf]
        %v1780 = vld [vmem:[%s11 + $0xd4] sm:$0xf]
        %v1781 = vld [vmem:[%s11 + $0xd8] sm:$0xf]
        %v1782 = vld [vmem:[%s11 + $0xdc] sm:$0xf]
        %v1783 = vld [vmem:[%s11 + $0xe0] sm:$0xf]
        %v1784 = vld [vmem:[%s11 + $0xe4] sm:$0xf]
        %v1785 = vld [vmem:[%s11 + $0xe8] sm:$0xf]
        %v1786 = vld [vmem:[%s11 + $0xec] sm:$0xf]
        %v1787 = vld [vmem:[%s11 + $0xf0] sm:$0xf]
        %v1788 = vld [vmem:[%s11 + $0xf4] sm:$0xf]
        %v1789 = vld [vmem:[%s11 + $0xf8] sm:$0xf]
        %v1790 = vld [vmem:[%s11 + $0xfc] sm:$0xf]
        %v1791 = vld [vmem:[%s12] sm:$0x1]
        %v1793 = vlaneseq
        %v1794 = vshrl.u32 %v1793, 7
        %v1795 = vsub.s32 0, %v1794
        %v1796 = vrot.slane %v1791, %v1795
        %v1862 = vunpack.c.l.b16 %v1727
        %v1863 = vunpack.c.l.b16 %v1728
        %v1864 = vunpack.c.l.b16 %v1729
        %v1865 = vunpack.c.l.b16 %v1730
        %v1866 = vunpack.c.l.b16 %v1731
        %v1867 = vunpack.c.l.b16 %v1732
        %v1868 = vunpack.c.l.b16 %v1733
        %v1869 = vunpack.c.l.b16 %v1734
        %v1870 = vunpack.c.l.b16 %v1735
        %v1871 = vunpack.c.l.b16 %v1736
        %v1872 = vunpack.c.l.b16 %v1737
        %v1873 = vunpack.c.l.b16 %v1738
        %v1874 = vunpack.c.l.b16 %v1739
        %v1875 = vunpack.c.l.b16 %v1740
        %v1876 = vunpack.c.l.b16 %v1741
        %v1877 = vunpack.c.l.b16 %v1742
        %v1878 = vunpack.c.l.b16 %v1743
        %v1879 = vunpack.c.l.b16 %v1744
        %v1880 = vunpack.c.l.b16 %v1745
        %v1881 = vunpack.c.l.b16 %v1746
        %v1882 = vunpack.c.l.b16 %v1747
        %v1883 = vunpack.c.l.b16 %v1748
        %v1884 = vunpack.c.l.b16 %v1749
        %v1885 = vunpack.c.l.b16 %v1750
        %v1886 = vunpack.c.l.b16 %v1751
        %v1887 = vunpack.c.l.b16 %v1752
        %v1888 = vunpack.c.l.b16 %v1753
        %v1889 = vunpack.c.l.b16 %v1754
        %v1890 = vunpack.c.l.b16 %v1755
        %v1891 = vunpack.c.l.b16 %v1756
        %v1892 = vunpack.c.l.b16 %v1757
        %v1893 = vunpack.c.l.b16 %v1758
        %v1894 = vunpack.c.l.b16 %v1759
        %v1895 = vunpack.c.l.b16 %v1760
        %v1896 = vunpack.c.l.b16 %v1761
        %v1897 = vunpack.c.l.b16 %v1762
        %v1898 = vunpack.c.l.b16 %v1763
        %v1899 = vunpack.c.l.b16 %v1764
        %v1900 = vunpack.c.l.b16 %v1765
        %v1901 = vunpack.c.l.b16 %v1766
        %v1902 = vunpack.c.l.b16 %v1767
        %v1903 = vunpack.c.l.b16 %v1768
        %v1904 = vunpack.c.l.b16 %v1769
        %v1905 = vunpack.c.l.b16 %v1770
        %v1906 = vunpack.c.l.b16 %v1771
        %v1907 = vunpack.c.l.b16 %v1772
        %v1908 = vunpack.c.l.b16 %v1773
        %v1909 = vunpack.c.l.b16 %v1774
        %v1910 = vunpack.c.l.b16 %v1775
        %v1911 = vunpack.c.l.b16 %v1776
        %v1912 = vunpack.c.l.b16 %v1777
        %v1913 = vunpack.c.l.b16 %v1778
        %v1914 = vunpack.c.l.b16 %v1779
        %v1915 = vunpack.c.l.b16 %v1780
        %v1916 = vunpack.c.l.b16 %v1781
        %v1917 = vunpack.c.l.b16 %v1782
        %v1918 = vunpack.c.l.b16 %v1783
        %v1919 = vunpack.c.l.b16 %v1784
        %v1920 = vunpack.c.l.b16 %v1785
        %v1921 = vunpack.c.l.b16 %v1786
        %v1922 = vunpack.c.l.b16 %v1787
        %v1923 = vunpack.c.l.b16 %v1788
        %v1924 = vunpack.c.l.b16 %v1789
        %v1925 = vunpack.c.l.b16 %v1790
        %v1926 = vpack.c.b16 %v1863, %v1862
        %v1927 = vpack.c.b16 %v1865, %v1864
        %v1928 = vpack.c.b16 %v1867, %v1866
        %v1929 = vpack.c.b16 %v1869, %v1868
        %v1930 = vpack.c.b16 %v1871, %v1870
        %v1931 = vpack.c.b16 %v1873, %v1872
        %v1932 = vpack.c.b16 %v1875, %v1874
        %v1933 = vpack.c.b16 %v1877, %v1876
        %v1934 = vpack.c.b16 %v1879, %v1878
        %v1935 = vpack.c.b16 %v1881, %v1880
        %v1936 = vpack.c.b16 %v1883, %v1882
        %v1937 = vpack.c.b16 %v1885, %v1884
        %v1938 = vpack.c.b16 %v1887, %v1886
        %v1939 = vpack.c.b16 %v1889, %v1888
        %v1940 = vpack.c.b16 %v1891, %v1890
        %v1941 = vpack.c.b16 %v1893, %v1892
        %v1942 = vpack.c.b16 %v1895, %v1894
        %v1943 = vpack.c.b16 %v1897, %v1896
        %v1944 = vpack.c.b16 %v1899, %v1898
        %v1945 = vpack.c.b16 %v1901, %v1900
        %v1946 = vpack.c.b16 %v1903, %v1902
        %v1947 = vpack.c.b16 %v1905, %v1904
        %v1948 = vpack.c.b16 %v1907, %v1906
        %v1949 = vpack.c.b16 %v1909, %v1908
        %v1950 = vpack.c.b16 %v1911, %v1910
        %v1951 = vpack.c.b16 %v1913, %v1912
        %v1952 = vpack.c.b16 %v1915, %v1914
        %v1953 = vpack.c.b16 %v1917, %v1916
        %v1954 = vpack.c.b16 %v1919, %v1918
        %v1955 = vpack.c.b16 %v1921, %v1920
        %v1956 = vpack.c.b16 %v1923, %v1922
        %v1957 = vpack.c.b16 %v1925, %v1924
        %1990 = vmatprep.subr.bf16.mxu0 0
        %1991 = vmatpush1.bf16.msra.mxu0 %v1933
        %1992 = vmatprep.subr.bf16.mxu0 0
        %1993 = vmatpush1.bf16.msra.mxu0 %v1932
        %1994 = vmatprep.subr.bf16.mxu0 0
        %1995 = vmatpush1.bf16.msra.mxu0 %v1931
        %1996 = vmatprep.subr.bf16.mxu0 0
        %1997 = vmatpush1.bf16.msra.mxu0 %v1930
        %1998 = vmatprep.subr.bf16.mxu0 0
        %1999 = vmatpush1.bf16.msra.mxu0 %v1929
        %2000 = vmatprep.subr.bf16.mxu0 0
        %2001 = vmatpush1.bf16.msra.mxu0 %v1928
        %2002 = vmatprep.subr.bf16.mxu0 0
        %2003 = vmatpush1.bf16.msra.mxu0 %v1927
        %2004 = vmatprep.subr.bf16.mxu0 0
        %2005 = vmatpush1.bf16.msra.mxu0 %v1926
        %2006 = vmatprep.subr.bf16.mxu0 0
        %2007 = vmatpush2.bf16.msra.mxu0 %v1941
        %2008 = vmatprep.subr.bf16.mxu0 0
        %2009 = vmatpush2.bf16.msra.mxu0 %v1940
        %2010 = vmatprep.subr.bf16.mxu0 0
        %2011 = vmatpush2.bf16.msra.mxu0 %v1939
        %2012 = vmatprep.subr.bf16.mxu0 0
        %2013 = vmatpush2.bf16.msra.mxu0 %v1938
        %2014 = vmatprep.subr.bf16.mxu0 0
        %2015 = vmatpush2.bf16.msra.mxu0 %v1937
        %2016 = vmatprep.subr.bf16.mxu0 0
        %2017 = vmatpush2.bf16.msra.mxu0 %v1936
        %2018 = vmatprep.subr.bf16.mxu0 0
        %2019 = vmatpush2.bf16.msra.mxu0 %v1935
        %2020 = vmatprep.subr.bf16.mxu0 0
        %2021 = vmatpush2.bf16.msra.mxu0 %v1934
        %2022 = vmatprep.mubr.bf16.mxu0 %v1724
        %2023 = vmatmul.mubr.bf16.gmra.mxu0 %v1723
        %v2024 = vpop.f32.mrf.mxu0
        %v2025 = vadd.f32 %v1796, %v2024
        %v2026 = vpop.f32.mrf.mxu0
        %v2027 = vpop.f32.mrf.mxu0
        %v2028 = vpop.f32.mrf.mxu0
        %2029 = vdwg.mxu0
        %2030 = vmatprep.subr.bf16.mxu0 0
        %2031 = vmatpush1.bf16.msra.mxu0 %v1949
        %2032 = vmatprep.subr.bf16.mxu0 0
        %2033 = vmatpush1.bf16.msra.mxu0 %v1948
        %2034 = vmatprep.subr.bf16.mxu0 0
        %2035 = vmatpush1.bf16.msra.mxu0 %v1947
        %2036 = vmatprep.subr.bf16.mxu0 0
        %2037 = vmatpush1.bf16.msra.mxu0 %v1946
        %2038 = vmatprep.subr.bf16.mxu0 0
        %2039 = vmatpush1.bf16.msra.mxu0 %v1945
        %2040 = vmatprep.subr.bf16.mxu0 0
        %2041 = vmatpush1.bf16.msra.mxu0 %v1944
        %2042 = vmatprep.subr.bf16.mxu0 0
        %2043 = vmatpush1.bf16.msra.mxu0 %v1943
        %2044 = vmatprep.subr.bf16.mxu0 0
        %2045 = vmatpush1.bf16.msra.mxu0 %v1942
        %2046 = vmatprep.subr.bf16.mxu0 0
        %2047 = vmatpush2.bf16.msra.mxu0 %v1957
        %2048 = vmatprep.subr.bf16.mxu0 0
        %2049 = vmatpush2.bf16.msra.mxu0 %v1956
        %2050 = vmatprep.subr.bf16.mxu0 0
        %2051 = vmatpush2.bf16.msra.mxu0 %v1955
        %2052 = vmatprep.subr.bf16.mxu0 0
        %2053 = vmatpush2.bf16.msra.mxu0 %v1954
        %2054 = vmatprep.subr.bf16.mxu0 0
        %2055 = vmatpush2.bf16.msra.mxu0 %v1953
        %2056 = vmatprep.subr.bf16.mxu0 0
        %2057 = vmatpush2.bf16.msra.mxu0 %v1952
        %2058 = vmatprep.subr.bf16.mxu0 0
        %2059 = vmatpush2.bf16.msra.mxu0 %v1951
        %2060 = vmatprep.subr.bf16.mxu0 0
        %2061 = vmatpush2.bf16.msra.mxu0 %v1950
        %2062 = vmatprep.mubr.bf16.mxu0 %v1726
        %2063 = vmatmul.mubr.bf16.gmra.mxu0 %v1725
        %v2064 = vpop.f32.mrf.mxu0
        %v2065 = vadd.f32 %v2025, %v2064
        %v2066 = vpop.f32.mrf.mxu0
        %v2067 = vpop.f32.mrf.mxu0
        %v2068 = vpop.f32.mrf.mxu0
        %2069 = vdwg.mxu0
        %v2070 = vadd.f32 %v1360, %v2065
        %v2071 = vld [vmem:[%s13] sm:$0x1]
        %v2072 = vld [vmem:[%s14] sm:$0x1]
        %v2073 = vsel %vm515, %v2070, 0.0
        %2074 = vadd.xlane.f32.xlu0 %v2073
        %v2075 = vpop.xlane.xlu0 %2074
        %v2076 = vmul.f32 %v2075, %v519
        %v2077 = vsub.f32 %v2070, %v2076
        %v2078 = vmul.f32 %v2077, %v2077
        %v2079 = vsel %vm515, %v2078, 0.0
        %2080 = vadd.xlane.f32.xlu0 %v2079
        %v2081 = vpop.xlane.xlu0 %2080
        %v2082 = vmul.f32 %v2081, %v519
        %v2083 = vadd.f32 %v2082, 1e-05
        %v2084 = vrsqrt.pop %v2083
        %v2085 = vmul.f32 %v2077, %v2084
        %v2087 = vlaneseq
        %v2088 = vshrl.u32 %v2087, 7
        %v2089 = vsub.s32 0, %v2088
        %v2090 = vrot.slane %v2071, %v2089
        %v2092 = vmul.f32 %v2085, %v2090
        %v2094 = vlaneseq
        %v2095 = vshrl.u32 %v2094, 7
        %v2096 = vsub.s32 0, %v2095
        %v2097 = vrot.slane %v2072, %v2096
        %v2099 = vadd.f32 %v2092, %v2097
        %2100 = vst [vmem:[%s498] sm:$0xf] %v2099
        %s2101 = sand.u32 %s362, 1
        %s2102 = scalar_lea.sflag [#allocation3], %s2101
        %s2103 = sand.u32 %s362, 1
        %s2104 = smul.addr %s2103, 4
        %s2105 = scalar_lea.vmem [#allocation2], %s2104
        // Predicated region
        $region81: #{point_transformer_forward.7} parent=79 // pred_check
          %p2106 = pneg %p372
        $region82: #{point_transformer_forward.7} parent=79 // pred_check_branch
          %2108 = sbr.rel (%p2106) target = $region84
        $region83: #{point_transformer_forward.7} parent=79 // pred_region
          %s2110 = ssub.s32 64, 64
          %2111 = vsyncadd %s2102, %s2110
          %s2112 = smul.addr %s29, 64
          %s2113 = scalar_lea.hbm %s15, %s2112
          %s2115 = sshll.u32 %s2105, 4
          %s2116 = int_to_ptr.vmem [resolvable:$true] %s2115
          %2118 = dma.vmem_to_hbm [thread:$0]  %s2116, 64, %s2113, %s2102
        $region84: #{point_transformer_forward.7} parent=79 // pred_fallthru
          _
      $region80: #{point_transformer_forward.7} parent=5 // pred_fallthru
        _
      %p2119 = scmp.le.s32.totalorder 2, %s24
      // Predicated region
      $region85: #{point_transformer_forward.7} parent=5 // pred_check
        %p2120 = pneg %p2119
      $region86: #{point_transformer_forward.7} parent=5 // pred_check_branch
        %2122 = sbr.rel (%p2120) target = $region88
      $region87: #{point_transformer_forward.7} parent=5 // pred_region
        %s2123 = ssub.s32 %s24, 2
        // Predicated region
        $region89: #{point_transformer_forward.7} parent=87 // pred_check
          %p2124 = pneg %p378
        $region90: #{point_transformer_forward.7} parent=87 // pred_check_branch
          %2126 = sbr.rel (%p2124) target = $region92
        $region91: #{point_transformer_forward.7} parent=87 // pred_region
          %s2127 = sand.u32 %s363, 1
          %s2128 = scalar_lea.sflag [#allocation3], %s2127
          %s2129 = sand.u32 %s363, 1
          %s2130 = smul.addr %s2129, 4
          %s2131 = scalar_lea.vmem [#allocation2], %s2130
          %2132 = dma.done %s2128, 64
        $region92: #{point_transformer_forward.7} parent=87 // pred_fallthru
          _
      $region88: #{point_transformer_forward.7} parent=5 // pred_fallthru
        _
    $region6: #{point_transformer_forward.7} parent=1 // loop_footer
      %s28 = sadd.s32 1, %s24
    $region7: #{point_transformer_forward.7} parent=1 // loop_footer_branch
      %23 = sbr.rel target = $region3
    $region8: #{point_transformer_forward.7} parent=1 // loop_exit
      _
    %2133 = vsyncpa [#allocation3], 1
    %s2134 = scalar_lea.sflag [#allocation3], 1
    %2135 = vsyncpa %s2134, 1

</llo_original>
